<compile_context>
chip_gen: v7x
topology: tpu7x:2x2x1
jax: 0.10.0
libtpu: 0.0.40
codegen_flags: <defaults>
</compile_context>

<pallas_src>
import functools

import jax
import jax.numpy as jnp
from jax import lax
from jax.experimental import pallas as pl
from jax.experimental.pallas import tpu as pltpu

BN_EPS = 1e-5


# --------------------------- in-kernel helpers -------------------------------

def _window_max(src, k, size):
    """Dense k x k window max: out[r, c] = max over window with top-left (r, c).
    `src` may be a 2-D ref or a 2-D value; only contiguous static slices used."""
    dm = src[0:size, 0:size]
    for dy in range(k):
        for dx in range(k):
            if dy == 0 and dx == 0:
                continue
            dm = jnp.maximum(dm, src[dy:dy + size, dx:dx + size])
    return dm


def _depthwise3x3(src_ref, dst_ref, w_ref, b_ref, channels, n_batch, oh, ow):
    """Depthwise 3x3 conv, stride 1.  src_ref: (C, N, oh+2, ow+2) zero-padded,
    dst_ref: (C, N, oh, ow), w_ref: (C, 9) SMEM, b_ref: (C,) SMEM."""
    def body(c, carry):
        for n in range(n_batch):
            acc = jnp.zeros((oh, ow), jnp.float32) + b_ref[c]
            for dy in range(3):
                for dx in range(3):
                    acc = acc + w_ref[c, 3 * dy + dx] * src_ref[c, n, dy:dy + oh, dx:dx + ow]
            dst_ref[c, n, :, :] = acc
        return carry
    lax.fori_loop(0, channels, body, 0)


def _pw_bn_relu_params(co, src_ref, tmp_ref, w_ref, b_ref, g_ref, beta_ref,
                       cin, n_batch, h, w):
    """Output channel `co` of a 1x1 conv (padding=1) + training-mode BatchNorm2d.
    Writes the pre-BN interior (N, h, w) into tmp_ref and returns
    (scale, shift, border) such that  y = relu(v * scale + shift)  for the
    interior and y = border for the padding ring.  The padding ring (value ==
    conv bias) is included in the batch statistics analytically, matching
    PyTorch Conv2d(padding=1) + BatchNorm2d exactly."""
    bias = b_ref[co]
    n_border = float(n_batch * ((h + 2) * (w + 2) - h * w))
    total = float(n_batch * (h + 2) * (w + 2))

    ssum = 0.0
    for n in range(n_batch):
        acc = jnp.zeros((h, w), jnp.float32) + bias
        for ci in range(cin):
            acc = acc + w_ref[co, ci] * src_ref[ci, n, :, :]
        tmp_ref[n, :, :] = acc
        ssum = ssum + jnp.sum(acc)
    mean = (ssum + n_border * bias) / total

    svar = n_border * (bias - mean) * (bias - mean)
    for n in range(n_batch):
        d = tmp_ref[n, :, :] - mean
        svar = svar + jnp.sum(d * d)
    var = svar / total

    scale = g_ref[co] * lax.rsqrt(var + BN_EPS)
    shift = beta_ref[co] - mean * scale
    border = jnp.maximum(bias * scale + shift, 0.0)
    return scale, shift, border


def _pool_select(stage_ref, colsel_ref, rowsel_ref):
    """Exact stride-k subsample of per-image dense window maxes (stacked in
    stage_ref, shape (N*S, S)) via 0/1 selection matmuls."""
    t = jnp.dot(stage_ref[...], colsel_ref[...], preferred_element_type=jnp.float32)
    return jnp.dot(rowsel_ref[...], t, preferred_element_type=jnp.float32)


# --------------------------- fused kernel ------------------------------------

def _fused_kernel(xp_ref,
                  dw1_w_ref, dw1_b_ref,
                  pw1_w_ref, pw1_b_ref, bn1_g_ref, bn1_b_ref,
                  dw2_w_ref, dw2_b_ref,
                  pw2_w_ref, pw2_b_ref, bn2_g_ref, bn2_b_ref,
                  fc_w_ref, fc_b_ref,
                  sw1_ref, sh1_ref, sw3_ref, sh3_ref, sw2_ref, sh2_ref,
                  out_ref,
                  dw1_out, tmp1, padb, stage1,
                  pad2, dw2_out, tmp2, padc, stage3, stage2,
                  *, n_batch):
    N = n_batch

    # dw2 padded-input buffer: zero border (padding=1); interior written below.
    pad2[...] = jnp.zeros(pad2.shape, jnp.float32)

    # ---- stage A: dw1 (depthwise 3x3, 3 channels, 96x96) ---------------------
    _depthwise3x3(xp_ref, dw1_out, dw1_w_ref, dw1_b_ref, 3, N, 96, 96)

    # ---- stage B: pw1 + bn1 + relu + maxpool2 --------------------------------
    def stage_b(co, carry):
        scale, shift, border = _pw_bn_relu_params(
            co, dw1_out, tmp1, pw1_w_ref, pw1_b_ref, bn1_g_ref, bn1_b_ref,
            cin=3, n_batch=N, h=96, w=96)
        for n in range(N):
            y = jnp.maximum(tmp1[n, :, :] * scale + shift, 0.0)
            padb[...] = jnp.zeros((98, 98), jnp.float32) + border
            padb[1:97, 1:97] = y
            stage1[n * 97:(n + 1) * 97, :] = _window_max(padb, 2, 97)
        pooled = _pool_select(stage1, sw1_ref, sh1_ref)            # (N*49, 49)
        for n in range(N):
            pad2[co, n, 1:50, 1:50] = pooled[n * 49:(n + 1) * 49, :]
        return carry
    lax.fori_loop(0, 12, stage_b, 0)

    # ---- stage C: dw2 (depthwise 3x3, 12 channels, 49x49) --------------------
    _depthwise3x3(pad2, dw2_out, dw2_w_ref, dw2_b_ref, 12, N, 49, 49)

    # ---- stage D: pw2 + bn2 + relu + maxpool3 + maxpool2 + fc1 ---------------
    rows = lax.broadcasted_iota(jnp.int32, (N, 4), 0)
    cols = lax.broadcasted_iota(jnp.int32, (N, 4), 1)
    onehot = [[jnp.where((rows == n) & (cols == f), 1.0, 0.0)
               for f in range(4)] for n in range(N)]

    def stage_d(co, fc_acc):
        scale, shift, border = _pw_bn_relu_params(
            co, dw2_out, tmp2, pw2_w_ref, pw2_b_ref, bn2_g_ref, bn2_b_ref,
            cin=12, n_batch=N, h=49, w=49)
        for n in range(N):
            y = jnp.maximum(tmp2[n, :, :] * scale + shift, 0.0)
            padc[...] = jnp.zeros((51, 51), jnp.float32) + border
            padc[1:50, 1:50] = y
            stage3[n * 49:(n + 1) * 49, :] = _window_max(padc, 3, 49)
        p17 = _pool_select(stage3, sw3_ref, sh3_ref)               # (N*17, 17)
        for n in range(N):
            blk = p17[n * 17:(n + 1) * 17, :]
            stage2[n * 16:(n + 1) * 16, :] = _window_max(blk, 2, 16)
        p8 = _pool_select(stage2, sw2_ref, sh2_ref)                # (N*8, 8)
        upd = fc_acc
        for n in range(N):
            blk8 = p8[n * 8:(n + 1) * 8, :]
            for f in range(4):
                val = jnp.sum(blk8 * fc_w_ref[co, f, :, :])
                upd = upd + val * onehot[n][f]
        return upd

    fc_acc = lax.fori_loop(0, 32, stage_d, jnp.zeros((N, 4), jnp.float32))
    out_ref[...] = fc_acc + fc_b_ref[...]


# --------------------------- wrapper ------------------------------------------

def _col_select(size, k, out_len):
    r = jnp.arange(size)[:, None]
    c = jnp.arange(out_len)[None, :]
    return (r == k * c).astype(jnp.float32)


def _row_select(n_batch, out_per, k, size_per):
    r = jnp.arange(n_batch * out_per)[:, None]
    c = jnp.arange(n_batch * size_per)[None, :]
    target = (r // out_per) * size_per + k * (r % out_per)
    return (c == target).astype(jnp.float32)


def bearing_forward(x, p):
    """x: (N, 3, 96, 96) float32 -> (N, 4) float32."""
    N = x.shape[0]
    assert x.shape[1:] == (3, 96, 96), "fc1(in_features=2048) requires 3x96x96 input"

    # Single one-time relayout: channel-major, zero-padded input for dw1.
    xp = jnp.pad(x, ((0, 0), (0, 0), (1, 1), (1, 1))).transpose(1, 0, 2, 3)  # (3,N,98,98)

    # 0/1 selection matrices for the exact stride-k maxpool subsamples.
    sw1 = _col_select(97, 2, 49)
    sh1 = _row_select(N, 49, 2, 97)
    sw3 = _col_select(49, 3, 17)
    sh3 = _row_select(N, 17, 3, 49)
    sw2 = _col_select(16, 2, 8)
    sh2 = _row_select(N, 8, 2, 16)

    # fc1 weight regrouped so row co*64 + i*8 + j maps to [co, :, i, j]
    # (matches PyTorch's .view(-1, 2048) flatten order of (32, 8, 8)).
    fc_w4 = p["fc1_w"].reshape(32, 8, 8, 4).transpose(0, 3, 1, 2)  # (32, 4, 8, 8)
    fc_b2 = p["fc1_b"].reshape(1, 4)

    smem = pl.BlockSpec(memory_space=pltpu.MemorySpace.SMEM)
    vmem = pl.BlockSpec(memory_space=pltpu.MemorySpace.VMEM)

    out = pl.pallas_call(
        functools.partial(_fused_kernel, n_batch=N),
        out_shape=jax.ShapeDtypeStruct((N, 4), jnp.float32),
        in_specs=[vmem,                               # padded input (3, N, 98, 98)
                  smem, smem,                         # dw1 w, b
                  smem, smem, smem, smem,             # pw1 w, b, bn1 gamma, beta
                  smem, smem,                         # dw2 w, b
                  smem, smem, smem, smem,             # pw2 w, b, bn2 gamma, beta
                  vmem, vmem,                         # fc1 w (regrouped), fc1 b
                  vmem, vmem, vmem, vmem, vmem, vmem],  # pool selection matrices
        out_specs=vmem,
        scratch_shapes=[
            pltpu.VMEM((3, N, 96, 96), jnp.float32),    # dw1 output
            pltpu.VMEM((N, 96, 96), jnp.float32),       # pw1 pre-BN interior
            pltpu.VMEM((98, 98), jnp.float32),          # padded bn1/relu output
            pltpu.VMEM((N * 97, 97), jnp.float32),      # dense window max (pool 2x2 #1)
            pltpu.VMEM((12, N, 51, 51), jnp.float32),   # dw2 padded input
            pltpu.VMEM((12, N, 49, 49), jnp.float32),   # dw2 output
            pltpu.VMEM((N, 49, 49), jnp.float32),       # pw2 pre-BN interior
            pltpu.VMEM((51, 51), jnp.float32),          # padded bn2/relu output
            pltpu.VMEM((N * 49, 49), jnp.float32),      # dense window max (pool 3x3)
            pltpu.VMEM((N * 16, 16), jnp.float32),      # dense window max (pool 2x2 #2)
        ],
        compiler_params=pltpu.CompilerParams(vmem_limit_bytes=32 * 1024 * 1024),
    )(xp,
      p["dw1_w"].reshape(3, 9), p["dw1_b"],
      p["pw1_w"], p["pw1_b"], p["bn1_g"], p["bn1_b"],
      p["dw2_w"].reshape(12, 9), p["dw2_b"],
      p["pw2_w"], p["pw2_b"], p["bn2_g"], p["bn2_b"],
      fc_w4, fc_b2,
      sw1, sh1, sw3, sh3, sw2, sh2)
    return out


def init_params(key):
    ks = jax.random.split(key, 10)
    f32 = jnp.float32
    return {
        "dw1_w": 0.2 * jax.random.normal(ks[0], (3, 3, 3), f32),
        "dw1_b": 0.1 * jax.random.normal(ks[1], (3,), f32),
        "pw1_w": 0.2 * jax.random.normal(ks[2], (12, 3), f32),
        "pw1_b": 0.1 * jax.random.normal(ks[3], (12,), f32),
        "bn1_g": jnp.ones((12,), f32),
        "bn1_b": jnp.zeros((12,), f32),
        "dw2_w": 0.2 * jax.random.normal(ks[4], (12, 3, 3), f32),
        "dw2_b": 0.1 * jax.random.normal(ks[5], (12,), f32),
        "pw2_w": 0.2 * jax.random.normal(ks[6], (32, 12), f32),
        "pw2_b": 0.1 * jax.random.normal(ks[7], (32,), f32),
        "bn2_g": jnp.ones((32,), f32),
        "bn2_b": jnp.zeros((32,), f32),
        "fc1_w": 0.05 * jax.random.normal(ks[8], (2048, 4), f32),
        "fc1_b": 0.05 * jax.random.normal(ks[9], (4,), f32),
    }


if __name__ == "__main__":
    key = jax.random.PRNGKey(0)
    kx, kp = jax.random.split(key)
    # fc1 (in_features=2048) forces 32*8*8 after pooling -> input must be 3x96x96.
    x = jax.random.normal(kx, (2, 3, 96, 96), jnp.float32)
    params = init_params(kp)

    fwd = jax.jit(lambda xx: bearing_forward(xx, params))
    out = fwd(x)
    jax.block_until_ready(out)
    assert out.shape == (2, 4) and out.dtype == jnp.float32
    print("KERNEL_OK")
</pallas_src>

<mosaic_0001>
module attributes {stable_mosaic.version = 11 : i64} {
  func.func @_fused_kernel(%arg0: memref<3x2x98x98xf32, #tpu.memory_space<vmem>>, %arg1: memref<3x9xf32, #tpu.memory_space<smem>>, %arg2: memref<3xf32, #tpu.memory_space<smem>>, %arg3: memref<12x3xf32, #tpu.memory_space<smem>>, %arg4: memref<12xf32, #tpu.memory_space<smem>>, %arg5: memref<12xf32, #tpu.memory_space<smem>>, %arg6: memref<12xf32, #tpu.memory_space<smem>>, %arg7: memref<12x9xf32, #tpu.memory_space<smem>>, %arg8: memref<12xf32, #tpu.memory_space<smem>>, %arg9: memref<32x12xf32, #tpu.memory_space<smem>>, %arg10: memref<32xf32, #tpu.memory_space<smem>>, %arg11: memref<32xf32, #tpu.memory_space<smem>>, %arg12: memref<32xf32, #tpu.memory_space<smem>>, %arg13: memref<32x4x8x8xf32, #tpu.memory_space<vmem>>, %arg14: memref<1x4xf32, #tpu.memory_space<vmem>>, %arg15: memref<97x49xf32, #tpu.memory_space<vmem>>, %arg16: memref<98x194xf32, #tpu.memory_space<vmem>>, %arg17: memref<49x17xf32, #tpu.memory_space<vmem>>, %arg18: memref<34x98xf32, #tpu.memory_space<vmem>>, %arg19: memref<16x8xf32, #tpu.memory_space<vmem>>, %arg20: memref<16x32xf32, #tpu.memory_space<vmem>>, %arg21: memref<2x4xf32, #tpu.memory_space<vmem>>, %arg22: memref<3x2x96x96xf32, #tpu.memory_space<vmem>>, %arg23: memref<2x96x96xf32, #tpu.memory_space<vmem>>, %arg24: memref<98x98xf32, #tpu.memory_space<vmem>>, %arg25: memref<194x97xf32, #tpu.memory_space<vmem>>, %arg26: memref<12x2x51x51xf32, #tpu.memory_space<vmem>>, %arg27: memref<12x2x49x49xf32, #tpu.memory_space<vmem>>, %arg28: memref<2x49x49xf32, #tpu.memory_space<vmem>>, %arg29: memref<51x51xf32, #tpu.memory_space<vmem>>, %arg30: memref<98x49xf32, #tpu.memory_space<vmem>>, %arg31: memref<32x16xf32, #tpu.memory_space<vmem>>) attributes {dimension_semantics = [], scalar_prefetch = 0 : i64, scratch_operands = 10 : i64, tpu.core_type = #tpu.core_type<tc>} {
    %cst = arith.constant 0.000000e+00 : f32
    %0 = vector.broadcast %cst : f32 to vector<12x2x51x51xf32>
    %c0 = arith.constant 0 : index
    %c0_0 = arith.constant 0 : index
    %c0_1 = arith.constant 0 : index
    %c0_2 = arith.constant 0 : index
    %1 = vector.load %arg26[%c0, %c0_0, %c0_1, %c0_2] : memref<12x2x51x51xf32, #tpu.memory_space<vmem>>, vector<12x2x51x51xf32>
    tpu.vector_store %arg26[%c0, %c0_0, %c0_1, %c0_2], %0 {strides = array<i32>} : memref<12x2x51x51xf32, #tpu.memory_space<vmem>>, vector<12x2x51x51xf32>,
    %c0_i32 = arith.constant 0 : i32
    %c3_i32 = arith.constant 3 : i32
    %2 = arith.addi %c0_i32, %c3_i32 : i32
    %c1_i32 = arith.constant 1 : i32
    scf.for %arg32 = %c0_i32 to %2 step %c1_i32  : i32 {
      %cst_50 = arith.constant 0.000000e+00 : f32
      %78 = vector.broadcast %cst_50 : f32 to vector<96x96xf32>
      %79 = arith.index_cast %arg32 : i32 to index
      %80 = memref.load %arg2[%79] : memref<3xf32, #tpu.memory_space<smem>>
      %81 = vector.broadcast %80 : f32 to vector<96x96xf32>
      %82 = arith.addf %78, %81 : vector<96x96xf32>
      %83 = arith.index_cast %arg32 : i32 to index
      %c0_51 = arith.constant 0 : index
      %84 = memref.load %arg1[%83, %c0_51] : memref<3x9xf32, #tpu.memory_space<smem>>
      %85 = arith.index_cast %arg32 : i32 to index
      %c0_52 = arith.constant 0 : index
      %c0_53 = arith.constant 0 : index
      %c0_54 = arith.constant 0 : index
      %86 = vector.load %arg0[%85, %c0_52, %c0_53, %c0_54] : memref<3x2x98x98xf32, #tpu.memory_space<vmem>>, vector<1x1x96x96xf32>
      %87 = vector.shape_cast %86 : vector<1x1x96x96xf32> to vector<96x96xf32>
      %88 = vector.broadcast %84 : f32 to vector<96x96xf32>
      %89 = arith.mulf %88, %87 : vector<96x96xf32>
      %90 = arith.addf %82, %89 : vector<96x96xf32>
      %91 = arith.index_cast %arg32 : i32 to index
      %c1 = arith.constant 1 : index
      %92 = memref.load %arg1[%91, %c1] : memref<3x9xf32, #tpu.memory_space<smem>>
      %93 = arith.index_cast %arg32 : i32 to index
      %c0_55 = arith.constant 0 : index
      %c0_56 = arith.constant 0 : index
      %c1_57 = arith.constant 1 : index
      %94 = vector.load %arg0[%93, %c0_55, %c0_56, %c1_57] : memref<3x2x98x98xf32, #tpu.memory_space<vmem>>, vector<1x1x96x96xf32>
      %95 = vector.shape_cast %94 : vector<1x1x96x96xf32> to vector<96x96xf32>
      %96 = vector.broadcast %92 : f32 to vector<96x96xf32>
      %97 = arith.mulf %96, %95 : vector<96x96xf32>
      %98 = arith.addf %90, %97 : vector<96x96xf32>
      %99 = arith.index_cast %arg32 : i32 to index
      %c2 = arith.constant 2 : index
      %100 = memref.load %arg1[%99, %c2] : memref<3x9xf32, #tpu.memory_space<smem>>
      %101 = arith.index_cast %arg32 : i32 to index
      %c0_58 = arith.constant 0 : index
      %c0_59 = arith.constant 0 : index
      %c2_60 = arith.constant 2 : index
      %102 = vector.load %arg0[%101, %c0_58, %c0_59, %c2_60] : memref<3x2x98x98xf32, #tpu.memory_space<vmem>>, vector<1x1x96x96xf32>
      %103 = vector.shape_cast %102 : vector<1x1x96x96xf32> to vector<96x96xf32>
      %104 = vector.broadcast %100 : f32 to vector<96x96xf32>
      %105 = arith.mulf %104, %103 : vector<96x96xf32>
      %106 = arith.addf %98, %105 : vector<96x96xf32>
      %107 = arith.index_cast %arg32 : i32 to index
      %c3 = arith.constant 3 : index
      %108 = memref.load %arg1[%107, %c3] : memref<3x9xf32, #tpu.memory_space<smem>>
      %109 = arith.index_cast %arg32 : i32 to index
      %c0_61 = arith.constant 0 : index
      %c1_62 = arith.constant 1 : index
      %c0_63 = arith.constant 0 : index
      %110 = vector.load %arg0[%109, %c0_61, %c1_62, %c0_63] : memref<3x2x98x98xf32, #tpu.memory_space<vmem>>, vector<1x1x96x96xf32>
      %111 = vector.shape_cast %110 : vector<1x1x96x96xf32> to vector<96x96xf32>
      %112 = vector.broadcast %108 : f32 to vector<96x96xf32>
      %113 = arith.mulf %112, %111 : vector<96x96xf32>
      %114 = arith.addf %106, %113 : vector<96x96xf32>
      %115 = arith.index_cast %arg32 : i32 to index
      %c4 = arith.constant 4 : index
      %116 = memref.load %arg1[%115, %c4] : memref<3x9xf32, #tpu.memory_space<smem>>
      %117 = arith.index_cast %arg32 : i32 to index
      %c0_64 = arith.constant 0 : index
      %c1_65 = arith.constant 1 : index
      %c1_66 = arith.constant 1 : index
      %118 = vector.load %arg0[%117, %c0_64, %c1_65, %c1_66] : memref<3x2x98x98xf32, #tpu.memory_space<vmem>>, vector<1x1x96x96xf32>
      %119 = vector.shape_cast %118 : vector<1x1x96x96xf32> to vector<96x96xf32>
      %120 = vector.broadcast %116 : f32 to vector<96x96xf32>
      %121 = arith.mulf %120, %119 : vector<96x96xf32>
      %122 = arith.addf %114, %121 : vector<96x96xf32>
      %123 = arith.index_cast %arg32 : i32 to index
      %c5 = arith.constant 5 : index
      %124 = memref.load %arg1[%123, %c5] : memref<3x9xf32, #tpu.memory_space<smem>>
      %125 = arith.index_cast %arg32 : i32 to index
      %c0_67 = arith.constant 0 : index
      %c1_68 = arith.constant 1 : index
      %c2_69 = arith.constant 2 : index
      %126 = vector.load %arg0[%125, %c0_67, %c1_68, %c2_69] : memref<3x2x98x98xf32, #tpu.memory_space<vmem>>, vector<1x1x96x96xf32>
      %127 = vector.shape_cast %126 : vector<1x1x96x96xf32> to vector<96x96xf32>
      %128 = vector.broadcast %124 : f32 to vector<96x96xf32>
      %129 = arith.mulf %128, %127 : vector<96x96xf32>
      %130 = arith.addf %122, %129 : vector<96x96xf32>
      %131 = arith.index_cast %arg32 : i32 to index
      %c6 = arith.constant 6 : index
      %132 = memref.load %arg1[%131, %c6] : memref<3x9xf32, #tpu.memory_space<smem>>
      %133 = arith.index_cast %arg32 : i32 to index
      %c0_70 = arith.constant 0 : index
      %c2_71 = arith.constant 2 : index
      %c0_72 = arith.constant 0 : index
      %134 = vector.load %arg0[%133, %c0_70, %c2_71, %c0_72] : memref<3x2x98x98xf32, #tpu.memory_space<vmem>>, vector<1x1x96x96xf32>
      %135 = vector.shape_cast %134 : vector<1x1x96x96xf32> to vector<96x96xf32>
      %136 = vector.broadcast %132 : f32 to vector<96x96xf32>
      %137 = arith.mulf %136, %135 : vector<96x96xf32>
      %138 = arith.addf %130, %137 : vector<96x96xf32>
      %139 = arith.index_cast %arg32 : i32 to index
      %c7 = arith.constant 7 : index
      %140 = memref.load %arg1[%139, %c7] : memref<3x9xf32, #tpu.memory_space<smem>>
      %141 = arith.index_cast %arg32 : i32 to index
      %c0_73 = arith.constant 0 : index
      %c2_74 = arith.constant 2 : index
      %c1_75 = arith.constant 1 : index
      %142 = vector.load %arg0[%141, %c0_73, %c2_74, %c1_75] : memref<3x2x98x98xf32, #tpu.memory_space<vmem>>, vector<1x1x96x96xf32>
      %143 = vector.shape_cast %142 : vector<1x1x96x96xf32> to vector<96x96xf32>
      %144 = vector.broadcast %140 : f32 to vector<96x96xf32>
      %145 = arith.mulf %144, %143 : vector<96x96xf32>
      %146 = arith.addf %138, %145 : vector<96x96xf32>
      %147 = arith.index_cast %arg32 : i32 to index
      %c8 = arith.constant 8 : index
      %148 = memref.load %arg1[%147, %c8] : memref<3x9xf32, #tpu.memory_space<smem>>
      %149 = arith.index_cast %arg32 : i32 to index
      %c0_76 = arith.constant 0 : index
      %c2_77 = arith.constant 2 : index
      %c2_78 = arith.constant 2 : index
      %150 = vector.load %arg0[%149, %c0_76, %c2_77, %c2_78] : memref<3x2x98x98xf32, #tpu.memory_space<vmem>>, vector<1x1x96x96xf32>
      %151 = vector.shape_cast %150 : vector<1x1x96x96xf32> to vector<96x96xf32>
      %152 = vector.broadcast %148 : f32 to vector<96x96xf32>
      %153 = arith.mulf %152, %151 : vector<96x96xf32>
      %154 = arith.addf %146, %153 : vector<96x96xf32>
      %155 = arith.index_cast %arg32 : i32 to index
      %c0_79 = arith.constant 0 : index
      %c0_80 = arith.constant 0 : index
      %c0_81 = arith.constant 0 : index
      %156 = vector.load %arg22[%155, %c0_79, %c0_80, %c0_81] : memref<3x2x96x96xf32, #tpu.memory_space<vmem>>, vector<1x1x96x96xf32>
      %157 = vector.shape_cast %156 : vector<1x1x96x96xf32> to vector<96x96xf32>
      %158 = vector.shape_cast %154 : vector<96x96xf32> to vector<1x1x96x96xf32>
      tpu.vector_store %arg22[%155, %c0_79, %c0_80, %c0_81], %158 {strides = array<i32>} : memref<3x2x96x96xf32, #tpu.memory_space<vmem>>, vector<1x1x96x96xf32>,
      %cst_82 = arith.constant 0.000000e+00 : f32
      %159 = vector.broadcast %cst_82 : f32 to vector<96x96xf32>
      %160 = arith.index_cast %arg32 : i32 to index
      %161 = memref.load %arg2[%160] : memref<3xf32, #tpu.memory_space<smem>>
      %162 = vector.broadcast %161 : f32 to vector<96x96xf32>
      %163 = arith.addf %159, %162 : vector<96x96xf32>
      %164 = arith.index_cast %arg32 : i32 to index
      %c0_83 = arith.constant 0 : index
      %165 = memref.load %arg1[%164, %c0_83] : memref<3x9xf32, #tpu.memory_space<smem>>
      %166 = arith.index_cast %arg32 : i32 to index
      %c1_84 = arith.constant 1 : index
      %c0_85 = arith.constant 0 : index
      %c0_86 = arith.constant 0 : index
      %167 = vector.load %arg0[%166, %c1_84, %c0_85, %c0_86] : memref<3x2x98x98xf32, #tpu.memory_space<vmem>>, vector<1x1x96x96xf32>
      %168 = vector.shape_cast %167 : vector<1x1x96x96xf32> to vector<96x96xf32>
      %169 = vector.broadcast %165 : f32 to vector<96x96xf32>
      %170 = arith.mulf %169, %168 : vector<96x96xf32>
      %171 = arith.addf %163, %170 : vector<96x96xf32>
      %172 = arith.index_cast %arg32 : i32 to index
      %c1_87 = arith.constant 1 : index
      %173 = memref.load %arg1[%172, %c1_87] : memref<3x9xf32, #tpu.memory_space<smem>>
      %174 = arith.index_cast %arg32 : i32 to index
      %c1_88 = arith.constant 1 : index
      %c0_89 = arith.constant 0 : index
      %c1_90 = arith.constant 1 : index
      %175 = vector.load %arg0[%174, %c1_88, %c0_89, %c1_90] : memref<3x2x98x98xf32, #tpu.memory_space<vmem>>, vector<1x1x96x96xf32>
      %176 = vector.shape_cast %175 : vector<1x1x96x96xf32> to vector<96x96xf32>
      %177 = vector.broadcast %173 : f32 to vector<96x96xf32>
      %178 = arith.mulf %177, %176 : vector<96x96xf32>
      %179 = arith.addf %171, %178 : vector<96x96xf32>
      %180 = arith.index_cast %arg32 : i32 to index
      %c2_91 = arith.constant 2 : index
      %181 = memref.load %arg1[%180, %c2_91] : memref<3x9xf32, #tpu.memory_space<smem>>
      %182 = arith.index_cast %arg32 : i32 to index
      %c1_92 = arith.constant 1 : index
      %c0_93 = arith.constant 0 : index
      %c2_94 = arith.constant 2 : index
      %183 = vector.load %arg0[%182, %c1_92, %c0_93, %c2_94] : memref<3x2x98x98xf32, #tpu.memory_space<vmem>>, vector<1x1x96x96xf32>
      %184 = vector.shape_cast %183 : vector<1x1x96x96xf32> to vector<96x96xf32>
      %185 = vector.broadcast %181 : f32 to vector<96x96xf32>
      %186 = arith.mulf %185, %184 : vector<96x96xf32>
      %187 = arith.addf %179, %186 : vector<96x96xf32>
      %188 = arith.index_cast %arg32 : i32 to index
      %c3_95 = arith.constant 3 : index
      %189 = memref.load %arg1[%188, %c3_95] : memref<3x9xf32, #tpu.memory_space<smem>>
      %190 = arith.index_cast %arg32 : i32 to index
      %c1_96 = arith.constant 1 : index
      %c1_97 = arith.constant 1 : index
      %c0_98 = arith.constant 0 : index
      %191 = vector.load %arg0[%190, %c1_96, %c1_97, %c0_98] : memref<3x2x98x98xf32, #tpu.memory_space<vmem>>, vector<1x1x96x96xf32>
      %192 = vector.shape_cast %191 : vector<1x1x96x96xf32> to vector<96x96xf32>
      %193 = vector.broadcast %189 : f32 to vector<96x96xf32>
      %194 = arith.mulf %193, %192 : vector<96x96xf32>
      %195 = arith.addf %187, %194 : vector<96x96xf32>
      %196 = arith.index_cast %arg32 : i32 to index
      %c4_99 = arith.constant 4 : index
      %197 = memref.load %arg1[%196, %c4_99] : memref<3x9xf32, #tpu.memory_space<smem>>
      %198 = arith.index_cast %arg32 : i32 to index
      %c1_100 = arith.constant 1 : index
      %c1_101 = arith.constant 1 : index
      %c1_102 = arith.constant 1 : index
      %199 = vector.load %arg0[%198, %c1_100, %c1_101, %c1_102] : memref<3x2x98x98xf32, #tpu.memory_space<vmem>>, vector<1x1x96x96xf32>
      %200 = vector.shape_cast %199 : vector<1x1x96x96xf32> to vector<96x96xf32>
      %201 = vector.broadcast %197 : f32 to vector<96x96xf32>
      %202 = arith.mulf %201, %200 : vector<96x96xf32>
      %203 = arith.addf %195, %202 : vector<96x96xf32>
      %204 = arith.index_cast %arg32 : i32 to index
      %c5_103 = arith.constant 5 : index
      %205 = memref.load %arg1[%204, %c5_103] : memref<3x9xf32, #tpu.memory_space<smem>>
      %206 = arith.index_cast %arg32 : i32 to index
      %c1_104 = arith.constant 1 : index
      %c1_105 = arith.constant 1 : index
      %c2_106 = arith.constant 2 : index
      %207 = vector.load %arg0[%206, %c1_104, %c1_105, %c2_106] : memref<3x2x98x98xf32, #tpu.memory_space<vmem>>, vector<1x1x96x96xf32>
      %208 = vector.shape_cast %207 : vector<1x1x96x96xf32> to vector<96x96xf32>
      %209 = vector.broadcast %205 : f32 to vector<96x96xf32>
      %210 = arith.mulf %209, %208 : vector<96x96xf32>
      %211 = arith.addf %203, %210 : vector<96x96xf32>
      %212 = arith.index_cast %arg32 : i32 to index
      %c6_107 = arith.constant 6 : index
      %213 = memref.load %arg1[%212, %c6_107] : memref<3x9xf32, #tpu.memory_space<smem>>
      %214 = arith.index_cast %arg32 : i32 to index
      %c1_108 = arith.constant 1 : index
      %c2_109 = arith.constant 2 : index
      %c0_110 = arith.constant 0 : index
      %215 = vector.load %arg0[%214, %c1_108, %c2_109, %c0_110] : memref<3x2x98x98xf32, #tpu.memory_space<vmem>>, vector<1x1x96x96xf32>
      %216 = vector.shape_cast %215 : vector<1x1x96x96xf32> to vector<96x96xf32>
      %217 = vector.broadcast %213 : f32 to vector<96x96xf32>
      %218 = arith.mulf %217, %216 : vector<96x96xf32>
      %219 = arith.addf %211, %218 : vector<96x96xf32>
      %220 = arith.index_cast %arg32 : i32 to index
      %c7_111 = arith.constant 7 : index
      %221 = memref.load %arg1[%220, %c7_111] : memref<3x9xf32, #tpu.memory_space<smem>>
      %222 = arith.index_cast %arg32 : i32 to index
      %c1_112 = arith.constant 1 : index
      %c2_113 = arith.constant 2 : index
      %c1_114 = arith.constant 1 : index
      %223 = vector.load %arg0[%222, %c1_112, %c2_113, %c1_114] : memref<3x2x98x98xf32, #tpu.memory_space<vmem>>, vector<1x1x96x96xf32>
      %224 = vector.shape_cast %223 : vector<1x1x96x96xf32> to vector<96x96xf32>
      %225 = vector.broadcast %221 : f32 to vector<96x96xf32>
      %226 = arith.mulf %225, %224 : vector<96x96xf32>
      %227 = arith.addf %219, %226 : vector<96x96xf32>
      %228 = arith.index_cast %arg32 : i32 to index
      %c8_115 = arith.constant 8 : index
      %229 = memref.load %arg1[%228, %c8_115] : memref<3x9xf32, #tpu.memory_space<smem>>
      %230 = arith.index_cast %arg32 : i32 to index
      %c1_116 = arith.constant 1 : index
      %c2_117 = arith.constant 2 : index
      %c2_118 = arith.constant 2 : index
      %231 = vector.load %arg0[%230, %c1_116, %c2_117, %c2_118] : memref<3x2x98x98xf32, #tpu.memory_space<vmem>>, vector<1x1x96x96xf32>
      %232 = vector.shape_cast %231 : vector<1x1x96x96xf32> to vector<96x96xf32>
      %233 = vector.broadcast %229 : f32 to vector<96x96xf32>
      %234 = arith.mulf %233, %232 : vector<96x96xf32>
      %235 = arith.addf %227, %234 : vector<96x96xf32>
      %236 = arith.index_cast %arg32 : i32 to index
      %c1_119 = arith.constant 1 : index
      %c0_120 = arith.constant 0 : index
      %c0_121 = arith.constant 0 : index
      %237 = vector.load %arg22[%236, %c1_119, %c0_120, %c0_121] : memref<3x2x96x96xf32, #tpu.memory_space<vmem>>, vector<1x1x96x96xf32>
      %238 = vector.shape_cast %237 : vector<1x1x96x96xf32> to vector<96x96xf32>
      %239 = vector.shape_cast %235 : vector<96x96xf32> to vector<1x1x96x96xf32>
      tpu.vector_store %arg22[%236, %c1_119, %c0_120, %c0_121], %239 {strides = array<i32>} : memref<3x2x96x96xf32, #tpu.memory_space<vmem>>, vector<1x1x96x96xf32>,
    }
    %c3_i32_3 = arith.constant 3 : i32
    %c0_i32_4 = arith.constant 0 : i32
    %c12_i32 = arith.constant 12 : i32
    %3 = arith.addi %c0_i32_4, %c12_i32 : i32
    %c1_i32_5 = arith.constant 1 : i32
    scf.for %arg32 = %c0_i32_4 to %3 step %c1_i32_5  : i32 {
      %78 = arith.index_cast %arg32 : i32 to index
      %79 = memref.load %arg4[%78] : memref<12xf32, #tpu.memory_space<smem>>
      %cst_50 = arith.constant 0.000000e+00 : f32
      %80 = vector.broadcast %cst_50 : f32 to vector<96x96xf32>
      %81 = vector.broadcast %79 : f32 to vector<96x96xf32>
      %82 = arith.addf %80, %81 : vector<96x96xf32>
      %83 = arith.index_cast %arg32 : i32 to index
      %c0_51 = arith.constant 0 : index
      %84 = memref.load %arg3[%83, %c0_51] : memref<12x3xf32, #tpu.memory_space<smem>>
      %c0_52 = arith.constant 0 : index
      %c0_53 = arith.constant 0 : index
      %c0_54 = arith.constant 0 : index
      %c0_55 = arith.constant 0 : index
      %85 = vector.load %arg22[%c0_52, %c0_53, %c0_54, %c0_55] : memref<3x2x96x96xf32, #tpu.memory_space<vmem>>, vector<1x1x96x96xf32>
      %86 = vector.shape_cast %85 : vector<1x1x96x96xf32> to vector<96x96xf32>
      %87 = vector.broadcast %84 : f32 to vector<96x96xf32>
      %88 = arith.mulf %87, %86 : vector<96x96xf32>
      %89 = arith.addf %82, %88 : vector<96x96xf32>
      %90 = arith.index_cast %arg32 : i32 to index
      %c1 = arith.constant 1 : index
      %91 = memref.load %arg3[%90, %c1] : memref<12x3xf32, #tpu.memory_space<smem>>
      %c1_56 = arith.constant 1 : index
      %c0_57 = arith.constant 0 : index
      %c0_58 = arith.constant 0 : index
      %c0_59 = arith.constant 0 : index
      %92 = vector.load %arg22[%c1_56, %c0_57, %c0_58, %c0_59] : memref<3x2x96x96xf32, #tpu.memory_space<vmem>>, vector<1x1x96x96xf32>
      %93 = vector.shape_cast %92 : vector<1x1x96x96xf32> to vector<96x96xf32>
      %94 = vector.broadcast %91 : f32 to vector<96x96xf32>
      %95 = arith.mulf %94, %93 : vector<96x96xf32>
      %96 = arith.addf %89, %95 : vector<96x96xf32>
      %97 = arith.index_cast %arg32 : i32 to index
      %c2 = arith.constant 2 : index
      %98 = memref.load %arg3[%97, %c2] : memref<12x3xf32, #tpu.memory_space<smem>>
      %c2_60 = arith.constant 2 : index
      %c0_61 = arith.constant 0 : index
      %c0_62 = arith.constant 0 : index
      %c0_63 = arith.constant 0 : index
      %99 = vector.load %arg22[%c2_60, %c0_61, %c0_62, %c0_63] : memref<3x2x96x96xf32, #tpu.memory_space<vmem>>, vector<1x1x96x96xf32>
      %100 = vector.shape_cast %99 : vector<1x1x96x96xf32> to vector<96x96xf32>
      %101 = vector.broadcast %98 : f32 to vector<96x96xf32>
      %102 = arith.mulf %101, %100 : vector<96x96xf32>
      %103 = arith.addf %96, %102 : vector<96x96xf32>
      %c0_64 = arith.constant 0 : index
      %c0_65 = arith.constant 0 : index
      %c0_66 = arith.constant 0 : index
      %104 = vector.load %arg23[%c0_64, %c0_65, %c0_66] : memref<2x96x96xf32, #tpu.memory_space<vmem>>, vector<1x96x96xf32>
      %105 = vector.shape_cast %104 : vector<1x96x96xf32> to vector<96x96xf32>
      %106 = vector.shape_cast %103 : vector<96x96xf32> to vector<1x96x96xf32>
      tpu.vector_store %arg23[%c0_64, %c0_65, %c0_66], %106 {strides = array<i32>} : memref<2x96x96xf32, #tpu.memory_space<vmem>>, vector<1x96x96xf32>,
      %107 = vector.shape_cast %103 : vector<96x96xf32> to vector<1x96x96xf32>
      %cst_67 = arith.constant dense<0.000000e+00> : vector<1xf32>
      %108 = vector.multi_reduction <add>, %107, %cst_67 [1, 2] : vector<1x96x96xf32> to vector<1xf32>
      %109 = vector.shape_cast %108 : vector<1xf32> to vector<1x1x1xf32>
      %110 = vector.extract %109[0, 0, 0] : f32 from vector<1x1x1xf32>
      %cst_68 = arith.constant 0.000000e+00 : f32
      %111 = arith.addf %cst_68, %110 : f32
      %cst_69 = arith.constant 0.000000e+00 : f32
      %112 = vector.broadcast %cst_69 : f32 to vector<96x96xf32>
      %113 = vector.broadcast %79 : f32 to vector<96x96xf32>
      %114 = arith.addf %112, %113 : vector<96x96xf32>
      %115 = arith.index_cast %arg32 : i32 to index
      %c0_70 = arith.constant 0 : index
      %116 = memref.load %arg3[%115, %c0_70] : memref<12x3xf32, #tpu.memory_space<smem>>
      %c0_71 = arith.constant 0 : index
      %c1_72 = arith.constant 1 : index
      %c0_73 = arith.constant 0 : index
      %c0_74 = arith.constant 0 : index
      %117 = vector.load %arg22[%c0_71, %c1_72, %c0_73, %c0_74] : memref<3x2x96x96xf32, #tpu.memory_space<vmem>>, vector<1x1x96x96xf32>
      %118 = vector.shape_cast %117 : vector<1x1x96x96xf32> to vector<96x96xf32>
      %119 = vector.broadcast %116 : f32 to vector<96x96xf32>
      %120 = arith.mulf %119, %118 : vector<96x96xf32>
      %121 = arith.addf %114, %120 : vector<96x96xf32>
      %122 = arith.index_cast %arg32 : i32 to index
      %c1_75 = arith.constant 1 : index
      %123 = memref.load %arg3[%122, %c1_75] : memref<12x3xf32, #tpu.memory_space<smem>>
      %c1_76 = arith.constant 1 : index
      %c1_77 = arith.constant 1 : index
      %c0_78 = arith.constant 0 : index
      %c0_79 = arith.constant 0 : index
      %124 = vector.load %arg22[%c1_76, %c1_77, %c0_78, %c0_79] : memref<3x2x96x96xf32, #tpu.memory_space<vmem>>, vector<1x1x96x96xf32>
      %125 = vector.shape_cast %124 : vector<1x1x96x96xf32> to vector<96x96xf32>
      %126 = vector.broadcast %123 : f32 to vector<96x96xf32>
      %127 = arith.mulf %126, %125 : vector<96x96xf32>
      %128 = arith.addf %121, %127 : vector<96x96xf32>
      %129 = arith.index_cast %arg32 : i32 to index
      %c2_80 = arith.constant 2 : index
      %130 = memref.load %arg3[%129, %c2_80] : memref<12x3xf32, #tpu.memory_space<smem>>
      %c2_81 = arith.constant 2 : index
      %c1_82 = arith.constant 1 : index
      %c0_83 = arith.constant 0 : index
      %c0_84 = arith.constant 0 : index
      %131 = vector.load %arg22[%c2_81, %c1_82, %c0_83, %c0_84] : memref<3x2x96x96xf32, #tpu.memory_space<vmem>>, vector<1x1x96x96xf32>
      %132 = vector.shape_cast %131 : vector<1x1x96x96xf32> to vector<96x96xf32>
      %133 = vector.broadcast %130 : f32 to vector<96x96xf32>
      %134 = arith.mulf %133, %132 : vector<96x96xf32>
      %135 = arith.addf %128, %134 : vector<96x96xf32>
      %c1_85 = arith.constant 1 : index
      %c0_86 = arith.constant 0 : index
      %c0_87 = arith.constant 0 : index
      %136 = vector.load %arg23[%c1_85, %c0_86, %c0_87] : memref<2x96x96xf32, #tpu.memory_space<vmem>>, vector<1x96x96xf32>
      %137 = vector.shape_cast %136 : vector<1x96x96xf32> to vector<96x96xf32>
      %138 = vector.shape_cast %135 : vector<96x96xf32> to vector<1x96x96xf32>
      tpu.vector_store %arg23[%c1_85, %c0_86, %c0_87], %138 {strides = array<i32>} : memref<2x96x96xf32, #tpu.memory_space<vmem>>, vector<1x96x96xf32>,
      %139 = vector.shape_cast %135 : vector<96x96xf32> to vector<1x96x96xf32>
      %cst_88 = arith.constant dense<0.000000e+00> : vector<1xf32>
      %140 = vector.multi_reduction <add>, %139, %cst_88 [1, 2] : vector<1x96x96xf32> to vector<1xf32>
      %141 = vector.shape_cast %140 : vector<1xf32> to vector<1x1x1xf32>
      %142 = vector.extract %141[0, 0, 0] : f32 from vector<1x1x1xf32>
      %143 = arith.addf %111, %142 : f32
      %cst_89 = arith.constant 7.760000e+02 : f32
      %144 = arith.mulf %cst_89, %79 : f32
      %145 = arith.addf %143, %144 : f32
      %cst_90 = arith.constant 1.920800e+04 : f32
      %146 = arith.divf %145, %cst_90 : f32
      %147 = arith.subf %79, %146 : f32
      %cst_91 = arith.constant 7.760000e+02 : f32
      %148 = arith.mulf %cst_91, %147 : f32
      %149 = arith.subf %79, %146 : f32
      %150 = arith.mulf %148, %149 : f32
      %c0_92 = arith.constant 0 : index
      %c0_93 = arith.constant 0 : index
      %c0_94 = arith.constant 0 : index
      %151 = vector.load %arg23[%c0_92, %c0_93, %c0_94] : memref<2x96x96xf32, #tpu.memory_space<vmem>>, vector<1x96x96xf32>
      %152 = vector.shape_cast %151 : vector<1x96x96xf32> to vector<96x96xf32>
      %153 = vector.broadcast %146 : f32 to vector<96x96xf32>
      %154 = arith.subf %152, %153 : vector<96x96xf32>
      %155 = arith.mulf %154, %154 : vector<96x96xf32>
      %156 = vector.shape_cast %155 : vector<96x96xf32> to vector<1x96x96xf32>
      %cst_95 = arith.constant dense<0.000000e+00> : vector<1xf32>
      %157 = vector.multi_reduction <add>, %156, %cst_95 [1, 2] : vector<1x96x96xf32> to vector<1xf32>
      %158 = vector.shape_cast %157 : vector<1xf32> to vector<1x1x1xf32>
      %159 = vector.extract %158[0, 0, 0] : f32 from vector<1x1x1xf32>
      %160 = arith.addf %150, %159 : f32
      %c1_96 = arith.constant 1 : index
      %c0_97 = arith.constant 0 : index
      %c0_98 = arith.constant 0 : index
      %161 = vector.load %arg23[%c1_96, %c0_97, %c0_98] : memref<2x96x96xf32, #tpu.memory_space<vmem>>, vector<1x96x96xf32>
      %162 = vector.shape_cast %161 : vector<1x96x96xf32> to vector<96x96xf32>
      %163 = vector.broadcast %146 : f32 to vector<96x96xf32>
      %164 = arith.subf %162, %163 : vector<96x96xf32>
      %165 = arith.mulf %164, %164 : vector<96x96xf32>
      %166 = vector.shape_cast %165 : vector<96x96xf32> to vector<1x96x96xf32>
      %cst_99 = arith.constant dense<0.000000e+00> : vector<1xf32>
      %167 = vector.multi_reduction <add>, %166, %cst_99 [1, 2] : vector<1x96x96xf32> to vector<1xf32>
      %168 = vector.shape_cast %167 : vector<1xf32> to vector<1x1x1xf32>
      %169 = vector.extract %168[0, 0, 0] : f32 from vector<1x1x1xf32>
      %170 = arith.addf %160, %169 : f32
      %cst_100 = arith.constant 1.920800e+04 : f32
      %171 = arith.divf %170, %cst_100 : f32
      %172 = arith.index_cast %arg32 : i32 to index
      %173 = memref.load %arg5[%172] : memref<12xf32, #tpu.memory_space<smem>>
      %cst_101 = arith.constant 9.99999974E-6 : f32
      %174 = arith.addf %171, %cst_101 : f32
      %175 = math.rsqrt %174 : f32
      %176 = arith.mulf %173, %175 : f32
      %177 = arith.index_cast %arg32 : i32 to index
      %178 = memref.load %arg6[%177] : memref<12xf32, #tpu.memory_space<smem>>
      %179 = arith.mulf %146, %176 : f32
      %180 = arith.subf %178, %179 : f32
      %181 = arith.mulf %79, %176 : f32
      %182 = arith.addf %181, %180 : f32
      %cst_102 = arith.constant 0.000000e+00 : f32
      %183 = arith.maximumf %182, %cst_102 : f32
      %c0_103 = arith.constant 0 : index
      %c0_104 = arith.constant 0 : index
      %c0_105 = arith.constant 0 : index
      %184 = vector.load %arg23[%c0_103, %c0_104, %c0_105] : memref<2x96x96xf32, #tpu.memory_space<vmem>>, vector<1x96x96xf32>
      %185 = vector.shape_cast %184 : vector<1x96x96xf32> to vector<96x96xf32>
      %186 = vector.broadcast %176 : f32 to vector<96x96xf32>
      %187 = arith.mulf %185, %186 : vector<96x96xf32>
      %188 = vector.broadcast %180 : f32 to vector<96x96xf32>
      %189 = arith.addf %187, %188 : vector<96x96xf32>
      %cst_106 = arith.constant 0.000000e+00 : f32
      %190 = vector.broadcast %cst_106 : f32 to vector<96x96xf32>
      %191 = arith.maximumf %189, %190 : vector<96x96xf32>
      %cst_107 = arith.constant 0.000000e+00 : f32
      %192 = vector.broadcast %cst_107 : f32 to vector<98x98xf32>
      %193 = vector.broadcast %183 : f32 to vector<98x98xf32>
      %194 = arith.addf %192, %193 : vector<98x98xf32>
      %c0_108 = arith.constant 0 : index
      %c0_109 = arith.constant 0 : index
      %195 = vector.load %arg24[%c0_108, %c0_109] : memref<98x98xf32, #tpu.memory_space<vmem>>, vector<98x98xf32>
      tpu.vector_store %arg24[%c0_108, %c0_109], %194 {strides = array<i32>} : memref<98x98xf32, #tpu.memory_space<vmem>>, vector<98x98xf32>,
      %c1_110 = arith.constant 1 : index
      %c1_111 = arith.constant 1 : index
      %196 = vector.load %arg24[%c1_110, %c1_111] : memref<98x98xf32, #tpu.memory_space<vmem>>, vector<96x96xf32>
      tpu.vector_store %arg24[%c1_110, %c1_111], %191 {strides = array<i32>} : memref<98x98xf32, #tpu.memory_space<vmem>>, vector<96x96xf32>,
      %c0_112 = arith.constant 0 : index
      %c0_113 = arith.constant 0 : index
      %197 = vector.load %arg24[%c0_112, %c0_113] : memref<98x98xf32, #tpu.memory_space<vmem>>, vector<97x97xf32>
      %c0_114 = arith.constant 0 : index
      %c1_115 = arith.constant 1 : index
      %198 = vector.load %arg24[%c0_114, %c1_115] : memref<98x98xf32, #tpu.memory_space<vmem>>, vector<97x97xf32>
      %199 = arith.maximumf %197, %198 : vector<97x97xf32>
      %c1_116 = arith.constant 1 : index
      %c0_117 = arith.constant 0 : index
      %200 = vector.load %arg24[%c1_116, %c0_117] : memref<98x98xf32, #tpu.memory_space<vmem>>, vector<97x97xf32>
      %201 = arith.maximumf %199, %200 : vector<97x97xf32>
      %c1_118 = arith.constant 1 : index
      %c1_119 = arith.constant 1 : index
      %202 = vector.load %arg24[%c1_118, %c1_119] : memref<98x98xf32, #tpu.memory_space<vmem>>, vector<97x97xf32>
      %203 = arith.maximumf %201, %202 : vector<97x97xf32>
      %c0_120 = arith.constant 0 : index
      %c0_121 = arith.constant 0 : index
      %204 = vector.load %arg25[%c0_120, %c0_121] : memref<194x97xf32, #tpu.memory_space<vmem>>, vector<97x97xf32>
      tpu.vector_store %arg25[%c0_120, %c0_121], %203 {strides = array<i32>} : memref<194x97xf32, #tpu.memory_space<vmem>>, vector<97x97xf32>,
      %c1_122 = arith.constant 1 : index
      %c0_123 = arith.constant 0 : index
      %c0_124 = arith.constant 0 : index
      %205 = vector.load %arg23[%c1_122, %c0_123, %c0_124] : memref<2x96x96xf32, #tpu.memory_space<vmem>>, vector<1x96x96xf32>
      %206 = vector.shape_cast %205 : vector<1x96x96xf32> to vector<96x96xf32>
      %207 = vector.broadcast %176 : f32 to vector<96x96xf32>
      %208 = arith.mulf %206, %207 : vector<96x96xf32>
      %209 = vector.broadcast %180 : f32 to vector<96x96xf32>
      %210 = arith.addf %208, %209 : vector<96x96xf32>
      %cst_125 = arith.constant 0.000000e+00 : f32
      %211 = vector.broadcast %cst_125 : f32 to vector<96x96xf32>
      %212 = arith.maximumf %210, %211 : vector<96x96xf32>
      %cst_126 = arith.constant 0.000000e+00 : f32
      %213 = vector.broadcast %cst_126 : f32 to vector<98x98xf32>
      %214 = vector.broadcast %183 : f32 to vector<98x98xf32>
      %215 = arith.addf %213, %214 : vector<98x98xf32>
      %c0_127 = arith.constant 0 : index
      %c0_128 = arith.constant 0 : index
      %216 = vector.load %arg24[%c0_127, %c0_128] : memref<98x98xf32, #tpu.memory_space<vmem>>, vector<98x98xf32>
      tpu.vector_store %arg24[%c0_127, %c0_128], %215 {strides = array<i32>} : memref<98x98xf32, #tpu.memory_space<vmem>>, vector<98x98xf32>,
      %c1_129 = arith.constant 1 : index
      %c1_130 = arith.constant 1 : index
      %217 = vector.load %arg24[%c1_129, %c1_130] : memref<98x98xf32, #tpu.memory_space<vmem>>, vector<96x96xf32>
      tpu.vector_store %arg24[%c1_129, %c1_130], %212 {strides = array<i32>} : memref<98x98xf32, #tpu.memory_space<vmem>>, vector<96x96xf32>,
      %c0_131 = arith.constant 0 : index
      %c0_132 = arith.constant 0 : index
      %218 = vector.load %arg24[%c0_131, %c0_132] : memref<98x98xf32, #tpu.memory_space<vmem>>, vector<97x97xf32>
      %c0_133 = arith.constant 0 : index
      %c1_134 = arith.constant 1 : index
      %219 = vector.load %arg24[%c0_133, %c1_134] : memref<98x98xf32, #tpu.memory_space<vmem>>, vector<97x97xf32>
      %220 = arith.maximumf %218, %219 : vector<97x97xf32>
      %c1_135 = arith.constant 1 : index
      %c0_136 = arith.constant 0 : index
      %221 = vector.load %arg24[%c1_135, %c0_136] : memref<98x98xf32, #tpu.memory_space<vmem>>, vector<97x97xf32>
      %222 = arith.maximumf %220, %221 : vector<97x97xf32>
      %c1_137 = arith.constant 1 : index
      %c1_138 = arith.constant 1 : index
      %223 = vector.load %arg24[%c1_137, %c1_138] : memref<98x98xf32, #tpu.memory_space<vmem>>, vector<97x97xf32>
      %224 = arith.maximumf %222, %223 : vector<97x97xf32>
      %c97 = arith.constant 97 : index
      %c0_139 = arith.constant 0 : index
      %225 = vector.load %arg25[%c97, %c0_139] : memref<194x97xf32, #tpu.memory_space<vmem>>, vector<97x97xf32>
      tpu.vector_store %arg25[%c97, %c0_139], %224 {strides = array<i32>} : memref<194x97xf32, #tpu.memory_space<vmem>>, vector<97x97xf32>,
      %c0_140 = arith.constant 0 : index
      %c0_141 = arith.constant 0 : index
      %226 = vector.load %arg25[%c0_140, %c0_141] : memref<194x97xf32, #tpu.memory_space<vmem>>, vector<194x97xf32>
      %c0_142 = arith.constant 0 : index
      %c0_143 = arith.constant 0 : index
      %227 = vector.load %arg15[%c0_142, %c0_143] : memref<97x49xf32, #tpu.memory_space<vmem>>, vector<97x49xf32>
      %cst_144 = arith.constant dense<0.000000e+00> : vector<194x49xf32>
      %228 = tpu.matmul %226, %227, %cst_144 {dimension_numbers = #tpu.dot_dimension_numbers<[1], [0], [0], [1], [0, 0, 1, 1], [], []>} : vector<194x97xf32>, vector<97x49xf32>, vector<194x49xf32> -> vector<194x49xf32>
      %c0_145 = arith.constant 0 : index
      %c0_146 = arith.constant 0 : index
      %229 = vector.load %arg16[%c0_145, %c0_146] : memref<98x194xf32, #tpu.memory_space<vmem>>, vector<98x194xf32>
      %cst_147 = arith.constant dense<0.000000e+00> : vector<98x49xf32>
      %230 = tpu.matmul %229, %228, %cst_147 {dimension_numbers = #tpu.dot_dimension_numbers<[1], [0], [0], [1], [0, 0, 1, 1], [], []>} : vector<98x194xf32>, vector<194x49xf32>, vector<98x49xf32> -> vector<98x49xf32>
      %231 = vector.extract_strided_slice %230 {offsets = [0, 0], sizes = [49, 49], strides = [1, 1]} : vector<98x49xf32> to vector<49x49xf32>
      %232 = arith.index_cast %arg32 : i32 to index
      %c0_148 = arith.constant 0 : index
      %c1_149 = arith.constant 1 : index
      %c1_150 = arith.constant 1 : index
      %233 = vector.load %arg26[%232, %c0_148, %c1_149, %c1_150] : memref<12x2x51x51xf32, #tpu.memory_space<vmem>>, vector<1x1x49x49xf32>
      %234 = vector.shape_cast %233 : vector<1x1x49x49xf32> to vector<49x49xf32>
      %235 = vector.shape_cast %231 : vector<49x49xf32> to vector<1x1x49x49xf32>
      tpu.vector_store %arg26[%232, %c0_148, %c1_149, %c1_150], %235 {strides = array<i32>} : memref<12x2x51x51xf32, #tpu.memory_space<vmem>>, vector<1x1x49x49xf32>,
      %236 = vector.extract_strided_slice %230 {offsets = [49, 0], sizes = [49, 49], strides = [1, 1]} : vector<98x49xf32> to vector<49x49xf32>
      %237 = arith.index_cast %arg32 : i32 to index
      %c1_151 = arith.constant 1 : index
      %c1_152 = arith.constant 1 : index
      %c1_153 = arith.constant 1 : index
      %238 = vector.load %arg26[%237, %c1_151, %c1_152, %c1_153] : memref<12x2x51x51xf32, #tpu.memory_space<vmem>>, vector<1x1x49x49xf32>
      %239 = vector.shape_cast %238 : vector<1x1x49x49xf32> to vector<49x49xf32>
      %240 = vector.shape_cast %236 : vector<49x49xf32> to vector<1x1x49x49xf32>
      tpu.vector_store %arg26[%237, %c1_151, %c1_152, %c1_153], %240 {strides = array<i32>} : memref<12x2x51x51xf32, #tpu.memory_space<vmem>>, vector<1x1x49x49xf32>,
    }
    %c12_i32_6 = arith.constant 12 : i32
    %c0_i32_7 = arith.constant 0 : i32
    %c12_i32_8 = arith.constant 12 : i32
    %4 = arith.addi %c0_i32_7, %c12_i32_8 : i32
    %c1_i32_9 = arith.constant 1 : i32
    scf.for %arg32 = %c0_i32_7 to %4 step %c1_i32_9  : i32 {
      %cst_50 = arith.constant 0.000000e+00 : f32
      %78 = vector.broadcast %cst_50 : f32 to vector<49x49xf32>
      %79 = arith.index_cast %arg32 : i32 to index
      %80 = memref.load %arg8[%79] : memref<12xf32, #tpu.memory_space<smem>>
      %81 = vector.broadcast %80 : f32 to vector<49x49xf32>
      %82 = arith.addf %78, %81 : vector<49x49xf32>
      %83 = arith.index_cast %arg32 : i32 to index
      %c0_51 = arith.constant 0 : index
      %84 = memref.load %arg7[%83, %c0_51] : memref<12x9xf32, #tpu.memory_space<smem>>
      %85 = arith.index_cast %arg32 : i32 to index
      %c0_52 = arith.constant 0 : index
      %c0_53 = arith.constant 0 : index
      %c0_54 = arith.constant 0 : index
      %86 = vector.load %arg26[%85, %c0_52, %c0_53, %c0_54] : memref<12x2x51x51xf32, #tpu.memory_space<vmem>>, vector<1x1x49x49xf32>
      %87 = vector.shape_cast %86 : vector<1x1x49x49xf32> to vector<49x49xf32>
      %88 = vector.broadcast %84 : f32 to vector<49x49xf32>
      %89 = arith.mulf %88, %87 : vector<49x49xf32>
      %90 = arith.addf %82, %89 : vector<49x49xf32>
      %91 = arith.index_cast %arg32 : i32 to index
      %c1 = arith.constant 1 : index
      %92 = memref.load %arg7[%91, %c1] : memref<12x9xf32, #tpu.memory_space<smem>>
      %93 = arith.index_cast %arg32 : i32 to index
      %c0_55 = arith.constant 0 : index
      %c0_56 = arith.constant 0 : index
      %c1_57 = arith.constant 1 : index
      %94 = vector.load %arg26[%93, %c0_55, %c0_56, %c1_57] : memref<12x2x51x51xf32, #tpu.memory_space<vmem>>, vector<1x1x49x49xf32>
      %95 = vector.shape_cast %94 : vector<1x1x49x49xf32> to vector<49x49xf32>
      %96 = vector.broadcast %92 : f32 to vector<49x49xf32>
      %97 = arith.mulf %96, %95 : vector<49x49xf32>
      %98 = arith.addf %90, %97 : vector<49x49xf32>
      %99 = arith.index_cast %arg32 : i32 to index
      %c2 = arith.constant 2 : index
      %100 = memref.load %arg7[%99, %c2] : memref<12x9xf32, #tpu.memory_space<smem>>
      %101 = arith.index_cast %arg32 : i32 to index
      %c0_58 = arith.constant 0 : index
      %c0_59 = arith.constant 0 : index
      %c2_60 = arith.constant 2 : index
      %102 = vector.load %arg26[%101, %c0_58, %c0_59, %c2_60] : memref<12x2x51x51xf32, #tpu.memory_space<vmem>>, vector<1x1x49x49xf32>
      %103 = vector.shape_cast %102 : vector<1x1x49x49xf32> to vector<49x49xf32>
      %104 = vector.broadcast %100 : f32 to vector<49x49xf32>
      %105 = arith.mulf %104, %103 : vector<49x49xf32>
      %106 = arith.addf %98, %105 : vector<49x49xf32>
      %107 = arith.index_cast %arg32 : i32 to index
      %c3 = arith.constant 3 : index
      %108 = memref.load %arg7[%107, %c3] : memref<12x9xf32, #tpu.memory_space<smem>>
      %109 = arith.index_cast %arg32 : i32 to index
      %c0_61 = arith.constant 0 : index
      %c1_62 = arith.constant 1 : index
      %c0_63 = arith.constant 0 : index
      %110 = vector.load %arg26[%109, %c0_61, %c1_62, %c0_63] : memref<12x2x51x51xf32, #tpu.memory_space<vmem>>, vector<1x1x49x49xf32>
      %111 = vector.shape_cast %110 : vector<1x1x49x49xf32> to vector<49x49xf32>
      %112 = vector.broadcast %108 : f32 to vector<49x49xf32>
      %113 = arith.mulf %112, %111 : vector<49x49xf32>
      %114 = arith.addf %106, %113 : vector<49x49xf32>
      %115 = arith.index_cast %arg32 : i32 to index
      %c4 = arith.constant 4 : index
      %116 = memref.load %arg7[%115, %c4] : memref<12x9xf32, #tpu.memory_space<smem>>
      %117 = arith.index_cast %arg32 : i32 to index
      %c0_64 = arith.constant 0 : index
      %c1_65 = arith.constant 1 : index
      %c1_66 = arith.constant 1 : index
      %118 = vector.load %arg26[%117, %c0_64, %c1_65, %c1_66] : memref<12x2x51x51xf32, #tpu.memory_space<vmem>>, vector<1x1x49x49xf32>
      %119 = vector.shape_cast %118 : vector<1x1x49x49xf32> to vector<49x49xf32>
      %120 = vector.broadcast %116 : f32 to vector<49x49xf32>
      %121 = arith.mulf %120, %119 : vector<49x49xf32>
      %122 = arith.addf %114, %121 : vector<49x49xf32>
      %123 = arith.index_cast %arg32 : i32 to index
      %c5 = arith.constant 5 : index
      %124 = memref.load %arg7[%123, %c5] : memref<12x9xf32, #tpu.memory_space<smem>>
      %125 = arith.index_cast %arg32 : i32 to index
      %c0_67 = arith.constant 0 : index
      %c1_68 = arith.constant 1 : index
      %c2_69 = arith.constant 2 : index
      %126 = vector.load %arg26[%125, %c0_67, %c1_68, %c2_69] : memref<12x2x51x51xf32, #tpu.memory_space<vmem>>, vector<1x1x49x49xf32>
      %127 = vector.shape_cast %126 : vector<1x1x49x49xf32> to vector<49x49xf32>
      %128 = vector.broadcast %124 : f32 to vector<49x49xf32>
      %129 = arith.mulf %128, %127 : vector<49x49xf32>
      %130 = arith.addf %122, %129 : vector<49x49xf32>
      %131 = arith.index_cast %arg32 : i32 to index
      %c6 = arith.constant 6 : index
      %132 = memref.load %arg7[%131, %c6] : memref<12x9xf32, #tpu.memory_space<smem>>
      %133 = arith.index_cast %arg32 : i32 to index
      %c0_70 = arith.constant 0 : index
      %c2_71 = arith.constant 2 : index
      %c0_72 = arith.constant 0 : index
      %134 = vector.load %arg26[%133, %c0_70, %c2_71, %c0_72] : memref<12x2x51x51xf32, #tpu.memory_space<vmem>>, vector<1x1x49x49xf32>
      %135 = vector.shape_cast %134 : vector<1x1x49x49xf32> to vector<49x49xf32>
      %136 = vector.broadcast %132 : f32 to vector<49x49xf32>
      %137 = arith.mulf %136, %135 : vector<49x49xf32>
      %138 = arith.addf %130, %137 : vector<49x49xf32>
      %139 = arith.index_cast %arg32 : i32 to index
      %c7 = arith.constant 7 : index
      %140 = memref.load %arg7[%139, %c7] : memref<12x9xf32, #tpu.memory_space<smem>>
      %141 = arith.index_cast %arg32 : i32 to index
      %c0_73 = arith.constant 0 : index
      %c2_74 = arith.constant 2 : index
      %c1_75 = arith.constant 1 : index
      %142 = vector.load %arg26[%141, %c0_73, %c2_74, %c1_75] : memref<12x2x51x51xf32, #tpu.memory_space<vmem>>, vector<1x1x49x49xf32>
      %143 = vector.shape_cast %142 : vector<1x1x49x49xf32> to vector<49x49xf32>
      %144 = vector.broadcast %140 : f32 to vector<49x49xf32>
      %145 = arith.mulf %144, %143 : vector<49x49xf32>
      %146 = arith.addf %138, %145 : vector<49x49xf32>
      %147 = arith.index_cast %arg32 : i32 to index
      %c8 = arith.constant 8 : index
      %148 = memref.load %arg7[%147, %c8] : memref<12x9xf32, #tpu.memory_space<smem>>
      %149 = arith.index_cast %arg32 : i32 to index
      %c0_76 = arith.constant 0 : index
      %c2_77 = arith.constant 2 : index
      %c2_78 = arith.constant 2 : index
      %150 = vector.load %arg26[%149, %c0_76, %c2_77, %c2_78] : memref<12x2x51x51xf32, #tpu.memory_space<vmem>>, vector<1x1x49x49xf32>
      %151 = vector.shape_cast %150 : vector<1x1x49x49xf32> to vector<49x49xf32>
      %152 = vector.broadcast %148 : f32 to vector<49x49xf32>
      %153 = arith.mulf %152, %151 : vector<49x49xf32>
      %154 = arith.addf %146, %153 : vector<49x49xf32>
      %155 = arith.index_cast %arg32 : i32 to index
      %c0_79 = arith.constant 0 : index
      %c0_80 = arith.constant 0 : index
      %c0_81 = arith.constant 0 : index
      %156 = vector.load %arg27[%155, %c0_79, %c0_80, %c0_81] : memref<12x2x49x49xf32, #tpu.memory_space<vmem>>, vector<1x1x49x49xf32>
      %157 = vector.shape_cast %156 : vector<1x1x49x49xf32> to vector<49x49xf32>
      %158 = vector.shape_cast %154 : vector<49x49xf32> to vector<1x1x49x49xf32>
      tpu.vector_store %arg27[%155, %c0_79, %c0_80, %c0_81], %158 {strides = array<i32>} : memref<12x2x49x49xf32, #tpu.memory_space<vmem>>, vector<1x1x49x49xf32>,
      %cst_82 = arith.constant 0.000000e+00 : f32
      %159 = vector.broadcast %cst_82 : f32 to vector<49x49xf32>
      %160 = arith.index_cast %arg32 : i32 to index
      %161 = memref.load %arg8[%160] : memref<12xf32, #tpu.memory_space<smem>>
      %162 = vector.broadcast %161 : f32 to vector<49x49xf32>
      %163 = arith.addf %159, %162 : vector<49x49xf32>
      %164 = arith.index_cast %arg32 : i32 to index
      %c0_83 = arith.constant 0 : index
      %165 = memref.load %arg7[%164, %c0_83] : memref<12x9xf32, #tpu.memory_space<smem>>
      %166 = arith.index_cast %arg32 : i32 to index
      %c1_84 = arith.constant 1 : index
      %c0_85 = arith.constant 0 : index
      %c0_86 = arith.constant 0 : index
      %167 = vector.load %arg26[%166, %c1_84, %c0_85, %c0_86] : memref<12x2x51x51xf32, #tpu.memory_space<vmem>>, vector<1x1x49x49xf32>
      %168 = vector.shape_cast %167 : vector<1x1x49x49xf32> to vector<49x49xf32>
      %169 = vector.broadcast %165 : f32 to vector<49x49xf32>
      %170 = arith.mulf %169, %168 : vector<49x49xf32>
      %171 = arith.addf %163, %170 : vector<49x49xf32>
      %172 = arith.index_cast %arg32 : i32 to index
      %c1_87 = arith.constant 1 : index
      %173 = memref.load %arg7[%172, %c1_87] : memref<12x9xf32, #tpu.memory_space<smem>>
      %174 = arith.index_cast %arg32 : i32 to index
      %c1_88 = arith.constant 1 : index
      %c0_89 = arith.constant 0 : index
      %c1_90 = arith.constant 1 : index
      %175 = vector.load %arg26[%174, %c1_88, %c0_89, %c1_90] : memref<12x2x51x51xf32, #tpu.memory_space<vmem>>, vector<1x1x49x49xf32>
      %176 = vector.shape_cast %175 : vector<1x1x49x49xf32> to vector<49x49xf32>
      %177 = vector.broadcast %173 : f32 to vector<49x49xf32>
      %178 = arith.mulf %177, %176 : vector<49x49xf32>
      %179 = arith.addf %171, %178 : vector<49x49xf32>
      %180 = arith.index_cast %arg32 : i32 to index
      %c2_91 = arith.constant 2 : index
      %181 = memref.load %arg7[%180, %c2_91] : memref<12x9xf32, #tpu.memory_space<smem>>
      %182 = arith.index_cast %arg32 : i32 to index
      %c1_92 = arith.constant 1 : index
      %c0_93 = arith.constant 0 : index
      %c2_94 = arith.constant 2 : index
      %183 = vector.load %arg26[%182, %c1_92, %c0_93, %c2_94] : memref<12x2x51x51xf32, #tpu.memory_space<vmem>>, vector<1x1x49x49xf32>
      %184 = vector.shape_cast %183 : vector<1x1x49x49xf32> to vector<49x49xf32>
      %185 = vector.broadcast %181 : f32 to vector<49x49xf32>
      %186 = arith.mulf %185, %184 : vector<49x49xf32>
      %187 = arith.addf %179, %186 : vector<49x49xf32>
      %188 = arith.index_cast %arg32 : i32 to index
      %c3_95 = arith.constant 3 : index
      %189 = memref.load %arg7[%188, %c3_95] : memref<12x9xf32, #tpu.memory_space<smem>>
      %190 = arith.index_cast %arg32 : i32 to index
      %c1_96 = arith.constant 1 : index
      %c1_97 = arith.constant 1 : index
      %c0_98 = arith.constant 0 : index
      %191 = vector.load %arg26[%190, %c1_96, %c1_97, %c0_98] : memref<12x2x51x51xf32, #tpu.memory_space<vmem>>, vector<1x1x49x49xf32>
      %192 = vector.shape_cast %191 : vector<1x1x49x49xf32> to vector<49x49xf32>
      %193 = vector.broadcast %189 : f32 to vector<49x49xf32>
      %194 = arith.mulf %193, %192 : vector<49x49xf32>
      %195 = arith.addf %187, %194 : vector<49x49xf32>
      %196 = arith.index_cast %arg32 : i32 to index
      %c4_99 = arith.constant 4 : index
      %197 = memref.load %arg7[%196, %c4_99] : memref<12x9xf32, #tpu.memory_space<smem>>
      %198 = arith.index_cast %arg32 : i32 to index
      %c1_100 = arith.constant 1 : index
      %c1_101 = arith.constant 1 : index
      %c1_102 = arith.constant 1 : index
      %199 = vector.load %arg26[%198, %c1_100, %c1_101, %c1_102] : memref<12x2x51x51xf32, #tpu.memory_space<vmem>>, vector<1x1x49x49xf32>
      %200 = vector.shape_cast %199 : vector<1x1x49x49xf32> to vector<49x49xf32>
      %201 = vector.broadcast %197 : f32 to vector<49x49xf32>
      %202 = arith.mulf %201, %200 : vector<49x49xf32>
      %203 = arith.addf %195, %202 : vector<49x49xf32>
      %204 = arith.index_cast %arg32 : i32 to index
      %c5_103 = arith.constant 5 : index
      %205 = memref.load %arg7[%204, %c5_103] : memref<12x9xf32, #tpu.memory_space<smem>>
      %206 = arith.index_cast %arg32 : i32 to index
      %c1_104 = arith.constant 1 : index
      %c1_105 = arith.constant 1 : index
      %c2_106 = arith.constant 2 : index
      %207 = vector.load %arg26[%206, %c1_104, %c1_105, %c2_106] : memref<12x2x51x51xf32, #tpu.memory_space<vmem>>, vector<1x1x49x49xf32>
      %208 = vector.shape_cast %207 : vector<1x1x49x49xf32> to vector<49x49xf32>
      %209 = vector.broadcast %205 : f32 to vector<49x49xf32>
      %210 = arith.mulf %209, %208 : vector<49x49xf32>
      %211 = arith.addf %203, %210 : vector<49x49xf32>
      %212 = arith.index_cast %arg32 : i32 to index
      %c6_107 = arith.constant 6 : index
      %213 = memref.load %arg7[%212, %c6_107] : memref<12x9xf32, #tpu.memory_space<smem>>
      %214 = arith.index_cast %arg32 : i32 to index
      %c1_108 = arith.constant 1 : index
      %c2_109 = arith.constant 2 : index
      %c0_110 = arith.constant 0 : index
      %215 = vector.load %arg26[%214, %c1_108, %c2_109, %c0_110] : memref<12x2x51x51xf32, #tpu.memory_space<vmem>>, vector<1x1x49x49xf32>
      %216 = vector.shape_cast %215 : vector<1x1x49x49xf32> to vector<49x49xf32>
      %217 = vector.broadcast %213 : f32 to vector<49x49xf32>
      %218 = arith.mulf %217, %216 : vector<49x49xf32>
      %219 = arith.addf %211, %218 : vector<49x49xf32>
      %220 = arith.index_cast %arg32 : i32 to index
      %c7_111 = arith.constant 7 : index
      %221 = memref.load %arg7[%220, %c7_111] : memref<12x9xf32, #tpu.memory_space<smem>>
      %222 = arith.index_cast %arg32 : i32 to index
      %c1_112 = arith.constant 1 : index
      %c2_113 = arith.constant 2 : index
      %c1_114 = arith.constant 1 : index
      %223 = vector.load %arg26[%222, %c1_112, %c2_113, %c1_114] : memref<12x2x51x51xf32, #tpu.memory_space<vmem>>, vector<1x1x49x49xf32>
      %224 = vector.shape_cast %223 : vector<1x1x49x49xf32> to vector<49x49xf32>
      %225 = vector.broadcast %221 : f32 to vector<49x49xf32>
      %226 = arith.mulf %225, %224 : vector<49x49xf32>
      %227 = arith.addf %219, %226 : vector<49x49xf32>
      %228 = arith.index_cast %arg32 : i32 to index
      %c8_115 = arith.constant 8 : index
      %229 = memref.load %arg7[%228, %c8_115] : memref<12x9xf32, #tpu.memory_space<smem>>
      %230 = arith.index_cast %arg32 : i32 to index
      %c1_116 = arith.constant 1 : index
      %c2_117 = arith.constant 2 : index
      %c2_118 = arith.constant 2 : index
      %231 = vector.load %arg26[%230, %c1_116, %c2_117, %c2_118] : memref<12x2x51x51xf32, #tpu.memory_space<vmem>>, vector<1x1x49x49xf32>
      %232 = vector.shape_cast %231 : vector<1x1x49x49xf32> to vector<49x49xf32>
      %233 = vector.broadcast %229 : f32 to vector<49x49xf32>
      %234 = arith.mulf %233, %232 : vector<49x49xf32>
      %235 = arith.addf %227, %234 : vector<49x49xf32>
      %236 = arith.index_cast %arg32 : i32 to index
      %c1_119 = arith.constant 1 : index
      %c0_120 = arith.constant 0 : index
      %c0_121 = arith.constant 0 : index
      %237 = vector.load %arg27[%236, %c1_119, %c0_120, %c0_121] : memref<12x2x49x49xf32, #tpu.memory_space<vmem>>, vector<1x1x49x49xf32>
      %238 = vector.shape_cast %237 : vector<1x1x49x49xf32> to vector<49x49xf32>
      %239 = vector.shape_cast %235 : vector<49x49xf32> to vector<1x1x49x49xf32>
      tpu.vector_store %arg27[%236, %c1_119, %c0_120, %c0_121], %239 {strides = array<i32>} : memref<12x2x49x49xf32, #tpu.memory_space<vmem>>, vector<1x1x49x49xf32>,
    }
    %c12_i32_10 = arith.constant 12 : i32
    %5 = tpu.iota {dimensions = array<i32: 0>} : vector<2x4xi32>
    %6 = tpu.iota {dimensions = array<i32: 1>} : vector<2x4xi32>
    %c0_i32_11 = arith.constant 0 : i32
    %7 = vector.broadcast %c0_i32_11 : i32 to vector<2x4xi32>
    %8 = arith.cmpi eq, %5, %7 : vector<2x4xi32>
    %c0_i32_12 = arith.constant 0 : i32
    %9 = vector.broadcast %c0_i32_12 : i32 to vector<2x4xi32>
    %10 = arith.cmpi eq, %6, %9 : vector<2x4xi32>
    %11 = arith.andi %8, %10 : vector<2x4xi1>
    %cst_13 = arith.constant 1.000000e+00 : f32
    %cst_14 = arith.constant 0.000000e+00 : f32
    %12 = vector.broadcast %cst_13 : f32 to vector<2x4xf32>
    %13 = vector.broadcast %cst_14 : f32 to vector<2x4xf32>
    %14 = arith.select %11, %12, %13 : vector<2x4xi1>, vector<2x4xf32>
    %c0_i32_15 = arith.constant 0 : i32
    %15 = vector.broadcast %c0_i32_15 : i32 to vector<2x4xi32>
    %16 = arith.cmpi eq, %5, %15 : vector<2x4xi32>
    %c1_i32_16 = arith.constant 1 : i32
    %17 = vector.broadcast %c1_i32_16 : i32 to vector<2x4xi32>
    %18 = arith.cmpi eq, %6, %17 : vector<2x4xi32>
    %19 = arith.andi %16, %18 : vector<2x4xi1>
    %cst_17 = arith.constant 1.000000e+00 : f32
    %cst_18 = arith.constant 0.000000e+00 : f32
    %20 = vector.broadcast %cst_17 : f32 to vector<2x4xf32>
    %21 = vector.broadcast %cst_18 : f32 to vector<2x4xf32>
    %22 = arith.select %19, %20, %21 : vector<2x4xi1>, vector<2x4xf32>
    %c0_i32_19 = arith.constant 0 : i32
    %23 = vector.broadcast %c0_i32_19 : i32 to vector<2x4xi32>
    %24 = arith.cmpi eq, %5, %23 : vector<2x4xi32>
    %c2_i32 = arith.constant 2 : i32
    %25 = vector.broadcast %c2_i32 : i32 to vector<2x4xi32>
    %26 = arith.cmpi eq, %6, %25 : vector<2x4xi32>
    %27 = arith.andi %24, %26 : vector<2x4xi1>
    %cst_20 = arith.constant 1.000000e+00 : f32
    %cst_21 = arith.constant 0.000000e+00 : f32
    %28 = vector.broadcast %cst_20 : f32 to vector<2x4xf32>
    %29 = vector.broadcast %cst_21 : f32 to vector<2x4xf32>
    %30 = arith.select %27, %28, %29 : vector<2x4xi1>, vector<2x4xf32>
    %c0_i32_22 = arith.constant 0 : i32
    %31 = vector.broadcast %c0_i32_22 : i32 to vector<2x4xi32>
    %32 = arith.cmpi eq, %5, %31 : vector<2x4xi32>
    %c3_i32_23 = arith.constant 3 : i32
    %33 = vector.broadcast %c3_i32_23 : i32 to vector<2x4xi32>
    %34 = arith.cmpi eq, %6, %33 : vector<2x4xi32>
    %35 = arith.andi %32, %34 : vector<2x4xi1>
    %cst_24 = arith.constant 1.000000e+00 : f32
    %cst_25 = arith.constant 0.000000e+00 : f32
    %36 = vector.broadcast %cst_24 : f32 to vector<2x4xf32>
    %37 = vector.broadcast %cst_25 : f32 to vector<2x4xf32>
    %38 = arith.select %35, %36, %37 : vector<2x4xi1>, vector<2x4xf32>
    %c1_i32_26 = arith.constant 1 : i32
    %39 = vector.broadcast %c1_i32_26 : i32 to vector<2x4xi32>
    %40 = arith.cmpi eq, %5, %39 : vector<2x4xi32>
    %c0_i32_27 = arith.constant 0 : i32
    %41 = vector.broadcast %c0_i32_27 : i32 to vector<2x4xi32>
    %42 = arith.cmpi eq, %6, %41 : vector<2x4xi32>
    %43 = arith.andi %40, %42 : vector<2x4xi1>
    %cst_28 = arith.constant 1.000000e+00 : f32
    %cst_29 = arith.constant 0.000000e+00 : f32
    %44 = vector.broadcast %cst_28 : f32 to vector<2x4xf32>
    %45 = vector.broadcast %cst_29 : f32 to vector<2x4xf32>
    %46 = arith.select %43, %44, %45 : vector<2x4xi1>, vector<2x4xf32>
    %c1_i32_30 = arith.constant 1 : i32
    %47 = vector.broadcast %c1_i32_30 : i32 to vector<2x4xi32>
    %48 = arith.cmpi eq, %5, %47 : vector<2x4xi32>
    %c1_i32_31 = arith.constant 1 : i32
    %49 = vector.broadcast %c1_i32_31 : i32 to vector<2x4xi32>
    %50 = arith.cmpi eq, %6, %49 : vector<2x4xi32>
    %51 = arith.andi %48, %50 : vector<2x4xi1>
    %cst_32 = arith.constant 1.000000e+00 : f32
    %cst_33 = arith.constant 0.000000e+00 : f32
    %52 = vector.broadcast %cst_32 : f32 to vector<2x4xf32>
    %53 = vector.broadcast %cst_33 : f32 to vector<2x4xf32>
    %54 = arith.select %51, %52, %53 : vector<2x4xi1>, vector<2x4xf32>
    %c1_i32_34 = arith.constant 1 : i32
    %55 = vector.broadcast %c1_i32_34 : i32 to vector<2x4xi32>
    %56 = arith.cmpi eq, %5, %55 : vector<2x4xi32>
    %c2_i32_35 = arith.constant 2 : i32
    %57 = vector.broadcast %c2_i32_35 : i32 to vector<2x4xi32>
    %58 = arith.cmpi eq, %6, %57 : vector<2x4xi32>
    %59 = arith.andi %56, %58 : vector<2x4xi1>
    %cst_36 = arith.constant 1.000000e+00 : f32
    %cst_37 = arith.constant 0.000000e+00 : f32
    %60 = vector.broadcast %cst_36 : f32 to vector<2x4xf32>
    %61 = vector.broadcast %cst_37 : f32 to vector<2x4xf32>
    %62 = arith.select %59, %60, %61 : vector<2x4xi1>, vector<2x4xf32>
    %c1_i32_38 = arith.constant 1 : i32
    %63 = vector.broadcast %c1_i32_38 : i32 to vector<2x4xi32>
    %64 = arith.cmpi eq, %5, %63 : vector<2x4xi32>
    %c3_i32_39 = arith.constant 3 : i32
    %65 = vector.broadcast %c3_i32_39 : i32 to vector<2x4xi32>
    %66 = arith.cmpi eq, %6, %65 : vector<2x4xi32>
    %67 = arith.andi %64, %66 : vector<2x4xi1>
    %cst_40 = arith.constant 1.000000e+00 : f32
    %cst_41 = arith.constant 0.000000e+00 : f32
    %68 = vector.broadcast %cst_40 : f32 to vector<2x4xf32>
    %69 = vector.broadcast %cst_41 : f32 to vector<2x4xf32>
    %70 = arith.select %67, %68, %69 : vector<2x4xi1>, vector<2x4xf32>
    %cst_42 = arith.constant 0.000000e+00 : f32
    %71 = vector.broadcast %cst_42 : f32 to vector<2x4xf32>
    %c0_i32_43 = arith.constant 0 : i32
    %c32_i32 = arith.constant 32 : i32
    %72 = arith.addi %c0_i32_43, %c32_i32 : i32
    %c1_i32_44 = arith.constant 1 : i32
    %73 = scf.for %arg32 = %c0_i32_43 to %72 step %c1_i32_44 iter_args(%arg33 = %71) -> (vector<2x4xf32>)  : i32 {
      %78 = arith.index_cast %arg32 : i32 to index
      %79 = memref.load %arg10[%78] : memref<32xf32, #tpu.memory_space<smem>>
      %cst_50 = arith.constant 0.000000e+00 : f32
      %80 = vector.broadcast %cst_50 : f32 to vector<49x49xf32>
      %81 = vector.broadcast %79 : f32 to vector<49x49xf32>
      %82 = arith.addf %80, %81 : vector<49x49xf32>
      %83 = arith.index_cast %arg32 : i32 to index
      %c0_51 = arith.constant 0 : index
      %84 = memref.load %arg9[%83, %c0_51] : memref<32x12xf32, #tpu.memory_space<smem>>
      %c0_52 = arith.constant 0 : index
      %c0_53 = arith.constant 0 : index
      %c0_54 = arith.constant 0 : index
      %c0_55 = arith.constant 0 : index
      %85 = vector.load %arg27[%c0_52, %c0_53, %c0_54, %c0_55] : memref<12x2x49x49xf32, #tpu.memory_space<vmem>>, vector<1x1x49x49xf32>
      %86 = vector.shape_cast %85 : vector<1x1x49x49xf32> to vector<49x49xf32>
      %87 = vector.broadcast %84 : f32 to vector<49x49xf32>
      %88 = arith.mulf %87, %86 : vector<49x49xf32>
      %89 = arith.addf %82, %88 : vector<49x49xf32>
      %90 = arith.index_cast %arg32 : i32 to index
      %c1 = arith.constant 1 : index
      %91 = memref.load %arg9[%90, %c1] : memref<32x12xf32, #tpu.memory_space<smem>>
      %c1_56 = arith.constant 1 : index
      %c0_57 = arith.constant 0 : index
      %c0_58 = arith.constant 0 : index
      %c0_59 = arith.constant 0 : index
      %92 = vector.load %arg27[%c1_56, %c0_57, %c0_58, %c0_59] : memref<12x2x49x49xf32, #tpu.memory_space<vmem>>, vector<1x1x49x49xf32>
      %93 = vector.shape_cast %92 : vector<1x1x49x49xf32> to vector<49x49xf32>
      %94 = vector.broadcast %91 : f32 to vector<49x49xf32>
      %95 = arith.mulf %94, %93 : vector<49x49xf32>
      %96 = arith.addf %89, %95 : vector<49x49xf32>
      %97 = arith.index_cast %arg32 : i32 to index
      %c2 = arith.constant 2 : index
      %98 = memref.load %arg9[%97, %c2] : memref<32x12xf32, #tpu.memory_space<smem>>
      %c2_60 = arith.constant 2 : index
      %c0_61 = arith.constant 0 : index
      %c0_62 = arith.constant 0 : index
      %c0_63 = arith.constant 0 : index
      %99 = vector.load %arg27[%c2_60, %c0_61, %c0_62, %c0_63] : memref<12x2x49x49xf32, #tpu.memory_space<vmem>>, vector<1x1x49x49xf32>
      %100 = vector.shape_cast %99 : vector<1x1x49x49xf32> to vector<49x49xf32>
      %101 = vector.broadcast %98 : f32 to vector<49x49xf32>
      %102 = arith.mulf %101, %100 : vector<49x49xf32>
      %103 = arith.addf %96, %102 : vector<49x49xf32>
      %104 = arith.index_cast %arg32 : i32 to index
      %c3 = arith.constant 3 : index
      %105 = memref.load %arg9[%104, %c3] : memref<32x12xf32, #tpu.memory_space<smem>>
      %c3_64 = arith.constant 3 : index
      %c0_65 = arith.constant 0 : index
      %c0_66 = arith.constant 0 : index
      %c0_67 = arith.constant 0 : index
      %106 = vector.load %arg27[%c3_64, %c0_65, %c0_66, %c0_67] : memref<12x2x49x49xf32, #tpu.memory_space<vmem>>, vector<1x1x49x49xf32>
      %107 = vector.shape_cast %106 : vector<1x1x49x49xf32> to vector<49x49xf32>
      %108 = vector.broadcast %105 : f32 to vector<49x49xf32>
      %109 = arith.mulf %108, %107 : vector<49x49xf32>
      %110 = arith.addf %103, %109 : vector<49x49xf32>
      %111 = arith.index_cast %arg32 : i32 to index
      %c4 = arith.constant 4 : index
      %112 = memref.load %arg9[%111, %c4] : memref<32x12xf32, #tpu.memory_space<smem>>
      %c4_68 = arith.constant 4 : index
      %c0_69 = arith.constant 0 : index
      %c0_70 = arith.constant 0 : index
      %c0_71 = arith.constant 0 : index
      %113 = vector.load %arg27[%c4_68, %c0_69, %c0_70, %c0_71] : memref<12x2x49x49xf32, #tpu.memory_space<vmem>>, vector<1x1x49x49xf32>
      %114 = vector.shape_cast %113 : vector<1x1x49x49xf32> to vector<49x49xf32>
      %115 = vector.broadcast %112 : f32 to vector<49x49xf32>
      %116 = arith.mulf %115, %114 : vector<49x49xf32>
      %117 = arith.addf %110, %116 : vector<49x49xf32>
      %118 = arith.index_cast %arg32 : i32 to index
      %c5 = arith.constant 5 : index
      %119 = memref.load %arg9[%118, %c5] : memref<32x12xf32, #tpu.memory_space<smem>>
      %c5_72 = arith.constant 5 : index
      %c0_73 = arith.constant 0 : index
      %c0_74 = arith.constant 0 : index
      %c0_75 = arith.constant 0 : index
      %120 = vector.load %arg27[%c5_72, %c0_73, %c0_74, %c0_75] : memref<12x2x49x49xf32, #tpu.memory_space<vmem>>, vector<1x1x49x49xf32>
      %121 = vector.shape_cast %120 : vector<1x1x49x49xf32> to vector<49x49xf32>
      %122 = vector.broadcast %119 : f32 to vector<49x49xf32>
      %123 = arith.mulf %122, %121 : vector<49x49xf32>
      %124 = arith.addf %117, %123 : vector<49x49xf32>
      %125 = arith.index_cast %arg32 : i32 to index
      %c6 = arith.constant 6 : index
      %126 = memref.load %arg9[%125, %c6] : memref<32x12xf32, #tpu.memory_space<smem>>
      %c6_76 = arith.constant 6 : index
      %c0_77 = arith.constant 0 : index
      %c0_78 = arith.constant 0 : index
      %c0_79 = arith.constant 0 : index
      %127 = vector.load %arg27[%c6_76, %c0_77, %c0_78, %c0_79] : memref<12x2x49x49xf32, #tpu.memory_space<vmem>>, vector<1x1x49x49xf32>
      %128 = vector.shape_cast %127 : vector<1x1x49x49xf32> to vector<49x49xf32>
      %129 = vector.broadcast %126 : f32 to vector<49x49xf32>
      %130 = arith.mulf %129, %128 : vector<49x49xf32>
      %131 = arith.addf %124, %130 : vector<49x49xf32>
      %132 = arith.index_cast %arg32 : i32 to index
      %c7 = arith.constant 7 : index
      %133 = memref.load %arg9[%132, %c7] : memref<32x12xf32, #tpu.memory_space<smem>>
      %c7_80 = arith.constant 7 : index
      %c0_81 = arith.constant 0 : index
      %c0_82 = arith.constant 0 : index
      %c0_83 = arith.constant 0 : index
      %134 = vector.load %arg27[%c7_80, %c0_81, %c0_82, %c0_83] : memref<12x2x49x49xf32, #tpu.memory_space<vmem>>, vector<1x1x49x49xf32>
      %135 = vector.shape_cast %134 : vector<1x1x49x49xf32> to vector<49x49xf32>
      %136 = vector.broadcast %133 : f32 to vector<49x49xf32>
      %137 = arith.mulf %136, %135 : vector<49x49xf32>
      %138 = arith.addf %131, %137 : vector<49x49xf32>
      %139 = arith.index_cast %arg32 : i32 to index
      %c8 = arith.constant 8 : index
      %140 = memref.load %arg9[%139, %c8] : memref<32x12xf32, #tpu.memory_space<smem>>
      %c8_84 = arith.constant 8 : index
      %c0_85 = arith.constant 0 : index
      %c0_86 = arith.constant 0 : index
      %c0_87 = arith.constant 0 : index
      %141 = vector.load %arg27[%c8_84, %c0_85, %c0_86, %c0_87] : memref<12x2x49x49xf32, #tpu.memory_space<vmem>>, vector<1x1x49x49xf32>
      %142 = vector.shape_cast %141 : vector<1x1x49x49xf32> to vector<49x49xf32>
      %143 = vector.broadcast %140 : f32 to vector<49x49xf32>
      %144 = arith.mulf %143, %142 : vector<49x49xf32>
      %145 = arith.addf %138, %144 : vector<49x49xf32>
      %146 = arith.index_cast %arg32 : i32 to index
      %c9 = arith.constant 9 : index
      %147 = memref.load %arg9[%146, %c9] : memref<32x12xf32, #tpu.memory_space<smem>>
      %c9_88 = arith.constant 9 : index
      %c0_89 = arith.constant 0 : index
      %c0_90 = arith.constant 0 : index
      %c0_91 = arith.constant 0 : index
      %148 = vector.load %arg27[%c9_88, %c0_89, %c0_90, %c0_91] : memref<12x2x49x49xf32, #tpu.memory_space<vmem>>, vector<1x1x49x49xf32>
      %149 = vector.shape_cast %148 : vector<1x1x49x49xf32> to vector<49x49xf32>
      %150 = vector.broadcast %147 : f32 to vector<49x49xf32>
      %151 = arith.mulf %150, %149 : vector<49x49xf32>
      %152 = arith.addf %145, %151 : vector<49x49xf32>
      %153 = arith.index_cast %arg32 : i32 to index
      %c10 = arith.constant 10 : index
      %154 = memref.load %arg9[%153, %c10] : memref<32x12xf32, #tpu.memory_space<smem>>
      %c10_92 = arith.constant 10 : index
      %c0_93 = arith.constant 0 : index
      %c0_94 = arith.constant 0 : index
      %c0_95 = arith.constant 0 : index
      %155 = vector.load %arg27[%c10_92, %c0_93, %c0_94, %c0_95] : memref<12x2x49x49xf32, #tpu.memory_space<vmem>>, vector<1x1x49x49xf32>
      %156 = vector.shape_cast %155 : vector<1x1x49x49xf32> to vector<49x49xf32>
      %157 = vector.broadcast %154 : f32 to vector<49x49xf32>
      %158 = arith.mulf %157, %156 : vector<49x49xf32>
      %159 = arith.addf %152, %158 : vector<49x49xf32>
      %160 = arith.index_cast %arg32 : i32 to index
      %c11 = arith.constant 11 : index
      %161 = memref.load %arg9[%160, %c11] : memref<32x12xf32, #tpu.memory_space<smem>>
      %c11_96 = arith.constant 11 : index
      %c0_97 = arith.constant 0 : index
      %c0_98 = arith.constant 0 : index
      %c0_99 = arith.constant 0 : index
      %162 = vector.load %arg27[%c11_96, %c0_97, %c0_98, %c0_99] : memref<12x2x49x49xf32, #tpu.memory_space<vmem>>, vector<1x1x49x49xf32>
      %163 = vector.shape_cast %162 : vector<1x1x49x49xf32> to vector<49x49xf32>
      %164 = vector.broadcast %161 : f32 to vector<49x49xf32>
      %165 = arith.mulf %164, %163 : vector<49x49xf32>
      %166 = arith.addf %159, %165 : vector<49x49xf32>
      %c0_100 = arith.constant 0 : index
      %c0_101 = arith.constant 0 : index
      %c0_102 = arith.constant 0 : index
      %167 = vector.load %arg28[%c0_100, %c0_101, %c0_102] : memref<2x49x49xf32, #tpu.memory_space<vmem>>, vector<1x49x49xf32>
      %168 = vector.shape_cast %167 : vector<1x49x49xf32> to vector<49x49xf32>
      %169 = vector.shape_cast %166 : vector<49x49xf32> to vector<1x49x49xf32>
      tpu.vector_store %arg28[%c0_100, %c0_101, %c0_102], %169 {strides = array<i32>} : memref<2x49x49xf32, #tpu.memory_space<vmem>>, vector<1x49x49xf32>,
      %170 = vector.shape_cast %166 : vector<49x49xf32> to vector<1x49x49xf32>
      %cst_103 = arith.constant dense<0.000000e+00> : vector<1xf32>
      %171 = vector.multi_reduction <add>, %170, %cst_103 [1, 2] : vector<1x49x49xf32> to vector<1xf32>
      %172 = vector.shape_cast %171 : vector<1xf32> to vector<1x1x1xf32>
      %173 = vector.extract %172[0, 0, 0] : f32 from vector<1x1x1xf32>
      %cst_104 = arith.constant 0.000000e+00 : f32
      %174 = arith.addf %cst_104, %173 : f32
      %cst_105 = arith.constant 0.000000e+00 : f32
      %175 = vector.broadcast %cst_105 : f32 to vector<49x49xf32>
      %176 = vector.broadcast %79 : f32 to vector<49x49xf32>
      %177 = arith.addf %175, %176 : vector<49x49xf32>
      %178 = arith.index_cast %arg32 : i32 to index
      %c0_106 = arith.constant 0 : index
      %179 = memref.load %arg9[%178, %c0_106] : memref<32x12xf32, #tpu.memory_space<smem>>
      %c0_107 = arith.constant 0 : index
      %c1_108 = arith.constant 1 : index
      %c0_109 = arith.constant 0 : index
      %c0_110 = arith.constant 0 : index
      %180 = vector.load %arg27[%c0_107, %c1_108, %c0_109, %c0_110] : memref<12x2x49x49xf32, #tpu.memory_space<vmem>>, vector<1x1x49x49xf32>
      %181 = vector.shape_cast %180 : vector<1x1x49x49xf32> to vector<49x49xf32>
      %182 = vector.broadcast %179 : f32 to vector<49x49xf32>
      %183 = arith.mulf %182, %181 : vector<49x49xf32>
      %184 = arith.addf %177, %183 : vector<49x49xf32>
      %185 = arith.index_cast %arg32 : i32 to index
      %c1_111 = arith.constant 1 : index
      %186 = memref.load %arg9[%185, %c1_111] : memref<32x12xf32, #tpu.memory_space<smem>>
      %c1_112 = arith.constant 1 : index
      %c1_113 = arith.constant 1 : index
      %c0_114 = arith.constant 0 : index
      %c0_115 = arith.constant 0 : index
      %187 = vector.load %arg27[%c1_112, %c1_113, %c0_114, %c0_115] : memref<12x2x49x49xf32, #tpu.memory_space<vmem>>, vector<1x1x49x49xf32>
      %188 = vector.shape_cast %187 : vector<1x1x49x49xf32> to vector<49x49xf32>
      %189 = vector.broadcast %186 : f32 to vector<49x49xf32>
      %190 = arith.mulf %189, %188 : vector<49x49xf32>
      %191 = arith.addf %184, %190 : vector<49x49xf32>
      %192 = arith.index_cast %arg32 : i32 to index
      %c2_116 = arith.constant 2 : index
      %193 = memref.load %arg9[%192, %c2_116] : memref<32x12xf32, #tpu.memory_space<smem>>
      %c2_117 = arith.constant 2 : index
      %c1_118 = arith.constant 1 : index
      %c0_119 = arith.constant 0 : index
      %c0_120 = arith.constant 0 : index
      %194 = vector.load %arg27[%c2_117, %c1_118, %c0_119, %c0_120] : memref<12x2x49x49xf32, #tpu.memory_space<vmem>>, vector<1x1x49x49xf32>
      %195 = vector.shape_cast %194 : vector<1x1x49x49xf32> to vector<49x49xf32>
      %196 = vector.broadcast %193 : f32 to vector<49x49xf32>
      %197 = arith.mulf %196, %195 : vector<49x49xf32>
      %198 = arith.addf %191, %197 : vector<49x49xf32>
      %199 = arith.index_cast %arg32 : i32 to index
      %c3_121 = arith.constant 3 : index
      %200 = memref.load %arg9[%199, %c3_121] : memref<32x12xf32, #tpu.memory_space<smem>>
      %c3_122 = arith.constant 3 : index
      %c1_123 = arith.constant 1 : index
      %c0_124 = arith.constant 0 : index
      %c0_125 = arith.constant 0 : index
      %201 = vector.load %arg27[%c3_122, %c1_123, %c0_124, %c0_125] : memref<12x2x49x49xf32, #tpu.memory_space<vmem>>, vector<1x1x49x49xf32>
      %202 = vector.shape_cast %201 : vector<1x1x49x49xf32> to vector<49x49xf32>
      %203 = vector.broadcast %200 : f32 to vector<49x49xf32>
      %204 = arith.mulf %203, %202 : vector<49x49xf32>
      %205 = arith.addf %198, %204 : vector<49x49xf32>
      %206 = arith.index_cast %arg32 : i32 to index
      %c4_126 = arith.constant 4 : index
      %207 = memref.load %arg9[%206, %c4_126] : memref<32x12xf32, #tpu.memory_space<smem>>
      %c4_127 = arith.constant 4 : index
      %c1_128 = arith.constant 1 : index
      %c0_129 = arith.constant 0 : index
      %c0_130 = arith.constant 0 : index
      %208 = vector.load %arg27[%c4_127, %c1_128, %c0_129, %c0_130] : memref<12x2x49x49xf32, #tpu.memory_space<vmem>>, vector<1x1x49x49xf32>
      %209 = vector.shape_cast %208 : vector<1x1x49x49xf32> to vector<49x49xf32>
      %210 = vector.broadcast %207 : f32 to vector<49x49xf32>
      %211 = arith.mulf %210, %209 : vector<49x49xf32>
      %212 = arith.addf %205, %211 : vector<49x49xf32>
      %213 = arith.index_cast %arg32 : i32 to index
      %c5_131 = arith.constant 5 : index
      %214 = memref.load %arg9[%213, %c5_131] : memref<32x12xf32, #tpu.memory_space<smem>>
      %c5_132 = arith.constant 5 : index
      %c1_133 = arith.constant 1 : index
      %c0_134 = arith.constant 0 : index
      %c0_135 = arith.constant 0 : index
      %215 = vector.load %arg27[%c5_132, %c1_133, %c0_134, %c0_135] : memref<12x2x49x49xf32, #tpu.memory_space<vmem>>, vector<1x1x49x49xf32>
      %216 = vector.shape_cast %215 : vector<1x1x49x49xf32> to vector<49x49xf32>
      %217 = vector.broadcast %214 : f32 to vector<49x49xf32>
      %218 = arith.mulf %217, %216 : vector<49x49xf32>
      %219 = arith.addf %212, %218 : vector<49x49xf32>
      %220 = arith.index_cast %arg32 : i32 to index
      %c6_136 = arith.constant 6 : index
      %221 = memref.load %arg9[%220, %c6_136] : memref<32x12xf32, #tpu.memory_space<smem>>
      %c6_137 = arith.constant 6 : index
      %c1_138 = arith.constant 1 : index
      %c0_139 = arith.constant 0 : index
      %c0_140 = arith.constant 0 : index
      %222 = vector.load %arg27[%c6_137, %c1_138, %c0_139, %c0_140] : memref<12x2x49x49xf32, #tpu.memory_space<vmem>>, vector<1x1x49x49xf32>
      %223 = vector.shape_cast %222 : vector<1x1x49x49xf32> to vector<49x49xf32>
      %224 = vector.broadcast %221 : f32 to vector<49x49xf32>
      %225 = arith.mulf %224, %223 : vector<49x49xf32>
      %226 = arith.addf %219, %225 : vector<49x49xf32>
      %227 = arith.index_cast %arg32 : i32 to index
      %c7_141 = arith.constant 7 : index
      %228 = memref.load %arg9[%227, %c7_141] : memref<32x12xf32, #tpu.memory_space<smem>>
      %c7_142 = arith.constant 7 : index
      %c1_143 = arith.constant 1 : index
      %c0_144 = arith.constant 0 : index
      %c0_145 = arith.constant 0 : index
      %229 = vector.load %arg27[%c7_142, %c1_143, %c0_144, %c0_145] : memref<12x2x49x49xf32, #tpu.memory_space<vmem>>, vector<1x1x49x49xf32>
      %230 = vector.shape_cast %229 : vector<1x1x49x49xf32> to vector<49x49xf32>
      %231 = vector.broadcast %228 : f32 to vector<49x49xf32>
      %232 = arith.mulf %231, %230 : vector<49x49xf32>
      %233 = arith.addf %226, %232 : vector<49x49xf32>
      %234 = arith.index_cast %arg32 : i32 to index
      %c8_146 = arith.constant 8 : index
      %235 = memref.load %arg9[%234, %c8_146] : memref<32x12xf32, #tpu.memory_space<smem>>
      %c8_147 = arith.constant 8 : index
      %c1_148 = arith.constant 1 : index
      %c0_149 = arith.constant 0 : index
      %c0_150 = arith.constant 0 : index
      %236 = vector.load %arg27[%c8_147, %c1_148, %c0_149, %c0_150] : memref<12x2x49x49xf32, #tpu.memory_space<vmem>>, vector<1x1x49x49xf32>
      %237 = vector.shape_cast %236 : vector<1x1x49x49xf32> to vector<49x49xf32>
      %238 = vector.broadcast %235 : f32 to vector<49x49xf32>
      %239 = arith.mulf %238, %237 : vector<49x49xf32>
      %240 = arith.addf %233, %239 : vector<49x49xf32>
      %241 = arith.index_cast %arg32 : i32 to index
      %c9_151 = arith.constant 9 : index
      %242 = memref.load %arg9[%241, %c9_151] : memref<32x12xf32, #tpu.memory_space<smem>>
      %c9_152 = arith.constant 9 : index
      %c1_153 = arith.constant 1 : index
      %c0_154 = arith.constant 0 : index
      %c0_155 = arith.constant 0 : index
      %243 = vector.load %arg27[%c9_152, %c1_153, %c0_154, %c0_155] : memref<12x2x49x49xf32, #tpu.memory_space<vmem>>, vector<1x1x49x49xf32>
      %244 = vector.shape_cast %243 : vector<1x1x49x49xf32> to vector<49x49xf32>
      %245 = vector.broadcast %242 : f32 to vector<49x49xf32>
      %246 = arith.mulf %245, %244 : vector<49x49xf32>
      %247 = arith.addf %240, %246 : vector<49x49xf32>
      %248 = arith.index_cast %arg32 : i32 to index
      %c10_156 = arith.constant 10 : index
      %249 = memref.load %arg9[%248, %c10_156] : memref<32x12xf32, #tpu.memory_space<smem>>
      %c10_157 = arith.constant 10 : index
      %c1_158 = arith.constant 1 : index
      %c0_159 = arith.constant 0 : index
      %c0_160 = arith.constant 0 : index
      %250 = vector.load %arg27[%c10_157, %c1_158, %c0_159, %c0_160] : memref<12x2x49x49xf32, #tpu.memory_space<vmem>>, vector<1x1x49x49xf32>
      %251 = vector.shape_cast %250 : vector<1x1x49x49xf32> to vector<49x49xf32>
      %252 = vector.broadcast %249 : f32 to vector<49x49xf32>
      %253 = arith.mulf %252, %251 : vector<49x49xf32>
      %254 = arith.addf %247, %253 : vector<49x49xf32>
      %255 = arith.index_cast %arg32 : i32 to index
      %c11_161 = arith.constant 11 : index
      %256 = memref.load %arg9[%255, %c11_161] : memref<32x12xf32, #tpu.memory_space<smem>>
      %c11_162 = arith.constant 11 : index
      %c1_163 = arith.constant 1 : index
      %c0_164 = arith.constant 0 : index
      %c0_165 = arith.constant 0 : index
      %257 = vector.load %arg27[%c11_162, %c1_163, %c0_164, %c0_165] : memref<12x2x49x49xf32, #tpu.memory_space<vmem>>, vector<1x1x49x49xf32>
      %258 = vector.shape_cast %257 : vector<1x1x49x49xf32> to vector<49x49xf32>
      %259 = vector.broadcast %256 : f32 to vector<49x49xf32>
      %260 = arith.mulf %259, %258 : vector<49x49xf32>
      %261 = arith.addf %254, %260 : vector<49x49xf32>
      %c1_166 = arith.constant 1 : index
      %c0_167 = arith.constant 0 : index
      %c0_168 = arith.constant 0 : index
      %262 = vector.load %arg28[%c1_166, %c0_167, %c0_168] : memref<2x49x49xf32, #tpu.memory_space<vmem>>, vector<1x49x49xf32>
      %263 = vector.shape_cast %262 : vector<1x49x49xf32> to vector<49x49xf32>
      %264 = vector.shape_cast %261 : vector<49x49xf32> to vector<1x49x49xf32>
      tpu.vector_store %arg28[%c1_166, %c0_167, %c0_168], %264 {strides = array<i32>} : memref<2x49x49xf32, #tpu.memory_space<vmem>>, vector<1x49x49xf32>,
      %265 = vector.shape_cast %261 : vector<49x49xf32> to vector<1x49x49xf32>
      %cst_169 = arith.constant dense<0.000000e+00> : vector<1xf32>
      %266 = vector.multi_reduction <add>, %265, %cst_169 [1, 2] : vector<1x49x49xf32> to vector<1xf32>
      %267 = vector.shape_cast %266 : vector<1xf32> to vector<1x1x1xf32>
      %268 = vector.extract %267[0, 0, 0] : f32 from vector<1x1x1xf32>
      %269 = arith.addf %174, %268 : f32
      %cst_170 = arith.constant 4.000000e+02 : f32
      %270 = arith.mulf %cst_170, %79 : f32
      %271 = arith.addf %269, %270 : f32
      %cst_171 = arith.constant 5.202000e+03 : f32
      %272 = arith.divf %271, %cst_171 : f32
      %273 = arith.subf %79, %272 : f32
      %cst_172 = arith.constant 4.000000e+02 : f32
      %274 = arith.mulf %cst_172, %273 : f32
      %275 = arith.subf %79, %272 : f32
      %276 = arith.mulf %274, %275 : f32
      %c0_173 = arith.constant 0 : index
      %c0_174 = arith.constant 0 : index
      %c0_175 = arith.constant 0 : index
      %277 = vector.load %arg28[%c0_173, %c0_174, %c0_175] : memref<2x49x49xf32, #tpu.memory_space<vmem>>, vector<1x49x49xf32>
      %278 = vector.shape_cast %277 : vector<1x49x49xf32> to vector<49x49xf32>
      %279 = vector.broadcast %272 : f32 to vector<49x49xf32>
      %280 = arith.subf %278, %279 : vector<49x49xf32>
      %281 = arith.mulf %280, %280 : vector<49x49xf32>
      %282 = vector.shape_cast %281 : vector<49x49xf32> to vector<1x49x49xf32>
      %cst_176 = arith.constant dense<0.000000e+00> : vector<1xf32>
      %283 = vector.multi_reduction <add>, %282, %cst_176 [1, 2] : vector<1x49x49xf32> to vector<1xf32>
      %284 = vector.shape_cast %283 : vector<1xf32> to vector<1x1x1xf32>
      %285 = vector.extract %284[0, 0, 0] : f32 from vector<1x1x1xf32>
      %286 = arith.addf %276, %285 : f32
      %c1_177 = arith.constant 1 : index
      %c0_178 = arith.constant 0 : index
      %c0_179 = arith.constant 0 : index
      %287 = vector.load %arg28[%c1_177, %c0_178, %c0_179] : memref<2x49x49xf32, #tpu.memory_space<vmem>>, vector<1x49x49xf32>
      %288 = vector.shape_cast %287 : vector<1x49x49xf32> to vector<49x49xf32>
      %289 = vector.broadcast %272 : f32 to vector<49x49xf32>
      %290 = arith.subf %288, %289 : vector<49x49xf32>
      %291 = arith.mulf %290, %290 : vector<49x49xf32>
      %292 = vector.shape_cast %291 : vector<49x49xf32> to vector<1x49x49xf32>
      %cst_180 = arith.constant dense<0.000000e+00> : vector<1xf32>
      %293 = vector.multi_reduction <add>, %292, %cst_180 [1, 2] : vector<1x49x49xf32> to vector<1xf32>
      %294 = vector.shape_cast %293 : vector<1xf32> to vector<1x1x1xf32>
      %295 = vector.extract %294[0, 0, 0] : f32 from vector<1x1x1xf32>
      %296 = arith.addf %286, %295 : f32
      %cst_181 = arith.constant 5.202000e+03 : f32
      %297 = arith.divf %296, %cst_181 : f32
      %298 = arith.index_cast %arg32 : i32 to index
      %299 = memref.load %arg11[%298] : memref<32xf32, #tpu.memory_space<smem>>
      %cst_182 = arith.constant 9.99999974E-6 : f32
      %300 = arith.addf %297, %cst_182 : f32
      %301 = math.rsqrt %300 : f32
      %302 = arith.mulf %299, %301 : f32
      %303 = arith.index_cast %arg32 : i32 to index
      %304 = memref.load %arg12[%303] : memref<32xf32, #tpu.memory_space<smem>>
      %305 = arith.mulf %272, %302 : f32
      %306 = arith.subf %304, %305 : f32
      %307 = arith.mulf %79, %302 : f32
      %308 = arith.addf %307, %306 : f32
      %cst_183 = arith.constant 0.000000e+00 : f32
      %309 = arith.maximumf %308, %cst_183 : f32
      %c0_184 = arith.constant 0 : index
      %c0_185 = arith.constant 0 : index
      %c0_186 = arith.constant 0 : index
      %310 = vector.load %arg28[%c0_184, %c0_185, %c0_186] : memref<2x49x49xf32, #tpu.memory_space<vmem>>, vector<1x49x49xf32>
      %311 = vector.shape_cast %310 : vector<1x49x49xf32> to vector<49x49xf32>
      %312 = vector.broadcast %302 : f32 to vector<49x49xf32>
      %313 = arith.mulf %311, %312 : vector<49x49xf32>
      %314 = vector.broadcast %306 : f32 to vector<49x49xf32>
      %315 = arith.addf %313, %314 : vector<49x49xf32>
      %cst_187 = arith.constant 0.000000e+00 : f32
      %316 = vector.broadcast %cst_187 : f32 to vector<49x49xf32>
      %317 = arith.maximumf %315, %316 : vector<49x49xf32>
      %cst_188 = arith.constant 0.000000e+00 : f32
      %318 = vector.broadcast %cst_188 : f32 to vector<51x51xf32>
      %319 = vector.broadcast %309 : f32 to vector<51x51xf32>
      %320 = arith.addf %318, %319 : vector<51x51xf32>
      %c0_189 = arith.constant 0 : index
      %c0_190 = arith.constant 0 : index
      %321 = vector.load %arg29[%c0_189, %c0_190] : memref<51x51xf32, #tpu.memory_space<vmem>>, vector<51x51xf32>
      tpu.vector_store %arg29[%c0_189, %c0_190], %320 {strides = array<i32>} : memref<51x51xf32, #tpu.memory_space<vmem>>, vector<51x51xf32>,
      %c1_191 = arith.constant 1 : index
      %c1_192 = arith.constant 1 : index
      %322 = vector.load %arg29[%c1_191, %c1_192] : memref<51x51xf32, #tpu.memory_space<vmem>>, vector<49x49xf32>
      tpu.vector_store %arg29[%c1_191, %c1_192], %317 {strides = array<i32>} : memref<51x51xf32, #tpu.memory_space<vmem>>, vector<49x49xf32>,
      %c0_193 = arith.constant 0 : index
      %c0_194 = arith.constant 0 : index
      %323 = vector.load %arg29[%c0_193, %c0_194] : memref<51x51xf32, #tpu.memory_space<vmem>>, vector<49x49xf32>
      %c0_195 = arith.constant 0 : index
      %c1_196 = arith.constant 1 : index
      %324 = vector.load %arg29[%c0_195, %c1_196] : memref<51x51xf32, #tpu.memory_space<vmem>>, vector<49x49xf32>
      %325 = arith.maximumf %323, %324 : vector<49x49xf32>
      %c0_197 = arith.constant 0 : index
      %c2_198 = arith.constant 2 : index
      %326 = vector.load %arg29[%c0_197, %c2_198] : memref<51x51xf32, #tpu.memory_space<vmem>>, vector<49x49xf32>
      %327 = arith.maximumf %325, %326 : vector<49x49xf32>
      %c1_199 = arith.constant 1 : index
      %c0_200 = arith.constant 0 : index
      %328 = vector.load %arg29[%c1_199, %c0_200] : memref<51x51xf32, #tpu.memory_space<vmem>>, vector<49x49xf32>
      %329 = arith.maximumf %327, %328 : vector<49x49xf32>
      %c1_201 = arith.constant 1 : index
      %c1_202 = arith.constant 1 : index
      %330 = vector.load %arg29[%c1_201, %c1_202] : memref<51x51xf32, #tpu.memory_space<vmem>>, vector<49x49xf32>
      %331 = arith.maximumf %329, %330 : vector<49x49xf32>
      %c1_203 = arith.constant 1 : index
      %c2_204 = arith.constant 2 : index
      %332 = vector.load %arg29[%c1_203, %c2_204] : memref<51x51xf32, #tpu.memory_space<vmem>>, vector<49x49xf32>
      %333 = arith.maximumf %331, %332 : vector<49x49xf32>
      %c2_205 = arith.constant 2 : index
      %c0_206 = arith.constant 0 : index
      %334 = vector.load %arg29[%c2_205, %c0_206] : memref<51x51xf32, #tpu.memory_space<vmem>>, vector<49x49xf32>
      %335 = arith.maximumf %333, %334 : vector<49x49xf32>
      %c2_207 = arith.constant 2 : index
      %c1_208 = arith.constant 1 : index
      %336 = vector.load %arg29[%c2_207, %c1_208] : memref<51x51xf32, #tpu.memory_space<vmem>>, vector<49x49xf32>
      %337 = arith.maximumf %335, %336 : vector<49x49xf32>
      %c2_209 = arith.constant 2 : index
      %c2_210 = arith.constant 2 : index
      %338 = vector.load %arg29[%c2_209, %c2_210] : memref<51x51xf32, #tpu.memory_space<vmem>>, vector<49x49xf32>
      %339 = arith.maximumf %337, %338 : vector<49x49xf32>
      %c0_211 = arith.constant 0 : index
      %c0_212 = arith.constant 0 : index
      %340 = vector.load %arg30[%c0_211, %c0_212] : memref<98x49xf32, #tpu.memory_space<vmem>>, vector<49x49xf32>
      tpu.vector_store %arg30[%c0_211, %c0_212], %339 {strides = array<i32>} : memref<98x49xf32, #tpu.memory_space<vmem>>, vector<49x49xf32>,
      %c1_213 = arith.constant 1 : index
      %c0_214 = arith.constant 0 : index
      %c0_215 = arith.constant 0 : index
      %341 = vector.load %arg28[%c1_213, %c0_214, %c0_215] : memref<2x49x49xf32, #tpu.memory_space<vmem>>, vector<1x49x49xf32>
      %342 = vector.shape_cast %341 : vector<1x49x49xf32> to vector<49x49xf32>
      %343 = vector.broadcast %302 : f32 to vector<49x49xf32>
      %344 = arith.mulf %342, %343 : vector<49x49xf32>
      %345 = vector.broadcast %306 : f32 to vector<49x49xf32>
      %346 = arith.addf %344, %345 : vector<49x49xf32>
      %cst_216 = arith.constant 0.000000e+00 : f32
      %347 = vector.broadcast %cst_216 : f32 to vector<49x49xf32>
      %348 = arith.maximumf %346, %347 : vector<49x49xf32>
      %cst_217 = arith.constant 0.000000e+00 : f32
      %349 = vector.broadcast %cst_217 : f32 to vector<51x51xf32>
      %350 = vector.broadcast %309 : f32 to vector<51x51xf32>
      %351 = arith.addf %349, %350 : vector<51x51xf32>
      %c0_218 = arith.constant 0 : index
      %c0_219 = arith.constant 0 : index
      %352 = vector.load %arg29[%c0_218, %c0_219] : memref<51x51xf32, #tpu.memory_space<vmem>>, vector<51x51xf32>
      tpu.vector_store %arg29[%c0_218, %c0_219], %351 {strides = array<i32>} : memref<51x51xf32, #tpu.memory_space<vmem>>, vector<51x51xf32>,
      %c1_220 = arith.constant 1 : index
      %c1_221 = arith.constant 1 : index
      %353 = vector.load %arg29[%c1_220, %c1_221] : memref<51x51xf32, #tpu.memory_space<vmem>>, vector<49x49xf32>
      tpu.vector_store %arg29[%c1_220, %c1_221], %348 {strides = array<i32>} : memref<51x51xf32, #tpu.memory_space<vmem>>, vector<49x49xf32>,
      %c0_222 = arith.constant 0 : index
      %c0_223 = arith.constant 0 : index
      %354 = vector.load %arg29[%c0_222, %c0_223] : memref<51x51xf32, #tpu.memory_space<vmem>>, vector<49x49xf32>
      %c0_224 = arith.constant 0 : index
      %c1_225 = arith.constant 1 : index
      %355 = vector.load %arg29[%c0_224, %c1_225] : memref<51x51xf32, #tpu.memory_space<vmem>>, vector<49x49xf32>
      %356 = arith.maximumf %354, %355 : vector<49x49xf32>
      %c0_226 = arith.constant 0 : index
      %c2_227 = arith.constant 2 : index
      %357 = vector.load %arg29[%c0_226, %c2_227] : memref<51x51xf32, #tpu.memory_space<vmem>>, vector<49x49xf32>
      %358 = arith.maximumf %356, %357 : vector<49x49xf32>
      %c1_228 = arith.constant 1 : index
      %c0_229 = arith.constant 0 : index
      %359 = vector.load %arg29[%c1_228, %c0_229] : memref<51x51xf32, #tpu.memory_space<vmem>>, vector<49x49xf32>
      %360 = arith.maximumf %358, %359 : vector<49x49xf32>
      %c1_230 = arith.constant 1 : index
      %c1_231 = arith.constant 1 : index
      %361 = vector.load %arg29[%c1_230, %c1_231] : memref<51x51xf32, #tpu.memory_space<vmem>>, vector<49x49xf32>
      %362 = arith.maximumf %360, %361 : vector<49x49xf32>
      %c1_232 = arith.constant 1 : index
      %c2_233 = arith.constant 2 : index
      %363 = vector.load %arg29[%c1_232, %c2_233] : memref<51x51xf32, #tpu.memory_space<vmem>>, vector<49x49xf32>
      %364 = arith.maximumf %362, %363 : vector<49x49xf32>
      %c2_234 = arith.constant 2 : index
      %c0_235 = arith.constant 0 : index
      %365 = vector.load %arg29[%c2_234, %c0_235] : memref<51x51xf32, #tpu.memory_space<vmem>>, vector<49x49xf32>
      %366 = arith.maximumf %364, %365 : vector<49x49xf32>
      %c2_236 = arith.constant 2 : index
      %c1_237 = arith.constant 1 : index
      %367 = vector.load %arg29[%c2_236, %c1_237] : memref<51x51xf32, #tpu.memory_space<vmem>>, vector<49x49xf32>
      %368 = arith.maximumf %366, %367 : vector<49x49xf32>
      %c2_238 = arith.constant 2 : index
      %c2_239 = arith.constant 2 : index
      %369 = vector.load %arg29[%c2_238, %c2_239] : memref<51x51xf32, #tpu.memory_space<vmem>>, vector<49x49xf32>
      %370 = arith.maximumf %368, %369 : vector<49x49xf32>
      %c49 = arith.constant 49 : index
      %c0_240 = arith.constant 0 : index
      %371 = vector.load %arg30[%c49, %c0_240] : memref<98x49xf32, #tpu.memory_space<vmem>>, vector<49x49xf32>
      tpu.vector_store %arg30[%c49, %c0_240], %370 {strides = array<i32>} : memref<98x49xf32, #tpu.memory_space<vmem>>, vector<49x49xf32>,
      %c0_241 = arith.constant 0 : index
      %c0_242 = arith.constant 0 : index
      %372 = vector.load %arg30[%c0_241, %c0_242] : memref<98x49xf32, #tpu.memory_space<vmem>>, vector<98x49xf32>
      %c0_243 = arith.constant 0 : index
      %c0_244 = arith.constant 0 : index
      %373 = vector.load %arg17[%c0_243, %c0_244] : memref<49x17xf32, #tpu.memory_space<vmem>>, vector<49x17xf32>
      %cst_245 = arith.constant dense<0.000000e+00> : vector<98x17xf32>
      %374 = tpu.matmul %372, %373, %cst_245 {dimension_numbers = #tpu.dot_dimension_numbers<[1], [0], [0], [1], [0, 0, 1, 1], [], []>} : vector<98x49xf32>, vector<49x17xf32>, vector<98x17xf32> -> vector<98x17xf32>
      %c0_246 = arith.constant 0 : index
      %c0_247 = arith.constant 0 : index
      %375 = vector.load %arg18[%c0_246, %c0_247] : memref<34x98xf32, #tpu.memory_space<vmem>>, vector<34x98xf32>
      %cst_248 = arith.constant dense<0.000000e+00> : vector<34x17xf32>
      %376 = tpu.matmul %375, %374, %cst_248 {dimension_numbers = #tpu.dot_dimension_numbers<[1], [0], [0], [1], [0, 0, 1, 1], [], []>} : vector<34x98xf32>, vector<98x17xf32>, vector<34x17xf32> -> vector<34x17xf32>
      %377 = vector.extract_strided_slice %376 {offsets = [0, 0], sizes = [17, 17], strides = [1, 1]} : vector<34x17xf32> to vector<17x17xf32>
      %378 = vector.extract_strided_slice %377 {offsets = [0, 0], sizes = [16, 16], strides = [1, 1]} : vector<17x17xf32> to vector<16x16xf32>
      %379 = vector.extract_strided_slice %377 {offsets = [0, 1], sizes = [16, 16], strides = [1, 1]} : vector<17x17xf32> to vector<16x16xf32>
      %380 = arith.maximumf %378, %379 : vector<16x16xf32>
      %381 = vector.extract_strided_slice %377 {offsets = [1, 0], sizes = [16, 16], strides = [1, 1]} : vector<17x17xf32> to vector<16x16xf32>
      %382 = arith.maximumf %380, %381 : vector<16x16xf32>
      %383 = vector.extract_strided_slice %377 {offsets = [1, 1], sizes = [16, 16], strides = [1, 1]} : vector<17x17xf32> to vector<16x16xf32>
      %384 = arith.maximumf %382, %383 : vector<16x16xf32>
      %c0_249 = arith.constant 0 : index
      %c0_250 = arith.constant 0 : index
      %385 = vector.load %arg31[%c0_249, %c0_250] : memref<32x16xf32, #tpu.memory_space<vmem>>, vector<16x16xf32>
      tpu.vector_store %arg31[%c0_249, %c0_250], %384 {strides = array<i32>} : memref<32x16xf32, #tpu.memory_space<vmem>>, vector<16x16xf32>,
      %386 = vector.extract_strided_slice %376 {offsets = [17, 0], sizes = [17, 17], strides = [1, 1]} : vector<34x17xf32> to vector<17x17xf32>
      %387 = vector.extract_strided_slice %386 {offsets = [0, 0], sizes = [16, 16], strides = [1, 1]} : vector<17x17xf32> to vector<16x16xf32>
      %388 = vector.extract_strided_slice %386 {offsets = [0, 1], sizes = [16, 16], strides = [1, 1]} : vector<17x17xf32> to vector<16x16xf32>
      %389 = arith.maximumf %387, %388 : vector<16x16xf32>
      %390 = vector.extract_strided_slice %386 {offsets = [1, 0], sizes = [16, 16], strides = [1, 1]} : vector<17x17xf32> to vector<16x16xf32>
      %391 = arith.maximumf %389, %390 : vector<16x16xf32>
      %392 = vector.extract_strided_slice %386 {offsets = [1, 1], sizes = [16, 16], strides = [1, 1]} : vector<17x17xf32> to vector<16x16xf32>
      %393 = arith.maximumf %391, %392 : vector<16x16xf32>
      %c16 = arith.constant 16 : index
      %c0_251 = arith.constant 0 : index
      %394 = vector.load %arg31[%c16, %c0_251] : memref<32x16xf32, #tpu.memory_space<vmem>>, vector<16x16xf32>
      tpu.vector_store %arg31[%c16, %c0_251], %393 {strides = array<i32>} : memref<32x16xf32, #tpu.memory_space<vmem>>, vector<16x16xf32>,
      %c0_252 = arith.constant 0 : index
      %c0_253 = arith.constant 0 : index
      %395 = vector.load %arg31[%c0_252, %c0_253] : memref<32x16xf32, #tpu.memory_space<vmem>>, vector<32x16xf32>
      %c0_254 = arith.constant 0 : index
      %c0_255 = arith.constant 0 : index
      %396 = vector.load %arg19[%c0_254, %c0_255] : memref<16x8xf32, #tpu.memory_space<vmem>>, vector<16x8xf32>
      %cst_256 = arith.constant dense<0.000000e+00> : vector<32x8xf32>
      %397 = tpu.matmul %395, %396, %cst_256 {dimension_numbers = #tpu.dot_dimension_numbers<[1], [0], [0], [1], [0, 0, 1, 1], [], []>} : vector<32x16xf32>, vector<16x8xf32>, vector<32x8xf32> -> vector<32x8xf32>
      %c0_257 = arith.constant 0 : index
      %c0_258 = arith.constant 0 : index
      %398 = vector.load %arg20[%c0_257, %c0_258] : memref<16x32xf32, #tpu.memory_space<vmem>>, vector<16x32xf32>
      %cst_259 = arith.constant dense<0.000000e+00> : vector<16x8xf32>
      %399 = tpu.matmul %398, %397, %cst_259 {dimension_numbers = #tpu.dot_dimension_numbers<[1], [0], [0], [1], [0, 0, 1, 1], [], []>} : vector<16x32xf32>, vector<32x8xf32>, vector<16x8xf32> -> vector<16x8xf32>
      %400 = vector.extract_strided_slice %399 {offsets = [0, 0], sizes = [8, 8], strides = [1, 1]} : vector<16x8xf32> to vector<8x8xf32>
      %401 = arith.index_cast %arg32 : i32 to index
      %c0_260 = arith.constant 0 : index
      %c0_261 = arith.constant 0 : index
      %c0_262 = arith.constant 0 : index
      %402 = vector.load %arg13[%401, %c0_260, %c0_261, %c0_262] : memref<32x4x8x8xf32, #tpu.memory_space<vmem>>, vector<1x1x8x8xf32>
      %403 = vector.shape_cast %402 : vector<1x1x8x8xf32> to vector<8x8xf32>
      %404 = arith.mulf %400, %403 : vector<8x8xf32>
      %405 = vector.shape_cast %404 : vector<8x8xf32> to vector<1x8x8xf32>
      %cst_263 = arith.constant dense<0.000000e+00> : vector<1xf32>
      %406 = vector.multi_reduction <add>, %405, %cst_263 [1, 2] : vector<1x8x8xf32> to vector<1xf32>
      %407 = vector.shape_cast %406 : vector<1xf32> to vector<1x1x1xf32>
      %408 = vector.extract %407[0, 0, 0] : f32 from vector<1x1x1xf32>
      %409 = vector.broadcast %408 : f32 to vector<2x4xf32>
      %410 = arith.mulf %409, %14 : vector<2x4xf32>
      %411 = arith.addf %arg33, %410 : vector<2x4xf32>
      %412 = arith.index_cast %arg32 : i32 to index
      %c1_264 = arith.constant 1 : index
      %c0_265 = arith.constant 0 : index
      %c0_266 = arith.constant 0 : index
      %413 = vector.load %arg13[%412, %c1_264, %c0_265, %c0_266] : memref<32x4x8x8xf32, #tpu.memory_space<vmem>>, vector<1x1x8x8xf32>
      %414 = vector.shape_cast %413 : vector<1x1x8x8xf32> to vector<8x8xf32>
      %415 = arith.mulf %400, %414 : vector<8x8xf32>
      %416 = vector.shape_cast %415 : vector<8x8xf32> to vector<1x8x8xf32>
      %cst_267 = arith.constant dense<0.000000e+00> : vector<1xf32>
      %417 = vector.multi_reduction <add>, %416, %cst_267 [1, 2] : vector<1x8x8xf32> to vector<1xf32>
      %418 = vector.shape_cast %417 : vector<1xf32> to vector<1x1x1xf32>
      %419 = vector.extract %418[0, 0, 0] : f32 from vector<1x1x1xf32>
      %420 = vector.broadcast %419 : f32 to vector<2x4xf32>
      %421 = arith.mulf %420, %22 : vector<2x4xf32>
      %422 = arith.addf %411, %421 : vector<2x4xf32>
      %423 = arith.index_cast %arg32 : i32 to index
      %c2_268 = arith.constant 2 : index
      %c0_269 = arith.constant 0 : index
      %c0_270 = arith.constant 0 : index
      %424 = vector.load %arg13[%423, %c2_268, %c0_269, %c0_270] : memref<32x4x8x8xf32, #tpu.memory_space<vmem>>, vector<1x1x8x8xf32>
      %425 = vector.shape_cast %424 : vector<1x1x8x8xf32> to vector<8x8xf32>
      %426 = arith.mulf %400, %425 : vector<8x8xf32>
      %427 = vector.shape_cast %426 : vector<8x8xf32> to vector<1x8x8xf32>
      %cst_271 = arith.constant dense<0.000000e+00> : vector<1xf32>
      %428 = vector.multi_reduction <add>, %427, %cst_271 [1, 2] : vector<1x8x8xf32> to vector<1xf32>
      %429 = vector.shape_cast %428 : vector<1xf32> to vector<1x1x1xf32>
      %430 = vector.extract %429[0, 0, 0] : f32 from vector<1x1x1xf32>
      %431 = vector.broadcast %430 : f32 to vector<2x4xf32>
      %432 = arith.mulf %431, %30 : vector<2x4xf32>
      %433 = arith.addf %422, %432 : vector<2x4xf32>
      %434 = arith.index_cast %arg32 : i32 to index
      %c3_272 = arith.constant 3 : index
      %c0_273 = arith.constant 0 : index
      %c0_274 = arith.constant 0 : index
      %435 = vector.load %arg13[%434, %c3_272, %c0_273, %c0_274] : memref<32x4x8x8xf32, #tpu.memory_space<vmem>>, vector<1x1x8x8xf32>
      %436 = vector.shape_cast %435 : vector<1x1x8x8xf32> to vector<8x8xf32>
      %437 = arith.mulf %400, %436 : vector<8x8xf32>
      %438 = vector.shape_cast %437 : vector<8x8xf32> to vector<1x8x8xf32>
      %cst_275 = arith.constant dense<0.000000e+00> : vector<1xf32>
      %439 = vector.multi_reduction <add>, %438, %cst_275 [1, 2] : vector<1x8x8xf32> to vector<1xf32>
      %440 = vector.shape_cast %439 : vector<1xf32> to vector<1x1x1xf32>
      %441 = vector.extract %440[0, 0, 0] : f32 from vector<1x1x1xf32>
      %442 = vector.broadcast %441 : f32 to vector<2x4xf32>
      %443 = arith.mulf %442, %38 : vector<2x4xf32>
      %444 = arith.addf %433, %443 : vector<2x4xf32>
      %445 = vector.extract_strided_slice %399 {offsets = [8, 0], sizes = [8, 8], strides = [1, 1]} : vector<16x8xf32> to vector<8x8xf32>
      %446 = arith.index_cast %arg32 : i32 to index
      %c0_276 = arith.constant 0 : index
      %c0_277 = arith.constant 0 : index
      %c0_278 = arith.constant 0 : index
      %447 = vector.load %arg13[%446, %c0_276, %c0_277, %c0_278] : memref<32x4x8x8xf32, #tpu.memory_space<vmem>>, vector<1x1x8x8xf32>
      %448 = vector.shape_cast %447 : vector<1x1x8x8xf32> to vector<8x8xf32>
      %449 = arith.mulf %445, %448 : vector<8x8xf32>
      %450 = vector.shape_cast %449 : vector<8x8xf32> to vector<1x8x8xf32>
      %cst_279 = arith.constant dense<0.000000e+00> : vector<1xf32>
      %451 = vector.multi_reduction <add>, %450, %cst_279 [1, 2] : vector<1x8x8xf32> to vector<1xf32>
      %452 = vector.shape_cast %451 : vector<1xf32> to vector<1x1x1xf32>
      %453 = vector.extract %452[0, 0, 0] : f32 from vector<1x1x1xf32>
      %454 = vector.broadcast %453 : f32 to vector<2x4xf32>
      %455 = arith.mulf %454, %46 : vector<2x4xf32>
      %456 = arith.addf %444, %455 : vector<2x4xf32>
      %457 = arith.index_cast %arg32 : i32 to index
      %c1_280 = arith.constant 1 : index
      %c0_281 = arith.constant 0 : index
      %c0_282 = arith.constant 0 : index
      %458 = vector.load %arg13[%457, %c1_280, %c0_281, %c0_282] : memref<32x4x8x8xf32, #tpu.memory_space<vmem>>, vector<1x1x8x8xf32>
      %459 = vector.shape_cast %458 : vector<1x1x8x8xf32> to vector<8x8xf32>
      %460 = arith.mulf %445, %459 : vector<8x8xf32>
      %461 = vector.shape_cast %460 : vector<8x8xf32> to vector<1x8x8xf32>
      %cst_283 = arith.constant dense<0.000000e+00> : vector<1xf32>
      %462 = vector.multi_reduction <add>, %461, %cst_283 [1, 2] : vector<1x8x8xf32> to vector<1xf32>
      %463 = vector.shape_cast %462 : vector<1xf32> to vector<1x1x1xf32>
      %464 = vector.extract %463[0, 0, 0] : f32 from vector<1x1x1xf32>
      %465 = vector.broadcast %464 : f32 to vector<2x4xf32>
      %466 = arith.mulf %465, %54 : vector<2x4xf32>
      %467 = arith.addf %456, %466 : vector<2x4xf32>
      %468 = arith.index_cast %arg32 : i32 to index
      %c2_284 = arith.constant 2 : index
      %c0_285 = arith.constant 0 : index
      %c0_286 = arith.constant 0 : index
      %469 = vector.load %arg13[%468, %c2_284, %c0_285, %c0_286] : memref<32x4x8x8xf32, #tpu.memory_space<vmem>>, vector<1x1x8x8xf32>
      %470 = vector.shape_cast %469 : vector<1x1x8x8xf32> to vector<8x8xf32>
      %471 = arith.mulf %445, %470 : vector<8x8xf32>
      %472 = vector.shape_cast %471 : vector<8x8xf32> to vector<1x8x8xf32>
      %cst_287 = arith.constant dense<0.000000e+00> : vector<1xf32>
      %473 = vector.multi_reduction <add>, %472, %cst_287 [1, 2] : vector<1x8x8xf32> to vector<1xf32>
      %474 = vector.shape_cast %473 : vector<1xf32> to vector<1x1x1xf32>
      %475 = vector.extract %474[0, 0, 0] : f32 from vector<1x1x1xf32>
      %476 = vector.broadcast %475 : f32 to vector<2x4xf32>
      %477 = arith.mulf %476, %62 : vector<2x4xf32>
      %478 = arith.addf %467, %477 : vector<2x4xf32>
      %479 = arith.index_cast %arg32 : i32 to index
      %c3_288 = arith.constant 3 : index
      %c0_289 = arith.constant 0 : index
      %c0_290 = arith.constant 0 : index
      %480 = vector.load %arg13[%479, %c3_288, %c0_289, %c0_290] : memref<32x4x8x8xf32, #tpu.memory_space<vmem>>, vector<1x1x8x8xf32>
      %481 = vector.shape_cast %480 : vector<1x1x8x8xf32> to vector<8x8xf32>
      %482 = arith.mulf %445, %481 : vector<8x8xf32>
      %483 = vector.shape_cast %482 : vector<8x8xf32> to vector<1x8x8xf32>
      %cst_291 = arith.constant dense<0.000000e+00> : vector<1xf32>
      %484 = vector.multi_reduction <add>, %483, %cst_291 [1, 2] : vector<1x8x8xf32> to vector<1xf32>
      %485 = vector.shape_cast %484 : vector<1xf32> to vector<1x1x1xf32>
      %486 = vector.extract %485[0, 0, 0] : f32 from vector<1x1x1xf32>
      %487 = vector.broadcast %486 : f32 to vector<2x4xf32>
      %488 = arith.mulf %487, %70 : vector<2x4xf32>
      %489 = arith.addf %478, %488 : vector<2x4xf32>
      scf.yield %489 : vector<2x4xf32>
    }
    %c32_i32_45 = arith.constant 32 : i32
    %c0_46 = arith.constant 0 : index
    %c0_47 = arith.constant 0 : index
    %74 = vector.load %arg14[%c0_46, %c0_47] : memref<1x4xf32, #tpu.memory_space<vmem>>, vector<1x4xf32>
    %75 = vector.broadcast %74 : vector<1x4xf32> to vector<2x4xf32>
    %76 = arith.addf %73, %75 : vector<2x4xf32>
    %c0_48 = arith.constant 0 : index
    %c0_49 = arith.constant 0 : index
    %77 = vector.load %arg21[%c0_48, %c0_49] : memref<2x4xf32, #tpu.memory_space<vmem>>, vector<2x4xf32>
    tpu.vector_store %arg21[%c0_48, %c0_49], %76 {strides = array<i32>} : memref<2x4xf32, #tpu.memory_space<vmem>>, vector<2x4xf32>,
    return
  }
}

</mosaic_0001>

<llo_original>
// kernel: _lambda_.1
$region0: #{_lambda_.1}
  #allocation0 [shape = 'u32[]', space=smem, size = 0x4, offset = 0x4, fixed_abs, tag = 'smem constant byte address 0x4 - core index']
  #allocation1 [shape = 'u32[144,128]{1,0:T(1,128)}', space=vmem, size = 0x12000, scoped, tag = 'internal scratch']
  #allocation2 [shape = 'f32[3,2,96,96]{3,2,1,0:T(8,128)}', space=vmem, size = 0x48000, scoped, tag = 'scratch operand']
  #allocation3 [shape = 'f32[2,96,96]{2,1,0:T(8,128)}', space=vmem, size = 0x18000, scoped, tag = 'scratch operand']
  #allocation4 [shape = 'f32[98,98]{1,0:T(8,128)}', space=vmem, size = 0xd000, scoped, tag = 'scratch operand']
  #allocation5 [shape = 'f32[194,97]{1,0:T(8,128)}', space=vmem, size = 0x19000, scoped, tag = 'scratch operand']
  #allocation6 [shape = 'f32[12,2,51,51]{3,2,1,0:T(8,128)}', space=vmem, size = 0xa8000, scoped, tag = 'scratch operand']
  #allocation7 [shape = 'f32[12,2,49,49]{3,2,1,0:T(8,128)}', space=vmem, size = 0xa8000, scoped, tag = 'scratch operand']
  #allocation8 [shape = 'f32[2,49,49]{2,1,0:T(8,128)}', space=vmem, size = 0xe000, scoped, tag = 'scratch operand']
  #allocation9 [shape = 'f32[51,51]{1,0:T(8,128)}', space=vmem, size = 0x7000, scoped, tag = 'scratch operand']
  #allocation10 [shape = 'f32[98,49]{1,0:T(8,128)}', space=vmem, size = 0xd000, scoped, tag = 'scratch operand']
  #allocation11 [shape = 'f32[32,16]{1,0:T(8,128)}', space=vmem, size = 0x4000, scoped, tag = 'scratch operand']
  %s0 = inlined_call_operand.vmem [shape: f32[3,2,98,98], index: 0, kind: input, shape index: {}]
  %s1 = inlined_call_operand.vmem [shape: f32[3,9], index: 1, kind: input, shape index: {}]
  %s2 = inlined_call_operand.vmem [shape: f32[3], index: 2, kind: input, shape index: {}]
  %s3 = inlined_call_operand.vmem [shape: f32[12,3], index: 3, kind: input, shape index: {}]
  %s4 = inlined_call_operand.vmem [shape: f32[12], index: 4, kind: input, shape index: {}]
  %s5 = inlined_call_operand.vmem [shape: f32[12], index: 5, kind: input, shape index: {}]
  %s6 = inlined_call_operand.vmem [shape: f32[12], index: 6, kind: input, shape index: {}]
  %s7 = inlined_call_operand.vmem [shape: f32[12,9], index: 7, kind: input, shape index: {}]
  %s8 = inlined_call_operand.vmem [shape: f32[12], index: 8, kind: input, shape index: {}]
  %s9 = inlined_call_operand.vmem [shape: f32[32,12], index: 9, kind: input, shape index: {}]
  %s10 = inlined_call_operand.vmem [shape: f32[32], index: 10, kind: input, shape index: {}]
  %s11 = inlined_call_operand.vmem [shape: f32[32], index: 11, kind: input, shape index: {}]
  %s12 = inlined_call_operand.vmem [shape: f32[32], index: 12, kind: input, shape index: {}]
  %s13 = inlined_call_operand.vmem [shape: f32[32,4,8,8], index: 13, kind: input, shape index: {}]
  %s14 = inlined_call_operand.vmem [shape: f32[1,4], index: 14, kind: input, shape index: {}]
  %s15 = inlined_call_operand.vmem [shape: f32[97,49], index: 15, kind: input, shape index: {}]
  %s16 = inlined_call_operand.vmem [shape: f32[98,194], index: 16, kind: input, shape index: {}]
  %s17 = inlined_call_operand.vmem [shape: f32[49,17], index: 17, kind: input, shape index: {}]
  %s18 = inlined_call_operand.vmem [shape: f32[34,98], index: 18, kind: input, shape index: {}]
  %s19 = inlined_call_operand.vmem [shape: f32[16,8], index: 19, kind: input, shape index: {}]
  %s20 = inlined_call_operand.vmem [shape: f32[16,32], index: 20, kind: input, shape index: {}]
  %s21 = inlined_call_operand.hbm [shape: f32[2,4], index: 21, kind: output, shape index: {}]
  %s22 = sld [smem:[#allocation0]]
  $region170: #{_lambda_.1} parent=0
    _
  %s24 = ssub.s32 1, %s22
  %s25 = scalar_select 0, %s24, %s22
  $region1: #{_lambda_.1} parent=0
    #allocation12 [shape = 'u8[2048]{0}', space=smem, size = 0x800, scoped, tag = 'input window, operand 1, single buffered']
    #allocation13 [shape = 's32[1]{0}', space=sflag, size = 0x4, scoped, tag = 'scoped memory for _lambda_.1']
    #allocation14 [shape = 's32[1]{0}', space=sflag, size = 0x4, scoped, tag = 'scoped memory for _lambda_.1']
    #allocation15 [shape = 'u8[512]{0}', space=smem, size = 0x200, scoped, tag = 'input window, operand 2, single buffered']
    #allocation16 [shape = 's32[1]{0}', space=sflag, size = 0x4, scoped, tag = 'scoped memory for _lambda_.1']
    #allocation17 [shape = 'u8[8192]{0}', space=smem, size = 0x2000, scoped, tag = 'input window, operand 3, single buffered']
    #allocation18 [shape = 'u8[512]{0}', space=smem, size = 0x200, scoped, tag = 'input window, operand 4, single buffered']
    #allocation19 [shape = 's32[1]{0}', space=sflag, size = 0x4, scoped, tag = 'scoped memory for _lambda_.1']
    #allocation20 [shape = 'u8[512]{0}', space=smem, size = 0x200, scoped, tag = 'input window, operand 5, single buffered']
    #allocation21 [shape = 'u8[512]{0}', space=smem, size = 0x200, scoped, tag = 'input window, operand 6, single buffered']
    #allocation22 [shape = 's32[1]{0}', space=sflag, size = 0x4, scoped, tag = 'scoped memory for _lambda_.1']
    #allocation23 [shape = 'u8[8192]{0}', space=smem, size = 0x2000, scoped, tag = 'input window, operand 7, single buffered']
    #allocation24 [shape = 'u8[512]{0}', space=smem, size = 0x200, scoped, tag = 'input window, operand 8, single buffered']
    #allocation25 [shape = 's32[1]{0}', space=sflag, size = 0x4, scoped, tag = 'scoped memory for _lambda_.1']
    #allocation26 [shape = 'u8[16384]{0}', space=smem, size = 0x4000, scoped, tag = 'input window, operand 9, single buffered']
    #allocation27 [shape = 'u8[512]{0}', space=smem, size = 0x200, scoped, tag = 'input window, operand 10, single buffered']
    #allocation28 [shape = 's32[1]{0}', space=sflag, size = 0x4, scoped, tag = 'scoped memory for _lambda_.1']
    #allocation29 [shape = 'u8[512]{0}', space=smem, size = 0x200, scoped, tag = 'input window, operand 11, single buffered']
    #allocation30 [shape = 'u8[512]{0}', space=smem, size = 0x200, scoped, tag = 'input window, operand 12, single buffered']
    #allocation31 [shape = 's32[1]{0}', space=sflag, size = 0x4, scoped, tag = 'scoped memory for _lambda_.1']
    #allocation32 [shape = 'u8[1024]{0}', space=vmem, size = 0x400, scoped, tag = 'output window, operand 0, single buffered']
    %26 = vsyncpa [#allocation14], 0
    %27 = vsyncpa [#allocation16], 0
    %28 = vsyncpa [#allocation19], 0
    %29 = vsyncpa [#allocation22], 0
    %30 = vsyncpa [#allocation25], 0
    %31 = vsyncpa [#allocation28], 0
    %32 = vsyncpa [#allocation31], 0
    %33 = vsyncpa [#allocation13], 0
    // Predicated region
    $region2: #{_lambda_.1} parent=1 // pred_check
      _
    $region3: #{_lambda_.1} parent=1 // pred_check_branch
      %35 = sbr.rel (0) target = $region5
    $region4: #{_lambda_.1} parent=1 // pred_region
      _
    $region5: #{_lambda_.1} parent=1 // pred_fallthru
      _
    // Predicated region
    $region6: #{_lambda_.1} parent=1 // pred_check
      _
    $region7: #{_lambda_.1} parent=1 // pred_check_branch
      %37 = sbr.rel (0) target = $region9
    $region8: #{_lambda_.1} parent=1 // pred_region
      %s39 = ssub.s32 64, 64
      %40 = vsyncadd [#allocation14], %s39
      %s42 = sshll.u32 %s1, 4
      %s43 = int_to_ptr.vmem [resolvable:$true] %s42
      %45 = dma.vmem_to_smem %s43, 64, [#allocation12], [#allocation14]
    $region9: #{_lambda_.1} parent=1 // pred_fallthru
      _
    // Predicated region
    $region10: #{_lambda_.1} parent=1 // pred_check
      _
    $region11: #{_lambda_.1} parent=1 // pred_check_branch
      %47 = sbr.rel (0) target = $region13
    $region12: #{_lambda_.1} parent=1 // pred_region
      %s49 = ssub.s32 16, 16
      %50 = vsyncadd [#allocation16], %s49
      %s52 = sshll.u32 %s2, 4
      %s53 = int_to_ptr.vmem [resolvable:$true] %s52
      %55 = dma.vmem_to_smem %s53, 16, [#allocation15], [#allocation16]
    $region13: #{_lambda_.1} parent=1 // pred_fallthru
      _
    // Predicated region
    $region14: #{_lambda_.1} parent=1 // pred_check
      _
    $region15: #{_lambda_.1} parent=1 // pred_check_branch
      %57 = sbr.rel (0) target = $region17
    $region16: #{_lambda_.1} parent=1 // pred_region
      %s59 = ssub.s32 256, 256
      %60 = vsyncadd [#allocation16], %s59
      %s61 = sshll.u32 %s3, 4
      %s62 = int_to_ptr.vmem [resolvable:$true] %s61
      %67 = dma.vmem_to_smem %s62, 256, [#allocation17], [#allocation16], 128, 128, 8
    $region17: #{_lambda_.1} parent=1 // pred_fallthru
      _
    // Predicated region
    $region18: #{_lambda_.1} parent=1 // pred_check
      _
    $region19: #{_lambda_.1} parent=1 // pred_check_branch
      %69 = sbr.rel (0) target = $region21
    $region20: #{_lambda_.1} parent=1 // pred_region
      %s71 = ssub.s32 16, 16
      %72 = vsyncadd [#allocation19], %s71
      %s74 = sshll.u32 %s4, 4
      %s75 = int_to_ptr.vmem [resolvable:$true] %s74
      %77 = dma.vmem_to_smem %s75, 16, [#allocation18], [#allocation19]
    $region21: #{_lambda_.1} parent=1 // pred_fallthru
      _
    // Predicated region
    $region22: #{_lambda_.1} parent=1 // pred_check
      _
    $region23: #{_lambda_.1} parent=1 // pred_check_branch
      %79 = sbr.rel (0) target = $region25
    $region24: #{_lambda_.1} parent=1 // pred_region
      %s81 = ssub.s32 16, 16
      %82 = vsyncadd [#allocation19], %s81
      %s84 = sshll.u32 %s5, 4
      %s85 = int_to_ptr.vmem [resolvable:$true] %s84
      %87 = dma.vmem_to_smem %s85, 16, [#allocation20], [#allocation19]
    $region25: #{_lambda_.1} parent=1 // pred_fallthru
      _
    // Predicated region
    $region26: #{_lambda_.1} parent=1 // pred_check
      _
    $region27: #{_lambda_.1} parent=1 // pred_check_branch
      %89 = sbr.rel (0) target = $region29
    $region28: #{_lambda_.1} parent=1 // pred_region
      %s91 = ssub.s32 16, 16
      %92 = vsyncadd [#allocation22], %s91
      %s94 = sshll.u32 %s6, 4
      %s95 = int_to_ptr.vmem [resolvable:$true] %s94
      %97 = dma.vmem_to_smem %s95, 16, [#allocation21], [#allocation22]
    $region29: #{_lambda_.1} parent=1 // pred_fallthru
      _
    // Predicated region
    $region30: #{_lambda_.1} parent=1 // pred_check
      _
    $region31: #{_lambda_.1} parent=1 // pred_check_branch
      %99 = sbr.rel (0) target = $region33
    $region32: #{_lambda_.1} parent=1 // pred_region
      %s101 = ssub.s32 256, 256
      %102 = vsyncadd [#allocation22], %s101
      %s103 = sshll.u32 %s7, 4
      %s104 = int_to_ptr.vmem [resolvable:$true] %s103
      %109 = dma.vmem_to_smem %s104, 256, [#allocation23], [#allocation22], 128, 128, 8
    $region33: #{_lambda_.1} parent=1 // pred_fallthru
      _
    // Predicated region
    $region34: #{_lambda_.1} parent=1 // pred_check
      _
    $region35: #{_lambda_.1} parent=1 // pred_check_branch
      %111 = sbr.rel (0) target = $region37
    $region36: #{_lambda_.1} parent=1 // pred_region
      %s113 = ssub.s32 16, 16
      %114 = vsyncadd [#allocation25], %s113
      %s116 = sshll.u32 %s8, 4
      %s117 = int_to_ptr.vmem [resolvable:$true] %s116
      %119 = dma.vmem_to_smem %s117, 16, [#allocation24], [#allocation25]
    $region37: #{_lambda_.1} parent=1 // pred_fallthru
      _
    // Predicated region
    $region38: #{_lambda_.1} parent=1 // pred_check
      _
    $region39: #{_lambda_.1} parent=1 // pred_check_branch
      %121 = sbr.rel (0) target = $region41
    $region40: #{_lambda_.1} parent=1 // pred_region
      %s123 = ssub.s32 512, 512
      %124 = vsyncadd [#allocation25], %s123
      %s125 = sshll.u32 %s9, 4
      %s126 = int_to_ptr.vmem [resolvable:$true] %s125
      %131 = dma.vmem_to_smem %s126, 512, [#allocation26], [#allocation25], 128, 128, 8
    $region41: #{_lambda_.1} parent=1 // pred_fallthru
      _
    // Predicated region
    $region42: #{_lambda_.1} parent=1 // pred_check
      _
    $region43: #{_lambda_.1} parent=1 // pred_check_branch
      %133 = sbr.rel (0) target = $region45
    $region44: #{_lambda_.1} parent=1 // pred_region
      %s135 = ssub.s32 16, 16
      %136 = vsyncadd [#allocation28], %s135
      %s138 = sshll.u32 %s10, 4
      %s139 = int_to_ptr.vmem [resolvable:$true] %s138
      %141 = dma.vmem_to_smem %s139, 16, [#allocation27], [#allocation28]
    $region45: #{_lambda_.1} parent=1 // pred_fallthru
      _
    // Predicated region
    $region46: #{_lambda_.1} parent=1 // pred_check
      _
    $region47: #{_lambda_.1} parent=1 // pred_check_branch
      %143 = sbr.rel (0) target = $region49
    $region48: #{_lambda_.1} parent=1 // pred_region
      %s145 = ssub.s32 16, 16
      %146 = vsyncadd [#allocation28], %s145
      %s148 = sshll.u32 %s11, 4
      %s149 = int_to_ptr.vmem [resolvable:$true] %s148
      %151 = dma.vmem_to_smem %s149, 16, [#allocation29], [#allocation28]
    $region49: #{_lambda_.1} parent=1 // pred_fallthru
      _
    // Predicated region
    $region50: #{_lambda_.1} parent=1 // pred_check
      _
    $region51: #{_lambda_.1} parent=1 // pred_check_branch
      %153 = sbr.rel (0) target = $region53
    $region52: #{_lambda_.1} parent=1 // pred_region
      %s155 = ssub.s32 16, 16
      %156 = vsyncadd [#allocation31], %s155
      %s158 = sshll.u32 %s12, 4
      %s159 = int_to_ptr.vmem [resolvable:$true] %s158
      %161 = dma.vmem_to_smem %s159, 16, [#allocation30], [#allocation31]
    $region53: #{_lambda_.1} parent=1 // pred_fallthru
      _
    // Predicated region
    $region54: #{_lambda_.1} parent=1 // pred_check
      _
    $region55: #{_lambda_.1} parent=1 // pred_check_branch
      %163 = sbr.rel (0) target = $region57
    $region56: #{_lambda_.1} parent=1 // pred_region
      _
    $region57: #{_lambda_.1} parent=1 // pred_fallthru
      _
    // Predicated region
    $region58: #{_lambda_.1} parent=1 // pred_check
      _
    $region59: #{_lambda_.1} parent=1 // pred_check_branch
      %165 = sbr.rel (0) target = $region61
    $region60: #{_lambda_.1} parent=1 // pred_region
      _
    $region61: #{_lambda_.1} parent=1 // pred_fallthru
      _
    // Predicated region
    $region62: #{_lambda_.1} parent=1 // pred_check
      _
    $region63: #{_lambda_.1} parent=1 // pred_check_branch
      %167 = sbr.rel (0) target = $region65
    $region64: #{_lambda_.1} parent=1 // pred_region
      _
    $region65: #{_lambda_.1} parent=1 // pred_fallthru
      _
    // Predicated region
    $region66: #{_lambda_.1} parent=1 // pred_check
      _
    $region67: #{_lambda_.1} parent=1 // pred_check_branch
      %169 = sbr.rel (0) target = $region69
    $region68: #{_lambda_.1} parent=1 // pred_region
      _
    $region69: #{_lambda_.1} parent=1 // pred_fallthru
      _
    // Predicated region
    $region70: #{_lambda_.1} parent=1 // pred_check
      _
    $region71: #{_lambda_.1} parent=1 // pred_check_branch
      %171 = sbr.rel (0) target = $region73
    $region72: #{_lambda_.1} parent=1 // pred_region
      _
    $region73: #{_lambda_.1} parent=1 // pred_fallthru
      _
    // Predicated region
    $region74: #{_lambda_.1} parent=1 // pred_check
      _
    $region75: #{_lambda_.1} parent=1 // pred_check_branch
      %173 = sbr.rel (0) target = $region77
    $region76: #{_lambda_.1} parent=1 // pred_region
      _
    $region77: #{_lambda_.1} parent=1 // pred_fallthru
      _
    // Predicated region
    $region78: #{_lambda_.1} parent=1 // pred_check
      _
    $region79: #{_lambda_.1} parent=1 // pred_check_branch
      %175 = sbr.rel (0) target = $region81
    $region80: #{_lambda_.1} parent=1 // pred_region
      _
    $region81: #{_lambda_.1} parent=1 // pred_fallthru
      _
    // Predicated region
    $region82: #{_lambda_.1} parent=1 // pred_check
      _
    $region83: #{_lambda_.1} parent=1 // pred_check_branch
      %177 = sbr.rel (0) target = $region85
    $region84: #{_lambda_.1} parent=1 // pred_region
      _
    $region85: #{_lambda_.1} parent=1 // pred_fallthru
      _
    // Predicated region
    $region86: #{_lambda_.1} parent=1 // pred_check
      _
    $region87: #{_lambda_.1} parent=1 // pred_check_branch
      %179 = sbr.rel (0) target = $region89
    $region88: #{_lambda_.1} parent=1 // pred_region
      %180 = dma.done [#allocation14], 64
    $region89: #{_lambda_.1} parent=1 // pred_fallthru
      _
    // Predicated region
    $region90: #{_lambda_.1} parent=1 // pred_check
      _
    $region91: #{_lambda_.1} parent=1 // pred_check_branch
      %182 = sbr.rel (0) target = $region93
    $region92: #{_lambda_.1} parent=1 // pred_region
      %183 = dma.done [#allocation16], 16
    $region93: #{_lambda_.1} parent=1 // pred_fallthru
      _
    // Predicated region
    $region94: #{_lambda_.1} parent=1 // pred_check
      _
    $region95: #{_lambda_.1} parent=1 // pred_check_branch
      %185 = sbr.rel (0) target = $region97
    $region96: #{_lambda_.1} parent=1 // pred_region
      %186 = dma.done [#allocation16], 256
    $region97: #{_lambda_.1} parent=1 // pred_fallthru
      _
    // Predicated region
    $region98: #{_lambda_.1} parent=1 // pred_check
      _
    $region99: #{_lambda_.1} parent=1 // pred_check_branch
      %188 = sbr.rel (0) target = $region101
    $region100: #{_lambda_.1} parent=1 // pred_region
      %189 = dma.done [#allocation19], 16
    $region101: #{_lambda_.1} parent=1 // pred_fallthru
      _
    // Predicated region
    $region102: #{_lambda_.1} parent=1 // pred_check
      _
    $region103: #{_lambda_.1} parent=1 // pred_check_branch
      %191 = sbr.rel (0) target = $region105
    $region104: #{_lambda_.1} parent=1 // pred_region
      %192 = dma.done [#allocation19], 16
    $region105: #{_lambda_.1} parent=1 // pred_fallthru
      _
    // Predicated region
    $region106: #{_lambda_.1} parent=1 // pred_check
      _
    $region107: #{_lambda_.1} parent=1 // pred_check_branch
      %194 = sbr.rel (0) target = $region109
    $region108: #{_lambda_.1} parent=1 // pred_region
      %195 = dma.done [#allocation22], 16
    $region109: #{_lambda_.1} parent=1 // pred_fallthru
      _
    // Predicated region
    $region110: #{_lambda_.1} parent=1 // pred_check
      _
    $region111: #{_lambda_.1} parent=1 // pred_check_branch
      %197 = sbr.rel (0) target = $region113
    $region112: #{_lambda_.1} parent=1 // pred_region
      %198 = dma.done [#allocation22], 256
    $region113: #{_lambda_.1} parent=1 // pred_fallthru
      _
    // Predicated region
    $region114: #{_lambda_.1} parent=1 // pred_check
      _
    $region115: #{_lambda_.1} parent=1 // pred_check_branch
      %200 = sbr.rel (0) target = $region117
    $region116: #{_lambda_.1} parent=1 // pred_region
      %201 = dma.done [#allocation25], 16
    $region117: #{_lambda_.1} parent=1 // pred_fallthru
      _
    // Predicated region
    $region118: #{_lambda_.1} parent=1 // pred_check
      _
    $region119: #{_lambda_.1} parent=1 // pred_check_branch
      %203 = sbr.rel (0) target = $region121
    $region120: #{_lambda_.1} parent=1 // pred_region
      %204 = dma.done [#allocation25], 512
    $region121: #{_lambda_.1} parent=1 // pred_fallthru
      _
    // Predicated region
    $region122: #{_lambda_.1} parent=1 // pred_check
      _
    $region123: #{_lambda_.1} parent=1 // pred_check_branch
      %206 = sbr.rel (0) target = $region125
    $region124: #{_lambda_.1} parent=1 // pred_region
      %207 = dma.done [#allocation28], 16
    $region125: #{_lambda_.1} parent=1 // pred_fallthru
      _
    // Predicated region
    $region126: #{_lambda_.1} parent=1 // pred_check
      _
    $region127: #{_lambda_.1} parent=1 // pred_check_branch
      %209 = sbr.rel (0) target = $region129
    $region128: #{_lambda_.1} parent=1 // pred_region
      %210 = dma.done [#allocation28], 16
    $region129: #{_lambda_.1} parent=1 // pred_fallthru
      _
    // Predicated region
    $region130: #{_lambda_.1} parent=1 // pred_check
      _
    $region131: #{_lambda_.1} parent=1 // pred_check_branch
      %212 = sbr.rel (0) target = $region133
    $region132: #{_lambda_.1} parent=1 // pred_region
      %213 = dma.done [#allocation31], 16
    $region133: #{_lambda_.1} parent=1 // pred_fallthru
      _
    %214 = sfence
    %vm215 = vcmask 416768
    %216 = vst.msk [vmem:[#allocation6] sm:$0xff] %vm215, 0.0
    %217 = vst.msk [vmem:[#allocation6 + $0x8] sm:$0xff] %vm215, 0.0
    %218 = vst.msk [vmem:[#allocation6 + $0x10] sm:$0xff] %vm215, 0.0
    %219 = vst.msk [vmem:[#allocation6 + $0x18] sm:$0xff] %vm215, 0.0
    %220 = vst.msk [vmem:[#allocation6 + $0x20] sm:$0xff] %vm215, 0.0
    %221 = vst.msk [vmem:[#allocation6 + $0x28] sm:$0xff] %vm215, 0.0
    %vm222 = vcmask 411648
    %223 = vst.msk [vmem:[#allocation6 + $0x30] sm:$0x7] %vm222, 0.0
    %224 = vst.msk [vmem:[#allocation6 + $0x38] sm:$0xff] %vm215, 0.0
    %225 = vst.msk [vmem:[#allocation6 + $0x40] sm:$0xff] %vm215, 0.0
    %226 = vst.msk [vmem:[#allocation6 + $0x48] sm:$0xff] %vm215, 0.0
    %227 = vst.msk [vmem:[#allocation6 + $0x50] sm:$0xff] %vm215, 0.0
    %228 = vst.msk [vmem:[#allocation6 + $0x58] sm:$0xff] %vm215, 0.0
    %229 = vst.msk [vmem:[#allocation6 + $0x60] sm:$0xff] %vm215, 0.0
    %230 = vst.msk [vmem:[#allocation6 + $0x68] sm:$0x7] %vm222, 0.0
    %231 = vst.msk [vmem:[#allocation6 + $0x70] sm:$0xff] %vm215, 0.0
    %232 = vst.msk [vmem:[#allocation6 + $0x78] sm:$0xff] %vm215, 0.0
    %233 = vst.msk [vmem:[#allocation6 + $0x80] sm:$0xff] %vm215, 0.0
    %234 = vst.msk [vmem:[#allocation6 + $0x88] sm:$0xff] %vm215, 0.0
    %235 = vst.msk [vmem:[#allocation6 + $0x90] sm:$0xff] %vm215, 0.0
    %236 = vst.msk [vmem:[#allocation6 + $0x98] sm:$0xff] %vm215, 0.0
    %237 = vst.msk [vmem:[#allocation6 + $0xa0] sm:$0x7] %vm222, 0.0
    %238 = vst.msk [vmem:[#allocation6 + $0xa8] sm:$0xff] %vm215, 0.0
    %239 = vst.msk [vmem:[#allocation6 + $0xb0] sm:$0xff] %vm215, 0.0
    %240 = vst.msk [vmem:[#allocation6 + $0xb8] sm:$0xff] %vm215, 0.0
    %241 = vst.msk [vmem:[#allocation6 + $0xc0] sm:$0xff] %vm215, 0.0
    %242 = vst.msk [vmem:[#allocation6 + $0xc8] sm:$0xff] %vm215, 0.0
    %243 = vst.msk [vmem:[#allocation6 + $0xd0] sm:$0xff] %vm215, 0.0
    %244 = vst.msk [vmem:[#allocation6 + $0xd8] sm:$0x7] %vm222, 0.0
    %245 = vst.msk [vmem:[#allocation6 + $0xe0] sm:$0xff] %vm215, 0.0
    %246 = vst.msk [vmem:[#allocation6 + $0xe8] sm:$0xff] %vm215, 0.0
    %247 = vst.msk [vmem:[#allocation6 + $0xf0] sm:$0xff] %vm215, 0.0
    %248 = vst.msk [vmem:[#allocation6 + $0xf8] sm:$0xff] %vm215, 0.0
    %249 = vst.msk [vmem:[#allocation6 + $0x100] sm:$0xff] %vm215, 0.0
    %250 = vst.msk [vmem:[#allocation6 + $0x108] sm:$0xff] %vm215, 0.0
    %251 = vst.msk [vmem:[#allocation6 + $0x110] sm:$0x7] %vm222, 0.0
    %252 = vst.msk [vmem:[#allocation6 + $0x118] sm:$0xff] %vm215, 0.0
    %253 = vst.msk [vmem:[#allocation6 + $0x120] sm:$0xff] %vm215, 0.0
    %254 = vst.msk [vmem:[#allocation6 + $0x128] sm:$0xff] %vm215, 0.0
    %255 = vst.msk [vmem:[#allocation6 + $0x130] sm:$0xff] %vm215, 0.0
    %256 = vst.msk [vmem:[#allocation6 + $0x138] sm:$0xff] %vm215, 0.0
    %257 = vst.msk [vmem:[#allocation6 + $0x140] sm:$0xff] %vm215, 0.0
    %258 = vst.msk [vmem:[#allocation6 + $0x148] sm:$0x7] %vm222, 0.0
    %259 = vst.msk [vmem:[#allocation6 + $0x150] sm:$0xff] %vm215, 0.0
    %260 = vst.msk [vmem:[#allocation6 + $0x158] sm:$0xff] %vm215, 0.0
    %261 = vst.msk [vmem:[#allocation6 + $0x160] sm:$0xff] %vm215, 0.0
    %262 = vst.msk [vmem:[#allocation6 + $0x168] sm:$0xff] %vm215, 0.0
    %263 = vst.msk [vmem:[#allocation6 + $0x170] sm:$0xff] %vm215, 0.0
    %264 = vst.msk [vmem:[#allocation6 + $0x178] sm:$0xff] %vm215, 0.0
    %265 = vst.msk [vmem:[#allocation6 + $0x180] sm:$0x7] %vm222, 0.0
    %266 = vst.msk [vmem:[#allocation6 + $0x188] sm:$0xff] %vm215, 0.0
    %267 = vst.msk [vmem:[#allocation6 + $0x190] sm:$0xff] %vm215, 0.0
    %268 = vst.msk [vmem:[#allocation6 + $0x198] sm:$0xff] %vm215, 0.0
    %269 = vst.msk [vmem:[#allocation6 + $0x1a0] sm:$0xff] %vm215, 0.0
    %270 = vst.msk [vmem:[#allocation6 + $0x1a8] sm:$0xff] %vm215, 0.0
    %271 = vst.msk [vmem:[#allocation6 + $0x1b0] sm:$0xff] %vm215, 0.0
    %272 = vst.msk [vmem:[#allocation6 + $0x1b8] sm:$0x7] %vm222, 0.0
    %273 = vst.msk [vmem:[#allocation6 + $0x1c0] sm:$0xff] %vm215, 0.0
    %274 = vst.msk [vmem:[#allocation6 + $0x1c8] sm:$0xff] %vm215, 0.0
    %275 = vst.msk [vmem:[#allocation6 + $0x1d0] sm:$0xff] %vm215, 0.0
    %276 = vst.msk [vmem:[#allocation6 + $0x1d8] sm:$0xff] %vm215, 0.0
    %277 = vst.msk [vmem:[#allocation6 + $0x1e0] sm:$0xff] %vm215, 0.0
    %278 = vst.msk [vmem:[#allocation6 + $0x1e8] sm:$0xff] %vm215, 0.0
    %279 = vst.msk [vmem:[#allocation6 + $0x1f0] sm:$0x7] %vm222, 0.0
    %280 = vst.msk [vmem:[#allocation6 + $0x1f8] sm:$0xff] %vm215, 0.0
    %281 = vst.msk [vmem:[#allocation6 + $0x200] sm:$0xff] %vm215, 0.0
    %282 = vst.msk [vmem:[#allocation6 + $0x208] sm:$0xff] %vm215, 0.0
    %283 = vst.msk [vmem:[#allocation6 + $0x210] sm:$0xff] %vm215, 0.0
    %284 = vst.msk [vmem:[#allocation6 + $0x218] sm:$0xff] %vm215, 0.0
    %285 = vst.msk [vmem:[#allocation6 + $0x220] sm:$0xff] %vm215, 0.0
    %286 = vst.msk [vmem:[#allocation6 + $0x228] sm:$0x7] %vm222, 0.0
    %287 = vst.msk [vmem:[#allocation6 + $0x230] sm:$0xff] %vm215, 0.0
    %288 = vst.msk [vmem:[#allocation6 + $0x238] sm:$0xff] %vm215, 0.0
    %289 = vst.msk [vmem:[#allocation6 + $0x240] sm:$0xff] %vm215, 0.0
    %290 = vst.msk [vmem:[#allocation6 + $0x248] sm:$0xff] %vm215, 0.0
    %291 = vst.msk [vmem:[#allocation6 + $0x250] sm:$0xff] %vm215, 0.0
    %292 = vst.msk [vmem:[#allocation6 + $0x258] sm:$0xff] %vm215, 0.0
    %293 = vst.msk [vmem:[#allocation6 + $0x260] sm:$0x7] %vm222, 0.0
    %294 = vst.msk [vmem:[#allocation6 + $0x268] sm:$0xff] %vm215, 0.0
    %295 = vst.msk [vmem:[#allocation6 + $0x270] sm:$0xff] %vm215, 0.0
    %296 = vst.msk [vmem:[#allocation6 + $0x278] sm:$0xff] %vm215, 0.0
    %297 = vst.msk [vmem:[#allocation6 + $0x280] sm:$0xff] %vm215, 0.0
    %298 = vst.msk [vmem:[#allocation6 + $0x288] sm:$0xff] %vm215, 0.0
    %299 = vst.msk [vmem:[#allocation6 + $0x290] sm:$0xff] %vm215, 0.0
    %300 = vst.msk [vmem:[#allocation6 + $0x298] sm:$0x7] %vm222, 0.0
    %301 = vst.msk [vmem:[#allocation6 + $0x2a0] sm:$0xff] %vm215, 0.0
    %302 = vst.msk [vmem:[#allocation6 + $0x2a8] sm:$0xff] %vm215, 0.0
    %303 = vst.msk [vmem:[#allocation6 + $0x2b0] sm:$0xff] %vm215, 0.0
    %304 = vst.msk [vmem:[#allocation6 + $0x2b8] sm:$0xff] %vm215, 0.0
    %305 = vst.msk [vmem:[#allocation6 + $0x2c0] sm:$0xff] %vm215, 0.0
    %306 = vst.msk [vmem:[#allocation6 + $0x2c8] sm:$0xff] %vm215, 0.0
    %307 = vst.msk [vmem:[#allocation6 + $0x2d0] sm:$0x7] %vm222, 0.0
    %308 = vst.msk [vmem:[#allocation6 + $0x2d8] sm:$0xff] %vm215, 0.0
    %309 = vst.msk [vmem:[#allocation6 + $0x2e0] sm:$0xff] %vm215, 0.0
    %310 = vst.msk [vmem:[#allocation6 + $0x2e8] sm:$0xff] %vm215, 0.0
    %311 = vst.msk [vmem:[#allocation6 + $0x2f0] sm:$0xff] %vm215, 0.0
    %312 = vst.msk [vmem:[#allocation6 + $0x2f8] sm:$0xff] %vm215, 0.0
    %313 = vst.msk [vmem:[#allocation6 + $0x300] sm:$0xff] %vm215, 0.0
    %314 = vst.msk [vmem:[#allocation6 + $0x308] sm:$0x7] %vm222, 0.0
    %315 = vst.msk [vmem:[#allocation6 + $0x310] sm:$0xff] %vm215, 0.0
    %316 = vst.msk [vmem:[#allocation6 + $0x318] sm:$0xff] %vm215, 0.0
    %317 = vst.msk [vmem:[#allocation6 + $0x320] sm:$0xff] %vm215, 0.0
    %318 = vst.msk [vmem:[#allocation6 + $0x328] sm:$0xff] %vm215, 0.0
    %319 = vst.msk [vmem:[#allocation6 + $0x330] sm:$0xff] %vm215, 0.0
    %320 = vst.msk [vmem:[#allocation6 + $0x338] sm:$0xff] %vm215, 0.0
    %321 = vst.msk [vmem:[#allocation6 + $0x340] sm:$0x7] %vm222, 0.0
    %322 = vst.msk [vmem:[#allocation6 + $0x348] sm:$0xff] %vm215, 0.0
    %323 = vst.msk [vmem:[#allocation6 + $0x350] sm:$0xff] %vm215, 0.0
    %324 = vst.msk [vmem:[#allocation6 + $0x358] sm:$0xff] %vm215, 0.0
    %325 = vst.msk [vmem:[#allocation6 + $0x360] sm:$0xff] %vm215, 0.0
    %326 = vst.msk [vmem:[#allocation6 + $0x368] sm:$0xff] %vm215, 0.0
    %327 = vst.msk [vmem:[#allocation6 + $0x370] sm:$0xff] %vm215, 0.0
    %328 = vst.msk [vmem:[#allocation6 + $0x378] sm:$0x7] %vm222, 0.0
    %329 = vst.msk [vmem:[#allocation6 + $0x380] sm:$0xff] %vm215, 0.0
    %330 = vst.msk [vmem:[#allocation6 + $0x388] sm:$0xff] %vm215, 0.0
    %331 = vst.msk [vmem:[#allocation6 + $0x390] sm:$0xff] %vm215, 0.0
    %332 = vst.msk [vmem:[#allocation6 + $0x398] sm:$0xff] %vm215, 0.0
    %333 = vst.msk [vmem:[#allocation6 + $0x3a0] sm:$0xff] %vm215, 0.0
    %334 = vst.msk [vmem:[#allocation6 + $0x3a8] sm:$0xff] %vm215, 0.0
    %335 = vst.msk [vmem:[#allocation6 + $0x3b0] sm:$0x7] %vm222, 0.0
    %336 = vst.msk [vmem:[#allocation6 + $0x3b8] sm:$0xff] %vm215, 0.0
    %337 = vst.msk [vmem:[#allocation6 + $0x3c0] sm:$0xff] %vm215, 0.0
    %338 = vst.msk [vmem:[#allocation6 + $0x3c8] sm:$0xff] %vm215, 0.0
    %339 = vst.msk [vmem:[#allocation6 + $0x3d0] sm:$0xff] %vm215, 0.0
    %340 = vst.msk [vmem:[#allocation6 + $0x3d8] sm:$0xff] %vm215, 0.0
    %341 = vst.msk [vmem:[#allocation6 + $0x3e0] sm:$0xff] %vm215, 0.0
    %342 = vst.msk [vmem:[#allocation6 + $0x3e8] sm:$0x7] %vm222, 0.0
    %343 = vst.msk [vmem:[#allocation6 + $0x3f0] sm:$0xff] %vm215, 0.0
    %344 = vst.msk [vmem:[#allocation6 + $0x3f8] sm:$0xff] %vm215, 0.0
    %345 = vst.msk [vmem:[#allocation6 + $0x400] sm:$0xff] %vm215, 0.0
    %346 = vst.msk [vmem:[#allocation6 + $0x408] sm:$0xff] %vm215, 0.0
    %347 = vst.msk [vmem:[#allocation6 + $0x410] sm:$0xff] %vm215, 0.0
    %348 = vst.msk [vmem:[#allocation6 + $0x418] sm:$0xff] %vm215, 0.0
    %349 = vst.msk [vmem:[#allocation6 + $0x420] sm:$0x7] %vm222, 0.0
    %350 = vst.msk [vmem:[#allocation6 + $0x428] sm:$0xff] %vm215, 0.0
    %351 = vst.msk [vmem:[#allocation6 + $0x430] sm:$0xff] %vm215, 0.0
    %352 = vst.msk [vmem:[#allocation6 + $0x438] sm:$0xff] %vm215, 0.0
    %353 = vst.msk [vmem:[#allocation6 + $0x440] sm:$0xff] %vm215, 0.0
    %354 = vst.msk [vmem:[#allocation6 + $0x448] sm:$0xff] %vm215, 0.0
    %355 = vst.msk [vmem:[#allocation6 + $0x450] sm:$0xff] %vm215, 0.0
    %356 = vst.msk [vmem:[#allocation6 + $0x458] sm:$0x7] %vm222, 0.0
    %357 = vst.msk [vmem:[#allocation6 + $0x460] sm:$0xff] %vm215, 0.0
    %358 = vst.msk [vmem:[#allocation6 + $0x468] sm:$0xff] %vm215, 0.0
    %359 = vst.msk [vmem:[#allocation6 + $0x470] sm:$0xff] %vm215, 0.0
    %360 = vst.msk [vmem:[#allocation6 + $0x478] sm:$0xff] %vm215, 0.0
    %361 = vst.msk [vmem:[#allocation6 + $0x480] sm:$0xff] %vm215, 0.0
    %362 = vst.msk [vmem:[#allocation6 + $0x488] sm:$0xff] %vm215, 0.0
    %363 = vst.msk [vmem:[#allocation6 + $0x490] sm:$0x7] %vm222, 0.0
    %364 = vst.msk [vmem:[#allocation6 + $0x498] sm:$0xff] %vm215, 0.0
    %365 = vst.msk [vmem:[#allocation6 + $0x4a0] sm:$0xff] %vm215, 0.0
    %366 = vst.msk [vmem:[#allocation6 + $0x4a8] sm:$0xff] %vm215, 0.0
    %367 = vst.msk [vmem:[#allocation6 + $0x4b0] sm:$0xff] %vm215, 0.0
    %368 = vst.msk [vmem:[#allocation6 + $0x4b8] sm:$0xff] %vm215, 0.0
    %369 = vst.msk [vmem:[#allocation6 + $0x4c0] sm:$0xff] %vm215, 0.0
    %370 = vst.msk [vmem:[#allocation6 + $0x4c8] sm:$0x7] %vm222, 0.0
    %371 = vst.msk [vmem:[#allocation6 + $0x4d0] sm:$0xff] %vm215, 0.0
    %372 = vst.msk [vmem:[#allocation6 + $0x4d8] sm:$0xff] %vm215, 0.0
    %373 = vst.msk [vmem:[#allocation6 + $0x4e0] sm:$0xff] %vm215, 0.0
    %374 = vst.msk [vmem:[#allocation6 + $0x4e8] sm:$0xff] %vm215, 0.0
    %375 = vst.msk [vmem:[#allocation6 + $0x4f0] sm:$0xff] %vm215, 0.0
    %376 = vst.msk [vmem:[#allocation6 + $0x4f8] sm:$0xff] %vm215, 0.0
    %377 = vst.msk [vmem:[#allocation6 + $0x500] sm:$0x7] %vm222, 0.0
    %378 = vst.msk [vmem:[#allocation6 + $0x508] sm:$0xff] %vm215, 0.0
    %379 = vst.msk [vmem:[#allocation6 + $0x510] sm:$0xff] %vm215, 0.0
    %380 = vst.msk [vmem:[#allocation6 + $0x518] sm:$0xff] %vm215, 0.0
    %381 = vst.msk [vmem:[#allocation6 + $0x520] sm:$0xff] %vm215, 0.0
    %382 = vst.msk [vmem:[#allocation6 + $0x528] sm:$0xff] %vm215, 0.0
    %383 = vst.msk [vmem:[#allocation6 + $0x530] sm:$0xff] %vm215, 0.0
    %384 = vst.msk [vmem:[#allocation6 + $0x538] sm:$0x7] %vm222, 0.0
    loop: start=0, step=1, limit=3
    $region134: #{_lambda_.1} parent=1 // loop_pre_header
      _
    $region135: #{_lambda_.1} parent=1 // loop_header
      %s386 = sphi 0, %s390
      %p387 = scmp.ge.s32.totalorder %s386, 3
    $region136: #{_lambda_.1} parent=1 // loop_header_branch
      %389 = sbr.rel (%p387) target = $region140
    $region137: #{_lambda_.1} parent=1 // loop_body
      %s391 = sld [smem:[#allocation15 + %s386]]
      %v392 = vstv %s391
      %v393 = vadd.f32 %v392, 0.0
      %s394 = smul.u32 %s386, 128
      %s395 = sld [smem:[#allocation12 + %s394]]
      %s396 = smul.u32 %s386, 208
      %s397 = scalar_lea.vmem %s0, %s396
      %v398 = vld [vmem:[%s397] sm:$0xff]
      %v399 = vld [vmem:[%s397 + $0x8] sm:$0xff]
      %v400 = vld [vmem:[%s397 + $0x10] sm:$0xff]
      %v401 = vld [vmem:[%s397 + $0x18] sm:$0xff]
      %v402 = vld [vmem:[%s397 + $0x20] sm:$0xff]
      %v403 = vld [vmem:[%s397 + $0x28] sm:$0xff]
      %v404 = vld [vmem:[%s397 + $0x30] sm:$0xff]
      %v405 = vld [vmem:[%s397 + $0x38] sm:$0xff]
      %v406 = vld [vmem:[%s397 + $0x40] sm:$0xff]
      %v407 = vld [vmem:[%s397 + $0x48] sm:$0xff]
      %v408 = vld [vmem:[%s397 + $0x50] sm:$0xff]
      %v409 = vld [vmem:[%s397 + $0x58] sm:$0xff]
      %v410 = vstv %s395
      %v411 = vmul.f32 %v410, %v398
      %v412 = vmul.f32 %v410, %v399
      %v413 = vmul.f32 %v410, %v400
      %v414 = vmul.f32 %v410, %v401
      %v415 = vmul.f32 %v410, %v402
      %v416 = vmul.f32 %v410, %v403
      %v417 = vmul.f32 %v410, %v404
      %v418 = vmul.f32 %v410, %v405
      %v419 = vmul.f32 %v410, %v406
      %v420 = vmul.f32 %v410, %v407
      %v421 = vmul.f32 %v410, %v408
      %v422 = vmul.f32 %v410, %v409
      %v423 = vadd.f32 %v393, %v411
      %v424 = vadd.f32 %v393, %v412
      %v425 = vadd.f32 %v393, %v413
      %v426 = vadd.f32 %v393, %v414
      %v427 = vadd.f32 %v393, %v415
      %v428 = vadd.f32 %v393, %v416
      %v429 = vadd.f32 %v393, %v417
      %v430 = vadd.f32 %v393, %v418
      %v431 = vadd.f32 %v393, %v419
      %v432 = vadd.f32 %v393, %v420
      %v433 = vadd.f32 %v393, %v421
      %v434 = vadd.f32 %v393, %v422
      %s435 = sadd.s32 %s394, 1
      %s436 = sld [smem:[#allocation12 + %s435]]
      %v437 = vstv %s436
      %v438 = vmul.f32 %v437, %v398
      %v439 = vmul.f32 %v437, %v399
      %v440 = vmul.f32 %v437, %v400
      %v441 = vmul.f32 %v437, %v401
      %v442 = vmul.f32 %v437, %v402
      %v443 = vmul.f32 %v437, %v403
      %v444 = vmul.f32 %v437, %v404
      %v445 = vmul.f32 %v437, %v405
      %v446 = vmul.f32 %v437, %v406
      %v447 = vmul.f32 %v437, %v407
      %v448 = vmul.f32 %v437, %v408
      %v449 = vmul.f32 %v437, %v409
      %462 = vrot.lane.b32.xlu0 %v438, 127
      %v463 = vpop.permute.xlu0 %462
      %464 = vrot.lane.b32.xlu0 %v439, 127
      %v465 = vpop.permute.xlu0 %464
      %466 = vrot.lane.b32.xlu0 %v440, 127
      %v467 = vpop.permute.xlu0 %466
      %468 = vrot.lane.b32.xlu0 %v441, 127
      %v469 = vpop.permute.xlu0 %468
      %470 = vrot.lane.b32.xlu0 %v442, 127
      %v471 = vpop.permute.xlu0 %470
      %472 = vrot.lane.b32.xlu0 %v443, 127
      %v473 = vpop.permute.xlu0 %472
      %474 = vrot.lane.b32.xlu0 %v444, 127
      %v475 = vpop.permute.xlu0 %474
      %476 = vrot.lane.b32.xlu0 %v445, 127
      %v477 = vpop.permute.xlu0 %476
      %478 = vrot.lane.b32.xlu0 %v446, 127
      %v479 = vpop.permute.xlu0 %478
      %480 = vrot.lane.b32.xlu0 %v447, 127
      %v481 = vpop.permute.xlu0 %480
      %482 = vrot.lane.b32.xlu0 %v448, 127
      %v483 = vpop.permute.xlu0 %482
      %484 = vrot.lane.b32.xlu0 %v449, 127
      %v485 = vpop.permute.xlu0 %484
      %v498 = vadd.f32 %v423, %v463
      %v499 = vadd.f32 %v424, %v465
      %v500 = vadd.f32 %v425, %v467
      %v501 = vadd.f32 %v426, %v469
      %v502 = vadd.f32 %v427, %v471
      %v503 = vadd.f32 %v428, %v473
      %v504 = vadd.f32 %v429, %v475
      %v505 = vadd.f32 %v430, %v477
      %v506 = vadd.f32 %v431, %v479
      %v507 = vadd.f32 %v432, %v481
      %v508 = vadd.f32 %v433, %v483
      %v509 = vadd.f32 %v434, %v485
      %s510 = sadd.s32 %s394, 2
      %s511 = sld [smem:[#allocation12 + %s510]]
      %v512 = vstv %s511
      %v513 = vmul.f32 %v512, %v398
      %v514 = vmul.f32 %v512, %v399
      %v515 = vmul.f32 %v512, %v400
      %v516 = vmul.f32 %v512, %v401
      %v517 = vmul.f32 %v512, %v402
      %v518 = vmul.f32 %v512, %v403
      %v519 = vmul.f32 %v512, %v404
      %v520 = vmul.f32 %v512, %v405
      %v521 = vmul.f32 %v512, %v406
      %v522 = vmul.f32 %v512, %v407
      %v523 = vmul.f32 %v512, %v408
      %v524 = vmul.f32 %v512, %v409
      %537 = vrot.lane.b32.xlu0 %v513, 126
      %v538 = vpop.permute.xlu0 %537
      %539 = vrot.lane.b32.xlu0 %v514, 126
      %v540 = vpop.permute.xlu0 %539
      %541 = vrot.lane.b32.xlu0 %v515, 126
      %v542 = vpop.permute.xlu0 %541
      %543 = vrot.lane.b32.xlu0 %v516, 126
      %v544 = vpop.permute.xlu0 %543
      %545 = vrot.lane.b32.xlu0 %v517, 126
      %v546 = vpop.permute.xlu0 %545
      %547 = vrot.lane.b32.xlu0 %v518, 126
      %v548 = vpop.permute.xlu0 %547
      %549 = vrot.lane.b32.xlu0 %v519, 126
      %v550 = vpop.permute.xlu0 %549
      %551 = vrot.lane.b32.xlu0 %v520, 126
      %v552 = vpop.permute.xlu0 %551
      %553 = vrot.lane.b32.xlu0 %v521, 126
      %v554 = vpop.permute.xlu0 %553
      %555 = vrot.lane.b32.xlu0 %v522, 126
      %v556 = vpop.permute.xlu0 %555
      %557 = vrot.lane.b32.xlu0 %v523, 126
      %v558 = vpop.permute.xlu0 %557
      %559 = vrot.lane.b32.xlu0 %v524, 126
      %v560 = vpop.permute.xlu0 %559
      %v573 = vadd.f32 %v498, %v538
      %v574 = vadd.f32 %v499, %v540
      %v575 = vadd.f32 %v500, %v542
      %v576 = vadd.f32 %v501, %v544
      %v577 = vadd.f32 %v502, %v546
      %v578 = vadd.f32 %v503, %v548
      %v579 = vadd.f32 %v504, %v550
      %v580 = vadd.f32 %v505, %v552
      %v581 = vadd.f32 %v506, %v554
      %v582 = vadd.f32 %v507, %v556
      %v583 = vadd.f32 %v508, %v558
      %v584 = vadd.f32 %v509, %v560
      %s585 = sadd.s32 %s394, 3
      %s586 = sld [smem:[#allocation12 + %s585]]
      %v587 = vld [vmem:[%s397 + $0x1] sm:$0xff]
      %v588 = vld [vmem:[%s397 + $0x9] sm:$0xff]
      %v589 = vld [vmem:[%s397 + $0x11] sm:$0xff]
      %v590 = vld [vmem:[%s397 + $0x19] sm:$0xff]
      %v591 = vld [vmem:[%s397 + $0x21] sm:$0xff]
      %v592 = vld [vmem:[%s397 + $0x29] sm:$0xff]
      %v593 = vld [vmem:[%s397 + $0x31] sm:$0xff]
      %v594 = vld [vmem:[%s397 + $0x39] sm:$0xff]
      %v595 = vld [vmem:[%s397 + $0x41] sm:$0xff]
      %v596 = vld [vmem:[%s397 + $0x49] sm:$0xff]
      %v597 = vld [vmem:[%s397 + $0x51] sm:$0xff]
      %v598 = vld [vmem:[%s397 + $0x59] sm:$0xff]
      %v599 = vstv %s586
      %v600 = vmul.f32 %v599, %v587
      %v601 = vmul.f32 %v599, %v588
      %v602 = vmul.f32 %v599, %v589
      %v603 = vmul.f32 %v599, %v590
      %v604 = vmul.f32 %v599, %v591
      %v605 = vmul.f32 %v599, %v592
      %v606 = vmul.f32 %v599, %v593
      %v607 = vmul.f32 %v599, %v594
      %v608 = vmul.f32 %v599, %v595
      %v609 = vmul.f32 %v599, %v596
      %v610 = vmul.f32 %v599, %v597
      %v611 = vmul.f32 %v599, %v598
      %v612 = vadd.f32 %v573, %v600
      %v613 = vadd.f32 %v574, %v601
      %v614 = vadd.f32 %v575, %v602
      %v615 = vadd.f32 %v576, %v603
      %v616 = vadd.f32 %v577, %v604
      %v617 = vadd.f32 %v578, %v605
      %v618 = vadd.f32 %v579, %v606
      %v619 = vadd.f32 %v580, %v607
      %v620 = vadd.f32 %v581, %v608
      %v621 = vadd.f32 %v582, %v609
      %v622 = vadd.f32 %v583, %v610
      %v623 = vadd.f32 %v584, %v611
      %s624 = sadd.s32 %s394, 4
      %s625 = sld [smem:[#allocation12 + %s624]]
      %v626 = vstv %s625
      %v627 = vmul.f32 %v626, %v587
      %v628 = vmul.f32 %v626, %v588
      %v629 = vmul.f32 %v626, %v589
      %v630 = vmul.f32 %v626, %v590
      %v631 = vmul.f32 %v626, %v591
      %v632 = vmul.f32 %v626, %v592
      %v633 = vmul.f32 %v626, %v593
      %v634 = vmul.f32 %v626, %v594
      %v635 = vmul.f32 %v626, %v595
      %v636 = vmul.f32 %v626, %v596
      %v637 = vmul.f32 %v626, %v597
      %v638 = vmul.f32 %v626, %v598
      %651 = vrot.lane.b32.xlu0 %v627, 127
      %v652 = vpop.permute.xlu0 %651
      %653 = vrot.lane.b32.xlu0 %v628, 127
      %v654 = vpop.permute.xlu0 %653
      %655 = vrot.lane.b32.xlu0 %v629, 127
      %v656 = vpop.permute.xlu0 %655
      %657 = vrot.lane.b32.xlu0 %v630, 127
      %v658 = vpop.permute.xlu0 %657
      %659 = vrot.lane.b32.xlu0 %v631, 127
      %v660 = vpop.permute.xlu0 %659
      %661 = vrot.lane.b32.xlu0 %v632, 127
      %v662 = vpop.permute.xlu0 %661
      %663 = vrot.lane.b32.xlu0 %v633, 127
      %v664 = vpop.permute.xlu0 %663
      %665 = vrot.lane.b32.xlu0 %v634, 127
      %v666 = vpop.permute.xlu0 %665
      %667 = vrot.lane.b32.xlu0 %v635, 127
      %v668 = vpop.permute.xlu0 %667
      %669 = vrot.lane.b32.xlu0 %v636, 127
      %v670 = vpop.permute.xlu0 %669
      %671 = vrot.lane.b32.xlu0 %v637, 127
      %v672 = vpop.permute.xlu0 %671
      %673 = vrot.lane.b32.xlu0 %v638, 127
      %v674 = vpop.permute.xlu0 %673
      %v687 = vadd.f32 %v612, %v652
      %v688 = vadd.f32 %v613, %v654
      %v689 = vadd.f32 %v614, %v656
      %v690 = vadd.f32 %v615, %v658
      %v691 = vadd.f32 %v616, %v660
      %v692 = vadd.f32 %v617, %v662
      %v693 = vadd.f32 %v618, %v664
      %v694 = vadd.f32 %v619, %v666
      %v695 = vadd.f32 %v620, %v668
      %v696 = vadd.f32 %v621, %v670
      %v697 = vadd.f32 %v622, %v672
      %v698 = vadd.f32 %v623, %v674
      %s699 = sadd.s32 %s394, 5
      %s700 = sld [smem:[#allocation12 + %s699]]
      %v701 = vstv %s700
      %v702 = vmul.f32 %v701, %v587
      %v703 = vmul.f32 %v701, %v588
      %v704 = vmul.f32 %v701, %v589
      %v705 = vmul.f32 %v701, %v590
      %v706 = vmul.f32 %v701, %v591
      %v707 = vmul.f32 %v701, %v592
      %v708 = vmul.f32 %v701, %v593
      %v709 = vmul.f32 %v701, %v594
      %v710 = vmul.f32 %v701, %v595
      %v711 = vmul.f32 %v701, %v596
      %v712 = vmul.f32 %v701, %v597
      %v713 = vmul.f32 %v701, %v598
      %726 = vrot.lane.b32.xlu0 %v702, 126
      %v727 = vpop.permute.xlu0 %726
      %728 = vrot.lane.b32.xlu0 %v703, 126
      %v729 = vpop.permute.xlu0 %728
      %730 = vrot.lane.b32.xlu0 %v704, 126
      %v731 = vpop.permute.xlu0 %730
      %732 = vrot.lane.b32.xlu0 %v705, 126
      %v733 = vpop.permute.xlu0 %732
      %734 = vrot.lane.b32.xlu0 %v706, 126
      %v735 = vpop.permute.xlu0 %734
      %736 = vrot.lane.b32.xlu0 %v707, 126
      %v737 = vpop.permute.xlu0 %736
      %738 = vrot.lane.b32.xlu0 %v708, 126
      %v739 = vpop.permute.xlu0 %738
      %740 = vrot.lane.b32.xlu0 %v709, 126
      %v741 = vpop.permute.xlu0 %740
      %742 = vrot.lane.b32.xlu0 %v710, 126
      %v743 = vpop.permute.xlu0 %742
      %744 = vrot.lane.b32.xlu0 %v711, 126
      %v745 = vpop.permute.xlu0 %744
      %746 = vrot.lane.b32.xlu0 %v712, 126
      %v747 = vpop.permute.xlu0 %746
      %748 = vrot.lane.b32.xlu0 %v713, 126
      %v749 = vpop.permute.xlu0 %748
      %v762 = vadd.f32 %v687, %v727
      %v763 = vadd.f32 %v688, %v729
      %v764 = vadd.f32 %v689, %v731
      %v765 = vadd.f32 %v690, %v733
      %v766 = vadd.f32 %v691, %v735
      %v767 = vadd.f32 %v692, %v737
      %v768 = vadd.f32 %v693, %v739
      %v769 = vadd.f32 %v694, %v741
      %v770 = vadd.f32 %v695, %v743
      %v771 = vadd.f32 %v696, %v745
      %v772 = vadd.f32 %v697, %v747
      %v773 = vadd.f32 %v698, %v749
      %s774 = sadd.s32 %s394, 6
      %s775 = sld [smem:[#allocation12 + %s774]]
      %v776 = vld [vmem:[%s397 + $0x2] sm:$0xff]
      %v777 = vld [vmem:[%s397 + $0xa] sm:$0xff]
      %v778 = vld [vmem:[%s397 + $0x12] sm:$0xff]
      %v779 = vld [vmem:[%s397 + $0x1a] sm:$0xff]
      %v780 = vld [vmem:[%s397 + $0x22] sm:$0xff]
      %v781 = vld [vmem:[%s397 + $0x2a] sm:$0xff]
      %v782 = vld [vmem:[%s397 + $0x32] sm:$0xff]
      %v783 = vld [vmem:[%s397 + $0x3a] sm:$0xff]
      %v784 = vld [vmem:[%s397 + $0x42] sm:$0xff]
      %v785 = vld [vmem:[%s397 + $0x4a] sm:$0xff]
      %v786 = vld [vmem:[%s397 + $0x52] sm:$0xff]
      %v787 = vld [vmem:[%s397 + $0x5a] sm:$0xff]
      %v788 = vstv %s775
      %v789 = vmul.f32 %v788, %v776
      %v790 = vmul.f32 %v788, %v777
      %v791 = vmul.f32 %v788, %v778
      %v792 = vmul.f32 %v788, %v779
      %v793 = vmul.f32 %v788, %v780
      %v794 = vmul.f32 %v788, %v781
      %v795 = vmul.f32 %v788, %v782
      %v796 = vmul.f32 %v788, %v783
      %v797 = vmul.f32 %v788, %v784
      %v798 = vmul.f32 %v788, %v785
      %v799 = vmul.f32 %v788, %v786
      %v800 = vmul.f32 %v788, %v787
      %v801 = vadd.f32 %v762, %v789
      %v802 = vadd.f32 %v763, %v790
      %v803 = vadd.f32 %v764, %v791
      %v804 = vadd.f32 %v765, %v792
      %v805 = vadd.f32 %v766, %v793
      %v806 = vadd.f32 %v767, %v794
      %v807 = vadd.f32 %v768, %v795
      %v808 = vadd.f32 %v769, %v796
      %v809 = vadd.f32 %v770, %v797
      %v810 = vadd.f32 %v771, %v798
      %v811 = vadd.f32 %v772, %v799
      %v812 = vadd.f32 %v773, %v800
      %s813 = sadd.s32 %s394, 7
      %s814 = sld [smem:[#allocation12 + %s813]]
      %v815 = vstv %s814
      %v816 = vmul.f32 %v815, %v776
      %v817 = vmul.f32 %v815, %v777
      %v818 = vmul.f32 %v815, %v778
      %v819 = vmul.f32 %v815, %v779
      %v820 = vmul.f32 %v815, %v780
      %v821 = vmul.f32 %v815, %v781
      %v822 = vmul.f32 %v815, %v782
      %v823 = vmul.f32 %v815, %v783
      %v824 = vmul.f32 %v815, %v784
      %v825 = vmul.f32 %v815, %v785
      %v826 = vmul.f32 %v815, %v786
      %v827 = vmul.f32 %v815, %v787
      %840 = vrot.lane.b32.xlu0 %v816, 127
      %v841 = vpop.permute.xlu0 %840
      %842 = vrot.lane.b32.xlu0 %v817, 127
      %v843 = vpop.permute.xlu0 %842
      %844 = vrot.lane.b32.xlu0 %v818, 127
      %v845 = vpop.permute.xlu0 %844
      %846 = vrot.lane.b32.xlu0 %v819, 127
      %v847 = vpop.permute.xlu0 %846
      %848 = vrot.lane.b32.xlu0 %v820, 127
      %v849 = vpop.permute.xlu0 %848
      %850 = vrot.lane.b32.xlu0 %v821, 127
      %v851 = vpop.permute.xlu0 %850
      %852 = vrot.lane.b32.xlu0 %v822, 127
      %v853 = vpop.permute.xlu0 %852
      %854 = vrot.lane.b32.xlu0 %v823, 127
      %v855 = vpop.permute.xlu0 %854
      %856 = vrot.lane.b32.xlu0 %v824, 127
      %v857 = vpop.permute.xlu0 %856
      %858 = vrot.lane.b32.xlu0 %v825, 127
      %v859 = vpop.permute.xlu0 %858
      %860 = vrot.lane.b32.xlu0 %v826, 127
      %v861 = vpop.permute.xlu0 %860
      %862 = vrot.lane.b32.xlu0 %v827, 127
      %v863 = vpop.permute.xlu0 %862
      %v876 = vadd.f32 %v801, %v841
      %v877 = vadd.f32 %v802, %v843
      %v878 = vadd.f32 %v803, %v845
      %v879 = vadd.f32 %v804, %v847
      %v880 = vadd.f32 %v805, %v849
      %v881 = vadd.f32 %v806, %v851
      %v882 = vadd.f32 %v807, %v853
      %v883 = vadd.f32 %v808, %v855
      %v884 = vadd.f32 %v809, %v857
      %v885 = vadd.f32 %v810, %v859
      %v886 = vadd.f32 %v811, %v861
      %v887 = vadd.f32 %v812, %v863
      %s888 = sadd.s32 %s394, 8
      %s889 = sld [smem:[#allocation12 + %s888]]
      %v890 = vstv %s889
      %v891 = vmul.f32 %v890, %v776
      %v892 = vmul.f32 %v890, %v777
      %v893 = vmul.f32 %v890, %v778
      %v894 = vmul.f32 %v890, %v779
      %v895 = vmul.f32 %v890, %v780
      %v896 = vmul.f32 %v890, %v781
      %v897 = vmul.f32 %v890, %v782
      %v898 = vmul.f32 %v890, %v783
      %v899 = vmul.f32 %v890, %v784
      %v900 = vmul.f32 %v890, %v785
      %v901 = vmul.f32 %v890, %v786
      %v902 = vmul.f32 %v890, %v787
      %915 = vrot.lane.b32.xlu0 %v891, 126
      %v916 = vpop.permute.xlu0 %915
      %917 = vrot.lane.b32.xlu0 %v892, 126
      %v918 = vpop.permute.xlu0 %917
      %919 = vrot.lane.b32.xlu0 %v893, 126
      %v920 = vpop.permute.xlu0 %919
      %921 = vrot.lane.b32.xlu0 %v894, 126
      %v922 = vpop.permute.xlu0 %921
      %923 = vrot.lane.b32.xlu0 %v895, 126
      %v924 = vpop.permute.xlu0 %923
      %925 = vrot.lane.b32.xlu0 %v896, 126
      %v926 = vpop.permute.xlu0 %925
      %927 = vrot.lane.b32.xlu0 %v897, 126
      %v928 = vpop.permute.xlu0 %927
      %929 = vrot.lane.b32.xlu0 %v898, 126
      %v930 = vpop.permute.xlu0 %929
      %931 = vrot.lane.b32.xlu0 %v899, 126
      %v932 = vpop.permute.xlu0 %931
      %933 = vrot.lane.b32.xlu0 %v900, 126
      %v934 = vpop.permute.xlu0 %933
      %935 = vrot.lane.b32.xlu0 %v901, 126
      %v936 = vpop.permute.xlu0 %935
      %937 = vrot.lane.b32.xlu0 %v902, 126
      %v938 = vpop.permute.xlu0 %937
      %v951 = vadd.f32 %v876, %v916
      %v952 = vadd.f32 %v877, %v918
      %v953 = vadd.f32 %v878, %v920
      %v954 = vadd.f32 %v879, %v922
      %v955 = vadd.f32 %v880, %v924
      %v956 = vadd.f32 %v881, %v926
      %v957 = vadd.f32 %v882, %v928
      %v958 = vadd.f32 %v883, %v930
      %v959 = vadd.f32 %v884, %v932
      %v960 = vadd.f32 %v885, %v934
      %v961 = vadd.f32 %v886, %v936
      %v962 = vadd.f32 %v887, %v938
      %s963 = smul.u32 %s386, 192
      %s964 = scalar_lea.vmem [#allocation2], %s963
      %vm965 = vcmask 785408
      %966 = vst.msk [vmem:[%s964] sm:$0xff] %vm965, %v951
      %967 = vst.msk [vmem:[%s964 + $0x8] sm:$0xff] %vm965, %v952
      %968 = vst.msk [vmem:[%s964 + $0x10] sm:$0xff] %vm965, %v953
      %969 = vst.msk [vmem:[%s964 + $0x18] sm:$0xff] %vm965, %v954
      %970 = vst.msk [vmem:[%s964 + $0x20] sm:$0xff] %vm965, %v955
      %971 = vst.msk [vmem:[%s964 + $0x28] sm:$0xff] %vm965, %v956
      %972 = vst.msk [vmem:[%s964 + $0x30] sm:$0xff] %vm965, %v957
      %973 = vst.msk [vmem:[%s964 + $0x38] sm:$0xff] %vm965, %v958
      %974 = vst.msk [vmem:[%s964 + $0x40] sm:$0xff] %vm965, %v959
      %975 = vst.msk [vmem:[%s964 + $0x48] sm:$0xff] %vm965, %v960
      %976 = vst.msk [vmem:[%s964 + $0x50] sm:$0xff] %vm965, %v961
      %977 = vst.msk [vmem:[%s964 + $0x58] sm:$0xff] %vm965, %v962
      %s978 = sld [smem:[#allocation15 + %s386]]
      %v979 = vstv %s978
      %v980 = vadd.f32 %v979, 0.0
      %s981 = sld [smem:[#allocation12 + %s394]]
      %s982 = sadd.s32 104, %s396
      %s983 = scalar_lea.vmem %s0, %s982
      %v984 = vld [vmem:[%s983] sm:$0xff]
      %v985 = vld [vmem:[%s983 + $0x8] sm:$0xff]
      %v986 = vld [vmem:[%s983 + $0x10] sm:$0xff]
      %v987 = vld [vmem:[%s983 + $0x18] sm:$0xff]
      %v988 = vld [vmem:[%s983 + $0x20] sm:$0xff]
      %v989 = vld [vmem:[%s983 + $0x28] sm:$0xff]
      %v990 = vld [vmem:[%s983 + $0x30] sm:$0xff]
      %v991 = vld [vmem:[%s983 + $0x38] sm:$0xff]
      %v992 = vld [vmem:[%s983 + $0x40] sm:$0xff]
      %v993 = vld [vmem:[%s983 + $0x48] sm:$0xff]
      %v994 = vld [vmem:[%s983 + $0x50] sm:$0xff]
      %v995 = vld [vmem:[%s983 + $0x58] sm:$0xff]
      %v996 = vstv %s981
      %v997 = vmul.f32 %v996, %v984
      %v998 = vmul.f32 %v996, %v985
      %v999 = vmul.f32 %v996, %v986
      %v1000 = vmul.f32 %v996, %v987
      %v1001 = vmul.f32 %v996, %v988
      %v1002 = vmul.f32 %v996, %v989
      %v1003 = vmul.f32 %v996, %v990
      %v1004 = vmul.f32 %v996, %v991
      %v1005 = vmul.f32 %v996, %v992
      %v1006 = vmul.f32 %v996, %v993
      %v1007 = vmul.f32 %v996, %v994
      %v1008 = vmul.f32 %v996, %v995
      %v1009 = vadd.f32 %v980, %v997
      %v1010 = vadd.f32 %v980, %v998
      %v1011 = vadd.f32 %v980, %v999
      %v1012 = vadd.f32 %v980, %v1000
      %v1013 = vadd.f32 %v980, %v1001
      %v1014 = vadd.f32 %v980, %v1002
      %v1015 = vadd.f32 %v980, %v1003
      %v1016 = vadd.f32 %v980, %v1004
      %v1017 = vadd.f32 %v980, %v1005
      %v1018 = vadd.f32 %v980, %v1006
      %v1019 = vadd.f32 %v980, %v1007
      %v1020 = vadd.f32 %v980, %v1008
      %s1021 = sld [smem:[#allocation12 + %s435]]
      %v1022 = vstv %s1021
      %v1023 = vmul.f32 %v1022, %v984
      %v1024 = vmul.f32 %v1022, %v985
      %v1025 = vmul.f32 %v1022, %v986
      %v1026 = vmul.f32 %v1022, %v987
      %v1027 = vmul.f32 %v1022, %v988
      %v1028 = vmul.f32 %v1022, %v989
      %v1029 = vmul.f32 %v1022, %v990
      %v1030 = vmul.f32 %v1022, %v991
      %v1031 = vmul.f32 %v1022, %v992
      %v1032 = vmul.f32 %v1022, %v993
      %v1033 = vmul.f32 %v1022, %v994
      %v1034 = vmul.f32 %v1022, %v995
      %1047 = vrot.lane.b32.xlu0 %v1023, 127
      %v1048 = vpop.permute.xlu0 %1047
      %1049 = vrot.lane.b32.xlu0 %v1024, 127
      %v1050 = vpop.permute.xlu0 %1049
      %1051 = vrot.lane.b32.xlu0 %v1025, 127
      %v1052 = vpop.permute.xlu0 %1051
      %1053 = vrot.lane.b32.xlu0 %v1026, 127
      %v1054 = vpop.permute.xlu0 %1053
      %1055 = vrot.lane.b32.xlu0 %v1027, 127
      %v1056 = vpop.permute.xlu0 %1055
      %1057 = vrot.lane.b32.xlu0 %v1028, 127
      %v1058 = vpop.permute.xlu0 %1057
      %1059 = vrot.lane.b32.xlu0 %v1029, 127
      %v1060 = vpop.permute.xlu0 %1059
      %1061 = vrot.lane.b32.xlu0 %v1030, 127
      %v1062 = vpop.permute.xlu0 %1061
      %1063 = vrot.lane.b32.xlu0 %v1031, 127
      %v1064 = vpop.permute.xlu0 %1063
      %1065 = vrot.lane.b32.xlu0 %v1032, 127
      %v1066 = vpop.permute.xlu0 %1065
      %1067 = vrot.lane.b32.xlu0 %v1033, 127
      %v1068 = vpop.permute.xlu0 %1067
      %1069 = vrot.lane.b32.xlu0 %v1034, 127
      %v1070 = vpop.permute.xlu0 %1069
      %v1083 = vadd.f32 %v1009, %v1048
      %v1084 = vadd.f32 %v1010, %v1050
      %v1085 = vadd.f32 %v1011, %v1052
      %v1086 = vadd.f32 %v1012, %v1054
      %v1087 = vadd.f32 %v1013, %v1056
      %v1088 = vadd.f32 %v1014, %v1058
      %v1089 = vadd.f32 %v1015, %v1060
      %v1090 = vadd.f32 %v1016, %v1062
      %v1091 = vadd.f32 %v1017, %v1064
      %v1092 = vadd.f32 %v1018, %v1066
      %v1093 = vadd.f32 %v1019, %v1068
      %v1094 = vadd.f32 %v1020, %v1070
      %s1095 = sld [smem:[#allocation12 + %s510]]
      %v1096 = vstv %s1095
      %v1097 = vmul.f32 %v1096, %v984
      %v1098 = vmul.f32 %v1096, %v985
      %v1099 = vmul.f32 %v1096, %v986
      %v1100 = vmul.f32 %v1096, %v987
      %v1101 = vmul.f32 %v1096, %v988
      %v1102 = vmul.f32 %v1096, %v989
      %v1103 = vmul.f32 %v1096, %v990
      %v1104 = vmul.f32 %v1096, %v991
      %v1105 = vmul.f32 %v1096, %v992
      %v1106 = vmul.f32 %v1096, %v993
      %v1107 = vmul.f32 %v1096, %v994
      %v1108 = vmul.f32 %v1096, %v995
      %1121 = vrot.lane.b32.xlu0 %v1097, 126
      %v1122 = vpop.permute.xlu0 %1121
      %1123 = vrot.lane.b32.xlu0 %v1098, 126
      %v1124 = vpop.permute.xlu0 %1123
      %1125 = vrot.lane.b32.xlu0 %v1099, 126
      %v1126 = vpop.permute.xlu0 %1125
      %1127 = vrot.lane.b32.xlu0 %v1100, 126
      %v1128 = vpop.permute.xlu0 %1127
      %1129 = vrot.lane.b32.xlu0 %v1101, 126
      %v1130 = vpop.permute.xlu0 %1129
      %1131 = vrot.lane.b32.xlu0 %v1102, 126
      %v1132 = vpop.permute.xlu0 %1131
      %1133 = vrot.lane.b32.xlu0 %v1103, 126
      %v1134 = vpop.permute.xlu0 %1133
      %1135 = vrot.lane.b32.xlu0 %v1104, 126
      %v1136 = vpop.permute.xlu0 %1135
      %1137 = vrot.lane.b32.xlu0 %v1105, 126
      %v1138 = vpop.permute.xlu0 %1137
      %1139 = vrot.lane.b32.xlu0 %v1106, 126
      %v1140 = vpop.permute.xlu0 %1139
      %1141 = vrot.lane.b32.xlu0 %v1107, 126
      %v1142 = vpop.permute.xlu0 %1141
      %1143 = vrot.lane.b32.xlu0 %v1108, 126
      %v1144 = vpop.permute.xlu0 %1143
      %v1157 = vadd.f32 %v1083, %v1122
      %v1158 = vadd.f32 %v1084, %v1124
      %v1159 = vadd.f32 %v1085, %v1126
      %v1160 = vadd.f32 %v1086, %v1128
      %v1161 = vadd.f32 %v1087, %v1130
      %v1162 = vadd.f32 %v1088, %v1132
      %v1163 = vadd.f32 %v1089, %v1134
      %v1164 = vadd.f32 %v1090, %v1136
      %v1165 = vadd.f32 %v1091, %v1138
      %v1166 = vadd.f32 %v1092, %v1140
      %v1167 = vadd.f32 %v1093, %v1142
      %v1168 = vadd.f32 %v1094, %v1144
      %s1169 = sld [smem:[#allocation12 + %s585]]
      %v1170 = vld [vmem:[%s983 + $0x1] sm:$0xff]
      %v1171 = vld [vmem:[%s983 + $0x9] sm:$0xff]
      %v1172 = vld [vmem:[%s983 + $0x11] sm:$0xff]
      %v1173 = vld [vmem:[%s983 + $0x19] sm:$0xff]
      %v1174 = vld [vmem:[%s983 + $0x21] sm:$0xff]
      %v1175 = vld [vmem:[%s983 + $0x29] sm:$0xff]
      %v1176 = vld [vmem:[%s983 + $0x31] sm:$0xff]
      %v1177 = vld [vmem:[%s983 + $0x39] sm:$0xff]
      %v1178 = vld [vmem:[%s983 + $0x41] sm:$0xff]
      %v1179 = vld [vmem:[%s983 + $0x49] sm:$0xff]
      %v1180 = vld [vmem:[%s983 + $0x51] sm:$0xff]
      %v1181 = vld [vmem:[%s983 + $0x59] sm:$0xff]
      %v1182 = vstv %s1169
      %v1183 = vmul.f32 %v1182, %v1170
      %v1184 = vmul.f32 %v1182, %v1171
      %v1185 = vmul.f32 %v1182, %v1172
      %v1186 = vmul.f32 %v1182, %v1173
      %v1187 = vmul.f32 %v1182, %v1174
      %v1188 = vmul.f32 %v1182, %v1175
      %v1189 = vmul.f32 %v1182, %v1176
      %v1190 = vmul.f32 %v1182, %v1177
      %v1191 = vmul.f32 %v1182, %v1178
      %v1192 = vmul.f32 %v1182, %v1179
      %v1193 = vmul.f32 %v1182, %v1180
      %v1194 = vmul.f32 %v1182, %v1181
      %v1195 = vadd.f32 %v1157, %v1183
      %v1196 = vadd.f32 %v1158, %v1184
      %v1197 = vadd.f32 %v1159, %v1185
      %v1198 = vadd.f32 %v1160, %v1186
      %v1199 = vadd.f32 %v1161, %v1187
      %v1200 = vadd.f32 %v1162, %v1188
      %v1201 = vadd.f32 %v1163, %v1189
      %v1202 = vadd.f32 %v1164, %v1190
      %v1203 = vadd.f32 %v1165, %v1191
      %v1204 = vadd.f32 %v1166, %v1192
      %v1205 = vadd.f32 %v1167, %v1193
      %v1206 = vadd.f32 %v1168, %v1194
      %s1207 = sld [smem:[#allocation12 + %s624]]
      %v1208 = vstv %s1207
      %v1209 = vmul.f32 %v1208, %v1170
      %v1210 = vmul.f32 %v1208, %v1171
      %v1211 = vmul.f32 %v1208, %v1172
      %v1212 = vmul.f32 %v1208, %v1173
      %v1213 = vmul.f32 %v1208, %v1174
      %v1214 = vmul.f32 %v1208, %v1175
      %v1215 = vmul.f32 %v1208, %v1176
      %v1216 = vmul.f32 %v1208, %v1177
      %v1217 = vmul.f32 %v1208, %v1178
      %v1218 = vmul.f32 %v1208, %v1179
      %v1219 = vmul.f32 %v1208, %v1180
      %v1220 = vmul.f32 %v1208, %v1181
      %1233 = vrot.lane.b32.xlu0 %v1209, 127
      %v1234 = vpop.permute.xlu0 %1233
      %1235 = vrot.lane.b32.xlu0 %v1210, 127
      %v1236 = vpop.permute.xlu0 %1235
      %1237 = vrot.lane.b32.xlu0 %v1211, 127
      %v1238 = vpop.permute.xlu0 %1237
      %1239 = vrot.lane.b32.xlu0 %v1212, 127
      %v1240 = vpop.permute.xlu0 %1239
      %1241 = vrot.lane.b32.xlu0 %v1213, 127
      %v1242 = vpop.permute.xlu0 %1241
      %1243 = vrot.lane.b32.xlu0 %v1214, 127
      %v1244 = vpop.permute.xlu0 %1243
      %1245 = vrot.lane.b32.xlu0 %v1215, 127
      %v1246 = vpop.permute.xlu0 %1245
      %1247 = vrot.lane.b32.xlu0 %v1216, 127
      %v1248 = vpop.permute.xlu0 %1247
      %1249 = vrot.lane.b32.xlu0 %v1217, 127
      %v1250 = vpop.permute.xlu0 %1249
      %1251 = vrot.lane.b32.xlu0 %v1218, 127
      %v1252 = vpop.permute.xlu0 %1251
      %1253 = vrot.lane.b32.xlu0 %v1219, 127
      %v1254 = vpop.permute.xlu0 %1253
      %1255 = vrot.lane.b32.xlu0 %v1220, 127
      %v1256 = vpop.permute.xlu0 %1255
      %v1269 = vadd.f32 %v1195, %v1234
      %v1270 = vadd.f32 %v1196, %v1236
      %v1271 = vadd.f32 %v1197, %v1238
      %v1272 = vadd.f32 %v1198, %v1240
      %v1273 = vadd.f32 %v1199, %v1242
      %v1274 = vadd.f32 %v1200, %v1244
      %v1275 = vadd.f32 %v1201, %v1246
      %v1276 = vadd.f32 %v1202, %v1248
      %v1277 = vadd.f32 %v1203, %v1250
      %v1278 = vadd.f32 %v1204, %v1252
      %v1279 = vadd.f32 %v1205, %v1254
      %v1280 = vadd.f32 %v1206, %v1256
      %s1281 = sld [smem:[#allocation12 + %s699]]
      %v1282 = vstv %s1281
      %v1283 = vmul.f32 %v1282, %v1170
      %v1284 = vmul.f32 %v1282, %v1171
      %v1285 = vmul.f32 %v1282, %v1172
      %v1286 = vmul.f32 %v1282, %v1173
      %v1287 = vmul.f32 %v1282, %v1174
      %v1288 = vmul.f32 %v1282, %v1175
      %v1289 = vmul.f32 %v1282, %v1176
      %v1290 = vmul.f32 %v1282, %v1177
      %v1291 = vmul.f32 %v1282, %v1178
      %v1292 = vmul.f32 %v1282, %v1179
      %v1293 = vmul.f32 %v1282, %v1180
      %v1294 = vmul.f32 %v1282, %v1181
      %1307 = vrot.lane.b32.xlu0 %v1283, 126
      %v1308 = vpop.permute.xlu0 %1307
      %1309 = vrot.lane.b32.xlu0 %v1284, 126
      %v1310 = vpop.permute.xlu0 %1309
      %1311 = vrot.lane.b32.xlu0 %v1285, 126
      %v1312 = vpop.permute.xlu0 %1311
      %1313 = vrot.lane.b32.xlu0 %v1286, 126
      %v1314 = vpop.permute.xlu0 %1313
      %1315 = vrot.lane.b32.xlu0 %v1287, 126
      %v1316 = vpop.permute.xlu0 %1315
      %1317 = vrot.lane.b32.xlu0 %v1288, 126
      %v1318 = vpop.permute.xlu0 %1317
      %1319 = vrot.lane.b32.xlu0 %v1289, 126
      %v1320 = vpop.permute.xlu0 %1319
      %1321 = vrot.lane.b32.xlu0 %v1290, 126
      %v1322 = vpop.permute.xlu0 %1321
      %1323 = vrot.lane.b32.xlu0 %v1291, 126
      %v1324 = vpop.permute.xlu0 %1323
      %1325 = vrot.lane.b32.xlu0 %v1292, 126
      %v1326 = vpop.permute.xlu0 %1325
      %1327 = vrot.lane.b32.xlu0 %v1293, 126
      %v1328 = vpop.permute.xlu0 %1327
      %1329 = vrot.lane.b32.xlu0 %v1294, 126
      %v1330 = vpop.permute.xlu0 %1329
      %v1343 = vadd.f32 %v1269, %v1308
      %v1344 = vadd.f32 %v1270, %v1310
      %v1345 = vadd.f32 %v1271, %v1312
      %v1346 = vadd.f32 %v1272, %v1314
      %v1347 = vadd.f32 %v1273, %v1316
      %v1348 = vadd.f32 %v1274, %v1318
      %v1349 = vadd.f32 %v1275, %v1320
      %v1350 = vadd.f32 %v1276, %v1322
      %v1351 = vadd.f32 %v1277, %v1324
      %v1352 = vadd.f32 %v1278, %v1326
      %v1353 = vadd.f32 %v1279, %v1328
      %v1354 = vadd.f32 %v1280, %v1330
      %s1355 = sld [smem:[#allocation12 + %s774]]
      %v1356 = vld [vmem:[%s983 + $0x2] sm:$0xff]
      %v1357 = vld [vmem:[%s983 + $0xa] sm:$0xff]
      %v1358 = vld [vmem:[%s983 + $0x12] sm:$0xff]
      %v1359 = vld [vmem:[%s983 + $0x1a] sm:$0xff]
      %v1360 = vld [vmem:[%s983 + $0x22] sm:$0xff]
      %v1361 = vld [vmem:[%s983 + $0x2a] sm:$0xff]
      %v1362 = vld [vmem:[%s983 + $0x32] sm:$0xff]
      %v1363 = vld [vmem:[%s983 + $0x3a] sm:$0xff]
      %v1364 = vld [vmem:[%s983 + $0x42] sm:$0xff]
      %v1365 = vld [vmem:[%s983 + $0x4a] sm:$0xff]
      %v1366 = vld [vmem:[%s983 + $0x52] sm:$0xff]
      %v1367 = vld [vmem:[%s983 + $0x5a] sm:$0xff]
      %v1368 = vstv %s1355
      %v1369 = vmul.f32 %v1368, %v1356
      %v1370 = vmul.f32 %v1368, %v1357
      %v1371 = vmul.f32 %v1368, %v1358
      %v1372 = vmul.f32 %v1368, %v1359
      %v1373 = vmul.f32 %v1368, %v1360
      %v1374 = vmul.f32 %v1368, %v1361
      %v1375 = vmul.f32 %v1368, %v1362
      %v1376 = vmul.f32 %v1368, %v1363
      %v1377 = vmul.f32 %v1368, %v1364
      %v1378 = vmul.f32 %v1368, %v1365
      %v1379 = vmul.f32 %v1368, %v1366
      %v1380 = vmul.f32 %v1368, %v1367
      %v1381 = vadd.f32 %v1343, %v1369
      %v1382 = vadd.f32 %v1344, %v1370
      %v1383 = vadd.f32 %v1345, %v1371
      %v1384 = vadd.f32 %v1346, %v1372
      %v1385 = vadd.f32 %v1347, %v1373
      %v1386 = vadd.f32 %v1348, %v1374
      %v1387 = vadd.f32 %v1349, %v1375
      %v1388 = vadd.f32 %v1350, %v1376
      %v1389 = vadd.f32 %v1351, %v1377
      %v1390 = vadd.f32 %v1352, %v1378
      %v1391 = vadd.f32 %v1353, %v1379
      %v1392 = vadd.f32 %v1354, %v1380
      %s1393 = sld [smem:[#allocation12 + %s813]]
      %v1394 = vstv %s1393
      %v1395 = vmul.f32 %v1394, %v1356
      %v1396 = vmul.f32 %v1394, %v1357
      %v1397 = vmul.f32 %v1394, %v1358
      %v1398 = vmul.f32 %v1394, %v1359
      %v1399 = vmul.f32 %v1394, %v1360
      %v1400 = vmul.f32 %v1394, %v1361
      %v1401 = vmul.f32 %v1394, %v1362
      %v1402 = vmul.f32 %v1394, %v1363
      %v1403 = vmul.f32 %v1394, %v1364
      %v1404 = vmul.f32 %v1394, %v1365
      %v1405 = vmul.f32 %v1394, %v1366
      %v1406 = vmul.f32 %v1394, %v1367
      %1419 = vrot.lane.b32.xlu0 %v1395, 127
      %v1420 = vpop.permute.xlu0 %1419
      %1421 = vrot.lane.b32.xlu0 %v1396, 127
      %v1422 = vpop.permute.xlu0 %1421
      %1423 = vrot.lane.b32.xlu0 %v1397, 127
      %v1424 = vpop.permute.xlu0 %1423
      %1425 = vrot.lane.b32.xlu0 %v1398, 127
      %v1426 = vpop.permute.xlu0 %1425
      %1427 = vrot.lane.b32.xlu0 %v1399, 127
      %v1428 = vpop.permute.xlu0 %1427
      %1429 = vrot.lane.b32.xlu0 %v1400, 127
      %v1430 = vpop.permute.xlu0 %1429
      %1431 = vrot.lane.b32.xlu0 %v1401, 127
      %v1432 = vpop.permute.xlu0 %1431
      %1433 = vrot.lane.b32.xlu0 %v1402, 127
      %v1434 = vpop.permute.xlu0 %1433
      %1435 = vrot.lane.b32.xlu0 %v1403, 127
      %v1436 = vpop.permute.xlu0 %1435
      %1437 = vrot.lane.b32.xlu0 %v1404, 127
      %v1438 = vpop.permute.xlu0 %1437
      %1439 = vrot.lane.b32.xlu0 %v1405, 127
      %v1440 = vpop.permute.xlu0 %1439
      %1441 = vrot.lane.b32.xlu0 %v1406, 127
      %v1442 = vpop.permute.xlu0 %1441
      %v1455 = vadd.f32 %v1381, %v1420
      %v1456 = vadd.f32 %v1382, %v1422
      %v1457 = vadd.f32 %v1383, %v1424
      %v1458 = vadd.f32 %v1384, %v1426
      %v1459 = vadd.f32 %v1385, %v1428
      %v1460 = vadd.f32 %v1386, %v1430
      %v1461 = vadd.f32 %v1387, %v1432
      %v1462 = vadd.f32 %v1388, %v1434
      %v1463 = vadd.f32 %v1389, %v1436
      %v1464 = vadd.f32 %v1390, %v1438
      %v1465 = vadd.f32 %v1391, %v1440
      %v1466 = vadd.f32 %v1392, %v1442
      %s1467 = sld [smem:[#allocation12 + %s888]]
      %v1468 = vstv %s1467
      %v1469 = vmul.f32 %v1468, %v1356
      %v1470 = vmul.f32 %v1468, %v1357
      %v1471 = vmul.f32 %v1468, %v1358
      %v1472 = vmul.f32 %v1468, %v1359
      %v1473 = vmul.f32 %v1468, %v1360
      %v1474 = vmul.f32 %v1468, %v1361
      %v1475 = vmul.f32 %v1468, %v1362
      %v1476 = vmul.f32 %v1468, %v1363
      %v1477 = vmul.f32 %v1468, %v1364
      %v1478 = vmul.f32 %v1468, %v1365
      %v1479 = vmul.f32 %v1468, %v1366
      %v1480 = vmul.f32 %v1468, %v1367
      %1493 = vrot.lane.b32.xlu0 %v1469, 126
      %v1494 = vpop.permute.xlu0 %1493
      %1495 = vrot.lane.b32.xlu0 %v1470, 126
      %v1496 = vpop.permute.xlu0 %1495
      %1497 = vrot.lane.b32.xlu0 %v1471, 126
      %v1498 = vpop.permute.xlu0 %1497
      %1499 = vrot.lane.b32.xlu0 %v1472, 126
      %v1500 = vpop.permute.xlu0 %1499
      %1501 = vrot.lane.b32.xlu0 %v1473, 126
      %v1502 = vpop.permute.xlu0 %1501
      %1503 = vrot.lane.b32.xlu0 %v1474, 126
      %v1504 = vpop.permute.xlu0 %1503
      %1505 = vrot.lane.b32.xlu0 %v1475, 126
      %v1506 = vpop.permute.xlu0 %1505
      %1507 = vrot.lane.b32.xlu0 %v1476, 126
      %v1508 = vpop.permute.xlu0 %1507
      %1509 = vrot.lane.b32.xlu0 %v1477, 126
      %v1510 = vpop.permute.xlu0 %1509
      %1511 = vrot.lane.b32.xlu0 %v1478, 126
      %v1512 = vpop.permute.xlu0 %1511
      %1513 = vrot.lane.b32.xlu0 %v1479, 126
      %v1514 = vpop.permute.xlu0 %1513
      %1515 = vrot.lane.b32.xlu0 %v1480, 126
      %v1516 = vpop.permute.xlu0 %1515
      %v1529 = vadd.f32 %v1455, %v1494
      %v1530 = vadd.f32 %v1456, %v1496
      %v1531 = vadd.f32 %v1457, %v1498
      %v1532 = vadd.f32 %v1458, %v1500
      %v1533 = vadd.f32 %v1459, %v1502
      %v1534 = vadd.f32 %v1460, %v1504
      %v1535 = vadd.f32 %v1461, %v1506
      %v1536 = vadd.f32 %v1462, %v1508
      %v1537 = vadd.f32 %v1463, %v1510
      %v1538 = vadd.f32 %v1464, %v1512
      %v1539 = vadd.f32 %v1465, %v1514
      %v1540 = vadd.f32 %v1466, %v1516
      %s1541 = sadd.s32 96, %s963
      %s1542 = scalar_lea.vmem [#allocation2], %s1541
      %1543 = vst.msk [vmem:[%s1542] sm:$0xff] %vm965, %v1529
      %1544 = vst.msk [vmem:[%s1542 + $0x8] sm:$0xff] %vm965, %v1530
      %1545 = vst.msk [vmem:[%s1542 + $0x10] sm:$0xff] %vm965, %v1531
      %1546 = vst.msk [vmem:[%s1542 + $0x18] sm:$0xff] %vm965, %v1532
      %1547 = vst.msk [vmem:[%s1542 + $0x20] sm:$0xff] %vm965, %v1533
      %1548 = vst.msk [vmem:[%s1542 + $0x28] sm:$0xff] %vm965, %v1534
      %1549 = vst.msk [vmem:[%s1542 + $0x30] sm:$0xff] %vm965, %v1535
      %1550 = vst.msk [vmem:[%s1542 + $0x38] sm:$0xff] %vm965, %v1536
      %1551 = vst.msk [vmem:[%s1542 + $0x40] sm:$0xff] %vm965, %v1537
      %1552 = vst.msk [vmem:[%s1542 + $0x48] sm:$0xff] %vm965, %v1538
      %1553 = vst.msk [vmem:[%s1542 + $0x50] sm:$0xff] %vm965, %v1539
      %1554 = vst.msk [vmem:[%s1542 + $0x58] sm:$0xff] %vm965, %v1540
    $region138: #{_lambda_.1} parent=1 // loop_footer
      %s390 = sadd.s32 1, %s386
    $region139: #{_lambda_.1} parent=1 // loop_footer_branch
      %385 = sbr.rel target = $region135
    $region140: #{_lambda_.1} parent=1 // loop_exit
      _
    loop: start=0, step=1, limit=12
    $region141: #{_lambda_.1} parent=1 // loop_pre_header
      _
    $region142: #{_lambda_.1} parent=1 // loop_header
      %s1556 = sphi 0, %s1560
      %p1557 = scmp.ge.s32.totalorder %s1556, 12
    $region143: #{_lambda_.1} parent=1 // loop_header_branch
      %1559 = sbr.rel (%p1557) target = $region147
    $region144: #{_lambda_.1} parent=1 // loop_body
      %s1561 = sld [smem:[#allocation18 + %s1556]]
      %v1562 = vstv %s1561
      %v1563 = vadd.f32 %v1562, 0.0
      %s1564 = smul.u32 %s1556, 128
      %s1565 = sld [smem:[#allocation17 + %s1564]]
      %v1566 = vld [vmem:[#allocation2] sm:$0xff]
      %v1567 = vld [vmem:[#allocation2 + $0x8] sm:$0xff]
      %v1568 = vld [vmem:[#allocation2 + $0x10] sm:$0xff]
      %v1569 = vld [vmem:[#allocation2 + $0x18] sm:$0xff]
      %v1570 = vld [vmem:[#allocation2 + $0x20] sm:$0xff]
      %v1571 = vld [vmem:[#allocation2 + $0x28] sm:$0xff]
      %v1572 = vld [vmem:[#allocation2 + $0x30] sm:$0xff]
      %v1573 = vld [vmem:[#allocation2 + $0x38] sm:$0xff]
      %v1574 = vld [vmem:[#allocation2 + $0x40] sm:$0xff]
      %v1575 = vld [vmem:[#allocation2 + $0x48] sm:$0xff]
      %v1576 = vld [vmem:[#allocation2 + $0x50] sm:$0xff]
      %v1577 = vld [vmem:[#allocation2 + $0x58] sm:$0xff]
      %v1578 = vstv %s1565
      %v1579 = vmul.f32 %v1578, %v1566
      %v1580 = vmul.f32 %v1578, %v1567
      %v1581 = vmul.f32 %v1578, %v1568
      %v1582 = vmul.f32 %v1578, %v1569
      %v1583 = vmul.f32 %v1578, %v1570
      %v1584 = vmul.f32 %v1578, %v1571
      %v1585 = vmul.f32 %v1578, %v1572
      %v1586 = vmul.f32 %v1578, %v1573
      %v1587 = vmul.f32 %v1578, %v1574
      %v1588 = vmul.f32 %v1578, %v1575
      %v1589 = vmul.f32 %v1578, %v1576
      %v1590 = vmul.f32 %v1578, %v1577
      %v1591 = vadd.f32 %v1563, %v1579
      %v1592 = vadd.f32 %v1563, %v1580
      %v1593 = vadd.f32 %v1563, %v1581
      %v1594 = vadd.f32 %v1563, %v1582
      %v1595 = vadd.f32 %v1563, %v1583
      %v1596 = vadd.f32 %v1563, %v1584
      %v1597 = vadd.f32 %v1563, %v1585
      %v1598 = vadd.f32 %v1563, %v1586
      %v1599 = vadd.f32 %v1563, %v1587
      %v1600 = vadd.f32 %v1563, %v1588
      %v1601 = vadd.f32 %v1563, %v1589
      %v1602 = vadd.f32 %v1563, %v1590
      %s1603 = sadd.s32 %s1564, 1
      %s1604 = sld [smem:[#allocation17 + %s1603]]
      %s1605 = scalar_lea.vmem [#allocation2], 192
      %v1606 = vld [vmem:[%s1605] sm:$0xff]
      %v1607 = vld [vmem:[%s1605 + $0x8] sm:$0xff]
      %v1608 = vld [vmem:[%s1605 + $0x10] sm:$0xff]
      %v1609 = vld [vmem:[%s1605 + $0x18] sm:$0xff]
      %v1610 = vld [vmem:[%s1605 + $0x20] sm:$0xff]
      %v1611 = vld [vmem:[%s1605 + $0x28] sm:$0xff]
      %v1612 = vld [vmem:[%s1605 + $0x30] sm:$0xff]
      %v1613 = vld [vmem:[%s1605 + $0x38] sm:$0xff]
      %v1614 = vld [vmem:[%s1605 + $0x40] sm:$0xff]
      %v1615 = vld [vmem:[%s1605 + $0x48] sm:$0xff]
      %v1616 = vld [vmem:[%s1605 + $0x50] sm:$0xff]
      %v1617 = vld [vmem:[%s1605 + $0x58] sm:$0xff]
      %v1618 = vstv %s1604
      %v1619 = vmul.f32 %v1618, %v1606
      %v1620 = vmul.f32 %v1618, %v1607
      %v1621 = vmul.f32 %v1618, %v1608
      %v1622 = vmul.f32 %v1618, %v1609
      %v1623 = vmul.f32 %v1618, %v1610
      %v1624 = vmul.f32 %v1618, %v1611
      %v1625 = vmul.f32 %v1618, %v1612
      %v1626 = vmul.f32 %v1618, %v1613
      %v1627 = vmul.f32 %v1618, %v1614
      %v1628 = vmul.f32 %v1618, %v1615
      %v1629 = vmul.f32 %v1618, %v1616
      %v1630 = vmul.f32 %v1618, %v1617
      %v1631 = vadd.f32 %v1591, %v1619
      %v1632 = vadd.f32 %v1592, %v1620
      %v1633 = vadd.f32 %v1593, %v1621
      %v1634 = vadd.f32 %v1594, %v1622
      %v1635 = vadd.f32 %v1595, %v1623
      %v1636 = vadd.f32 %v1596, %v1624
      %v1637 = vadd.f32 %v1597, %v1625
      %v1638 = vadd.f32 %v1598, %v1626
      %v1639 = vadd.f32 %v1599, %v1627
      %v1640 = vadd.f32 %v1600, %v1628
      %v1641 = vadd.f32 %v1601, %v1629
      %v1642 = vadd.f32 %v1602, %v1630
      %s1643 = sadd.s32 %s1564, 2
      %s1644 = sld [smem:[#allocation17 + %s1643]]
      %s1645 = scalar_lea.vmem [#allocation2], 384
      %v1646 = vld [vmem:[%s1645] sm:$0xff]
      %v1647 = vld [vmem:[%s1645 + $0x8] sm:$0xff]
      %v1648 = vld [vmem:[%s1645 + $0x10] sm:$0xff]
      %v1649 = vld [vmem:[%s1645 + $0x18] sm:$0xff]
      %v1650 = vld [vmem:[%s1645 + $0x20] sm:$0xff]
      %v1651 = vld [vmem:[%s1645 + $0x28] sm:$0xff]
      %v1652 = vld [vmem:[%s1645 + $0x30] sm:$0xff]
      %v1653 = vld [vmem:[%s1645 + $0x38] sm:$0xff]
      %v1654 = vld [vmem:[%s1645 + $0x40] sm:$0xff]
      %v1655 = vld [vmem:[%s1645 + $0x48] sm:$0xff]
      %v1656 = vld [vmem:[%s1645 + $0x50] sm:$0xff]
      %v1657 = vld [vmem:[%s1645 + $0x58] sm:$0xff]
      %v1658 = vstv %s1644
      %v1659 = vmul.f32 %v1658, %v1646
      %v1660 = vmul.f32 %v1658, %v1647
      %v1661 = vmul.f32 %v1658, %v1648
      %v1662 = vmul.f32 %v1658, %v1649
      %v1663 = vmul.f32 %v1658, %v1650
      %v1664 = vmul.f32 %v1658, %v1651
      %v1665 = vmul.f32 %v1658, %v1652
      %v1666 = vmul.f32 %v1658, %v1653
      %v1667 = vmul.f32 %v1658, %v1654
      %v1668 = vmul.f32 %v1658, %v1655
      %v1669 = vmul.f32 %v1658, %v1656
      %v1670 = vmul.f32 %v1658, %v1657
      %v1671 = vadd.f32 %v1631, %v1659
      %v1672 = vadd.f32 %v1632, %v1660
      %v1673 = vadd.f32 %v1633, %v1661
      %v1674 = vadd.f32 %v1634, %v1662
      %v1675 = vadd.f32 %v1635, %v1663
      %v1676 = vadd.f32 %v1636, %v1664
      %v1677 = vadd.f32 %v1637, %v1665
      %v1678 = vadd.f32 %v1638, %v1666
      %v1679 = vadd.f32 %v1639, %v1667
      %v1680 = vadd.f32 %v1640, %v1668
      %v1681 = vadd.f32 %v1641, %v1669
      %v1682 = vadd.f32 %v1642, %v1670
      %vm1683 = vcmask 785408
      %1684 = vst.msk [vmem:[#allocation3] sm:$0xff] %vm1683, %v1671
      %1685 = vst.msk [vmem:[#allocation3 + $0x8] sm:$0xff] %vm1683, %v1672
      %1686 = vst.msk [vmem:[#allocation3 + $0x10] sm:$0xff] %vm1683, %v1673
      %1687 = vst.msk [vmem:[#allocation3 + $0x18] sm:$0xff] %vm1683, %v1674
      %1688 = vst.msk [vmem:[#allocation3 + $0x20] sm:$0xff] %vm1683, %v1675
      %1689 = vst.msk [vmem:[#allocation3 + $0x28] sm:$0xff] %vm1683, %v1676
      %1690 = vst.msk [vmem:[#allocation3 + $0x30] sm:$0xff] %vm1683, %v1677
      %1691 = vst.msk [vmem:[#allocation3 + $0x38] sm:$0xff] %vm1683, %v1678
      %1692 = vst.msk [vmem:[#allocation3 + $0x40] sm:$0xff] %vm1683, %v1679
      %1693 = vst.msk [vmem:[#allocation3 + $0x48] sm:$0xff] %vm1683, %v1680
      %1694 = vst.msk [vmem:[#allocation3 + $0x50] sm:$0xff] %vm1683, %v1681
      %1695 = vst.msk [vmem:[#allocation3 + $0x58] sm:$0xff] %vm1683, %v1682
      %v1696 = vsel %vm1683, %v1671, 0.0
      %v1697 = vsel %vm1683, %v1672, 0.0
      %v1698 = vadd.f32 %v1696, %v1697
      %v1699 = vsel %vm1683, %v1673, 0.0
      %v1700 = vadd.f32 %v1698, %v1699
      %v1701 = vsel %vm1683, %v1674, 0.0
      %v1702 = vadd.f32 %v1700, %v1701
      %v1703 = vsel %vm1683, %v1675, 0.0
      %v1704 = vadd.f32 %v1702, %v1703
      %v1705 = vsel %vm1683, %v1676, 0.0
      %v1706 = vadd.f32 %v1704, %v1705
      %v1707 = vsel %vm1683, %v1677, 0.0
      %v1708 = vadd.f32 %v1706, %v1707
      %v1709 = vsel %vm1683, %v1678, 0.0
      %v1710 = vadd.f32 %v1708, %v1709
      %v1711 = vsel %vm1683, %v1679, 0.0
      %v1712 = vadd.f32 %v1710, %v1711
      %v1713 = vsel %vm1683, %v1680, 0.0
      %v1714 = vadd.f32 %v1712, %v1713
      %v1715 = vsel %vm1683, %v1681, 0.0
      %v1716 = vadd.f32 %v1714, %v1715
      %v1717 = vsel %vm1683, %v1682, 0.0
      %v1718 = vadd.f32 %v1716, %v1717
      %1719 = vadd.xlane.f32.xlu0 %v1718
      %v1720 = vpop.xlane.xlu0 %1719
      %v1721 = vrot.slane %v1720, 4
      %v1722 = vadd.f32 %v1720, %v1721
      %v1723 = vrot.slane %v1722, 2
      %v1724 = vadd.f32 %v1722, %v1723
      %v1725 = vrot.slane %v1724, 1
      %v1726 = vadd.f32 %v1724, %v1725
      %s1727 = vtos %v1726
      %s1728 = sadd.f32 %s1727, 0.0
      %s1729 = sld [smem:[#allocation17 + %s1564]]
      %s1730 = scalar_lea.vmem [#allocation2], 96
      %v1731 = vld [vmem:[%s1730] sm:$0xff]
      %v1732 = vld [vmem:[%s1730 + $0x8] sm:$0xff]
      %v1733 = vld [vmem:[%s1730 + $0x10] sm:$0xff]
      %v1734 = vld [vmem:[%s1730 + $0x18] sm:$0xff]
      %v1735 = vld [vmem:[%s1730 + $0x20] sm:$0xff]
      %v1736 = vld [vmem:[%s1730 + $0x28] sm:$0xff]
      %v1737 = vld [vmem:[%s1730 + $0x30] sm:$0xff]
      %v1738 = vld [vmem:[%s1730 + $0x38] sm:$0xff]
      %v1739 = vld [vmem:[%s1730 + $0x40] sm:$0xff]
      %v1740 = vld [vmem:[%s1730 + $0x48] sm:$0xff]
      %v1741 = vld [vmem:[%s1730 + $0x50] sm:$0xff]
      %v1742 = vld [vmem:[%s1730 + $0x58] sm:$0xff]
      %v1743 = vstv %s1729
      %v1744 = vmul.f32 %v1743, %v1731
      %v1745 = vmul.f32 %v1743, %v1732
      %v1746 = vmul.f32 %v1743, %v1733
      %v1747 = vmul.f32 %v1743, %v1734
      %v1748 = vmul.f32 %v1743, %v1735
      %v1749 = vmul.f32 %v1743, %v1736
      %v1750 = vmul.f32 %v1743, %v1737
      %v1751 = vmul.f32 %v1743, %v1738
      %v1752 = vmul.f32 %v1743, %v1739
      %v1753 = vmul.f32 %v1743, %v1740
      %v1754 = vmul.f32 %v1743, %v1741
      %v1755 = vmul.f32 %v1743, %v1742
      %v1756 = vadd.f32 %v1563, %v1744
      %v1757 = vadd.f32 %v1563, %v1745
      %v1758 = vadd.f32 %v1563, %v1746
      %v1759 = vadd.f32 %v1563, %v1747
      %v1760 = vadd.f32 %v1563, %v1748
      %v1761 = vadd.f32 %v1563, %v1749
      %v1762 = vadd.f32 %v1563, %v1750
      %v1763 = vadd.f32 %v1563, %v1751
      %v1764 = vadd.f32 %v1563, %v1752
      %v1765 = vadd.f32 %v1563, %v1753
      %v1766 = vadd.f32 %v1563, %v1754
      %v1767 = vadd.f32 %v1563, %v1755
      %s1768 = sld [smem:[#allocation17 + %s1603]]
      %s1769 = scalar_lea.vmem [#allocation2], 288
      %v1770 = vld [vmem:[%s1769] sm:$0xff]
      %v1771 = vld [vmem:[%s1769 + $0x8] sm:$0xff]
      %v1772 = vld [vmem:[%s1769 + $0x10] sm:$0xff]
      %v1773 = vld [vmem:[%s1769 + $0x18] sm:$0xff]
      %v1774 = vld [vmem:[%s1769 + $0x20] sm:$0xff]
      %v1775 = vld [vmem:[%s1769 + $0x28] sm:$0xff]
      %v1776 = vld [vmem:[%s1769 + $0x30] sm:$0xff]
      %v1777 = vld [vmem:[%s1769 + $0x38] sm:$0xff]
      %v1778 = vld [vmem:[%s1769 + $0x40] sm:$0xff]
      %v1779 = vld [vmem:[%s1769 + $0x48] sm:$0xff]
      %v1780 = vld [vmem:[%s1769 + $0x50] sm:$0xff]
      %v1781 = vld [vmem:[%s1769 + $0x58] sm:$0xff]
      %v1782 = vstv %s1768
      %v1783 = vmul.f32 %v1782, %v1770
      %v1784 = vmul.f32 %v1782, %v1771
      %v1785 = vmul.f32 %v1782, %v1772
      %v1786 = vmul.f32 %v1782, %v1773
      %v1787 = vmul.f32 %v1782, %v1774
      %v1788 = vmul.f32 %v1782, %v1775
      %v1789 = vmul.f32 %v1782, %v1776
      %v1790 = vmul.f32 %v1782, %v1777
      %v1791 = vmul.f32 %v1782, %v1778
      %v1792 = vmul.f32 %v1782, %v1779
      %v1793 = vmul.f32 %v1782, %v1780
      %v1794 = vmul.f32 %v1782, %v1781
      %v1795 = vadd.f32 %v1756, %v1783
      %v1796 = vadd.f32 %v1757, %v1784
      %v1797 = vadd.f32 %v1758, %v1785
      %v1798 = vadd.f32 %v1759, %v1786
      %v1799 = vadd.f32 %v1760, %v1787
      %v1800 = vadd.f32 %v1761, %v1788
      %v1801 = vadd.f32 %v1762, %v1789
      %v1802 = vadd.f32 %v1763, %v1790
      %v1803 = vadd.f32 %v1764, %v1791
      %v1804 = vadd.f32 %v1765, %v1792
      %v1805 = vadd.f32 %v1766, %v1793
      %v1806 = vadd.f32 %v1767, %v1794
      %s1807 = sld [smem:[#allocation17 + %s1643]]
      %s1808 = scalar_lea.vmem [#allocation2], 480
      %v1809 = vld [vmem:[%s1808] sm:$0xff]
      %v1810 = vld [vmem:[%s1808 + $0x8] sm:$0xff]
      %v1811 = vld [vmem:[%s1808 + $0x10] sm:$0xff]
      %v1812 = vld [vmem:[%s1808 + $0x18] sm:$0xff]
      %v1813 = vld [vmem:[%s1808 + $0x20] sm:$0xff]
      %v1814 = vld [vmem:[%s1808 + $0x28] sm:$0xff]
      %v1815 = vld [vmem:[%s1808 + $0x30] sm:$0xff]
      %v1816 = vld [vmem:[%s1808 + $0x38] sm:$0xff]
      %v1817 = vld [vmem:[%s1808 + $0x40] sm:$0xff]
      %v1818 = vld [vmem:[%s1808 + $0x48] sm:$0xff]
      %v1819 = vld [vmem:[%s1808 + $0x50] sm:$0xff]
      %v1820 = vld [vmem:[%s1808 + $0x58] sm:$0xff]
      %v1821 = vstv %s1807
      %v1822 = vmul.f32 %v1821, %v1809
      %v1823 = vmul.f32 %v1821, %v1810
      %v1824 = vmul.f32 %v1821, %v1811
      %v1825 = vmul.f32 %v1821, %v1812
      %v1826 = vmul.f32 %v1821, %v1813
      %v1827 = vmul.f32 %v1821, %v1814
      %v1828 = vmul.f32 %v1821, %v1815
      %v1829 = vmul.f32 %v1821, %v1816
      %v1830 = vmul.f32 %v1821, %v1817
      %v1831 = vmul.f32 %v1821, %v1818
      %v1832 = vmul.f32 %v1821, %v1819
      %v1833 = vmul.f32 %v1821, %v1820
      %v1834 = vadd.f32 %v1795, %v1822
      %v1835 = vadd.f32 %v1796, %v1823
      %v1836 = vadd.f32 %v1797, %v1824
      %v1837 = vadd.f32 %v1798, %v1825
      %v1838 = vadd.f32 %v1799, %v1826
      %v1839 = vadd.f32 %v1800, %v1827
      %v1840 = vadd.f32 %v1801, %v1828
      %v1841 = vadd.f32 %v1802, %v1829
      %v1842 = vadd.f32 %v1803, %v1830
      %v1843 = vadd.f32 %v1804, %v1831
      %v1844 = vadd.f32 %v1805, %v1832
      %v1845 = vadd.f32 %v1806, %v1833
      %s1846 = scalar_lea.vmem [#allocation3], 96
      %1847 = vst.msk [vmem:[%s1846] sm:$0xff] %vm1683, %v1834
      %1848 = vst.msk [vmem:[%s1846 + $0x8] sm:$0xff] %vm1683, %v1835
      %1849 = vst.msk [vmem:[%s1846 + $0x10] sm:$0xff] %vm1683, %v1836
      %1850 = vst.msk [vmem:[%s1846 + $0x18] sm:$0xff] %vm1683, %v1837
      %1851 = vst.msk [vmem:[%s1846 + $0x20] sm:$0xff] %vm1683, %v1838
      %1852 = vst.msk [vmem:[%s1846 + $0x28] sm:$0xff] %vm1683, %v1839
      %1853 = vst.msk [vmem:[%s1846 + $0x30] sm:$0xff] %vm1683, %v1840
      %1854 = vst.msk [vmem:[%s1846 + $0x38] sm:$0xff] %vm1683, %v1841
      %1855 = vst.msk [vmem:[%s1846 + $0x40] sm:$0xff] %vm1683, %v1842
      %1856 = vst.msk [vmem:[%s1846 + $0x48] sm:$0xff] %vm1683, %v1843
      %1857 = vst.msk [vmem:[%s1846 + $0x50] sm:$0xff] %vm1683, %v1844
      %1858 = vst.msk [vmem:[%s1846 + $0x58] sm:$0xff] %vm1683, %v1845
      %v1859 = vsel %vm1683, %v1834, 0.0
      %v1860 = vsel %vm1683, %v1835, 0.0
      %v1861 = vadd.f32 %v1859, %v1860
      %v1862 = vsel %vm1683, %v1836, 0.0
      %v1863 = vadd.f32 %v1861, %v1862
      %v1864 = vsel %vm1683, %v1837, 0.0
      %v1865 = vadd.f32 %v1863, %v1864
      %v1866 = vsel %vm1683, %v1838, 0.0
      %v1867 = vadd.f32 %v1865, %v1866
      %v1868 = vsel %vm1683, %v1839, 0.0
      %v1869 = vadd.f32 %v1867, %v1868
      %v1870 = vsel %vm1683, %v1840, 0.0
      %v1871 = vadd.f32 %v1869, %v1870
      %v1872 = vsel %vm1683, %v1841, 0.0
      %v1873 = vadd.f32 %v1871, %v1872
      %v1874 = vsel %vm1683, %v1842, 0.0
      %v1875 = vadd.f32 %v1873, %v1874
      %v1876 = vsel %vm1683, %v1843, 0.0
      %v1877 = vadd.f32 %v1875, %v1876
      %v1878 = vsel %vm1683, %v1844, 0.0
      %v1879 = vadd.f32 %v1877, %v1878
      %v1880 = vsel %vm1683, %v1845, 0.0
      %v1881 = vadd.f32 %v1879, %v1880
      %1882 = vadd.xlane.f32.xlu0 %v1881
      %v1883 = vpop.xlane.xlu0 %1882
      %v1884 = vrot.slane %v1883, 4
      %v1885 = vadd.f32 %v1883, %v1884
      %v1886 = vrot.slane %v1885, 2
      %v1887 = vadd.f32 %v1885, %v1886
      %v1888 = vrot.slane %v1887, 1
      %v1889 = vadd.f32 %v1887, %v1888
      %s1890 = vtos %v1889
      %s1891 = sadd.f32 %s1728, %s1890
      %s1892 = smul.f32 %s1561, 776.0
      %s1893 = sadd.f32 %s1891, %s1892
      %v1894 = vrcp.pop 19208.0
      %s1895 = vtos %v1894
      %s1896 = smul.f32 %s1893, %s1895
      %s1897 = ssub.f32 %s1561, %s1896
      %s1898 = smul.f32 %s1897, 776.0
      %s1899 = smul.f32 %s1898, %s1897
      %v1900 = vld [vmem:[#allocation3] sm:$0xff]
      %v1901 = vld [vmem:[#allocation3 + $0x8] sm:$0xff]
      %v1902 = vld [vmem:[#allocation3 + $0x10] sm:$0xff]
      %v1903 = vld [vmem:[#allocation3 + $0x18] sm:$0xff]
      %v1904 = vld [vmem:[#allocation3 + $0x20] sm:$0xff]
      %v1905 = vld [vmem:[#allocation3 + $0x28] sm:$0xff]
      %v1906 = vld [vmem:[#allocation3 + $0x30] sm:$0xff]
      %v1907 = vld [vmem:[#allocation3 + $0x38] sm:$0xff]
      %v1908 = vld [vmem:[#allocation3 + $0x40] sm:$0xff]
      %v1909 = vld [vmem:[#allocation3 + $0x48] sm:$0xff]
      %v1910 = vld [vmem:[#allocation3 + $0x50] sm:$0xff]
      %v1911 = vld [vmem:[#allocation3 + $0x58] sm:$0xff]
      %v1912 = vstv %s1896
      %v1913 = vsub.f32 %v1900, %v1912
      %v1914 = vsub.f32 %v1901, %v1912
      %v1915 = vsub.f32 %v1902, %v1912
      %v1916 = vsub.f32 %v1903, %v1912
      %v1917 = vsub.f32 %v1904, %v1912
      %v1918 = vsub.f32 %v1905, %v1912
      %v1919 = vsub.f32 %v1906, %v1912
      %v1920 = vsub.f32 %v1907, %v1912
      %v1921 = vsub.f32 %v1908, %v1912
      %v1922 = vsub.f32 %v1909, %v1912
      %v1923 = vsub.f32 %v1910, %v1912
      %v1924 = vsub.f32 %v1911, %v1912
      %v1925 = vmul.f32 %v1913, %v1913
      %v1926 = vmul.f32 %v1914, %v1914
      %v1927 = vmul.f32 %v1915, %v1915
      %v1928 = vmul.f32 %v1916, %v1916
      %v1929 = vmul.f32 %v1917, %v1917
      %v1930 = vmul.f32 %v1918, %v1918
      %v1931 = vmul.f32 %v1919, %v1919
      %v1932 = vmul.f32 %v1920, %v1920
      %v1933 = vmul.f32 %v1921, %v1921
      %v1934 = vmul.f32 %v1922, %v1922
      %v1935 = vmul.f32 %v1923, %v1923
      %v1936 = vmul.f32 %v1924, %v1924
      %v1937 = vsel %vm1683, %v1925, 0.0
      %v1938 = vsel %vm1683, %v1926, 0.0
      %v1939 = vadd.f32 %v1937, %v1938
      %v1940 = vsel %vm1683, %v1927, 0.0
      %v1941 = vadd.f32 %v1939, %v1940
      %v1942 = vsel %vm1683, %v1928, 0.0
      %v1943 = vadd.f32 %v1941, %v1942
      %v1944 = vsel %vm1683, %v1929, 0.0
      %v1945 = vadd.f32 %v1943, %v1944
      %v1946 = vsel %vm1683, %v1930, 0.0
      %v1947 = vadd.f32 %v1945, %v1946
      %v1948 = vsel %vm1683, %v1931, 0.0
      %v1949 = vadd.f32 %v1947, %v1948
      %v1950 = vsel %vm1683, %v1932, 0.0
      %v1951 = vadd.f32 %v1949, %v1950
      %v1952 = vsel %vm1683, %v1933, 0.0
      %v1953 = vadd.f32 %v1951, %v1952
      %v1954 = vsel %vm1683, %v1934, 0.0
      %v1955 = vadd.f32 %v1953, %v1954
      %v1956 = vsel %vm1683, %v1935, 0.0
      %v1957 = vadd.f32 %v1955, %v1956
      %v1958 = vsel %vm1683, %v1936, 0.0
      %v1959 = vadd.f32 %v1957, %v1958
      %1960 = vadd.xlane.f32.xlu0 %v1959
      %v1961 = vpop.xlane.xlu0 %1960
      %v1962 = vrot.slane %v1961, 4
      %v1963 = vadd.f32 %v1961, %v1962
      %v1964 = vrot.slane %v1963, 2
      %v1965 = vadd.f32 %v1963, %v1964
      %v1966 = vrot.slane %v1965, 1
      %v1967 = vadd.f32 %v1965, %v1966
      %s1968 = vtos %v1967
      %s1969 = sadd.f32 %s1899, %s1968
      %v1970 = vld [vmem:[%s1846] sm:$0xff]
      %v1971 = vld [vmem:[%s1846 + $0x8] sm:$0xff]
      %v1972 = vld [vmem:[%s1846 + $0x10] sm:$0xff]
      %v1973 = vld [vmem:[%s1846 + $0x18] sm:$0xff]
      %v1974 = vld [vmem:[%s1846 + $0x20] sm:$0xff]
      %v1975 = vld [vmem:[%s1846 + $0x28] sm:$0xff]
      %v1976 = vld [vmem:[%s1846 + $0x30] sm:$0xff]
      %v1977 = vld [vmem:[%s1846 + $0x38] sm:$0xff]
      %v1978 = vld [vmem:[%s1846 + $0x40] sm:$0xff]
      %v1979 = vld [vmem:[%s1846 + $0x48] sm:$0xff]
      %v1980 = vld [vmem:[%s1846 + $0x50] sm:$0xff]
      %v1981 = vld [vmem:[%s1846 + $0x58] sm:$0xff]
      %v1982 = vsub.f32 %v1970, %v1912
      %v1983 = vsub.f32 %v1971, %v1912
      %v1984 = vsub.f32 %v1972, %v1912
      %v1985 = vsub.f32 %v1973, %v1912
      %v1986 = vsub.f32 %v1974, %v1912
      %v1987 = vsub.f32 %v1975, %v1912
      %v1988 = vsub.f32 %v1976, %v1912
      %v1989 = vsub.f32 %v1977, %v1912
      %v1990 = vsub.f32 %v1978, %v1912
      %v1991 = vsub.f32 %v1979, %v1912
      %v1992 = vsub.f32 %v1980, %v1912
      %v1993 = vsub.f32 %v1981, %v1912
      %v1994 = vmul.f32 %v1982, %v1982
      %v1995 = vmul.f32 %v1983, %v1983
      %v1996 = vmul.f32 %v1984, %v1984
      %v1997 = vmul.f32 %v1985, %v1985
      %v1998 = vmul.f32 %v1986, %v1986
      %v1999 = vmul.f32 %v1987, %v1987
      %v2000 = vmul.f32 %v1988, %v1988
      %v2001 = vmul.f32 %v1989, %v1989
      %v2002 = vmul.f32 %v1990, %v1990
      %v2003 = vmul.f32 %v1991, %v1991
      %v2004 = vmul.f32 %v1992, %v1992
      %v2005 = vmul.f32 %v1993, %v1993
      %v2006 = vsel %vm1683, %v1994, 0.0
      %v2007 = vsel %vm1683, %v1995, 0.0
      %v2008 = vadd.f32 %v2006, %v2007
      %v2009 = vsel %vm1683, %v1996, 0.0
      %v2010 = vadd.f32 %v2008, %v2009
      %v2011 = vsel %vm1683, %v1997, 0.0
      %v2012 = vadd.f32 %v2010, %v2011
      %v2013 = vsel %vm1683, %v1998, 0.0
      %v2014 = vadd.f32 %v2012, %v2013
      %v2015 = vsel %vm1683, %v1999, 0.0
      %v2016 = vadd.f32 %v2014, %v2015
      %v2017 = vsel %vm1683, %v2000, 0.0
      %v2018 = vadd.f32 %v2016, %v2017
      %v2019 = vsel %vm1683, %v2001, 0.0
      %v2020 = vadd.f32 %v2018, %v2019
      %v2021 = vsel %vm1683, %v2002, 0.0
      %v2022 = vadd.f32 %v2020, %v2021
      %v2023 = vsel %vm1683, %v2003, 0.0
      %v2024 = vadd.f32 %v2022, %v2023
      %v2025 = vsel %vm1683, %v2004, 0.0
      %v2026 = vadd.f32 %v2024, %v2025
      %v2027 = vsel %vm1683, %v2005, 0.0
      %v2028 = vadd.f32 %v2026, %v2027
      %2029 = vadd.xlane.f32.xlu0 %v2028
      %v2030 = vpop.xlane.xlu0 %2029
      %v2031 = vrot.slane %v2030, 4
      %v2032 = vadd.f32 %v2030, %v2031
      %v2033 = vrot.slane %v2032, 2
      %v2034 = vadd.f32 %v2032, %v2033
      %v2035 = vrot.slane %v2034, 1
      %v2036 = vadd.f32 %v2034, %v2035
      %s2037 = vtos %v2036
      %s2038 = sadd.f32 %s1969, %s2037
      %v2039 = vrcp.pop 19208.0
      %s2040 = vtos %v2039
      %s2041 = smul.f32 %s2038, %s2040
      %s2042 = sld [smem:[#allocation20 + %s1556]]
      %s2043 = sadd.f32 %s2041, 1e-05
      %v2044 = vstv %s2043
      %v2045 = vrsqrt.pop %v2044
      %s2046 = vtos %v2045
      %s2047 = smul.f32 %s2042, %s2046
      %s2048 = sld [smem:[#allocation21 + %s1556]]
      %s2049 = smul.f32 %s1896, %s2047
      %s2050 = ssub.f32 %s2048, %s2049
      %s2051 = smul.f32 %s1561, %s2047
      %s2052 = sadd.f32 %s2051, %s2050
      %s2053 = smax.f32 %s2052, 0.0
      %v2054 = vstv %s2047
      %v2055 = vmul.f32 %v1900, %v2054
      %v2056 = vmul.f32 %v1901, %v2054
      %v2057 = vmul.f32 %v1902, %v2054
      %v2058 = vmul.f32 %v1903, %v2054
      %v2059 = vmul.f32 %v1904, %v2054
      %v2060 = vmul.f32 %v1905, %v2054
      %v2061 = vmul.f32 %v1906, %v2054
      %v2062 = vmul.f32 %v1907, %v2054
      %v2063 = vmul.f32 %v1908, %v2054
      %v2064 = vmul.f32 %v1909, %v2054
      %v2065 = vmul.f32 %v1910, %v2054
      %v2066 = vmul.f32 %v1911, %v2054
      %v2067 = vstv %s2050
      %v2068 = vadd.f32 %v2055, %v2067
      %v2069 = vadd.f32 %v2056, %v2067
      %v2070 = vadd.f32 %v2057, %v2067
      %v2071 = vadd.f32 %v2058, %v2067
      %v2072 = vadd.f32 %v2059, %v2067
      %v2073 = vadd.f32 %v2060, %v2067
      %v2074 = vadd.f32 %v2061, %v2067
      %v2075 = vadd.f32 %v2062, %v2067
      %v2076 = vadd.f32 %v2063, %v2067
      %v2077 = vadd.f32 %v2064, %v2067
      %v2078 = vadd.f32 %v2065, %v2067
      %v2079 = vadd.f32 %v2066, %v2067
      %v2080 = vmax.f32 %v2068, 0.0
      %v2081 = vmax.f32 %v2069, 0.0
      %v2082 = vmax.f32 %v2070, 0.0
      %v2083 = vmax.f32 %v2071, 0.0
      %v2084 = vmax.f32 %v2072, 0.0
      %v2085 = vmax.f32 %v2073, 0.0
      %v2086 = vmax.f32 %v2074, 0.0
      %v2087 = vmax.f32 %v2075, 0.0
      %v2088 = vmax.f32 %v2076, 0.0
      %v2089 = vmax.f32 %v2077, 0.0
      %v2090 = vmax.f32 %v2078, 0.0
      %v2091 = vmax.f32 %v2079, 0.0
      %v2092 = vstv %s2053
      %v2093 = vadd.f32 %v2092, 0.0
      %vm2094 = vcmask 801792
      %2095 = vst.msk [vmem:[#allocation4] sm:$0xff] %vm2094, %v2093
      %2096 = vst.msk [vmem:[#allocation4 + $0x8] sm:$0xff] %vm2094, %v2093
      %2097 = vst.msk [vmem:[#allocation4 + $0x10] sm:$0xff] %vm2094, %v2093
      %2098 = vst.msk [vmem:[#allocation4 + $0x18] sm:$0xff] %vm2094, %v2093
      %2099 = vst.msk [vmem:[#allocation4 + $0x20] sm:$0xff] %vm2094, %v2093
      %2100 = vst.msk [vmem:[#allocation4 + $0x28] sm:$0xff] %vm2094, %v2093
      %2101 = vst.msk [vmem:[#allocation4 + $0x30] sm:$0xff] %vm2094, %v2093
      %2102 = vst.msk [vmem:[#allocation4 + $0x38] sm:$0xff] %vm2094, %v2093
      %2103 = vst.msk [vmem:[#allocation4 + $0x40] sm:$0xff] %vm2094, %v2093
      %2104 = vst.msk [vmem:[#allocation4 + $0x48] sm:$0xff] %vm2094, %v2093
      %2105 = vst.msk [vmem:[#allocation4 + $0x50] sm:$0xff] %vm2094, %v2093
      %2106 = vst.msk [vmem:[#allocation4 + $0x58] sm:$0xff] %vm2094, %v2093
      %vm2107 = vcmask 795648
      %2108 = vst.msk [vmem:[#allocation4 + $0x60] sm:$0x3] %vm2107, %v2093
      %2121 = vrot.lane.b32.xlu0 %v2080, 1
      %v2122 = vpop.permute.xlu0 %2121
      %2123 = vrot.lane.b32.xlu0 %v2081, 1
      %v2124 = vpop.permute.xlu0 %2123
      %2125 = vrot.lane.b32.xlu0 %v2082, 1
      %v2126 = vpop.permute.xlu0 %2125
      %2127 = vrot.lane.b32.xlu0 %v2083, 1
      %v2128 = vpop.permute.xlu0 %2127
      %2129 = vrot.lane.b32.xlu0 %v2084, 1
      %v2130 = vpop.permute.xlu0 %2129
      %2131 = vrot.lane.b32.xlu0 %v2085, 1
      %v2132 = vpop.permute.xlu0 %2131
      %2133 = vrot.lane.b32.xlu0 %v2086, 1
      %v2134 = vpop.permute.xlu0 %2133
      %2135 = vrot.lane.b32.xlu0 %v2087, 1
      %v2136 = vpop.permute.xlu0 %2135
      %2137 = vrot.lane.b32.xlu0 %v2088, 1
      %v2138 = vpop.permute.xlu0 %2137
      %2139 = vrot.lane.b32.xlu0 %v2089, 1
      %v2140 = vpop.permute.xlu0 %2139
      %2141 = vrot.lane.b32.xlu0 %v2090, 1
      %v2142 = vpop.permute.xlu0 %2141
      %2143 = vrot.lane.b32.xlu0 %v2091, 1
      %v2144 = vpop.permute.xlu0 %2143
      %vm2157 = vcmask 793608
      %2158 = vst.msk [vmem:[#allocation4 + $0x1] sm:$0xff] %vm2157, %v2122
      %2159 = vst.msk [vmem:[#allocation4 + $0x9] sm:$0xff] %vm2157, %v2124
      %2160 = vst.msk [vmem:[#allocation4 + $0x11] sm:$0xff] %vm2157, %v2126
      %2161 = vst.msk [vmem:[#allocation4 + $0x19] sm:$0xff] %vm2157, %v2128
      %2162 = vst.msk [vmem:[#allocation4 + $0x21] sm:$0xff] %vm2157, %v2130
      %2163 = vst.msk [vmem:[#allocation4 + $0x29] sm:$0xff] %vm2157, %v2132
      %2164 = vst.msk [vmem:[#allocation4 + $0x31] sm:$0xff] %vm2157, %v2134
      %2165 = vst.msk [vmem:[#allocation4 + $0x39] sm:$0xff] %vm2157, %v2136
      %2166 = vst.msk [vmem:[#allocation4 + $0x41] sm:$0xff] %vm2157, %v2138
      %2167 = vst.msk [vmem:[#allocation4 + $0x49] sm:$0xff] %vm2157, %v2140
      %2168 = vst.msk [vmem:[#allocation4 + $0x51] sm:$0xff] %vm2157, %v2142
      %2169 = vst.msk [vmem:[#allocation4 + $0x59] sm:$0xff] %vm2157, %v2144
      %v2170 = vld [vmem:[#allocation4] sm:$0xff]
      %v2171 = vld [vmem:[#allocation4 + $0x8] sm:$0xff]
      %v2172 = vld [vmem:[#allocation4 + $0x10] sm:$0xff]
      %v2173 = vld [vmem:[#allocation4 + $0x18] sm:$0xff]
      %v2174 = vld [vmem:[#allocation4 + $0x20] sm:$0xff]
      %v2175 = vld [vmem:[#allocation4 + $0x28] sm:$0xff]
      %v2176 = vld [vmem:[#allocation4 + $0x30] sm:$0xff]
      %v2177 = vld [vmem:[#allocation4 + $0x38] sm:$0xff]
      %v2178 = vld [vmem:[#allocation4 + $0x40] sm:$0xff]
      %v2179 = vld [vmem:[#allocation4 + $0x48] sm:$0xff]
      %v2180 = vld [vmem:[#allocation4 + $0x50] sm:$0xff]
      %v2181 = vld [vmem:[#allocation4 + $0x58] sm:$0xff]
      %v2182 = vld [vmem:[#allocation4 + $0x60] sm:$0x1]
      %2196 = vrot.lane.b32.xlu0 %v2170, 127
      %v2197 = vpop.permute.xlu0 %2196
      %2198 = vrot.lane.b32.xlu0 %v2171, 127
      %v2199 = vpop.permute.xlu0 %2198
      %2200 = vrot.lane.b32.xlu0 %v2172, 127
      %v2201 = vpop.permute.xlu0 %2200
      %2202 = vrot.lane.b32.xlu0 %v2173, 127
      %v2203 = vpop.permute.xlu0 %2202
      %2204 = vrot.lane.b32.xlu0 %v2174, 127
      %v2205 = vpop.permute.xlu0 %2204
      %2206 = vrot.lane.b32.xlu0 %v2175, 127
      %v2207 = vpop.permute.xlu0 %2206
      %2208 = vrot.lane.b32.xlu0 %v2176, 127
      %v2209 = vpop.permute.xlu0 %2208
      %2210 = vrot.lane.b32.xlu0 %v2177, 127
      %v2211 = vpop.permute.xlu0 %2210
      %2212 = vrot.lane.b32.xlu0 %v2178, 127
      %v2213 = vpop.permute.xlu0 %2212
      %2214 = vrot.lane.b32.xlu0 %v2179, 127
      %v2215 = vpop.permute.xlu0 %2214
      %2216 = vrot.lane.b32.xlu0 %v2180, 127
      %v2217 = vpop.permute.xlu0 %2216
      %2218 = vrot.lane.b32.xlu0 %v2181, 127
      %v2219 = vpop.permute.xlu0 %2218
      %2220 = vrot.lane.b32.xlu0 %v2182, 127
      %v2221 = vpop.permute.xlu0 %2220
      %v2235 = vmax.f32 %v2170, %v2197
      %v2236 = vmax.f32 %v2171, %v2199
      %v2237 = vmax.f32 %v2172, %v2201
      %v2238 = vmax.f32 %v2173, %v2203
      %v2239 = vmax.f32 %v2174, %v2205
      %v2240 = vmax.f32 %v2175, %v2207
      %v2241 = vmax.f32 %v2176, %v2209
      %v2242 = vmax.f32 %v2177, %v2211
      %v2243 = vmax.f32 %v2178, %v2213
      %v2244 = vmax.f32 %v2179, %v2215
      %v2245 = vmax.f32 %v2180, %v2217
      %v2246 = vmax.f32 %v2181, %v2219
      %v2247 = vmax.f32 %v2182, %v2221
      %v2248 = vld [vmem:[#allocation4 + $0x1] sm:$0xff]
      %v2249 = vld [vmem:[#allocation4 + $0x9] sm:$0xff]
      %v2250 = vld [vmem:[#allocation4 + $0x11] sm:$0xff]
      %v2251 = vld [vmem:[#allocation4 + $0x19] sm:$0xff]
      %v2252 = vld [vmem:[#allocation4 + $0x21] sm:$0xff]
      %v2253 = vld [vmem:[#allocation4 + $0x29] sm:$0xff]
      %v2254 = vld [vmem:[#allocation4 + $0x31] sm:$0xff]
      %v2255 = vld [vmem:[#allocation4 + $0x39] sm:$0xff]
      %v2256 = vld [vmem:[#allocation4 + $0x41] sm:$0xff]
      %v2257 = vld [vmem:[#allocation4 + $0x49] sm:$0xff]
      %v2258 = vld [vmem:[#allocation4 + $0x51] sm:$0xff]
      %v2259 = vld [vmem:[#allocation4 + $0x59] sm:$0xff]
      %v2260 = vld [vmem:[#allocation4 + $0x61] sm:$0x1]
      %v2261 = vmax.f32 %v2235, %v2248
      %v2262 = vmax.f32 %v2236, %v2249
      %v2263 = vmax.f32 %v2237, %v2250
      %v2264 = vmax.f32 %v2238, %v2251
      %v2265 = vmax.f32 %v2239, %v2252
      %v2266 = vmax.f32 %v2240, %v2253
      %v2267 = vmax.f32 %v2241, %v2254
      %v2268 = vmax.f32 %v2242, %v2255
      %v2269 = vmax.f32 %v2243, %v2256
      %v2270 = vmax.f32 %v2244, %v2257
      %v2271 = vmax.f32 %v2245, %v2258
      %v2272 = vmax.f32 %v2246, %v2259
      %v2273 = vmax.f32 %v2247, %v2260
      %2287 = vrot.lane.b32.xlu0 %v2248, 127
      %v2288 = vpop.permute.xlu0 %2287
      %2289 = vrot.lane.b32.xlu0 %v2249, 127
      %v2290 = vpop.permute.xlu0 %2289
      %2291 = vrot.lane.b32.xlu0 %v2250, 127
      %v2292 = vpop.permute.xlu0 %2291
      %2293 = vrot.lane.b32.xlu0 %v2251, 127
      %v2294 = vpop.permute.xlu0 %2293
      %2295 = vrot.lane.b32.xlu0 %v2252, 127
      %v2296 = vpop.permute.xlu0 %2295
      %2297 = vrot.lane.b32.xlu0 %v2253, 127
      %v2298 = vpop.permute.xlu0 %2297
      %2299 = vrot.lane.b32.xlu0 %v2254, 127
      %v2300 = vpop.permute.xlu0 %2299
      %2301 = vrot.lane.b32.xlu0 %v2255, 127
      %v2302 = vpop.permute.xlu0 %2301
      %2303 = vrot.lane.b32.xlu0 %v2256, 127
      %v2304 = vpop.permute.xlu0 %2303
      %2305 = vrot.lane.b32.xlu0 %v2257, 127
      %v2306 = vpop.permute.xlu0 %2305
      %2307 = vrot.lane.b32.xlu0 %v2258, 127
      %v2308 = vpop.permute.xlu0 %2307
      %2309 = vrot.lane.b32.xlu0 %v2259, 127
      %v2310 = vpop.permute.xlu0 %2309
      %2311 = vrot.lane.b32.xlu0 %v2260, 127
      %v2312 = vpop.permute.xlu0 %2311
      %v2326 = vmax.f32 %v2261, %v2288
      %v2327 = vmax.f32 %v2262, %v2290
      %v2328 = vmax.f32 %v2263, %v2292
      %v2329 = vmax.f32 %v2264, %v2294
      %v2330 = vmax.f32 %v2265, %v2296
      %v2331 = vmax.f32 %v2266, %v2298
      %v2332 = vmax.f32 %v2267, %v2300
      %v2333 = vmax.f32 %v2268, %v2302
      %v2334 = vmax.f32 %v2269, %v2304
      %v2335 = vmax.f32 %v2270, %v2306
      %v2336 = vmax.f32 %v2271, %v2308
      %v2337 = vmax.f32 %v2272, %v2310
      %v2338 = vmax.f32 %v2273, %v2312
      %vm2339 = vcmask 793600
      %2340 = vst.msk [vmem:[#allocation5] sm:$0xff] %vm2339, %v2326
      %2341 = vst.msk [vmem:[#allocation5 + $0x8] sm:$0xff] %vm2339, %v2327
      %2342 = vst.msk [vmem:[#allocation5 + $0x10] sm:$0xff] %vm2339, %v2328
      %2343 = vst.msk [vmem:[#allocation5 + $0x18] sm:$0xff] %vm2339, %v2329
      %2344 = vst.msk [vmem:[#allocation5 + $0x20] sm:$0xff] %vm2339, %v2330
      %2345 = vst.msk [vmem:[#allocation5 + $0x28] sm:$0xff] %vm2339, %v2331
      %2346 = vst.msk [vmem:[#allocation5 + $0x30] sm:$0xff] %vm2339, %v2332
      %2347 = vst.msk [vmem:[#allocation5 + $0x38] sm:$0xff] %vm2339, %v2333
      %2348 = vst.msk [vmem:[#allocation5 + $0x40] sm:$0xff] %vm2339, %v2334
      %2349 = vst.msk [vmem:[#allocation5 + $0x48] sm:$0xff] %vm2339, %v2335
      %2350 = vst.msk [vmem:[#allocation5 + $0x50] sm:$0xff] %vm2339, %v2336
      %2351 = vst.msk [vmem:[#allocation5 + $0x58] sm:$0xff] %vm2339, %v2337
      %vm2352 = vcmask 786432
      %2353 = vst.msk [vmem:[#allocation5 + $0x60] sm:$0x1] %vm2352, %v2338
      %v2354 = vld [vmem:[%s1846] sm:$0xff]
      %v2355 = vld [vmem:[%s1846 + $0x8] sm:$0xff]
      %v2356 = vld [vmem:[%s1846 + $0x10] sm:$0xff]
      %v2357 = vld [vmem:[%s1846 + $0x18] sm:$0xff]
      %v2358 = vld [vmem:[%s1846 + $0x20] sm:$0xff]
      %v2359 = vld [vmem:[%s1846 + $0x28] sm:$0xff]
      %v2360 = vld [vmem:[%s1846 + $0x30] sm:$0xff]
      %v2361 = vld [vmem:[%s1846 + $0x38] sm:$0xff]
      %v2362 = vld [vmem:[%s1846 + $0x40] sm:$0xff]
      %v2363 = vld [vmem:[%s1846 + $0x48] sm:$0xff]
      %v2364 = vld [vmem:[%s1846 + $0x50] sm:$0xff]
      %v2365 = vld [vmem:[%s1846 + $0x58] sm:$0xff]
      %v2366 = vmul.f32 %v2354, %v2054
      %v2367 = vmul.f32 %v2355, %v2054
      %v2368 = vmul.f32 %v2356, %v2054
      %v2369 = vmul.f32 %v2357, %v2054
      %v2370 = vmul.f32 %v2358, %v2054
      %v2371 = vmul.f32 %v2359, %v2054
      %v2372 = vmul.f32 %v2360, %v2054
      %v2373 = vmul.f32 %v2361, %v2054
      %v2374 = vmul.f32 %v2362, %v2054
      %v2375 = vmul.f32 %v2363, %v2054
      %v2376 = vmul.f32 %v2364, %v2054
      %v2377 = vmul.f32 %v2365, %v2054
      %v2378 = vadd.f32 %v2366, %v2067
      %v2379 = vadd.f32 %v2367, %v2067
      %v2380 = vadd.f32 %v2368, %v2067
      %v2381 = vadd.f32 %v2369, %v2067
      %v2382 = vadd.f32 %v2370, %v2067
      %v2383 = vadd.f32 %v2371, %v2067
      %v2384 = vadd.f32 %v2372, %v2067
      %v2385 = vadd.f32 %v2373, %v2067
      %v2386 = vadd.f32 %v2374, %v2067
      %v2387 = vadd.f32 %v2375, %v2067
      %v2388 = vadd.f32 %v2376, %v2067
      %v2389 = vadd.f32 %v2377, %v2067
      %v2390 = vmax.f32 %v2378, 0.0
      %v2391 = vmax.f32 %v2379, 0.0
      %v2392 = vmax.f32 %v2380, 0.0
      %v2393 = vmax.f32 %v2381, 0.0
      %v2394 = vmax.f32 %v2382, 0.0
      %v2395 = vmax.f32 %v2383, 0.0
      %v2396 = vmax.f32 %v2384, 0.0
      %v2397 = vmax.f32 %v2385, 0.0
      %v2398 = vmax.f32 %v2386, 0.0
      %v2399 = vmax.f32 %v2387, 0.0
      %v2400 = vmax.f32 %v2388, 0.0
      %v2401 = vmax.f32 %v2389, 0.0
      %2402 = vst.msk [vmem:[#allocation4] sm:$0xff] %vm2094, %v2093
      %2403 = vst.msk [vmem:[#allocation4 + $0x8] sm:$0xff] %vm2094, %v2093
      %2404 = vst.msk [vmem:[#allocation4 + $0x10] sm:$0xff] %vm2094, %v2093
      %2405 = vst.msk [vmem:[#allocation4 + $0x18] sm:$0xff] %vm2094, %v2093
      %2406 = vst.msk [vmem:[#allocation4 + $0x20] sm:$0xff] %vm2094, %v2093
      %2407 = vst.msk [vmem:[#allocation4 + $0x28] sm:$0xff] %vm2094, %v2093
      %2408 = vst.msk [vmem:[#allocation4 + $0x30] sm:$0xff] %vm2094, %v2093
      %2409 = vst.msk [vmem:[#allocation4 + $0x38] sm:$0xff] %vm2094, %v2093
      %2410 = vst.msk [vmem:[#allocation4 + $0x40] sm:$0xff] %vm2094, %v2093
      %2411 = vst.msk [vmem:[#allocation4 + $0x48] sm:$0xff] %vm2094, %v2093
      %2412 = vst.msk [vmem:[#allocation4 + $0x50] sm:$0xff] %vm2094, %v2093
      %2413 = vst.msk [vmem:[#allocation4 + $0x58] sm:$0xff] %vm2094, %v2093
      %2414 = vst.msk [vmem:[#allocation4 + $0x60] sm:$0x3] %vm2107, %v2093
      %2427 = vrot.lane.b32.xlu0 %v2390, 1
      %v2428 = vpop.permute.xlu0 %2427
      %2429 = vrot.lane.b32.xlu0 %v2391, 1
      %v2430 = vpop.permute.xlu0 %2429
      %2431 = vrot.lane.b32.xlu0 %v2392, 1
      %v2432 = vpop.permute.xlu0 %2431
      %2433 = vrot.lane.b32.xlu0 %v2393, 1
      %v2434 = vpop.permute.xlu0 %2433
      %2435 = vrot.lane.b32.xlu0 %v2394, 1
      %v2436 = vpop.permute.xlu0 %2435
      %2437 = vrot.lane.b32.xlu0 %v2395, 1
      %v2438 = vpop.permute.xlu0 %2437
      %2439 = vrot.lane.b32.xlu0 %v2396, 1
      %v2440 = vpop.permute.xlu0 %2439
      %2441 = vrot.lane.b32.xlu0 %v2397, 1
      %v2442 = vpop.permute.xlu0 %2441
      %2443 = vrot.lane.b32.xlu0 %v2398, 1
      %v2444 = vpop.permute.xlu0 %2443
      %2445 = vrot.lane.b32.xlu0 %v2399, 1
      %v2446 = vpop.permute.xlu0 %2445
      %2447 = vrot.lane.b32.xlu0 %v2400, 1
      %v2448 = vpop.permute.xlu0 %2447
      %2449 = vrot.lane.b32.xlu0 %v2401, 1
      %v2450 = vpop.permute.xlu0 %2449
      %2463 = vst.msk [vmem:[#allocation4 + $0x1] sm:$0xff] %vm2157, %v2428
      %2464 = vst.msk [vmem:[#allocation4 + $0x9] sm:$0xff] %vm2157, %v2430
      %2465 = vst.msk [vmem:[#allocation4 + $0x11] sm:$0xff] %vm2157, %v2432
      %2466 = vst.msk [vmem:[#allocation4 + $0x19] sm:$0xff] %vm2157, %v2434
      %2467 = vst.msk [vmem:[#allocation4 + $0x21] sm:$0xff] %vm2157, %v2436
      %2468 = vst.msk [vmem:[#allocation4 + $0x29] sm:$0xff] %vm2157, %v2438
      %2469 = vst.msk [vmem:[#allocation4 + $0x31] sm:$0xff] %vm2157, %v2440
      %2470 = vst.msk [vmem:[#allocation4 + $0x39] sm:$0xff] %vm2157, %v2442
      %2471 = vst.msk [vmem:[#allocation4 + $0x41] sm:$0xff] %vm2157, %v2444
      %2472 = vst.msk [vmem:[#allocation4 + $0x49] sm:$0xff] %vm2157, %v2446
      %2473 = vst.msk [vmem:[#allocation4 + $0x51] sm:$0xff] %vm2157, %v2448
      %2474 = vst.msk [vmem:[#allocation4 + $0x59] sm:$0xff] %vm2157, %v2450
      %v2475 = vld [vmem:[#allocation4] sm:$0xff]
      %v2476 = vld [vmem:[#allocation4 + $0x8] sm:$0xff]
      %v2477 = vld [vmem:[#allocation4 + $0x10] sm:$0xff]
      %v2478 = vld [vmem:[#allocation4 + $0x18] sm:$0xff]
      %v2479 = vld [vmem:[#allocation4 + $0x20] sm:$0xff]
      %v2480 = vld [vmem:[#allocation4 + $0x28] sm:$0xff]
      %v2481 = vld [vmem:[#allocation4 + $0x30] sm:$0xff]
      %v2482 = vld [vmem:[#allocation4 + $0x38] sm:$0xff]
      %v2483 = vld [vmem:[#allocation4 + $0x40] sm:$0xff]
      %v2484 = vld [vmem:[#allocation4 + $0x48] sm:$0xff]
      %v2485 = vld [vmem:[#allocation4 + $0x50] sm:$0xff]
      %v2486 = vld [vmem:[#allocation4 + $0x58] sm:$0xff]
      %v2487 = vld [vmem:[#allocation4 + $0x60] sm:$0x1]
      %2501 = vrot.lane.b32.xlu0 %v2475, 127
      %v2502 = vpop.permute.xlu0 %2501
      %2503 = vrot.lane.b32.xlu0 %v2476, 127
      %v2504 = vpop.permute.xlu0 %2503
      %2505 = vrot.lane.b32.xlu0 %v2477, 127
      %v2506 = vpop.permute.xlu0 %2505
      %2507 = vrot.lane.b32.xlu0 %v2478, 127
      %v2508 = vpop.permute.xlu0 %2507
      %2509 = vrot.lane.b32.xlu0 %v2479, 127
      %v2510 = vpop.permute.xlu0 %2509
      %2511 = vrot.lane.b32.xlu0 %v2480, 127
      %v2512 = vpop.permute.xlu0 %2511
      %2513 = vrot.lane.b32.xlu0 %v2481, 127
      %v2514 = vpop.permute.xlu0 %2513
      %2515 = vrot.lane.b32.xlu0 %v2482, 127
      %v2516 = vpop.permute.xlu0 %2515
      %2517 = vrot.lane.b32.xlu0 %v2483, 127
      %v2518 = vpop.permute.xlu0 %2517
      %2519 = vrot.lane.b32.xlu0 %v2484, 127
      %v2520 = vpop.permute.xlu0 %2519
      %2521 = vrot.lane.b32.xlu0 %v2485, 127
      %v2522 = vpop.permute.xlu0 %2521
      %2523 = vrot.lane.b32.xlu0 %v2486, 127
      %v2524 = vpop.permute.xlu0 %2523
      %2525 = vrot.lane.b32.xlu0 %v2487, 127
      %v2526 = vpop.permute.xlu0 %2525
      %v2540 = vmax.f32 %v2475, %v2502
      %v2541 = vmax.f32 %v2476, %v2504
      %v2542 = vmax.f32 %v2477, %v2506
      %v2543 = vmax.f32 %v2478, %v2508
      %v2544 = vmax.f32 %v2479, %v2510
      %v2545 = vmax.f32 %v2480, %v2512
      %v2546 = vmax.f32 %v2481, %v2514
      %v2547 = vmax.f32 %v2482, %v2516
      %v2548 = vmax.f32 %v2483, %v2518
      %v2549 = vmax.f32 %v2484, %v2520
      %v2550 = vmax.f32 %v2485, %v2522
      %v2551 = vmax.f32 %v2486, %v2524
      %v2552 = vmax.f32 %v2487, %v2526
      %v2553 = vld [vmem:[#allocation4 + $0x1] sm:$0xff]
      %v2554 = vld [vmem:[#allocation4 + $0x9] sm:$0xff]
      %v2555 = vld [vmem:[#allocation4 + $0x11] sm:$0xff]
      %v2556 = vld [vmem:[#allocation4 + $0x19] sm:$0xff]
      %v2557 = vld [vmem:[#allocation4 + $0x21] sm:$0xff]
      %v2558 = vld [vmem:[#allocation4 + $0x29] sm:$0xff]
      %v2559 = vld [vmem:[#allocation4 + $0x31] sm:$0xff]
      %v2560 = vld [vmem:[#allocation4 + $0x39] sm:$0xff]
      %v2561 = vld [vmem:[#allocation4 + $0x41] sm:$0xff]
      %v2562 = vld [vmem:[#allocation4 + $0x49] sm:$0xff]
      %v2563 = vld [vmem:[#allocation4 + $0x51] sm:$0xff]
      %v2564 = vld [vmem:[#allocation4 + $0x59] sm:$0xff]
      %v2565 = vld [vmem:[#allocation4 + $0x61] sm:$0x1]
      %v2566 = vmax.f32 %v2540, %v2553
      %v2567 = vmax.f32 %v2541, %v2554
      %v2568 = vmax.f32 %v2542, %v2555
      %v2569 = vmax.f32 %v2543, %v2556
      %v2570 = vmax.f32 %v2544, %v2557
      %v2571 = vmax.f32 %v2545, %v2558
      %v2572 = vmax.f32 %v2546, %v2559
      %v2573 = vmax.f32 %v2547, %v2560
      %v2574 = vmax.f32 %v2548, %v2561
      %v2575 = vmax.f32 %v2549, %v2562
      %v2576 = vmax.f32 %v2550, %v2563
      %v2577 = vmax.f32 %v2551, %v2564
      %v2578 = vmax.f32 %v2552, %v2565
      %2592 = vrot.lane.b32.xlu0 %v2553, 127
      %v2593 = vpop.permute.xlu0 %2592
      %2594 = vrot.lane.b32.xlu0 %v2554, 127
      %v2595 = vpop.permute.xlu0 %2594
      %2596 = vrot.lane.b32.xlu0 %v2555, 127
      %v2597 = vpop.permute.xlu0 %2596
      %2598 = vrot.lane.b32.xlu0 %v2556, 127
      %v2599 = vpop.permute.xlu0 %2598
      %2600 = vrot.lane.b32.xlu0 %v2557, 127
      %v2601 = vpop.permute.xlu0 %2600
      %2602 = vrot.lane.b32.xlu0 %v2558, 127
      %v2603 = vpop.permute.xlu0 %2602
      %2604 = vrot.lane.b32.xlu0 %v2559, 127
      %v2605 = vpop.permute.xlu0 %2604
      %2606 = vrot.lane.b32.xlu0 %v2560, 127
      %v2607 = vpop.permute.xlu0 %2606
      %2608 = vrot.lane.b32.xlu0 %v2561, 127
      %v2609 = vpop.permute.xlu0 %2608
      %2610 = vrot.lane.b32.xlu0 %v2562, 127
      %v2611 = vpop.permute.xlu0 %2610
      %2612 = vrot.lane.b32.xlu0 %v2563, 127
      %v2613 = vpop.permute.xlu0 %2612
      %2614 = vrot.lane.b32.xlu0 %v2564, 127
      %v2615 = vpop.permute.xlu0 %2614
      %2616 = vrot.lane.b32.xlu0 %v2565, 127
      %v2617 = vpop.permute.xlu0 %2616
      %v2631 = vmax.f32 %v2566, %v2593
      %v2632 = vmax.f32 %v2567, %v2595
      %v2633 = vmax.f32 %v2568, %v2597
      %v2634 = vmax.f32 %v2569, %v2599
      %v2635 = vmax.f32 %v2570, %v2601
      %v2636 = vmax.f32 %v2571, %v2603
      %v2637 = vmax.f32 %v2572, %v2605
      %v2638 = vmax.f32 %v2573, %v2607
      %v2639 = vmax.f32 %v2574, %v2609
      %v2640 = vmax.f32 %v2575, %v2611
      %v2641 = vmax.f32 %v2576, %v2613
      %v2642 = vmax.f32 %v2577, %v2615
      %v2643 = vmax.f32 %v2578, %v2617
      %2644 = vst.msk [vmem:[#allocation5 + $0x61] sm:$0xff] %vm2339, %v2631
      %2645 = vst.msk [vmem:[#allocation5 + $0x69] sm:$0xff] %vm2339, %v2632
      %2646 = vst.msk [vmem:[#allocation5 + $0x71] sm:$0xff] %vm2339, %v2633
      %2647 = vst.msk [vmem:[#allocation5 + $0x79] sm:$0xff] %vm2339, %v2634
      %2648 = vst.msk [vmem:[#allocation5 + $0x81] sm:$0xff] %vm2339, %v2635
      %2649 = vst.msk [vmem:[#allocation5 + $0x89] sm:$0xff] %vm2339, %v2636
      %2650 = vst.msk [vmem:[#allocation5 + $0x91] sm:$0xff] %vm2339, %v2637
      %2651 = vst.msk [vmem:[#allocation5 + $0x99] sm:$0xff] %vm2339, %v2638
      %2652 = vst.msk [vmem:[#allocation5 + $0xa1] sm:$0xff] %vm2339, %v2639
      %2653 = vst.msk [vmem:[#allocation5 + $0xa9] sm:$0xff] %vm2339, %v2640
      %2654 = vst.msk [vmem:[#allocation5 + $0xb1] sm:$0xff] %vm2339, %v2641
      %2655 = vst.msk [vmem:[#allocation5 + $0xb9] sm:$0xff] %vm2339, %v2642
      %2656 = vst.msk [vmem:[#allocation5 + $0xc1] sm:$0x1] %vm2352, %v2643
      %v2657 = vld [vmem:[#allocation5] sm:$0xff]
      %v2658 = vld [vmem:[#allocation5 + $0x8] sm:$0xff]
      %v2659 = vld [vmem:[#allocation5 + $0x10] sm:$0xff]
      %v2660 = vld [vmem:[#allocation5 + $0x18] sm:$0xff]
      %v2661 = vld [vmem:[#allocation5 + $0x20] sm:$0xff]
      %v2662 = vld [vmem:[#allocation5 + $0x28] sm:$0xff]
      %v2663 = vld [vmem:[#allocation5 + $0x30] sm:$0xff]
      %v2664 = vld [vmem:[#allocation5 + $0x38] sm:$0xff]
      %v2665 = vld [vmem:[#allocation5 + $0x40] sm:$0xff]
      %v2666 = vld [vmem:[#allocation5 + $0x48] sm:$0xff]
      %v2667 = vld [vmem:[#allocation5 + $0x50] sm:$0xff]
      %v2668 = vld [vmem:[#allocation5 + $0x58] sm:$0xff]
      %v2669 = vld [vmem:[#allocation5 + $0x60] sm:$0xff]
      %v2670 = vld [vmem:[#allocation5 + $0x68] sm:$0xff]
      %v2671 = vld [vmem:[#allocation5 + $0x70] sm:$0xff]
      %v2672 = vld [vmem:[#allocation5 + $0x78] sm:$0xff]
      %v2673 = vld [vmem:[#allocation5 + $0x80] sm:$0xff]
      %v2674 = vld [vmem:[#allocation5 + $0x88] sm:$0xff]
      %v2675 = vld [vmem:[#allocation5 + $0x90] sm:$0xff]
      %v2676 = vld [vmem:[#allocation5 + $0x98] sm:$0xff]
      %v2677 = vld [vmem:[#allocation5 + $0xa0] sm:$0xff]
      %v2678 = vld [vmem:[#allocation5 + $0xa8] sm:$0xff]
      %v2679 = vld [vmem:[#allocation5 + $0xb0] sm:$0xff]
      %v2680 = vld [vmem:[#allocation5 + $0xb8] sm:$0xff]
      %v2681 = vld [vmem:[#allocation5 + $0xc0] sm:$0x3]
      %v2682 = vld [vmem:[%s15] sm:$0xff]
      %v2683 = vld [vmem:[%s15 + $0x8] sm:$0xff]
      %v2684 = vld [vmem:[%s15 + $0x10] sm:$0xff]
      %v2685 = vld [vmem:[%s15 + $0x18] sm:$0xff]
      %v2686 = vld [vmem:[%s15 + $0x20] sm:$0xff]
      %v2687 = vld [vmem:[%s15 + $0x28] sm:$0xff]
      %v2688 = vld [vmem:[%s15 + $0x30] sm:$0xff]
      %v2689 = vld [vmem:[%s15 + $0x38] sm:$0xff]
      %v2690 = vld [vmem:[%s15 + $0x40] sm:$0xff]
      %v2691 = vld [vmem:[%s15 + $0x48] sm:$0xff]
      %v2692 = vld [vmem:[%s15 + $0x50] sm:$0xff]
      %v2693 = vld [vmem:[%s15 + $0x58] sm:$0xff]
      %v2694 = vld [vmem:[%s15 + $0x60] sm:$0x1]
      %v2696 = vsel %vm2339, %v2657, 0
      %v2699 = vsel %vm2339, %v2658, 0
      %v2702 = vsel %vm2339, %v2659, 0
      %v2705 = vsel %vm2339, %v2660, 0
      %v2708 = vsel %vm2339, %v2661, 0
      %v2711 = vsel %vm2339, %v2662, 0
      %v2714 = vsel %vm2339, %v2663, 0
      %v2717 = vsel %vm2339, %v2664, 0
      %v2720 = vsel %vm2339, %v2665, 0
      %v2723 = vsel %vm2339, %v2666, 0
      %v2726 = vsel %vm2339, %v2667, 0
      %v2729 = vsel %vm2339, %v2668, 0
      %v2732 = vsel %vm2339, %v2669, 0
      %v2735 = vsel %vm2339, %v2670, 0
      %v2738 = vsel %vm2339, %v2671, 0
      %v2741 = vsel %vm2339, %v2672, 0
      %v2744 = vsel %vm2339, %v2673, 0
      %v2747 = vsel %vm2339, %v2674, 0
      %v2750 = vsel %vm2339, %v2675, 0
      %v2753 = vsel %vm2339, %v2676, 0
      %v2756 = vsel %vm2339, %v2677, 0
      %v2759 = vsel %vm2339, %v2678, 0
      %v2762 = vsel %vm2339, %v2679, 0
      %v2765 = vsel %vm2339, %v2680, 0
      %v2768 = vsel %vm2339, %v2681, 0
      %vm2770 = vcmask 1040384
      %v2772 = vsel %vm2770, %v2694, 0
      %2774 = vmatprep.subr.mxu0 0.0
      %2775 = vmatpush1.msra.mxu0 %v2682
      %2776 = vmatprep.subr.mxu0 0.0
      %2777 = vmatpush1.msra.mxu0 %v2683
      %2778 = vmatprep.subr.mxu0 0.0
      %2779 = vmatpush1.msra.mxu0 %v2684
      %2780 = vmatprep.subr.mxu0 0.0
      %2781 = vmatpush1.msra.mxu0 %v2685
      %2782 = vmatprep.subr.mxu0 0.0
      %2783 = vmatpush1.msra.mxu0 %v2686
      %2784 = vmatprep.subr.mxu0 0.0
      %2785 = vmatpush1.msra.mxu0 %v2687
      %2786 = vmatprep.subr.mxu0 0.0
      %2787 = vmatpush1.msra.mxu0 %v2688
      %2788 = vmatprep.subr.mxu0 0.0
      %2789 = vmatpush1.msra.mxu0 %v2689
      %2790 = vmatprep.subr.mxu0 0.0
      %2791 = vmatpush1.msra.mxu0 %v2690
      %2792 = vmatprep.subr.mxu0 0.0
      %2793 = vmatpush1.msra.mxu0 %v2691
      %2794 = vmatprep.subr.mxu0 0.0
      %2795 = vmatpush1.msra.mxu0 %v2692
      %2796 = vmatprep.subr.mxu0 0.0
      %2797 = vmatpush1.msra.mxu0 %v2693
      %2798 = vmatprep.subr.mxu0 0.0
      %2799 = vmatpush1.msra.mxu0 %v2772
      %2800 = vmatprep.subr.mxu0 0.0
      %2801 = vmatpush1.msra.mxu0 0.0
      %2802 = vmatprep.subr.mxu0 0.0
      %2803 = vmatpush1.msra.mxu0 0.0
      %2804 = vmatprep.subr.mxu0 0.0
      %2805 = vmatpush1.msra.mxu0 0.0
      %2806 = vmatprep.subr.mxu0 0.0
      %2807 = vmatpush1.msra.mxu0 0.0
      %2808 = vmatprep.subr.mxu0 0.0
      %2809 = vmatpush1.msra.mxu0 0.0
      %2810 = vmatprep.subr.mxu0 0.0
      %2811 = vmatpush1.msra.mxu0 0.0
      %2812 = vmatprep.subr.mxu0 0.0
      %2813 = vmatpush1.msra.mxu0 0.0
      %2814 = vmatprep.subr.mxu0 0.0
      %2815 = vmatpush1.msra.mxu0 0.0
      %2816 = vmatprep.subr.mxu0 0.0
      %2817 = vmatpush1.msra.mxu0 0.0
      %2818 = vmatprep.subr.mxu0 0.0
      %2819 = vmatpush1.msra.mxu0 0.0
      %2820 = vmatprep.subr.mxu0 0.0
      %2821 = vmatpush1.msra.mxu0 0.0
      %2822 = vmatprep.subr.mxu0 0.0
      %2823 = vmatpush1.msra.mxu0 0.0
      %2824 = vmatprep.subr.mxu0 0.0
      %2825 = vmatpush1.msra.mxu0 0.0
      %2826 = vmatprep.subr.mxu0 0.0
      %2827 = vmatpush1.msra.mxu0 0.0
      %2828 = vmatprep.subr.mxu0 0.0
      %2829 = vmatpush1.msra.mxu0 0.0
      %2830 = vmatprep.subr.mxu0 0.0
      %2831 = vmatpush1.msra.mxu0 0.0
      %2832 = vmatprep.subr.mxu0 0.0
      %2833 = vmatpush1.msra.mxu0 0.0
      %2834 = vmatprep.subr.mxu0 0.0
      %2835 = vmatpush1.msra.mxu0 0.0
      %2836 = vmatprep.subr.mxu0 0.0
      %2837 = vmatpush1.msra.mxu0 0.0
      %2838 = vmatprep.mubr.f32.mxu0 0.0
      %2839 = vmatmul.mubr.f32.gmra.mrb[0].mxu0 %v2696
      %v2840 = vpop.f32.mrb[0].mxu0
      %v2841 = vadd.f32 0.0, %v2840
      %v2842 = vpop.f32.mrb[0].mxu0
      %2843 = vmatprep.mubr.f32.mxu0 0.0
      %2844 = vmatmul.mubr.f32.gmra.mrb[0].mxu0 %v2699
      %v2845 = vpop.f32.mrb[0].mxu0
      %v2846 = vadd.f32 0.0, %v2845
      %v2847 = vpop.f32.mrb[0].mxu0
      %2848 = vmatprep.mubr.f32.mxu0 0.0
      %2849 = vmatmul.mubr.f32.gmra.mrb[0].mxu0 %v2702
      %v2850 = vpop.f32.mrb[0].mxu0
      %v2851 = vadd.f32 0.0, %v2850
      %v2852 = vpop.f32.mrb[0].mxu0
      %2853 = vmatprep.mubr.f32.mxu0 0.0
      %2854 = vmatmul.mubr.f32.gmra.mrb[0].mxu0 %v2705
      %v2855 = vpop.f32.mrb[0].mxu0
      %v2856 = vadd.f32 0.0, %v2855
      %v2857 = vpop.f32.mrb[0].mxu0
      %2858 = vmatprep.mubr.f32.mxu0 0.0
      %2859 = vmatmul.mubr.f32.gmra.mrb[0].mxu0 %v2708
      %v2860 = vpop.f32.mrb[0].mxu0
      %v2861 = vadd.f32 0.0, %v2860
      %v2862 = vpop.f32.mrb[0].mxu0
      %2863 = vmatprep.mubr.f32.mxu0 0.0
      %2864 = vmatmul.mubr.f32.gmra.mrb[0].mxu0 %v2711
      %v2865 = vpop.f32.mrb[0].mxu0
      %v2866 = vadd.f32 0.0, %v2865
      %v2867 = vpop.f32.mrb[0].mxu0
      %2868 = vmatprep.mubr.f32.mxu0 0.0
      %2869 = vmatmul.mubr.f32.gmra.mrb[0].mxu0 %v2714
      %v2870 = vpop.f32.mrb[0].mxu0
      %v2871 = vadd.f32 0.0, %v2870
      %v2872 = vpop.f32.mrb[0].mxu0
      %2873 = vmatprep.mubr.f32.mxu0 0.0
      %2874 = vmatmul.mubr.f32.gmra.mrb[0].mxu0 %v2717
      %v2875 = vpop.f32.mrb[0].mxu0
      %v2876 = vadd.f32 0.0, %v2875
      %v2877 = vpop.f32.mrb[0].mxu0
      %2878 = vmatprep.mubr.f32.mxu0 0.0
      %2879 = vmatmul.mubr.f32.gmra.mrb[0].mxu0 %v2720
      %v2880 = vpop.f32.mrb[0].mxu0
      %v2881 = vadd.f32 0.0, %v2880
      %v2882 = vpop.f32.mrb[0].mxu0
      %2883 = vmatprep.mubr.f32.mxu0 0.0
      %2884 = vmatmul.mubr.f32.gmra.mrb[0].mxu0 %v2723
      %v2885 = vpop.f32.mrb[0].mxu0
      %v2886 = vadd.f32 0.0, %v2885
      %v2887 = vpop.f32.mrb[0].mxu0
      %2888 = vmatprep.mubr.f32.mxu0 0.0
      %2889 = vmatmul.mubr.f32.gmra.mrb[0].mxu0 %v2726
      %v2890 = vpop.f32.mrb[0].mxu0
      %v2891 = vadd.f32 0.0, %v2890
      %v2892 = vpop.f32.mrb[0].mxu0
      %2893 = vmatprep.mubr.f32.mxu0 0.0
      %2894 = vmatmul.mubr.f32.gmra.mrb[0].mxu0 %v2729
      %v2895 = vpop.f32.mrb[0].mxu0
      %v2896 = vadd.f32 0.0, %v2895
      %v2897 = vpop.f32.mrb[0].mxu0
      %2898 = vmatprep.mubr.f32.mxu0 0.0
      %2899 = vmatmul.mubr.f32.gmra.mrb[0].mxu0 %v2732
      %v2900 = vpop.f32.mrb[0].mxu0
      %v2901 = vadd.f32 0.0, %v2900
      %v2902 = vpop.f32.mrb[0].mxu0
      %2903 = vmatprep.mubr.f32.mxu0 0.0
      %2904 = vmatmul.mubr.f32.gmra.mrb[0].mxu0 %v2735
      %v2905 = vpop.f32.mrb[0].mxu0
      %v2906 = vadd.f32 0.0, %v2905
      %v2907 = vpop.f32.mrb[0].mxu0
      %2908 = vmatprep.mubr.f32.mxu0 0.0
      %2909 = vmatmul.mubr.f32.gmra.mrb[0].mxu0 %v2738
      %v2910 = vpop.f32.mrb[0].mxu0
      %v2911 = vadd.f32 0.0, %v2910
      %v2912 = vpop.f32.mrb[0].mxu0
      %2913 = vmatprep.mubr.f32.mxu0 0.0
      %2914 = vmatmul.mubr.f32.gmra.mrb[0].mxu0 %v2741
      %v2915 = vpop.f32.mrb[0].mxu0
      %v2916 = vadd.f32 0.0, %v2915
      %v2917 = vpop.f32.mrb[0].mxu0
      %2918 = vmatprep.mubr.f32.mxu0 0.0
      %2919 = vmatmul.mubr.f32.gmra.mrb[0].mxu0 %v2744
      %v2920 = vpop.f32.mrb[0].mxu0
      %v2921 = vadd.f32 0.0, %v2920
      %v2922 = vpop.f32.mrb[0].mxu0
      %2923 = vmatprep.mubr.f32.mxu0 0.0
      %2924 = vmatmul.mubr.f32.gmra.mrb[0].mxu0 %v2747
      %v2925 = vpop.f32.mrb[0].mxu0
      %v2926 = vadd.f32 0.0, %v2925
      %v2927 = vpop.f32.mrb[0].mxu0
      %2928 = vmatprep.mubr.f32.mxu0 0.0
      %2929 = vmatmul.mubr.f32.gmra.mrb[0].mxu0 %v2750
      %v2930 = vpop.f32.mrb[0].mxu0
      %v2931 = vadd.f32 0.0, %v2930
      %v2932 = vpop.f32.mrb[0].mxu0
      %2933 = vmatprep.mubr.f32.mxu0 0.0
      %2934 = vmatmul.mubr.f32.gmra.mrb[0].mxu0 %v2753
      %v2935 = vpop.f32.mrb[0].mxu0
      %v2936 = vadd.f32 0.0, %v2935
      %v2937 = vpop.f32.mrb[0].mxu0
      %2938 = vmatprep.mubr.f32.mxu0 0.0
      %2939 = vmatmul.mubr.f32.gmra.mrb[0].mxu0 %v2756
      %v2940 = vpop.f32.mrb[0].mxu0
      %v2941 = vadd.f32 0.0, %v2940
      %v2942 = vpop.f32.mrb[0].mxu0
      %2943 = vmatprep.mubr.f32.mxu0 0.0
      %2944 = vmatmul.mubr.f32.gmra.mrb[0].mxu0 %v2759
      %v2945 = vpop.f32.mrb[0].mxu0
      %v2946 = vadd.f32 0.0, %v2945
      %v2947 = vpop.f32.mrb[0].mxu0
      %2948 = vmatprep.mubr.f32.mxu0 0.0
      %2949 = vmatmul.mubr.f32.gmra.mrb[0].mxu0 %v2762
      %v2950 = vpop.f32.mrb[0].mxu0
      %v2951 = vadd.f32 0.0, %v2950
      %v2952 = vpop.f32.mrb[0].mxu0
      %2953 = vmatprep.mubr.f32.mxu0 0.0
      %2954 = vmatmul.mubr.f32.gmra.mrb[0].mxu0 %v2765
      %v2955 = vpop.f32.mrb[0].mxu0
      %v2956 = vadd.f32 0.0, %v2955
      %v2957 = vpop.f32.mrb[0].mxu0
      %2958 = vmatprep.mubr.f32.mxu0 0.0
      %2959 = vmatmul.mubr.f32.gmra.mrb[0].mxu0 %v2768
      %v2960 = vpop.f32.mrb[0].mxu0
      %v2961 = vadd.f32 0.0, %v2960
      %v2962 = vpop.f32.mrb[0].mxu0
      %2963 = vdwg.mxu0
      %v2964 = vld [vmem:[%s16] sm:$0xff]
      %v2965 = vld [vmem:[%s16 + $0x8] sm:$0xff]
      %v2966 = vld [vmem:[%s16 + $0x10] sm:$0xff]
      %v2967 = vld [vmem:[%s16 + $0x18] sm:$0xff]
      %v2968 = vld [vmem:[%s16 + $0x20] sm:$0xff]
      %v2969 = vld [vmem:[%s16 + $0x28] sm:$0xff]
      %v2970 = vld [vmem:[%s16 + $0x30] sm:$0xff]
      %v2971 = vld [vmem:[%s16 + $0x38] sm:$0xff]
      %v2972 = vld [vmem:[%s16 + $0x40] sm:$0xff]
      %v2973 = vld [vmem:[%s16 + $0x48] sm:$0xff]
      %v2974 = vld [vmem:[%s16 + $0x50] sm:$0xff]
      %v2975 = vld [vmem:[%s16 + $0x58] sm:$0xff]
      %v2976 = vld [vmem:[%s16 + $0x60] sm:$0xff]
      %v2977 = vld [vmem:[%s16 + $0x68] sm:$0xff]
      %v2978 = vld [vmem:[%s16 + $0x70] sm:$0xff]
      %v2979 = vld [vmem:[%s16 + $0x78] sm:$0xff]
      %v2980 = vld [vmem:[%s16 + $0x80] sm:$0xff]
      %v2981 = vld [vmem:[%s16 + $0x88] sm:$0xff]
      %v2982 = vld [vmem:[%s16 + $0x90] sm:$0xff]
      %v2983 = vld [vmem:[%s16 + $0x98] sm:$0xff]
      %v2984 = vld [vmem:[%s16 + $0xa0] sm:$0xff]
      %v2985 = vld [vmem:[%s16 + $0xa8] sm:$0xff]
      %v2986 = vld [vmem:[%s16 + $0xb0] sm:$0xff]
      %v2987 = vld [vmem:[%s16 + $0xb8] sm:$0xff]
      %v2988 = vld [vmem:[%s16 + $0xc0] sm:$0x3]
      %v2989 = vld [vmem:[%s16 + $0xc8] sm:$0x3]
      %vm2990 = vcmask 539648
      %v2992 = vsel %vm2990, %v2965, 0
      %v2995 = vsel %vm2990, %v2967, 0
      %v2998 = vsel %vm2990, %v2969, 0
      %v3001 = vsel %vm2990, %v2971, 0
      %v3004 = vsel %vm2990, %v2973, 0
      %v3007 = vsel %vm2990, %v2975, 0
      %v3010 = vsel %vm2990, %v2977, 0
      %v3013 = vsel %vm2990, %v2979, 0
      %v3016 = vsel %vm2990, %v2981, 0
      %v3019 = vsel %vm2990, %v2983, 0
      %v3022 = vsel %vm2990, %v2985, 0
      %v3025 = vsel %vm2990, %v2987, 0
      %v3028 = vsel %vm2990, %v2989, 0
      %vm3030 = vcmask 1041408
      %v3032 = vsel %vm3030, %v2961, 0
      %3034 = vmatprep.subr.mxu0 0.0
      %3035 = vmatpush1.msra.mxu0 %v2841
      %3036 = vmatprep.subr.mxu0 0.0
      %3037 = vmatpush1.msra.mxu0 %v2846
      %3038 = vmatprep.subr.mxu0 0.0
      %3039 = vmatpush1.msra.mxu0 %v2851
      %3040 = vmatprep.subr.mxu0 0.0
      %3041 = vmatpush1.msra.mxu0 %v2856
      %3042 = vmatprep.subr.mxu0 0.0
      %3043 = vmatpush1.msra.mxu0 %v2861
      %3044 = vmatprep.subr.mxu0 0.0
      %3045 = vmatpush1.msra.mxu0 %v2866
      %3046 = vmatprep.subr.mxu0 0.0
      %3047 = vmatpush1.msra.mxu0 %v2871
      %3048 = vmatprep.subr.mxu0 0.0
      %3049 = vmatpush1.msra.mxu0 %v2876
      %3050 = vmatprep.subr.mxu0 0.0
      %3051 = vmatpush1.msra.mxu0 %v2881
      %3052 = vmatprep.subr.mxu0 0.0
      %3053 = vmatpush1.msra.mxu0 %v2886
      %3054 = vmatprep.subr.mxu0 0.0
      %3055 = vmatpush1.msra.mxu0 %v2891
      %3056 = vmatprep.subr.mxu0 0.0
      %3057 = vmatpush1.msra.mxu0 %v2896
      %3058 = vmatprep.subr.mxu0 0.0
      %3059 = vmatpush1.msra.mxu0 %v2901
      %3060 = vmatprep.subr.mxu0 0.0
      %3061 = vmatpush1.msra.mxu0 %v2906
      %3062 = vmatprep.subr.mxu0 0.0
      %3063 = vmatpush1.msra.mxu0 %v2911
      %3064 = vmatprep.subr.mxu0 0.0
      %3065 = vmatpush1.msra.mxu0 %v2916
      %3066 = vmatprep.subr.mxu0 0.0
      %3067 = vmatpush1.msra.mxu0 %v2921
      %3068 = vmatprep.subr.mxu0 0.0
      %3069 = vmatpush1.msra.mxu0 %v2926
      %3070 = vmatprep.subr.mxu0 0.0
      %3071 = vmatpush1.msra.mxu0 %v2931
      %3072 = vmatprep.subr.mxu0 0.0
      %3073 = vmatpush1.msra.mxu0 %v2936
      %3074 = vmatprep.subr.mxu0 0.0
      %3075 = vmatpush1.msra.mxu0 %v2941
      %3076 = vmatprep.subr.mxu0 0.0
      %3077 = vmatpush1.msra.mxu0 %v2946
      %3078 = vmatprep.subr.mxu0 0.0
      %3079 = vmatpush1.msra.mxu0 %v2951
      %3080 = vmatprep.subr.mxu0 0.0
      %3081 = vmatpush1.msra.mxu0 %v2956
      %3082 = vmatprep.subr.mxu0 0.0
      %3083 = vmatpush1.msra.mxu0 %v3032
      %3084 = vmatprep.subr.mxu0 0.0
      %3085 = vmatpush1.msra.mxu0 0.0
      %3086 = vmatprep.subr.mxu0 0.0
      %3087 = vmatpush1.msra.mxu0 0.0
      %3088 = vmatprep.subr.mxu0 0.0
      %3089 = vmatpush1.msra.mxu0 0.0
      %3090 = vmatprep.subr.mxu0 0.0
      %3091 = vmatpush1.msra.mxu0 0.0
      %3092 = vmatprep.subr.mxu0 0.0
      %3093 = vmatpush1.msra.mxu0 0.0
      %3094 = vmatprep.subr.mxu0 0.0
      %3095 = vmatpush1.msra.mxu0 0.0
      %3096 = vmatprep.subr.mxu0 0.0
      %3097 = vmatpush1.msra.mxu0 0.0
      %3098 = vmatprep.mubr.f32.mxu0 %v2992
      %3099 = vmatmul.mubr.f32.gmra.mrb[0].mxu0 %v2964
      %v3100 = vpop.f32.mrb[0].mxu0
      %v3101 = vadd.f32 0.0, %v3100
      %v3102 = vpop.f32.mrb[0].mxu0
      %3103 = vmatprep.mubr.f32.mxu0 %v2995
      %3104 = vmatmul.mubr.f32.gmra.mrb[0].mxu0 %v2966
      %v3105 = vpop.f32.mrb[0].mxu0
      %v3106 = vadd.f32 0.0, %v3105
      %v3107 = vpop.f32.mrb[0].mxu0
      %3108 = vmatprep.mubr.f32.mxu0 %v2998
      %3109 = vmatmul.mubr.f32.gmra.mrb[0].mxu0 %v2968
      %v3110 = vpop.f32.mrb[0].mxu0
      %v3111 = vadd.f32 0.0, %v3110
      %v3112 = vpop.f32.mrb[0].mxu0
      %3113 = vmatprep.mubr.f32.mxu0 %v3001
      %3114 = vmatmul.mubr.f32.gmra.mrb[0].mxu0 %v2970
      %v3115 = vpop.f32.mrb[0].mxu0
      %v3116 = vadd.f32 0.0, %v3115
      %v3117 = vpop.f32.mrb[0].mxu0
      %3118 = vmatprep.mubr.f32.mxu0 %v3004
      %3119 = vmatmul.mubr.f32.gmra.mrb[0].mxu0 %v2972
      %v3120 = vpop.f32.mrb[0].mxu0
      %v3121 = vadd.f32 0.0, %v3120
      %v3122 = vpop.f32.mrb[0].mxu0
      %3123 = vmatprep.mubr.f32.mxu0 %v3007
      %3124 = vmatmul.mubr.f32.gmra.mrb[0].mxu0 %v2974
      %v3125 = vpop.f32.mrb[0].mxu0
      %v3126 = vadd.f32 0.0, %v3125
      %v3127 = vpop.f32.mrb[0].mxu0
      %3128 = vmatprep.mubr.f32.mxu0 %v3010
      %3129 = vmatmul.mubr.f32.gmra.mrb[0].mxu0 %v2976
      %v3130 = vpop.f32.mrb[0].mxu0
      %v3131 = vadd.f32 0.0, %v3130
      %v3132 = vpop.f32.mrb[0].mxu0
      %3133 = vmatprep.mubr.f32.mxu0 %v3013
      %3134 = vmatmul.mubr.f32.gmra.mrb[0].mxu0 %v2978
      %v3135 = vpop.f32.mrb[0].mxu0
      %v3136 = vadd.f32 0.0, %v3135
      %v3137 = vpop.f32.mrb[0].mxu0
      %3138 = vmatprep.mubr.f32.mxu0 %v3016
      %3139 = vmatmul.mubr.f32.gmra.mrb[0].mxu0 %v2980
      %v3140 = vpop.f32.mrb[0].mxu0
      %v3141 = vadd.f32 0.0, %v3140
      %v3142 = vpop.f32.mrb[0].mxu0
      %3143 = vmatprep.mubr.f32.mxu0 %v3019
      %3144 = vmatmul.mubr.f32.gmra.mrb[0].mxu0 %v2982
      %v3145 = vpop.f32.mrb[0].mxu0
      %v3146 = vadd.f32 0.0, %v3145
      %v3147 = vpop.f32.mrb[0].mxu0
      %3148 = vmatprep.mubr.f32.mxu0 %v3022
      %3149 = vmatmul.mubr.f32.gmra.mrb[0].mxu0 %v2984
      %v3150 = vpop.f32.mrb[0].mxu0
      %v3151 = vadd.f32 0.0, %v3150
      %v3152 = vpop.f32.mrb[0].mxu0
      %3153 = vmatprep.mubr.f32.mxu0 %v3025
      %3154 = vmatmul.mubr.f32.gmra.mrb[0].mxu0 %v2986
      %v3155 = vpop.f32.mrb[0].mxu0
      %v3156 = vadd.f32 0.0, %v3155
      %v3157 = vpop.f32.mrb[0].mxu0
      %3158 = vmatprep.mubr.f32.mxu0 %v3028
      %3159 = vmatmul.mubr.f32.gmra.mrb[0].mxu0 %v2988
      %v3160 = vpop.f32.mrb[0].mxu0
      %v3161 = vadd.f32 0.0, %v3160
      %v3162 = vpop.f32.mrb[0].mxu0
      %3163 = vdwg.mxu0
      %3171 = vrot.lane.b32.xlu0 %v3101, 1
      %v3172 = vpop.permute.xlu0 %3171
      %3173 = vrot.lane.b32.xlu0 %v3106, 1
      %v3174 = vpop.permute.xlu0 %3173
      %3175 = vrot.lane.b32.xlu0 %v3111, 1
      %v3176 = vpop.permute.xlu0 %3175
      %3177 = vrot.lane.b32.xlu0 %v3116, 1
      %v3178 = vpop.permute.xlu0 %3177
      %3179 = vrot.lane.b32.xlu0 %v3121, 1
      %v3180 = vpop.permute.xlu0 %3179
      %3181 = vrot.lane.b32.xlu0 %v3126, 1
      %v3182 = vpop.permute.xlu0 %3181
      %3183 = vrot.lane.b32.xlu0 %v3131, 1
      %v3184 = vpop.permute.xlu0 %3183
      %s3192 = smul.u32 %s1556, 112
      %s3193 = scalar_lea.vmem [#allocation6], %s3192
      %vm3194 = vcmask 408584
      %3195 = vst.msk [vmem:[%s3193 + $0x1] sm:$0xff] %vm3194, %v3172
      %3196 = vst.msk [vmem:[%s3193 + $0x9] sm:$0xff] %vm3194, %v3174
      %3197 = vst.msk [vmem:[%s3193 + $0x11] sm:$0xff] %vm3194, %v3176
      %3198 = vst.msk [vmem:[%s3193 + $0x19] sm:$0xff] %vm3194, %v3178
      %3199 = vst.msk [vmem:[%s3193 + $0x21] sm:$0xff] %vm3194, %v3180
      %3200 = vst.msk [vmem:[%s3193 + $0x29] sm:$0xff] %vm3194, %v3182
      %vm3201 = vcmask 401416
      %3202 = vst.msk [vmem:[%s3193 + $0x31] sm:$0x1] %vm3201, %v3184
      %3209 = vrot.lane.b32.xlu0 %v3136, 1
      %v3210 = vpop.permute.xlu0 %3209
      %3211 = vrot.lane.b32.xlu0 %v3141, 1
      %v3212 = vpop.permute.xlu0 %3211
      %3213 = vrot.lane.b32.xlu0 %v3146, 1
      %v3214 = vpop.permute.xlu0 %3213
      %3215 = vrot.lane.b32.xlu0 %v3151, 1
      %v3216 = vpop.permute.xlu0 %3215
      %3217 = vrot.lane.b32.xlu0 %v3156, 1
      %v3218 = vpop.permute.xlu0 %3217
      %3219 = vrot.lane.b32.xlu0 %v3161, 1
      %v3220 = vpop.permute.xlu0 %3219
      %s3227 = sadd.s32 56, %s3192
      %s3228 = scalar_lea.vmem [#allocation6], %s3227
      %vm3229 = vcmask 408585
      %3230 = vst.msk [vmem:[%s3228] sm:$0xfe] %vm3229, %v3184
      %3231 = vst.msk [vmem:[%s3228 + $0x8] sm:$0xff] %vm3194, %v3210
      %3232 = vst.msk [vmem:[%s3228 + $0x10] sm:$0xff] %vm3194, %v3212
      %3233 = vst.msk [vmem:[%s3228 + $0x18] sm:$0xff] %vm3194, %v3214
      %3234 = vst.msk [vmem:[%s3228 + $0x20] sm:$0xff] %vm3194, %v3216
      %3235 = vst.msk [vmem:[%s3228 + $0x28] sm:$0xff] %vm3194, %v3218
      %vm3236 = vcmask 402440
      %3237 = vst.msk [vmem:[%s3228 + $0x30] sm:$0x3] %vm3236, %v3220
    $region145: #{_lambda_.1} parent=1 // loop_footer
      %s1560 = sadd.s32 1, %s1556
    $region146: #{_lambda_.1} parent=1 // loop_footer_branch
      %1555 = sbr.rel target = $region142
    $region147: #{_lambda_.1} parent=1 // loop_exit
      _
    loop: start=0, step=1, limit=12
    $region148: #{_lambda_.1} parent=1 // loop_pre_header
      _
    $region149: #{_lambda_.1} parent=1 // loop_header
      %s3239 = sphi 0, %s3243
      %p3240 = scmp.ge.s32.totalorder %s3239, 12
    $region150: #{_lambda_.1} parent=1 // loop_header_branch
      %3242 = sbr.rel (%p3240) target = $region154
    $region151: #{_lambda_.1} parent=1 // loop_body
      %s3244 = sld [smem:[#allocation24 + %s3239]]
      %v3245 = vstv %s3244
      %v3246 = vadd.f32 %v3245, 0.0
      %s3247 = smul.u32 %s3239, 128
      %s3248 = sld [smem:[#allocation23 + %s3247]]
      %s3249 = smul.u32 %s3239, 112
      %s3250 = scalar_lea.vmem [#allocation6], %s3249
      %v3251 = vld [vmem:[%s3250] sm:$0xff]
      %v3252 = vld [vmem:[%s3250 + $0x8] sm:$0xff]
      %v3253 = vld [vmem:[%s3250 + $0x10] sm:$0xff]
      %v3254 = vld [vmem:[%s3250 + $0x18] sm:$0xff]
      %v3255 = vld [vmem:[%s3250 + $0x20] sm:$0xff]
      %v3256 = vld [vmem:[%s3250 + $0x28] sm:$0xff]
      %v3257 = vld [vmem:[%s3250 + $0x30] sm:$0x1]
      %v3258 = vstv %s3248
      %v3259 = vmul.f32 %v3258, %v3251
      %v3260 = vmul.f32 %v3258, %v3252
      %v3261 = vmul.f32 %v3258, %v3253
      %v3262 = vmul.f32 %v3258, %v3254
      %v3263 = vmul.f32 %v3258, %v3255
      %v3264 = vmul.f32 %v3258, %v3256
      %v3265 = vmul.f32 %v3258, %v3257
      %v3266 = vadd.f32 %v3246, %v3259
      %v3267 = vadd.f32 %v3246, %v3260
      %v3268 = vadd.f32 %v3246, %v3261
      %v3269 = vadd.f32 %v3246, %v3262
      %v3270 = vadd.f32 %v3246, %v3263
      %v3271 = vadd.f32 %v3246, %v3264
      %v3272 = vadd.f32 %v3246, %v3265
      %s3273 = sadd.s32 %s3247, 1
      %s3274 = sld [smem:[#allocation23 + %s3273]]
      %v3275 = vstv %s3274
      %v3276 = vmul.f32 %v3275, %v3251
      %v3277 = vmul.f32 %v3275, %v3252
      %v3278 = vmul.f32 %v3275, %v3253
      %v3279 = vmul.f32 %v3275, %v3254
      %v3280 = vmul.f32 %v3275, %v3255
      %v3281 = vmul.f32 %v3275, %v3256
      %v3282 = vmul.f32 %v3275, %v3257
      %3290 = vrot.lane.b32.xlu0 %v3276, 127
      %v3291 = vpop.permute.xlu0 %3290
      %3292 = vrot.lane.b32.xlu0 %v3277, 127
      %v3293 = vpop.permute.xlu0 %3292
      %3294 = vrot.lane.b32.xlu0 %v3278, 127
      %v3295 = vpop.permute.xlu0 %3294
      %3296 = vrot.lane.b32.xlu0 %v3279, 127
      %v3297 = vpop.permute.xlu0 %3296
      %3298 = vrot.lane.b32.xlu0 %v3280, 127
      %v3299 = vpop.permute.xlu0 %3298
      %3300 = vrot.lane.b32.xlu0 %v3281, 127
      %v3301 = vpop.permute.xlu0 %3300
      %3302 = vrot.lane.b32.xlu0 %v3282, 127
      %v3303 = vpop.permute.xlu0 %3302
      %v3311 = vadd.f32 %v3266, %v3291
      %v3312 = vadd.f32 %v3267, %v3293
      %v3313 = vadd.f32 %v3268, %v3295
      %v3314 = vadd.f32 %v3269, %v3297
      %v3315 = vadd.f32 %v3270, %v3299
      %v3316 = vadd.f32 %v3271, %v3301
      %v3317 = vadd.f32 %v3272, %v3303
      %s3318 = sadd.s32 %s3247, 2
      %s3319 = sld [smem:[#allocation23 + %s3318]]
      %v3320 = vstv %s3319
      %v3321 = vmul.f32 %v3320, %v3251
      %v3322 = vmul.f32 %v3320, %v3252
      %v3323 = vmul.f32 %v3320, %v3253
      %v3324 = vmul.f32 %v3320, %v3254
      %v3325 = vmul.f32 %v3320, %v3255
      %v3326 = vmul.f32 %v3320, %v3256
      %v3327 = vmul.f32 %v3320, %v3257
      %3335 = vrot.lane.b32.xlu0 %v3321, 126
      %v3336 = vpop.permute.xlu0 %3335
      %3337 = vrot.lane.b32.xlu0 %v3322, 126
      %v3338 = vpop.permute.xlu0 %3337
      %3339 = vrot.lane.b32.xlu0 %v3323, 126
      %v3340 = vpop.permute.xlu0 %3339
      %3341 = vrot.lane.b32.xlu0 %v3324, 126
      %v3342 = vpop.permute.xlu0 %3341
      %3343 = vrot.lane.b32.xlu0 %v3325, 126
      %v3344 = vpop.permute.xlu0 %3343
      %3345 = vrot.lane.b32.xlu0 %v3326, 126
      %v3346 = vpop.permute.xlu0 %3345
      %3347 = vrot.lane.b32.xlu0 %v3327, 126
      %v3348 = vpop.permute.xlu0 %3347
      %v3356 = vadd.f32 %v3311, %v3336
      %v3357 = vadd.f32 %v3312, %v3338
      %v3358 = vadd.f32 %v3313, %v3340
      %v3359 = vadd.f32 %v3314, %v3342
      %v3360 = vadd.f32 %v3315, %v3344
      %v3361 = vadd.f32 %v3316, %v3346
      %v3362 = vadd.f32 %v3317, %v3348
      %s3363 = sadd.s32 %s3247, 3
      %s3364 = sld [smem:[#allocation23 + %s3363]]
      %v3365 = vld [vmem:[%s3250 + $0x1] sm:$0xff]
      %v3366 = vld [vmem:[%s3250 + $0x9] sm:$0xff]
      %v3367 = vld [vmem:[%s3250 + $0x11] sm:$0xff]
      %v3368 = vld [vmem:[%s3250 + $0x19] sm:$0xff]
      %v3369 = vld [vmem:[%s3250 + $0x21] sm:$0xff]
      %v3370 = vld [vmem:[%s3250 + $0x29] sm:$0xff]
      %v3371 = vld [vmem:[%s3250 + $0x31] sm:$0x1]
      %v3372 = vstv %s3364
      %v3373 = vmul.f32 %v3372, %v3365
      %v3374 = vmul.f32 %v3372, %v3366
      %v3375 = vmul.f32 %v3372, %v3367
      %v3376 = vmul.f32 %v3372, %v3368
      %v3377 = vmul.f32 %v3372, %v3369
      %v3378 = vmul.f32 %v3372, %v3370
      %v3379 = vmul.f32 %v3372, %v3371
      %v3380 = vadd.f32 %v3356, %v3373
      %v3381 = vadd.f32 %v3357, %v3374
      %v3382 = vadd.f32 %v3358, %v3375
      %v3383 = vadd.f32 %v3359, %v3376
      %v3384 = vadd.f32 %v3360, %v3377
      %v3385 = vadd.f32 %v3361, %v3378
      %v3386 = vadd.f32 %v3362, %v3379
      %s3387 = sadd.s32 %s3247, 4
      %s3388 = sld [smem:[#allocation23 + %s3387]]
      %v3389 = vstv %s3388
      %v3390 = vmul.f32 %v3389, %v3365
      %v3391 = vmul.f32 %v3389, %v3366
      %v3392 = vmul.f32 %v3389, %v3367
      %v3393 = vmul.f32 %v3389, %v3368
      %v3394 = vmul.f32 %v3389, %v3369
      %v3395 = vmul.f32 %v3389, %v3370
      %v3396 = vmul.f32 %v3389, %v3371
      %3404 = vrot.lane.b32.xlu0 %v3390, 127
      %v3405 = vpop.permute.xlu0 %3404
      %3406 = vrot.lane.b32.xlu0 %v3391, 127
      %v3407 = vpop.permute.xlu0 %3406
      %3408 = vrot.lane.b32.xlu0 %v3392, 127
      %v3409 = vpop.permute.xlu0 %3408
      %3410 = vrot.lane.b32.xlu0 %v3393, 127
      %v3411 = vpop.permute.xlu0 %3410
      %3412 = vrot.lane.b32.xlu0 %v3394, 127
      %v3413 = vpop.permute.xlu0 %3412
      %3414 = vrot.lane.b32.xlu0 %v3395, 127
      %v3415 = vpop.permute.xlu0 %3414
      %3416 = vrot.lane.b32.xlu0 %v3396, 127
      %v3417 = vpop.permute.xlu0 %3416
      %v3425 = vadd.f32 %v3380, %v3405
      %v3426 = vadd.f32 %v3381, %v3407
      %v3427 = vadd.f32 %v3382, %v3409
      %v3428 = vadd.f32 %v3383, %v3411
      %v3429 = vadd.f32 %v3384, %v3413
      %v3430 = vadd.f32 %v3385, %v3415
      %v3431 = vadd.f32 %v3386, %v3417
      %s3432 = sadd.s32 %s3247, 5
      %s3433 = sld [smem:[#allocation23 + %s3432]]
      %v3434 = vstv %s3433
      %v3435 = vmul.f32 %v3434, %v3365
      %v3436 = vmul.f32 %v3434, %v3366
      %v3437 = vmul.f32 %v3434, %v3367
      %v3438 = vmul.f32 %v3434, %v3368
      %v3439 = vmul.f32 %v3434, %v3369
      %v3440 = vmul.f32 %v3434, %v3370
      %v3441 = vmul.f32 %v3434, %v3371
      %3449 = vrot.lane.b32.xlu0 %v3435, 126
      %v3450 = vpop.permute.xlu0 %3449
      %3451 = vrot.lane.b32.xlu0 %v3436, 126
      %v3452 = vpop.permute.xlu0 %3451
      %3453 = vrot.lane.b32.xlu0 %v3437, 126
      %v3454 = vpop.permute.xlu0 %3453
      %3455 = vrot.lane.b32.xlu0 %v3438, 126
      %v3456 = vpop.permute.xlu0 %3455
      %3457 = vrot.lane.b32.xlu0 %v3439, 126
      %v3458 = vpop.permute.xlu0 %3457
      %3459 = vrot.lane.b32.xlu0 %v3440, 126
      %v3460 = vpop.permute.xlu0 %3459
      %3461 = vrot.lane.b32.xlu0 %v3441, 126
      %v3462 = vpop.permute.xlu0 %3461
      %v3470 = vadd.f32 %v3425, %v3450
      %v3471 = vadd.f32 %v3426, %v3452
      %v3472 = vadd.f32 %v3427, %v3454
      %v3473 = vadd.f32 %v3428, %v3456
      %v3474 = vadd.f32 %v3429, %v3458
      %v3475 = vadd.f32 %v3430, %v3460
      %v3476 = vadd.f32 %v3431, %v3462
      %s3477 = sadd.s32 %s3247, 6
      %s3478 = sld [smem:[#allocation23 + %s3477]]
      %v3479 = vld [vmem:[%s3250 + $0x2] sm:$0xff]
      %v3480 = vld [vmem:[%s3250 + $0xa] sm:$0xff]
      %v3481 = vld [vmem:[%s3250 + $0x12] sm:$0xff]
      %v3482 = vld [vmem:[%s3250 + $0x1a] sm:$0xff]
      %v3483 = vld [vmem:[%s3250 + $0x22] sm:$0xff]
      %v3484 = vld [vmem:[%s3250 + $0x2a] sm:$0xff]
      %v3485 = vld [vmem:[%s3250 + $0x32] sm:$0x1]
      %v3486 = vstv %s3478
      %v3487 = vmul.f32 %v3486, %v3479
      %v3488 = vmul.f32 %v3486, %v3480
      %v3489 = vmul.f32 %v3486, %v3481
      %v3490 = vmul.f32 %v3486, %v3482
      %v3491 = vmul.f32 %v3486, %v3483
      %v3492 = vmul.f32 %v3486, %v3484
      %v3493 = vmul.f32 %v3486, %v3485
      %v3494 = vadd.f32 %v3470, %v3487
      %v3495 = vadd.f32 %v3471, %v3488
      %v3496 = vadd.f32 %v3472, %v3489
      %v3497 = vadd.f32 %v3473, %v3490
      %v3498 = vadd.f32 %v3474, %v3491
      %v3499 = vadd.f32 %v3475, %v3492
      %v3500 = vadd.f32 %v3476, %v3493
      %s3501 = sadd.s32 %s3247, 7
      %s3502 = sld [smem:[#allocation23 + %s3501]]
      %v3503 = vstv %s3502
      %v3504 = vmul.f32 %v3503, %v3479
      %v3505 = vmul.f32 %v3503, %v3480
      %v3506 = vmul.f32 %v3503, %v3481
      %v3507 = vmul.f32 %v3503, %v3482
      %v3508 = vmul.f32 %v3503, %v3483
      %v3509 = vmul.f32 %v3503, %v3484
      %v3510 = vmul.f32 %v3503, %v3485
      %3518 = vrot.lane.b32.xlu0 %v3504, 127
      %v3519 = vpop.permute.xlu0 %3518
      %3520 = vrot.lane.b32.xlu0 %v3505, 127
      %v3521 = vpop.permute.xlu0 %3520
      %3522 = vrot.lane.b32.xlu0 %v3506, 127
      %v3523 = vpop.permute.xlu0 %3522
      %3524 = vrot.lane.b32.xlu0 %v3507, 127
      %v3525 = vpop.permute.xlu0 %3524
      %3526 = vrot.lane.b32.xlu0 %v3508, 127
      %v3527 = vpop.permute.xlu0 %3526
      %3528 = vrot.lane.b32.xlu0 %v3509, 127
      %v3529 = vpop.permute.xlu0 %3528
      %3530 = vrot.lane.b32.xlu0 %v3510, 127
      %v3531 = vpop.permute.xlu0 %3530
      %v3539 = vadd.f32 %v3494, %v3519
      %v3540 = vadd.f32 %v3495, %v3521
      %v3541 = vadd.f32 %v3496, %v3523
      %v3542 = vadd.f32 %v3497, %v3525
      %v3543 = vadd.f32 %v3498, %v3527
      %v3544 = vadd.f32 %v3499, %v3529
      %v3545 = vadd.f32 %v3500, %v3531
      %s3546 = sadd.s32 %s3247, 8
      %s3547 = sld [smem:[#allocation23 + %s3546]]
      %v3548 = vstv %s3547
      %v3549 = vmul.f32 %v3548, %v3479
      %v3550 = vmul.f32 %v3548, %v3480
      %v3551 = vmul.f32 %v3548, %v3481
      %v3552 = vmul.f32 %v3548, %v3482
      %v3553 = vmul.f32 %v3548, %v3483
      %v3554 = vmul.f32 %v3548, %v3484
      %v3555 = vmul.f32 %v3548, %v3485
      %3563 = vrot.lane.b32.xlu0 %v3549, 126
      %v3564 = vpop.permute.xlu0 %3563
      %3565 = vrot.lane.b32.xlu0 %v3550, 126
      %v3566 = vpop.permute.xlu0 %3565
      %3567 = vrot.lane.b32.xlu0 %v3551, 126
      %v3568 = vpop.permute.xlu0 %3567
      %3569 = vrot.lane.b32.xlu0 %v3552, 126
      %v3570 = vpop.permute.xlu0 %3569
      %3571 = vrot.lane.b32.xlu0 %v3553, 126
      %v3572 = vpop.permute.xlu0 %3571
      %3573 = vrot.lane.b32.xlu0 %v3554, 126
      %v3574 = vpop.permute.xlu0 %3573
      %3575 = vrot.lane.b32.xlu0 %v3555, 126
      %v3576 = vpop.permute.xlu0 %3575
      %v3584 = vadd.f32 %v3539, %v3564
      %v3585 = vadd.f32 %v3540, %v3566
      %v3586 = vadd.f32 %v3541, %v3568
      %v3587 = vadd.f32 %v3542, %v3570
      %v3588 = vadd.f32 %v3543, %v3572
      %v3589 = vadd.f32 %v3544, %v3574
      %v3590 = vadd.f32 %v3545, %v3576
      %s3591 = scalar_lea.vmem [#allocation7], %s3249
      %vm3592 = vcmask 400384
      %3593 = vst.msk [vmem:[%s3591] sm:$0xff] %vm3592, %v3584
      %3594 = vst.msk [vmem:[%s3591 + $0x8] sm:$0xff] %vm3592, %v3585
      %3595 = vst.msk [vmem:[%s3591 + $0x10] sm:$0xff] %vm3592, %v3586
      %3596 = vst.msk [vmem:[%s3591 + $0x18] sm:$0xff] %vm3592, %v3587
      %3597 = vst.msk [vmem:[%s3591 + $0x20] sm:$0xff] %vm3592, %v3588
      %3598 = vst.msk [vmem:[%s3591 + $0x28] sm:$0xff] %vm3592, %v3589
      %vm3599 = vcmask 393216
      %3600 = vst.msk [vmem:[%s3591 + $0x30] sm:$0x1] %vm3599, %v3590
      %s3601 = sld [smem:[#allocation24 + %s3239]]
      %v3602 = vstv %s3601
      %v3603 = vadd.f32 %v3602, 0.0
      %s3604 = sld [smem:[#allocation23 + %s3247]]
      %s3605 = sadd.s32 56, %s3249
      %s3606 = scalar_lea.vmem [#allocation6], %s3605
      %v3607 = vld [vmem:[%s3606] sm:$0xff]
      %v3608 = vld [vmem:[%s3606 + $0x8] sm:$0xff]
      %v3609 = vld [vmem:[%s3606 + $0x10] sm:$0xff]
      %v3610 = vld [vmem:[%s3606 + $0x18] sm:$0xff]
      %v3611 = vld [vmem:[%s3606 + $0x20] sm:$0xff]
      %v3612 = vld [vmem:[%s3606 + $0x28] sm:$0xff]
      %v3613 = vld [vmem:[%s3606 + $0x30] sm:$0x1]
      %v3614 = vstv %s3604
      %v3615 = vmul.f32 %v3614, %v3607
      %v3616 = vmul.f32 %v3614, %v3608
      %v3617 = vmul.f32 %v3614, %v3609
      %v3618 = vmul.f32 %v3614, %v3610
      %v3619 = vmul.f32 %v3614, %v3611
      %v3620 = vmul.f32 %v3614, %v3612
      %v3621 = vmul.f32 %v3614, %v3613
      %v3622 = vadd.f32 %v3603, %v3615
      %v3623 = vadd.f32 %v3603, %v3616
      %v3624 = vadd.f32 %v3603, %v3617
      %v3625 = vadd.f32 %v3603, %v3618
      %v3626 = vadd.f32 %v3603, %v3619
      %v3627 = vadd.f32 %v3603, %v3620
      %v3628 = vadd.f32 %v3603, %v3621
      %s3629 = sld [smem:[#allocation23 + %s3273]]
      %v3630 = vstv %s3629
      %v3631 = vmul.f32 %v3630, %v3607
      %v3632 = vmul.f32 %v3630, %v3608
      %v3633 = vmul.f32 %v3630, %v3609
      %v3634 = vmul.f32 %v3630, %v3610
      %v3635 = vmul.f32 %v3630, %v3611
      %v3636 = vmul.f32 %v3630, %v3612
      %v3637 = vmul.f32 %v3630, %v3613
      %3645 = vrot.lane.b32.xlu0 %v3631, 127
      %v3646 = vpop.permute.xlu0 %3645
      %3647 = vrot.lane.b32.xlu0 %v3632, 127
      %v3648 = vpop.permute.xlu0 %3647
      %3649 = vrot.lane.b32.xlu0 %v3633, 127
      %v3650 = vpop.permute.xlu0 %3649
      %3651 = vrot.lane.b32.xlu0 %v3634, 127
      %v3652 = vpop.permute.xlu0 %3651
      %3653 = vrot.lane.b32.xlu0 %v3635, 127
      %v3654 = vpop.permute.xlu0 %3653
      %3655 = vrot.lane.b32.xlu0 %v3636, 127
      %v3656 = vpop.permute.xlu0 %3655
      %3657 = vrot.lane.b32.xlu0 %v3637, 127
      %v3658 = vpop.permute.xlu0 %3657
      %v3666 = vadd.f32 %v3622, %v3646
      %v3667 = vadd.f32 %v3623, %v3648
      %v3668 = vadd.f32 %v3624, %v3650
      %v3669 = vadd.f32 %v3625, %v3652
      %v3670 = vadd.f32 %v3626, %v3654
      %v3671 = vadd.f32 %v3627, %v3656
      %v3672 = vadd.f32 %v3628, %v3658
      %s3673 = sld [smem:[#allocation23 + %s3318]]
      %v3674 = vstv %s3673
      %v3675 = vmul.f32 %v3674, %v3607
      %v3676 = vmul.f32 %v3674, %v3608
      %v3677 = vmul.f32 %v3674, %v3609
      %v3678 = vmul.f32 %v3674, %v3610
      %v3679 = vmul.f32 %v3674, %v3611
      %v3680 = vmul.f32 %v3674, %v3612
      %v3681 = vmul.f32 %v3674, %v3613
      %3689 = vrot.lane.b32.xlu0 %v3675, 126
      %v3690 = vpop.permute.xlu0 %3689
      %3691 = vrot.lane.b32.xlu0 %v3676, 126
      %v3692 = vpop.permute.xlu0 %3691
      %3693 = vrot.lane.b32.xlu0 %v3677, 126
      %v3694 = vpop.permute.xlu0 %3693
      %3695 = vrot.lane.b32.xlu0 %v3678, 126
      %v3696 = vpop.permute.xlu0 %3695
      %3697 = vrot.lane.b32.xlu0 %v3679, 126
      %v3698 = vpop.permute.xlu0 %3697
      %3699 = vrot.lane.b32.xlu0 %v3680, 126
      %v3700 = vpop.permute.xlu0 %3699
      %3701 = vrot.lane.b32.xlu0 %v3681, 126
      %v3702 = vpop.permute.xlu0 %3701
      %v3710 = vadd.f32 %v3666, %v3690
      %v3711 = vadd.f32 %v3667, %v3692
      %v3712 = vadd.f32 %v3668, %v3694
      %v3713 = vadd.f32 %v3669, %v3696
      %v3714 = vadd.f32 %v3670, %v3698
      %v3715 = vadd.f32 %v3671, %v3700
      %v3716 = vadd.f32 %v3672, %v3702
      %s3717 = sld [smem:[#allocation23 + %s3363]]
      %v3718 = vld [vmem:[%s3606 + $0x1] sm:$0xff]
      %v3719 = vld [vmem:[%s3606 + $0x9] sm:$0xff]
      %v3720 = vld [vmem:[%s3606 + $0x11] sm:$0xff]
      %v3721 = vld [vmem:[%s3606 + $0x19] sm:$0xff]
      %v3722 = vld [vmem:[%s3606 + $0x21] sm:$0xff]
      %v3723 = vld [vmem:[%s3606 + $0x29] sm:$0xff]
      %v3724 = vld [vmem:[%s3606 + $0x31] sm:$0x1]
      %v3725 = vstv %s3717
      %v3726 = vmul.f32 %v3725, %v3718
      %v3727 = vmul.f32 %v3725, %v3719
      %v3728 = vmul.f32 %v3725, %v3720
      %v3729 = vmul.f32 %v3725, %v3721
      %v3730 = vmul.f32 %v3725, %v3722
      %v3731 = vmul.f32 %v3725, %v3723
      %v3732 = vmul.f32 %v3725, %v3724
      %v3733 = vadd.f32 %v3710, %v3726
      %v3734 = vadd.f32 %v3711, %v3727
      %v3735 = vadd.f32 %v3712, %v3728
      %v3736 = vadd.f32 %v3713, %v3729
      %v3737 = vadd.f32 %v3714, %v3730
      %v3738 = vadd.f32 %v3715, %v3731
      %v3739 = vadd.f32 %v3716, %v3732
      %s3740 = sld [smem:[#allocation23 + %s3387]]
      %v3741 = vstv %s3740
      %v3742 = vmul.f32 %v3741, %v3718
      %v3743 = vmul.f32 %v3741, %v3719
      %v3744 = vmul.f32 %v3741, %v3720
      %v3745 = vmul.f32 %v3741, %v3721
      %v3746 = vmul.f32 %v3741, %v3722
      %v3747 = vmul.f32 %v3741, %v3723
      %v3748 = vmul.f32 %v3741, %v3724
      %3756 = vrot.lane.b32.xlu0 %v3742, 127
      %v3757 = vpop.permute.xlu0 %3756
      %3758 = vrot.lane.b32.xlu0 %v3743, 127
      %v3759 = vpop.permute.xlu0 %3758
      %3760 = vrot.lane.b32.xlu0 %v3744, 127
      %v3761 = vpop.permute.xlu0 %3760
      %3762 = vrot.lane.b32.xlu0 %v3745, 127
      %v3763 = vpop.permute.xlu0 %3762
      %3764 = vrot.lane.b32.xlu0 %v3746, 127
      %v3765 = vpop.permute.xlu0 %3764
      %3766 = vrot.lane.b32.xlu0 %v3747, 127
      %v3767 = vpop.permute.xlu0 %3766
      %3768 = vrot.lane.b32.xlu0 %v3748, 127
      %v3769 = vpop.permute.xlu0 %3768
      %v3777 = vadd.f32 %v3733, %v3757
      %v3778 = vadd.f32 %v3734, %v3759
      %v3779 = vadd.f32 %v3735, %v3761
      %v3780 = vadd.f32 %v3736, %v3763
      %v3781 = vadd.f32 %v3737, %v3765
      %v3782 = vadd.f32 %v3738, %v3767
      %v3783 = vadd.f32 %v3739, %v3769
      %s3784 = sld [smem:[#allocation23 + %s3432]]
      %v3785 = vstv %s3784
      %v3786 = vmul.f32 %v3785, %v3718
      %v3787 = vmul.f32 %v3785, %v3719
      %v3788 = vmul.f32 %v3785, %v3720
      %v3789 = vmul.f32 %v3785, %v3721
      %v3790 = vmul.f32 %v3785, %v3722
      %v3791 = vmul.f32 %v3785, %v3723
      %v3792 = vmul.f32 %v3785, %v3724
      %3800 = vrot.lane.b32.xlu0 %v3786, 126
      %v3801 = vpop.permute.xlu0 %3800
      %3802 = vrot.lane.b32.xlu0 %v3787, 126
      %v3803 = vpop.permute.xlu0 %3802
      %3804 = vrot.lane.b32.xlu0 %v3788, 126
      %v3805 = vpop.permute.xlu0 %3804
      %3806 = vrot.lane.b32.xlu0 %v3789, 126
      %v3807 = vpop.permute.xlu0 %3806
      %3808 = vrot.lane.b32.xlu0 %v3790, 126
      %v3809 = vpop.permute.xlu0 %3808
      %3810 = vrot.lane.b32.xlu0 %v3791, 126
      %v3811 = vpop.permute.xlu0 %3810
      %3812 = vrot.lane.b32.xlu0 %v3792, 126
      %v3813 = vpop.permute.xlu0 %3812
      %v3821 = vadd.f32 %v3777, %v3801
      %v3822 = vadd.f32 %v3778, %v3803
      %v3823 = vadd.f32 %v3779, %v3805
      %v3824 = vadd.f32 %v3780, %v3807
      %v3825 = vadd.f32 %v3781, %v3809
      %v3826 = vadd.f32 %v3782, %v3811
      %v3827 = vadd.f32 %v3783, %v3813
      %s3828 = sld [smem:[#allocation23 + %s3477]]
      %v3829 = vld [vmem:[%s3606 + $0x2] sm:$0xff]
      %v3830 = vld [vmem:[%s3606 + $0xa] sm:$0xff]
      %v3831 = vld [vmem:[%s3606 + $0x12] sm:$0xff]
      %v3832 = vld [vmem:[%s3606 + $0x1a] sm:$0xff]
      %v3833 = vld [vmem:[%s3606 + $0x22] sm:$0xff]
      %v3834 = vld [vmem:[%s3606 + $0x2a] sm:$0xff]
      %v3835 = vld [vmem:[%s3606 + $0x32] sm:$0x1]
      %v3836 = vstv %s3828
      %v3837 = vmul.f32 %v3836, %v3829
      %v3838 = vmul.f32 %v3836, %v3830
      %v3839 = vmul.f32 %v3836, %v3831
      %v3840 = vmul.f32 %v3836, %v3832
      %v3841 = vmul.f32 %v3836, %v3833
      %v3842 = vmul.f32 %v3836, %v3834
      %v3843 = vmul.f32 %v3836, %v3835
      %v3844 = vadd.f32 %v3821, %v3837
      %v3845 = vadd.f32 %v3822, %v3838
      %v3846 = vadd.f32 %v3823, %v3839
      %v3847 = vadd.f32 %v3824, %v3840
      %v3848 = vadd.f32 %v3825, %v3841
      %v3849 = vadd.f32 %v3826, %v3842
      %v3850 = vadd.f32 %v3827, %v3843
      %s3851 = sld [smem:[#allocation23 + %s3501]]
      %v3852 = vstv %s3851
      %v3853 = vmul.f32 %v3852, %v3829
      %v3854 = vmul.f32 %v3852, %v3830
      %v3855 = vmul.f32 %v3852, %v3831
      %v3856 = vmul.f32 %v3852, %v3832
      %v3857 = vmul.f32 %v3852, %v3833
      %v3858 = vmul.f32 %v3852, %v3834
      %v3859 = vmul.f32 %v3852, %v3835
      %3867 = vrot.lane.b32.xlu0 %v3853, 127
      %v3868 = vpop.permute.xlu0 %3867
      %3869 = vrot.lane.b32.xlu0 %v3854, 127
      %v3870 = vpop.permute.xlu0 %3869
      %3871 = vrot.lane.b32.xlu0 %v3855, 127
      %v3872 = vpop.permute.xlu0 %3871
      %3873 = vrot.lane.b32.xlu0 %v3856, 127
      %v3874 = vpop.permute.xlu0 %3873
      %3875 = vrot.lane.b32.xlu0 %v3857, 127
      %v3876 = vpop.permute.xlu0 %3875
      %3877 = vrot.lane.b32.xlu0 %v3858, 127
      %v3878 = vpop.permute.xlu0 %3877
      %3879 = vrot.lane.b32.xlu0 %v3859, 127
      %v3880 = vpop.permute.xlu0 %3879
      %v3888 = vadd.f32 %v3844, %v3868
      %v3889 = vadd.f32 %v3845, %v3870
      %v3890 = vadd.f32 %v3846, %v3872
      %v3891 = vadd.f32 %v3847, %v3874
      %v3892 = vadd.f32 %v3848, %v3876
      %v3893 = vadd.f32 %v3849, %v3878
      %v3894 = vadd.f32 %v3850, %v3880
      %s3895 = sld [smem:[#allocation23 + %s3546]]
      %v3896 = vstv %s3895
      %v3897 = vmul.f32 %v3896, %v3829
      %v3898 = vmul.f32 %v3896, %v3830
      %v3899 = vmul.f32 %v3896, %v3831
      %v3900 = vmul.f32 %v3896, %v3832
      %v3901 = vmul.f32 %v3896, %v3833
      %v3902 = vmul.f32 %v3896, %v3834
      %v3903 = vmul.f32 %v3896, %v3835
      %3911 = vrot.lane.b32.xlu0 %v3897, 126
      %v3912 = vpop.permute.xlu0 %3911
      %3913 = vrot.lane.b32.xlu0 %v3898, 126
      %v3914 = vpop.permute.xlu0 %3913
      %3915 = vrot.lane.b32.xlu0 %v3899, 126
      %v3916 = vpop.permute.xlu0 %3915
      %3917 = vrot.lane.b32.xlu0 %v3900, 126
      %v3918 = vpop.permute.xlu0 %3917
      %3919 = vrot.lane.b32.xlu0 %v3901, 126
      %v3920 = vpop.permute.xlu0 %3919
      %3921 = vrot.lane.b32.xlu0 %v3902, 126
      %v3922 = vpop.permute.xlu0 %3921
      %3923 = vrot.lane.b32.xlu0 %v3903, 126
      %v3924 = vpop.permute.xlu0 %3923
      %v3932 = vadd.f32 %v3888, %v3912
      %v3933 = vadd.f32 %v3889, %v3914
      %v3934 = vadd.f32 %v3890, %v3916
      %v3935 = vadd.f32 %v3891, %v3918
      %v3936 = vadd.f32 %v3892, %v3920
      %v3937 = vadd.f32 %v3893, %v3922
      %v3938 = vadd.f32 %v3894, %v3924
      %s3939 = scalar_lea.vmem [#allocation7], %s3605
      %3940 = vst.msk [vmem:[%s3939] sm:$0xff] %vm3592, %v3932
      %3941 = vst.msk [vmem:[%s3939 + $0x8] sm:$0xff] %vm3592, %v3933
      %3942 = vst.msk [vmem:[%s3939 + $0x10] sm:$0xff] %vm3592, %v3934
      %3943 = vst.msk [vmem:[%s3939 + $0x18] sm:$0xff] %vm3592, %v3935
      %3944 = vst.msk [vmem:[%s3939 + $0x20] sm:$0xff] %vm3592, %v3936
      %3945 = vst.msk [vmem:[%s3939 + $0x28] sm:$0xff] %vm3592, %v3937
      %3946 = vst.msk [vmem:[%s3939 + $0x30] sm:$0x1] %vm3599, %v3938
    $region152: #{_lambda_.1} parent=1 // loop_footer
      %s3243 = sadd.s32 1, %s3239
    $region153: #{_lambda_.1} parent=1 // loop_footer_branch
      %3238 = sbr.rel target = $region149
    $region154: #{_lambda_.1} parent=1 // loop_exit
      _
    %v3947 = vlaneseq
    %v3948 = vshrl.u32 %v3947, 7
    %v3949 = vlaneseq
    %v3950 = vand.u32 %v3949, 127
    %vm3951 = vcmp.eq.s32.totalorder %v3948, 0
    %vm3952 = vcmp.eq.s32.totalorder %v3950, 0
    %vm3953 = vmand %vm3951, %vm3952
    %v3954 = vsel %vm3953, 1.0, 0.0
    %vm3955 = vcmp.eq.s32.totalorder %v3950, 1
    %vm3956 = vmand %vm3951, %vm3955
    %v3957 = vsel %vm3956, 1.0, 0.0
    %vm3958 = vcmp.eq.s32.totalorder %v3950, 2
    %vm3959 = vmand %vm3951, %vm3958
    %v3960 = vsel %vm3959, 1.0, 0.0
    %vm3961 = vcmp.eq.s32.totalorder %v3950, 3
    %vm3962 = vmand %vm3951, %vm3961
    %v3963 = vsel %vm3962, 1.0, 0.0
    %vm3964 = vcmp.eq.s32.totalorder %v3948, 1
    %vm3965 = vmand %vm3964, %vm3952
    %v3966 = vsel %vm3965, 1.0, 0.0
    %vm3967 = vmand %vm3964, %vm3955
    %v3968 = vsel %vm3967, 1.0, 0.0
    %vm3969 = vmand %vm3964, %vm3958
    %v3970 = vsel %vm3969, 1.0, 0.0
    %vm3971 = vmand %vm3964, %vm3961
    %v3972 = vsel %vm3971, 1.0, 0.0
    loop: start=0, step=1, limit=32
    $region155: #{_lambda_.1} parent=1 // loop_pre_header
      _
    $region156: #{_lambda_.1} parent=1 // loop_header
      %s3974 = sphi 0, %s3978
      %p3975 = scmp.ge.s32.totalorder %s3974, 32
      %v3979 = vphi 0.0, %v6038
    $region157: #{_lambda_.1} parent=1 // loop_header_branch
      %3977 = sbr.rel (%p3975) target = $region161
    $region158: #{_lambda_.1} parent=1 // loop_body
      %s3980 = sld [smem:[#allocation27 + %s3974]]
      %v3981 = vstv %s3980
      %v3982 = vadd.f32 %v3981, 0.0
      %s3983 = smul.u32 %s3974, 128
      %s3984 = sld [smem:[#allocation26 + %s3983]]
      %v3985 = vld [vmem:[#allocation7] sm:$0xff]
      %v3986 = vld [vmem:[#allocation7 + $0x8] sm:$0xff]
      %v3987 = vld [vmem:[#allocation7 + $0x10] sm:$0xff]
      %v3988 = vld [vmem:[#allocation7 + $0x18] sm:$0xff]
      %v3989 = vld [vmem:[#allocation7 + $0x20] sm:$0xff]
      %v3990 = vld [vmem:[#allocation7 + $0x28] sm:$0xff]
      %v3991 = vld [vmem:[#allocation7 + $0x30] sm:$0x1]
      %v3992 = vstv %s3984
      %v3993 = vmul.f32 %v3992, %v3985
      %v3994 = vmul.f32 %v3992, %v3986
      %v3995 = vmul.f32 %v3992, %v3987
      %v3996 = vmul.f32 %v3992, %v3988
      %v3997 = vmul.f32 %v3992, %v3989
      %v3998 = vmul.f32 %v3992, %v3990
      %v3999 = vmul.f32 %v3992, %v3991
      %v4000 = vadd.f32 %v3982, %v3993
      %v4001 = vadd.f32 %v3982, %v3994
      %v4002 = vadd.f32 %v3982, %v3995
      %v4003 = vadd.f32 %v3982, %v3996
      %v4004 = vadd.f32 %v3982, %v3997
      %v4005 = vadd.f32 %v3982, %v3998
      %v4006 = vadd.f32 %v3982, %v3999
      %s4007 = sadd.s32 %s3983, 1
      %s4008 = sld [smem:[#allocation26 + %s4007]]
      %s4009 = scalar_lea.vmem [#allocation7], 112
      %v4010 = vld [vmem:[%s4009] sm:$0xff]
      %v4011 = vld [vmem:[%s4009 + $0x8] sm:$0xff]
      %v4012 = vld [vmem:[%s4009 + $0x10] sm:$0xff]
      %v4013 = vld [vmem:[%s4009 + $0x18] sm:$0xff]
      %v4014 = vld [vmem:[%s4009 + $0x20] sm:$0xff]
      %v4015 = vld [vmem:[%s4009 + $0x28] sm:$0xff]
      %v4016 = vld [vmem:[%s4009 + $0x30] sm:$0x1]
      %v4017 = vstv %s4008
      %v4018 = vmul.f32 %v4017, %v4010
      %v4019 = vmul.f32 %v4017, %v4011
      %v4020 = vmul.f32 %v4017, %v4012
      %v4021 = vmul.f32 %v4017, %v4013
      %v4022 = vmul.f32 %v4017, %v4014
      %v4023 = vmul.f32 %v4017, %v4015
      %v4024 = vmul.f32 %v4017, %v4016
      %v4025 = vadd.f32 %v4000, %v4018
      %v4026 = vadd.f32 %v4001, %v4019
      %v4027 = vadd.f32 %v4002, %v4020
      %v4028 = vadd.f32 %v4003, %v4021
      %v4029 = vadd.f32 %v4004, %v4022
      %v4030 = vadd.f32 %v4005, %v4023
      %v4031 = vadd.f32 %v4006, %v4024
      %s4032 = sadd.s32 %s3983, 2
      %s4033 = sld [smem:[#allocation26 + %s4032]]
      %s4034 = scalar_lea.vmem [#allocation7], 224
      %v4035 = vld [vmem:[%s4034] sm:$0xff]
      %v4036 = vld [vmem:[%s4034 + $0x8] sm:$0xff]
      %v4037 = vld [vmem:[%s4034 + $0x10] sm:$0xff]
      %v4038 = vld [vmem:[%s4034 + $0x18] sm:$0xff]
      %v4039 = vld [vmem:[%s4034 + $0x20] sm:$0xff]
      %v4040 = vld [vmem:[%s4034 + $0x28] sm:$0xff]
      %v4041 = vld [vmem:[%s4034 + $0x30] sm:$0x1]
      %v4042 = vstv %s4033
      %v4043 = vmul.f32 %v4042, %v4035
      %v4044 = vmul.f32 %v4042, %v4036
      %v4045 = vmul.f32 %v4042, %v4037
      %v4046 = vmul.f32 %v4042, %v4038
      %v4047 = vmul.f32 %v4042, %v4039
      %v4048 = vmul.f32 %v4042, %v4040
      %v4049 = vmul.f32 %v4042, %v4041
      %v4050 = vadd.f32 %v4025, %v4043
      %v4051 = vadd.f32 %v4026, %v4044
      %v4052 = vadd.f32 %v4027, %v4045
      %v4053 = vadd.f32 %v4028, %v4046
      %v4054 = vadd.f32 %v4029, %v4047
      %v4055 = vadd.f32 %v4030, %v4048
      %v4056 = vadd.f32 %v4031, %v4049
      %s4057 = sadd.s32 %s3983, 3
      %s4058 = sld [smem:[#allocation26 + %s4057]]
      %s4059 = scalar_lea.vmem [#allocation7], 336
      %v4060 = vld [vmem:[%s4059] sm:$0xff]
      %v4061 = vld [vmem:[%s4059 + $0x8] sm:$0xff]
      %v4062 = vld [vmem:[%s4059 + $0x10] sm:$0xff]
      %v4063 = vld [vmem:[%s4059 + $0x18] sm:$0xff]
      %v4064 = vld [vmem:[%s4059 + $0x20] sm:$0xff]
      %v4065 = vld [vmem:[%s4059 + $0x28] sm:$0xff]
      %v4066 = vld [vmem:[%s4059 + $0x30] sm:$0x1]
      %v4067 = vstv %s4058
      %v4068 = vmul.f32 %v4067, %v4060
      %v4069 = vmul.f32 %v4067, %v4061
      %v4070 = vmul.f32 %v4067, %v4062
      %v4071 = vmul.f32 %v4067, %v4063
      %v4072 = vmul.f32 %v4067, %v4064
      %v4073 = vmul.f32 %v4067, %v4065
      %v4074 = vmul.f32 %v4067, %v4066
      %v4075 = vadd.f32 %v4050, %v4068
      %v4076 = vadd.f32 %v4051, %v4069
      %v4077 = vadd.f32 %v4052, %v4070
      %v4078 = vadd.f32 %v4053, %v4071
      %v4079 = vadd.f32 %v4054, %v4072
      %v4080 = vadd.f32 %v4055, %v4073
      %v4081 = vadd.f32 %v4056, %v4074
      %s4082 = sadd.s32 %s3983, 4
      %s4083 = sld [smem:[#allocation26 + %s4082]]
      %s4084 = scalar_lea.vmem [#allocation7], 448
      %v4085 = vld [vmem:[%s4084] sm:$0xff]
      %v4086 = vld [vmem:[%s4084 + $0x8] sm:$0xff]
      %v4087 = vld [vmem:[%s4084 + $0x10] sm:$0xff]
      %v4088 = vld [vmem:[%s4084 + $0x18] sm:$0xff]
      %v4089 = vld [vmem:[%s4084 + $0x20] sm:$0xff]
      %v4090 = vld [vmem:[%s4084 + $0x28] sm:$0xff]
      %v4091 = vld [vmem:[%s4084 + $0x30] sm:$0x1]
      %v4092 = vstv %s4083
      %v4093 = vmul.f32 %v4092, %v4085
      %v4094 = vmul.f32 %v4092, %v4086
      %v4095 = vmul.f32 %v4092, %v4087
      %v4096 = vmul.f32 %v4092, %v4088
      %v4097 = vmul.f32 %v4092, %v4089
      %v4098 = vmul.f32 %v4092, %v4090
      %v4099 = vmul.f32 %v4092, %v4091
      %v4100 = vadd.f32 %v4075, %v4093
      %v4101 = vadd.f32 %v4076, %v4094
      %v4102 = vadd.f32 %v4077, %v4095
      %v4103 = vadd.f32 %v4078, %v4096
      %v4104 = vadd.f32 %v4079, %v4097
      %v4105 = vadd.f32 %v4080, %v4098
      %v4106 = vadd.f32 %v4081, %v4099
      %s4107 = sadd.s32 %s3983, 5
      %s4108 = sld [smem:[#allocation26 + %s4107]]
      %s4109 = scalar_lea.vmem [#allocation7], 560
      %v4110 = vld [vmem:[%s4109] sm:$0xff]
      %v4111 = vld [vmem:[%s4109 + $0x8] sm:$0xff]
      %v4112 = vld [vmem:[%s4109 + $0x10] sm:$0xff]
      %v4113 = vld [vmem:[%s4109 + $0x18] sm:$0xff]
      %v4114 = vld [vmem:[%s4109 + $0x20] sm:$0xff]
      %v4115 = vld [vmem:[%s4109 + $0x28] sm:$0xff]
      %v4116 = vld [vmem:[%s4109 + $0x30] sm:$0x1]
      %v4117 = vstv %s4108
      %v4118 = vmul.f32 %v4117, %v4110
      %v4119 = vmul.f32 %v4117, %v4111
      %v4120 = vmul.f32 %v4117, %v4112
      %v4121 = vmul.f32 %v4117, %v4113
      %v4122 = vmul.f32 %v4117, %v4114
      %v4123 = vmul.f32 %v4117, %v4115
      %v4124 = vmul.f32 %v4117, %v4116
      %v4125 = vadd.f32 %v4100, %v4118
      %v4126 = vadd.f32 %v4101, %v4119
      %v4127 = vadd.f32 %v4102, %v4120
      %v4128 = vadd.f32 %v4103, %v4121
      %v4129 = vadd.f32 %v4104, %v4122
      %v4130 = vadd.f32 %v4105, %v4123
      %v4131 = vadd.f32 %v4106, %v4124
      %s4132 = sadd.s32 %s3983, 6
      %s4133 = sld [smem:[#allocation26 + %s4132]]
      %s4134 = scalar_lea.vmem [#allocation7], 672
      %v4135 = vld [vmem:[%s4134] sm:$0xff]
      %v4136 = vld [vmem:[%s4134 + $0x8] sm:$0xff]
      %v4137 = vld [vmem:[%s4134 + $0x10] sm:$0xff]
      %v4138 = vld [vmem:[%s4134 + $0x18] sm:$0xff]
      %v4139 = vld [vmem:[%s4134 + $0x20] sm:$0xff]
      %v4140 = vld [vmem:[%s4134 + $0x28] sm:$0xff]
      %v4141 = vld [vmem:[%s4134 + $0x30] sm:$0x1]
      %v4142 = vstv %s4133
      %v4143 = vmul.f32 %v4142, %v4135
      %v4144 = vmul.f32 %v4142, %v4136
      %v4145 = vmul.f32 %v4142, %v4137
      %v4146 = vmul.f32 %v4142, %v4138
      %v4147 = vmul.f32 %v4142, %v4139
      %v4148 = vmul.f32 %v4142, %v4140
      %v4149 = vmul.f32 %v4142, %v4141
      %v4150 = vadd.f32 %v4125, %v4143
      %v4151 = vadd.f32 %v4126, %v4144
      %v4152 = vadd.f32 %v4127, %v4145
      %v4153 = vadd.f32 %v4128, %v4146
      %v4154 = vadd.f32 %v4129, %v4147
      %v4155 = vadd.f32 %v4130, %v4148
      %v4156 = vadd.f32 %v4131, %v4149
      %s4157 = sadd.s32 %s3983, 7
      %s4158 = sld [smem:[#allocation26 + %s4157]]
      %s4159 = scalar_lea.vmem [#allocation7], 784
      %v4160 = vld [vmem:[%s4159] sm:$0xff]
      %v4161 = vld [vmem:[%s4159 + $0x8] sm:$0xff]
      %v4162 = vld [vmem:[%s4159 + $0x10] sm:$0xff]
      %v4163 = vld [vmem:[%s4159 + $0x18] sm:$0xff]
      %v4164 = vld [vmem:[%s4159 + $0x20] sm:$0xff]
      %v4165 = vld [vmem:[%s4159 + $0x28] sm:$0xff]
      %v4166 = vld [vmem:[%s4159 + $0x30] sm:$0x1]
      %v4167 = vstv %s4158
      %v4168 = vmul.f32 %v4167, %v4160
      %v4169 = vmul.f32 %v4167, %v4161
      %v4170 = vmul.f32 %v4167, %v4162
      %v4171 = vmul.f32 %v4167, %v4163
      %v4172 = vmul.f32 %v4167, %v4164
      %v4173 = vmul.f32 %v4167, %v4165
      %v4174 = vmul.f32 %v4167, %v4166
      %v4175 = vadd.f32 %v4150, %v4168
      %v4176 = vadd.f32 %v4151, %v4169
      %v4177 = vadd.f32 %v4152, %v4170
      %v4178 = vadd.f32 %v4153, %v4171
      %v4179 = vadd.f32 %v4154, %v4172
      %v4180 = vadd.f32 %v4155, %v4173
      %v4181 = vadd.f32 %v4156, %v4174
      %s4182 = sadd.s32 %s3983, 8
      %s4183 = sld [smem:[#allocation26 + %s4182]]
      %s4184 = scalar_lea.vmem [#allocation7], 896
      %v4185 = vld [vmem:[%s4184] sm:$0xff]
      %v4186 = vld [vmem:[%s4184 + $0x8] sm:$0xff]
      %v4187 = vld [vmem:[%s4184 + $0x10] sm:$0xff]
      %v4188 = vld [vmem:[%s4184 + $0x18] sm:$0xff]
      %v4189 = vld [vmem:[%s4184 + $0x20] sm:$0xff]
      %v4190 = vld [vmem:[%s4184 + $0x28] sm:$0xff]
      %v4191 = vld [vmem:[%s4184 + $0x30] sm:$0x1]
      %v4192 = vstv %s4183
      %v4193 = vmul.f32 %v4192, %v4185
      %v4194 = vmul.f32 %v4192, %v4186
      %v4195 = vmul.f32 %v4192, %v4187
      %v4196 = vmul.f32 %v4192, %v4188
      %v4197 = vmul.f32 %v4192, %v4189
      %v4198 = vmul.f32 %v4192, %v4190
      %v4199 = vmul.f32 %v4192, %v4191
      %v4200 = vadd.f32 %v4175, %v4193
      %v4201 = vadd.f32 %v4176, %v4194
      %v4202 = vadd.f32 %v4177, %v4195
      %v4203 = vadd.f32 %v4178, %v4196
      %v4204 = vadd.f32 %v4179, %v4197
      %v4205 = vadd.f32 %v4180, %v4198
      %v4206 = vadd.f32 %v4181, %v4199
      %s4207 = sadd.s32 %s3983, 9
      %s4208 = sld [smem:[#allocation26 + %s4207]]
      %s4209 = scalar_lea.vmem [#allocation7], 1008
      %v4210 = vld [vmem:[%s4209] sm:$0xff]
      %v4211 = vld [vmem:[%s4209 + $0x8] sm:$0xff]
      %v4212 = vld [vmem:[%s4209 + $0x10] sm:$0xff]
      %v4213 = vld [vmem:[%s4209 + $0x18] sm:$0xff]
      %v4214 = vld [vmem:[%s4209 + $0x20] sm:$0xff]
      %v4215 = vld [vmem:[%s4209 + $0x28] sm:$0xff]
      %v4216 = vld [vmem:[%s4209 + $0x30] sm:$0x1]
      %v4217 = vstv %s4208
      %v4218 = vmul.f32 %v4217, %v4210
      %v4219 = vmul.f32 %v4217, %v4211
      %v4220 = vmul.f32 %v4217, %v4212
      %v4221 = vmul.f32 %v4217, %v4213
      %v4222 = vmul.f32 %v4217, %v4214
      %v4223 = vmul.f32 %v4217, %v4215
      %v4224 = vmul.f32 %v4217, %v4216
      %v4225 = vadd.f32 %v4200, %v4218
      %v4226 = vadd.f32 %v4201, %v4219
      %v4227 = vadd.f32 %v4202, %v4220
      %v4228 = vadd.f32 %v4203, %v4221
      %v4229 = vadd.f32 %v4204, %v4222
      %v4230 = vadd.f32 %v4205, %v4223
      %v4231 = vadd.f32 %v4206, %v4224
      %s4232 = sadd.s32 %s3983, 10
      %s4233 = sld [smem:[#allocation26 + %s4232]]
      %s4234 = scalar_lea.vmem [#allocation7], 1120
      %v4235 = vld [vmem:[%s4234] sm:$0xff]
      %v4236 = vld [vmem:[%s4234 + $0x8] sm:$0xff]
      %v4237 = vld [vmem:[%s4234 + $0x10] sm:$0xff]
      %v4238 = vld [vmem:[%s4234 + $0x18] sm:$0xff]
      %v4239 = vld [vmem:[%s4234 + $0x20] sm:$0xff]
      %v4240 = vld [vmem:[%s4234 + $0x28] sm:$0xff]
      %v4241 = vld [vmem:[%s4234 + $0x30] sm:$0x1]
      %v4242 = vstv %s4233
      %v4243 = vmul.f32 %v4242, %v4235
      %v4244 = vmul.f32 %v4242, %v4236
      %v4245 = vmul.f32 %v4242, %v4237
      %v4246 = vmul.f32 %v4242, %v4238
      %v4247 = vmul.f32 %v4242, %v4239
      %v4248 = vmul.f32 %v4242, %v4240
      %v4249 = vmul.f32 %v4242, %v4241
      %v4250 = vadd.f32 %v4225, %v4243
      %v4251 = vadd.f32 %v4226, %v4244
      %v4252 = vadd.f32 %v4227, %v4245
      %v4253 = vadd.f32 %v4228, %v4246
      %v4254 = vadd.f32 %v4229, %v4247
      %v4255 = vadd.f32 %v4230, %v4248
      %v4256 = vadd.f32 %v4231, %v4249
      %s4257 = sadd.s32 %s3983, 11
      %s4258 = sld [smem:[#allocation26 + %s4257]]
      %s4259 = scalar_lea.vmem [#allocation7], 1232
      %v4260 = vld [vmem:[%s4259] sm:$0xff]
      %v4261 = vld [vmem:[%s4259 + $0x8] sm:$0xff]
      %v4262 = vld [vmem:[%s4259 + $0x10] sm:$0xff]
      %v4263 = vld [vmem:[%s4259 + $0x18] sm:$0xff]
      %v4264 = vld [vmem:[%s4259 + $0x20] sm:$0xff]
      %v4265 = vld [vmem:[%s4259 + $0x28] sm:$0xff]
      %v4266 = vld [vmem:[%s4259 + $0x30] sm:$0x1]
      %v4267 = vstv %s4258
      %v4268 = vmul.f32 %v4267, %v4260
      %v4269 = vmul.f32 %v4267, %v4261
      %v4270 = vmul.f32 %v4267, %v4262
      %v4271 = vmul.f32 %v4267, %v4263
      %v4272 = vmul.f32 %v4267, %v4264
      %v4273 = vmul.f32 %v4267, %v4265
      %v4274 = vmul.f32 %v4267, %v4266
      %v4275 = vadd.f32 %v4250, %v4268
      %v4276 = vadd.f32 %v4251, %v4269
      %v4277 = vadd.f32 %v4252, %v4270
      %v4278 = vadd.f32 %v4253, %v4271
      %v4279 = vadd.f32 %v4254, %v4272
      %v4280 = vadd.f32 %v4255, %v4273
      %v4281 = vadd.f32 %v4256, %v4274
      %vm4282 = vcmask 400384
      %4283 = vst.msk [vmem:[#allocation8] sm:$0xff] %vm4282, %v4275
      %4284 = vst.msk [vmem:[#allocation8 + $0x8] sm:$0xff] %vm4282, %v4276
      %4285 = vst.msk [vmem:[#allocation8 + $0x10] sm:$0xff] %vm4282, %v4277
      %4286 = vst.msk [vmem:[#allocation8 + $0x18] sm:$0xff] %vm4282, %v4278
      %4287 = vst.msk [vmem:[#allocation8 + $0x20] sm:$0xff] %vm4282, %v4279
      %4288 = vst.msk [vmem:[#allocation8 + $0x28] sm:$0xff] %vm4282, %v4280
      %vm4289 = vcmask 393216
      %4290 = vst.msk [vmem:[#allocation8 + $0x30] sm:$0x1] %vm4289, %v4281
      %v4291 = vsel %vm4282, %v4275, 0.0
      %v4292 = vsel %vm4282, %v4276, 0.0
      %v4293 = vadd.f32 %v4291, %v4292
      %v4294 = vsel %vm4282, %v4277, 0.0
      %v4295 = vadd.f32 %v4293, %v4294
      %v4296 = vsel %vm4282, %v4278, 0.0
      %v4297 = vadd.f32 %v4295, %v4296
      %v4298 = vsel %vm4282, %v4279, 0.0
      %v4299 = vadd.f32 %v4297, %v4298
      %v4300 = vsel %vm4282, %v4280, 0.0
      %v4301 = vadd.f32 %v4299, %v4300
      %v4302 = vsel %vm4289, %v4281, 0.0
      %v4303 = vadd.f32 %v4301, %v4302
      %4304 = vadd.xlane.f32.xlu0 %v4303
      %v4305 = vpop.xlane.xlu0 %4304
      %v4306 = vrot.slane %v4305, 4
      %v4307 = vadd.f32 %v4305, %v4306
      %v4308 = vrot.slane %v4307, 2
      %v4309 = vadd.f32 %v4307, %v4308
      %v4310 = vrot.slane %v4309, 1
      %v4311 = vadd.f32 %v4309, %v4310
      %s4312 = vtos %v4311
      %s4313 = sadd.f32 %s4312, 0.0
      %s4314 = sld [smem:[#allocation26 + %s3983]]
      %s4315 = scalar_lea.vmem [#allocation7], 56
      %v4316 = vld [vmem:[%s4315] sm:$0xff]
      %v4317 = vld [vmem:[%s4315 + $0x8] sm:$0xff]
      %v4318 = vld [vmem:[%s4315 + $0x10] sm:$0xff]
      %v4319 = vld [vmem:[%s4315 + $0x18] sm:$0xff]
      %v4320 = vld [vmem:[%s4315 + $0x20] sm:$0xff]
      %v4321 = vld [vmem:[%s4315 + $0x28] sm:$0xff]
      %v4322 = vld [vmem:[%s4315 + $0x30] sm:$0x1]
      %v4323 = vstv %s4314
      %v4324 = vmul.f32 %v4323, %v4316
      %v4325 = vmul.f32 %v4323, %v4317
      %v4326 = vmul.f32 %v4323, %v4318
      %v4327 = vmul.f32 %v4323, %v4319
      %v4328 = vmul.f32 %v4323, %v4320
      %v4329 = vmul.f32 %v4323, %v4321
      %v4330 = vmul.f32 %v4323, %v4322
      %v4331 = vadd.f32 %v3982, %v4324
      %v4332 = vadd.f32 %v3982, %v4325
      %v4333 = vadd.f32 %v3982, %v4326
      %v4334 = vadd.f32 %v3982, %v4327
      %v4335 = vadd.f32 %v3982, %v4328
      %v4336 = vadd.f32 %v3982, %v4329
      %v4337 = vadd.f32 %v3982, %v4330
      %s4338 = sld [smem:[#allocation26 + %s4007]]
      %s4339 = scalar_lea.vmem [#allocation7], 168
      %v4340 = vld [vmem:[%s4339] sm:$0xff]
      %v4341 = vld [vmem:[%s4339 + $0x8] sm:$0xff]
      %v4342 = vld [vmem:[%s4339 + $0x10] sm:$0xff]
      %v4343 = vld [vmem:[%s4339 + $0x18] sm:$0xff]
      %v4344 = vld [vmem:[%s4339 + $0x20] sm:$0xff]
      %v4345 = vld [vmem:[%s4339 + $0x28] sm:$0xff]
      %v4346 = vld [vmem:[%s4339 + $0x30] sm:$0x1]
      %v4347 = vstv %s4338
      %v4348 = vmul.f32 %v4347, %v4340
      %v4349 = vmul.f32 %v4347, %v4341
      %v4350 = vmul.f32 %v4347, %v4342
      %v4351 = vmul.f32 %v4347, %v4343
      %v4352 = vmul.f32 %v4347, %v4344
      %v4353 = vmul.f32 %v4347, %v4345
      %v4354 = vmul.f32 %v4347, %v4346
      %v4355 = vadd.f32 %v4331, %v4348
      %v4356 = vadd.f32 %v4332, %v4349
      %v4357 = vadd.f32 %v4333, %v4350
      %v4358 = vadd.f32 %v4334, %v4351
      %v4359 = vadd.f32 %v4335, %v4352
      %v4360 = vadd.f32 %v4336, %v4353
      %v4361 = vadd.f32 %v4337, %v4354
      %s4362 = sld [smem:[#allocation26 + %s4032]]
      %s4363 = scalar_lea.vmem [#allocation7], 280
      %v4364 = vld [vmem:[%s4363] sm:$0xff]
      %v4365 = vld [vmem:[%s4363 + $0x8] sm:$0xff]
      %v4366 = vld [vmem:[%s4363 + $0x10] sm:$0xff]
      %v4367 = vld [vmem:[%s4363 + $0x18] sm:$0xff]
      %v4368 = vld [vmem:[%s4363 + $0x20] sm:$0xff]
      %v4369 = vld [vmem:[%s4363 + $0x28] sm:$0xff]
      %v4370 = vld [vmem:[%s4363 + $0x30] sm:$0x1]
      %v4371 = vstv %s4362
      %v4372 = vmul.f32 %v4371, %v4364
      %v4373 = vmul.f32 %v4371, %v4365
      %v4374 = vmul.f32 %v4371, %v4366
      %v4375 = vmul.f32 %v4371, %v4367
      %v4376 = vmul.f32 %v4371, %v4368
      %v4377 = vmul.f32 %v4371, %v4369
      %v4378 = vmul.f32 %v4371, %v4370
      %v4379 = vadd.f32 %v4355, %v4372
      %v4380 = vadd.f32 %v4356, %v4373
      %v4381 = vadd.f32 %v4357, %v4374
      %v4382 = vadd.f32 %v4358, %v4375
      %v4383 = vadd.f32 %v4359, %v4376
      %v4384 = vadd.f32 %v4360, %v4377
      %v4385 = vadd.f32 %v4361, %v4378
      %s4386 = sld [smem:[#allocation26 + %s4057]]
      %s4387 = scalar_lea.vmem [#allocation7], 392
      %v4388 = vld [vmem:[%s4387] sm:$0xff]
      %v4389 = vld [vmem:[%s4387 + $0x8] sm:$0xff]
      %v4390 = vld [vmem:[%s4387 + $0x10] sm:$0xff]
      %v4391 = vld [vmem:[%s4387 + $0x18] sm:$0xff]
      %v4392 = vld [vmem:[%s4387 + $0x20] sm:$0xff]
      %v4393 = vld [vmem:[%s4387 + $0x28] sm:$0xff]
      %v4394 = vld [vmem:[%s4387 + $0x30] sm:$0x1]
      %v4395 = vstv %s4386
      %v4396 = vmul.f32 %v4395, %v4388
      %v4397 = vmul.f32 %v4395, %v4389
      %v4398 = vmul.f32 %v4395, %v4390
      %v4399 = vmul.f32 %v4395, %v4391
      %v4400 = vmul.f32 %v4395, %v4392
      %v4401 = vmul.f32 %v4395, %v4393
      %v4402 = vmul.f32 %v4395, %v4394
      %v4403 = vadd.f32 %v4379, %v4396
      %v4404 = vadd.f32 %v4380, %v4397
      %v4405 = vadd.f32 %v4381, %v4398
      %v4406 = vadd.f32 %v4382, %v4399
      %v4407 = vadd.f32 %v4383, %v4400
      %v4408 = vadd.f32 %v4384, %v4401
      %v4409 = vadd.f32 %v4385, %v4402
      %s4410 = sld [smem:[#allocation26 + %s4082]]
      %s4411 = scalar_lea.vmem [#allocation7], 504
      %v4412 = vld [vmem:[%s4411] sm:$0xff]
      %v4413 = vld [vmem:[%s4411 + $0x8] sm:$0xff]
      %v4414 = vld [vmem:[%s4411 + $0x10] sm:$0xff]
      %v4415 = vld [vmem:[%s4411 + $0x18] sm:$0xff]
      %v4416 = vld [vmem:[%s4411 + $0x20] sm:$0xff]
      %v4417 = vld [vmem:[%s4411 + $0x28] sm:$0xff]
      %v4418 = vld [vmem:[%s4411 + $0x30] sm:$0x1]
      %v4419 = vstv %s4410
      %v4420 = vmul.f32 %v4419, %v4412
      %v4421 = vmul.f32 %v4419, %v4413
      %v4422 = vmul.f32 %v4419, %v4414
      %v4423 = vmul.f32 %v4419, %v4415
      %v4424 = vmul.f32 %v4419, %v4416
      %v4425 = vmul.f32 %v4419, %v4417
      %v4426 = vmul.f32 %v4419, %v4418
      %v4427 = vadd.f32 %v4403, %v4420
      %v4428 = vadd.f32 %v4404, %v4421
      %v4429 = vadd.f32 %v4405, %v4422
      %v4430 = vadd.f32 %v4406, %v4423
      %v4431 = vadd.f32 %v4407, %v4424
      %v4432 = vadd.f32 %v4408, %v4425
      %v4433 = vadd.f32 %v4409, %v4426
      %s4434 = sld [smem:[#allocation26 + %s4107]]
      %s4435 = scalar_lea.vmem [#allocation7], 616
      %v4436 = vld [vmem:[%s4435] sm:$0xff]
      %v4437 = vld [vmem:[%s4435 + $0x8] sm:$0xff]
      %v4438 = vld [vmem:[%s4435 + $0x10] sm:$0xff]
      %v4439 = vld [vmem:[%s4435 + $0x18] sm:$0xff]
      %v4440 = vld [vmem:[%s4435 + $0x20] sm:$0xff]
      %v4441 = vld [vmem:[%s4435 + $0x28] sm:$0xff]
      %v4442 = vld [vmem:[%s4435 + $0x30] sm:$0x1]
      %v4443 = vstv %s4434
      %v4444 = vmul.f32 %v4443, %v4436
      %v4445 = vmul.f32 %v4443, %v4437
      %v4446 = vmul.f32 %v4443, %v4438
      %v4447 = vmul.f32 %v4443, %v4439
      %v4448 = vmul.f32 %v4443, %v4440
      %v4449 = vmul.f32 %v4443, %v4441
      %v4450 = vmul.f32 %v4443, %v4442
      %v4451 = vadd.f32 %v4427, %v4444
      %v4452 = vadd.f32 %v4428, %v4445
      %v4453 = vadd.f32 %v4429, %v4446
      %v4454 = vadd.f32 %v4430, %v4447
      %v4455 = vadd.f32 %v4431, %v4448
      %v4456 = vadd.f32 %v4432, %v4449
      %v4457 = vadd.f32 %v4433, %v4450
      %s4458 = sld [smem:[#allocation26 + %s4132]]
      %s4459 = scalar_lea.vmem [#allocation7], 728
      %v4460 = vld [vmem:[%s4459] sm:$0xff]
      %v4461 = vld [vmem:[%s4459 + $0x8] sm:$0xff]
      %v4462 = vld [vmem:[%s4459 + $0x10] sm:$0xff]
      %v4463 = vld [vmem:[%s4459 + $0x18] sm:$0xff]
      %v4464 = vld [vmem:[%s4459 + $0x20] sm:$0xff]
      %v4465 = vld [vmem:[%s4459 + $0x28] sm:$0xff]
      %v4466 = vld [vmem:[%s4459 + $0x30] sm:$0x1]
      %v4467 = vstv %s4458
      %v4468 = vmul.f32 %v4467, %v4460
      %v4469 = vmul.f32 %v4467, %v4461
      %v4470 = vmul.f32 %v4467, %v4462
      %v4471 = vmul.f32 %v4467, %v4463
      %v4472 = vmul.f32 %v4467, %v4464
      %v4473 = vmul.f32 %v4467, %v4465
      %v4474 = vmul.f32 %v4467, %v4466
      %v4475 = vadd.f32 %v4451, %v4468
      %v4476 = vadd.f32 %v4452, %v4469
      %v4477 = vadd.f32 %v4453, %v4470
      %v4478 = vadd.f32 %v4454, %v4471
      %v4479 = vadd.f32 %v4455, %v4472
      %v4480 = vadd.f32 %v4456, %v4473
      %v4481 = vadd.f32 %v4457, %v4474
      %s4482 = sld [smem:[#allocation26 + %s4157]]
      %s4483 = scalar_lea.vmem [#allocation7], 840
      %v4484 = vld [vmem:[%s4483] sm:$0xff]
      %v4485 = vld [vmem:[%s4483 + $0x8] sm:$0xff]
      %v4486 = vld [vmem:[%s4483 + $0x10] sm:$0xff]
      %v4487 = vld [vmem:[%s4483 + $0x18] sm:$0xff]
      %v4488 = vld [vmem:[%s4483 + $0x20] sm:$0xff]
      %v4489 = vld [vmem:[%s4483 + $0x28] sm:$0xff]
      %v4490 = vld [vmem:[%s4483 + $0x30] sm:$0x1]
      %v4491 = vstv %s4482
      %v4492 = vmul.f32 %v4491, %v4484
      %v4493 = vmul.f32 %v4491, %v4485
      %v4494 = vmul.f32 %v4491, %v4486
      %v4495 = vmul.f32 %v4491, %v4487
      %v4496 = vmul.f32 %v4491, %v4488
      %v4497 = vmul.f32 %v4491, %v4489
      %v4498 = vmul.f32 %v4491, %v4490
      %v4499 = vadd.f32 %v4475, %v4492
      %v4500 = vadd.f32 %v4476, %v4493
      %v4501 = vadd.f32 %v4477, %v4494
      %v4502 = vadd.f32 %v4478, %v4495
      %v4503 = vadd.f32 %v4479, %v4496
      %v4504 = vadd.f32 %v4480, %v4497
      %v4505 = vadd.f32 %v4481, %v4498
      %s4506 = sld [smem:[#allocation26 + %s4182]]
      %s4507 = scalar_lea.vmem [#allocation7], 952
      %v4508 = vld [vmem:[%s4507] sm:$0xff]
      %v4509 = vld [vmem:[%s4507 + $0x8] sm:$0xff]
      %v4510 = vld [vmem:[%s4507 + $0x10] sm:$0xff]
      %v4511 = vld [vmem:[%s4507 + $0x18] sm:$0xff]
      %v4512 = vld [vmem:[%s4507 + $0x20] sm:$0xff]
      %v4513 = vld [vmem:[%s4507 + $0x28] sm:$0xff]
      %v4514 = vld [vmem:[%s4507 + $0x30] sm:$0x1]
      %v4515 = vstv %s4506
      %v4516 = vmul.f32 %v4515, %v4508
      %v4517 = vmul.f32 %v4515, %v4509
      %v4518 = vmul.f32 %v4515, %v4510
      %v4519 = vmul.f32 %v4515, %v4511
      %v4520 = vmul.f32 %v4515, %v4512
      %v4521 = vmul.f32 %v4515, %v4513
      %v4522 = vmul.f32 %v4515, %v4514
      %v4523 = vadd.f32 %v4499, %v4516
      %v4524 = vadd.f32 %v4500, %v4517
      %v4525 = vadd.f32 %v4501, %v4518
      %v4526 = vadd.f32 %v4502, %v4519
      %v4527 = vadd.f32 %v4503, %v4520
      %v4528 = vadd.f32 %v4504, %v4521
      %v4529 = vadd.f32 %v4505, %v4522
      %s4530 = sld [smem:[#allocation26 + %s4207]]
      %s4531 = scalar_lea.vmem [#allocation7], 1064
      %v4532 = vld [vmem:[%s4531] sm:$0xff]
      %v4533 = vld [vmem:[%s4531 + $0x8] sm:$0xff]
      %v4534 = vld [vmem:[%s4531 + $0x10] sm:$0xff]
      %v4535 = vld [vmem:[%s4531 + $0x18] sm:$0xff]
      %v4536 = vld [vmem:[%s4531 + $0x20] sm:$0xff]
      %v4537 = vld [vmem:[%s4531 + $0x28] sm:$0xff]
      %v4538 = vld [vmem:[%s4531 + $0x30] sm:$0x1]
      %v4539 = vstv %s4530
      %v4540 = vmul.f32 %v4539, %v4532
      %v4541 = vmul.f32 %v4539, %v4533
      %v4542 = vmul.f32 %v4539, %v4534
      %v4543 = vmul.f32 %v4539, %v4535
      %v4544 = vmul.f32 %v4539, %v4536
      %v4545 = vmul.f32 %v4539, %v4537
      %v4546 = vmul.f32 %v4539, %v4538
      %v4547 = vadd.f32 %v4523, %v4540
      %v4548 = vadd.f32 %v4524, %v4541
      %v4549 = vadd.f32 %v4525, %v4542
      %v4550 = vadd.f32 %v4526, %v4543
      %v4551 = vadd.f32 %v4527, %v4544
      %v4552 = vadd.f32 %v4528, %v4545
      %v4553 = vadd.f32 %v4529, %v4546
      %s4554 = sld [smem:[#allocation26 + %s4232]]
      %s4555 = scalar_lea.vmem [#allocation7], 1176
      %v4556 = vld [vmem:[%s4555] sm:$0xff]
      %v4557 = vld [vmem:[%s4555 + $0x8] sm:$0xff]
      %v4558 = vld [vmem:[%s4555 + $0x10] sm:$0xff]
      %v4559 = vld [vmem:[%s4555 + $0x18] sm:$0xff]
      %v4560 = vld [vmem:[%s4555 + $0x20] sm:$0xff]
      %v4561 = vld [vmem:[%s4555 + $0x28] sm:$0xff]
      %v4562 = vld [vmem:[%s4555 + $0x30] sm:$0x1]
      %v4563 = vstv %s4554
      %v4564 = vmul.f32 %v4563, %v4556
      %v4565 = vmul.f32 %v4563, %v4557
      %v4566 = vmul.f32 %v4563, %v4558
      %v4567 = vmul.f32 %v4563, %v4559
      %v4568 = vmul.f32 %v4563, %v4560
      %v4569 = vmul.f32 %v4563, %v4561
      %v4570 = vmul.f32 %v4563, %v4562
      %v4571 = vadd.f32 %v4547, %v4564
      %v4572 = vadd.f32 %v4548, %v4565
      %v4573 = vadd.f32 %v4549, %v4566
      %v4574 = vadd.f32 %v4550, %v4567
      %v4575 = vadd.f32 %v4551, %v4568
      %v4576 = vadd.f32 %v4552, %v4569
      %v4577 = vadd.f32 %v4553, %v4570
      %s4578 = sld [smem:[#allocation26 + %s4257]]
      %s4579 = scalar_lea.vmem [#allocation7], 1288
      %v4580 = vld [vmem:[%s4579] sm:$0xff]
      %v4581 = vld [vmem:[%s4579 + $0x8] sm:$0xff]
      %v4582 = vld [vmem:[%s4579 + $0x10] sm:$0xff]
      %v4583 = vld [vmem:[%s4579 + $0x18] sm:$0xff]
      %v4584 = vld [vmem:[%s4579 + $0x20] sm:$0xff]
      %v4585 = vld [vmem:[%s4579 + $0x28] sm:$0xff]
      %v4586 = vld [vmem:[%s4579 + $0x30] sm:$0x1]
      %v4587 = vstv %s4578
      %v4588 = vmul.f32 %v4587, %v4580
      %v4589 = vmul.f32 %v4587, %v4581
      %v4590 = vmul.f32 %v4587, %v4582
      %v4591 = vmul.f32 %v4587, %v4583
      %v4592 = vmul.f32 %v4587, %v4584
      %v4593 = vmul.f32 %v4587, %v4585
      %v4594 = vmul.f32 %v4587, %v4586
      %v4595 = vadd.f32 %v4571, %v4588
      %v4596 = vadd.f32 %v4572, %v4589
      %v4597 = vadd.f32 %v4573, %v4590
      %v4598 = vadd.f32 %v4574, %v4591
      %v4599 = vadd.f32 %v4575, %v4592
      %v4600 = vadd.f32 %v4576, %v4593
      %v4601 = vadd.f32 %v4577, %v4594
      %s4602 = scalar_lea.vmem [#allocation8], 56
      %4603 = vst.msk [vmem:[%s4602] sm:$0xff] %vm4282, %v4595
      %4604 = vst.msk [vmem:[%s4602 + $0x8] sm:$0xff] %vm4282, %v4596
      %4605 = vst.msk [vmem:[%s4602 + $0x10] sm:$0xff] %vm4282, %v4597
      %4606 = vst.msk [vmem:[%s4602 + $0x18] sm:$0xff] %vm4282, %v4598
      %4607 = vst.msk [vmem:[%s4602 + $0x20] sm:$0xff] %vm4282, %v4599
      %4608 = vst.msk [vmem:[%s4602 + $0x28] sm:$0xff] %vm4282, %v4600
      %4609 = vst.msk [vmem:[%s4602 + $0x30] sm:$0x1] %vm4289, %v4601
      %v4610 = vsel %vm4282, %v4595, 0.0
      %v4611 = vsel %vm4282, %v4596, 0.0
      %v4612 = vadd.f32 %v4610, %v4611
      %v4613 = vsel %vm4282, %v4597, 0.0
      %v4614 = vadd.f32 %v4612, %v4613
      %v4615 = vsel %vm4282, %v4598, 0.0
      %v4616 = vadd.f32 %v4614, %v4615
      %v4617 = vsel %vm4282, %v4599, 0.0
      %v4618 = vadd.f32 %v4616, %v4617
      %v4619 = vsel %vm4282, %v4600, 0.0
      %v4620 = vadd.f32 %v4618, %v4619
      %v4621 = vsel %vm4289, %v4601, 0.0
      %v4622 = vadd.f32 %v4620, %v4621
      %4623 = vadd.xlane.f32.xlu0 %v4622
      %v4624 = vpop.xlane.xlu0 %4623
      %v4625 = vrot.slane %v4624, 4
      %v4626 = vadd.f32 %v4624, %v4625
      %v4627 = vrot.slane %v4626, 2
      %v4628 = vadd.f32 %v4626, %v4627
      %v4629 = vrot.slane %v4628, 1
      %v4630 = vadd.f32 %v4628, %v4629
      %s4631 = vtos %v4630
      %s4632 = sadd.f32 %s4313, %s4631
      %s4633 = smul.f32 %s3980, 400.0
      %s4634 = sadd.f32 %s4632, %s4633
      %v4635 = vrcp.pop 5202.0
      %s4636 = vtos %v4635
      %s4637 = smul.f32 %s4634, %s4636
      %s4638 = ssub.f32 %s3980, %s4637
      %s4639 = smul.f32 %s4638, 400.0
      %s4640 = smul.f32 %s4639, %s4638
      %v4641 = vld [vmem:[#allocation8] sm:$0xff]
      %v4642 = vld [vmem:[#allocation8 + $0x8] sm:$0xff]
      %v4643 = vld [vmem:[#allocation8 + $0x10] sm:$0xff]
      %v4644 = vld [vmem:[#allocation8 + $0x18] sm:$0xff]
      %v4645 = vld [vmem:[#allocation8 + $0x20] sm:$0xff]
      %v4646 = vld [vmem:[#allocation8 + $0x28] sm:$0xff]
      %v4647 = vld [vmem:[#allocation8 + $0x30] sm:$0x1]
      %v4648 = vstv %s4637
      %v4649 = vsub.f32 %v4641, %v4648
      %v4650 = vsub.f32 %v4642, %v4648
      %v4651 = vsub.f32 %v4643, %v4648
      %v4652 = vsub.f32 %v4644, %v4648
      %v4653 = vsub.f32 %v4645, %v4648
      %v4654 = vsub.f32 %v4646, %v4648
      %v4655 = vsub.f32 %v4647, %v4648
      %v4656 = vmul.f32 %v4649, %v4649
      %v4657 = vmul.f32 %v4650, %v4650
      %v4658 = vmul.f32 %v4651, %v4651
      %v4659 = vmul.f32 %v4652, %v4652
      %v4660 = vmul.f32 %v4653, %v4653
      %v4661 = vmul.f32 %v4654, %v4654
      %v4662 = vmul.f32 %v4655, %v4655
      %v4663 = vsel %vm4282, %v4656, 0.0
      %v4664 = vsel %vm4282, %v4657, 0.0
      %v4665 = vadd.f32 %v4663, %v4664
      %v4666 = vsel %vm4282, %v4658, 0.0
      %v4667 = vadd.f32 %v4665, %v4666
      %v4668 = vsel %vm4282, %v4659, 0.0
      %v4669 = vadd.f32 %v4667, %v4668
      %v4670 = vsel %vm4282, %v4660, 0.0
      %v4671 = vadd.f32 %v4669, %v4670
      %v4672 = vsel %vm4282, %v4661, 0.0
      %v4673 = vadd.f32 %v4671, %v4672
      %v4674 = vsel %vm4289, %v4662, 0.0
      %v4675 = vadd.f32 %v4673, %v4674
      %4676 = vadd.xlane.f32.xlu0 %v4675
      %v4677 = vpop.xlane.xlu0 %4676
      %v4678 = vrot.slane %v4677, 4
      %v4679 = vadd.f32 %v4677, %v4678
      %v4680 = vrot.slane %v4679, 2
      %v4681 = vadd.f32 %v4679, %v4680
      %v4682 = vrot.slane %v4681, 1
      %v4683 = vadd.f32 %v4681, %v4682
      %s4684 = vtos %v4683
      %s4685 = sadd.f32 %s4640, %s4684
      %v4686 = vld [vmem:[%s4602] sm:$0xff]
      %v4687 = vld [vmem:[%s4602 + $0x8] sm:$0xff]
      %v4688 = vld [vmem:[%s4602 + $0x10] sm:$0xff]
      %v4689 = vld [vmem:[%s4602 + $0x18] sm:$0xff]
      %v4690 = vld [vmem:[%s4602 + $0x20] sm:$0xff]
      %v4691 = vld [vmem:[%s4602 + $0x28] sm:$0xff]
      %v4692 = vld [vmem:[%s4602 + $0x30] sm:$0x1]
      %v4693 = vsub.f32 %v4686, %v4648
      %v4694 = vsub.f32 %v4687, %v4648
      %v4695 = vsub.f32 %v4688, %v4648
      %v4696 = vsub.f32 %v4689, %v4648
      %v4697 = vsub.f32 %v4690, %v4648
      %v4698 = vsub.f32 %v4691, %v4648
      %v4699 = vsub.f32 %v4692, %v4648
      %v4700 = vmul.f32 %v4693, %v4693
      %v4701 = vmul.f32 %v4694, %v4694
      %v4702 = vmul.f32 %v4695, %v4695
      %v4703 = vmul.f32 %v4696, %v4696
      %v4704 = vmul.f32 %v4697, %v4697
      %v4705 = vmul.f32 %v4698, %v4698
      %v4706 = vmul.f32 %v4699, %v4699
      %v4707 = vsel %vm4282, %v4700, 0.0
      %v4708 = vsel %vm4282, %v4701, 0.0
      %v4709 = vadd.f32 %v4707, %v4708
      %v4710 = vsel %vm4282, %v4702, 0.0
      %v4711 = vadd.f32 %v4709, %v4710
      %v4712 = vsel %vm4282, %v4703, 0.0
      %v4713 = vadd.f32 %v4711, %v4712
      %v4714 = vsel %vm4282, %v4704, 0.0
      %v4715 = vadd.f32 %v4713, %v4714
      %v4716 = vsel %vm4282, %v4705, 0.0
      %v4717 = vadd.f32 %v4715, %v4716
      %v4718 = vsel %vm4289, %v4706, 0.0
      %v4719 = vadd.f32 %v4717, %v4718
      %4720 = vadd.xlane.f32.xlu0 %v4719
      %v4721 = vpop.xlane.xlu0 %4720
      %v4722 = vrot.slane %v4721, 4
      %v4723 = vadd.f32 %v4721, %v4722
      %v4724 = vrot.slane %v4723, 2
      %v4725 = vadd.f32 %v4723, %v4724
      %v4726 = vrot.slane %v4725, 1
      %v4727 = vadd.f32 %v4725, %v4726
      %s4728 = vtos %v4727
      %s4729 = sadd.f32 %s4685, %s4728
      %v4730 = vrcp.pop 5202.0
      %s4731 = vtos %v4730
      %s4732 = smul.f32 %s4729, %s4731
      %s4733 = sld [smem:[#allocation29 + %s3974]]
      %s4734 = sadd.f32 %s4732, 1e-05
      %v4735 = vstv %s4734
      %v4736 = vrsqrt.pop %v4735
      %s4737 = vtos %v4736
      %s4738 = smul.f32 %s4733, %s4737
      %s4739 = sld [smem:[#allocation30 + %s3974]]
      %s4740 = smul.f32 %s4637, %s4738
      %s4741 = ssub.f32 %s4739, %s4740
      %s4742 = smul.f32 %s3980, %s4738
      %s4743 = sadd.f32 %s4742, %s4741
      %s4744 = smax.f32 %s4743, 0.0
      %v4745 = vstv %s4738
      %v4746 = vmul.f32 %v4641, %v4745
      %v4747 = vmul.f32 %v4642, %v4745
      %v4748 = vmul.f32 %v4643, %v4745
      %v4749 = vmul.f32 %v4644, %v4745
      %v4750 = vmul.f32 %v4645, %v4745
      %v4751 = vmul.f32 %v4646, %v4745
      %v4752 = vmul.f32 %v4647, %v4745
      %v4753 = vstv %s4741
      %v4754 = vadd.f32 %v4746, %v4753
      %v4755 = vadd.f32 %v4747, %v4753
      %v4756 = vadd.f32 %v4748, %v4753
      %v4757 = vadd.f32 %v4749, %v4753
      %v4758 = vadd.f32 %v4750, %v4753
      %v4759 = vadd.f32 %v4751, %v4753
      %v4760 = vadd.f32 %v4752, %v4753
      %v4761 = vmax.f32 %v4754, 0.0
      %v4762 = vmax.f32 %v4755, 0.0
      %v4763 = vmax.f32 %v4756, 0.0
      %v4764 = vmax.f32 %v4757, 0.0
      %v4765 = vmax.f32 %v4758, 0.0
      %v4766 = vmax.f32 %v4759, 0.0
      %v4767 = vmax.f32 %v4760, 0.0
      %v4768 = vstv %s4744
      %v4769 = vadd.f32 %v4768, 0.0
      %4770 = vst.msk [vmem:[#allocation9] sm:$0xff] %vm215, %v4769
      %4771 = vst.msk [vmem:[#allocation9 + $0x8] sm:$0xff] %vm215, %v4769
      %4772 = vst.msk [vmem:[#allocation9 + $0x10] sm:$0xff] %vm215, %v4769
      %4773 = vst.msk [vmem:[#allocation9 + $0x18] sm:$0xff] %vm215, %v4769
      %4774 = vst.msk [vmem:[#allocation9 + $0x20] sm:$0xff] %vm215, %v4769
      %4775 = vst.msk [vmem:[#allocation9 + $0x28] sm:$0xff] %vm215, %v4769
      %4776 = vst.msk [vmem:[#allocation9 + $0x30] sm:$0x7] %vm222, %v4769
      %4784 = vrot.lane.b32.xlu0 %v4761, 1
      %v4785 = vpop.permute.xlu0 %4784
      %4786 = vrot.lane.b32.xlu0 %v4762, 1
      %v4787 = vpop.permute.xlu0 %4786
      %4788 = vrot.lane.b32.xlu0 %v4763, 1
      %v4789 = vpop.permute.xlu0 %4788
      %4790 = vrot.lane.b32.xlu0 %v4764, 1
      %v4791 = vpop.permute.xlu0 %4790
      %4792 = vrot.lane.b32.xlu0 %v4765, 1
      %v4793 = vpop.permute.xlu0 %4792
      %4794 = vrot.lane.b32.xlu0 %v4766, 1
      %v4795 = vpop.permute.xlu0 %4794
      %4796 = vrot.lane.b32.xlu0 %v4767, 1
      %v4797 = vpop.permute.xlu0 %4796
      %vm4805 = vcmask 408584
      %4806 = vst.msk [vmem:[#allocation9 + $0x1] sm:$0xff] %vm4805, %v4785
      %4807 = vst.msk [vmem:[#allocation9 + $0x9] sm:$0xff] %vm4805, %v4787
      %4808 = vst.msk [vmem:[#allocation9 + $0x11] sm:$0xff] %vm4805, %v4789
      %4809 = vst.msk [vmem:[#allocation9 + $0x19] sm:$0xff] %vm4805, %v4791
      %4810 = vst.msk [vmem:[#allocation9 + $0x21] sm:$0xff] %vm4805, %v4793
      %4811 = vst.msk [vmem:[#allocation9 + $0x29] sm:$0xff] %vm4805, %v4795
      %vm4812 = vcmask 401416
      %4813 = vst.msk [vmem:[#allocation9 + $0x31] sm:$0x1] %vm4812, %v4797
      %v4814 = vld [vmem:[#allocation9] sm:$0xff]
      %v4815 = vld [vmem:[#allocation9 + $0x8] sm:$0xff]
      %v4816 = vld [vmem:[#allocation9 + $0x10] sm:$0xff]
      %v4817 = vld [vmem:[#allocation9 + $0x18] sm:$0xff]
      %v4818 = vld [vmem:[#allocation9 + $0x20] sm:$0xff]
      %v4819 = vld [vmem:[#allocation9 + $0x28] sm:$0xff]
      %v4820 = vld [vmem:[#allocation9 + $0x30] sm:$0x1]
      %4828 = vrot.lane.b32.xlu0 %v4814, 127
      %v4829 = vpop.permute.xlu0 %4828
      %4830 = vrot.lane.b32.xlu0 %v4815, 127
      %v4831 = vpop.permute.xlu0 %4830
      %4832 = vrot.lane.b32.xlu0 %v4816, 127
      %v4833 = vpop.permute.xlu0 %4832
      %4834 = vrot.lane.b32.xlu0 %v4817, 127
      %v4835 = vpop.permute.xlu0 %4834
      %4836 = vrot.lane.b32.xlu0 %v4818, 127
      %v4837 = vpop.permute.xlu0 %4836
      %4838 = vrot.lane.b32.xlu0 %v4819, 127
      %v4839 = vpop.permute.xlu0 %4838
      %4840 = vrot.lane.b32.xlu0 %v4820, 127
      %v4841 = vpop.permute.xlu0 %4840
      %v4849 = vmax.f32 %v4814, %v4829
      %v4850 = vmax.f32 %v4815, %v4831
      %v4851 = vmax.f32 %v4816, %v4833
      %v4852 = vmax.f32 %v4817, %v4835
      %v4853 = vmax.f32 %v4818, %v4837
      %v4854 = vmax.f32 %v4819, %v4839
      %v4855 = vmax.f32 %v4820, %v4841
      %4856 = vrot.lane.b32.xlu0 %v4814, 126
      %v4857 = vpop.permute.xlu0 %4856
      %4858 = vrot.lane.b32.xlu0 %v4815, 126
      %v4859 = vpop.permute.xlu0 %4858
      %4860 = vrot.lane.b32.xlu0 %v4816, 126
      %v4861 = vpop.permute.xlu0 %4860
      %4862 = vrot.lane.b32.xlu0 %v4817, 126
      %v4863 = vpop.permute.xlu0 %4862
      %4864 = vrot.lane.b32.xlu0 %v4818, 126
      %v4865 = vpop.permute.xlu0 %4864
      %4866 = vrot.lane.b32.xlu0 %v4819, 126
      %v4867 = vpop.permute.xlu0 %4866
      %4868 = vrot.lane.b32.xlu0 %v4820, 126
      %v4869 = vpop.permute.xlu0 %4868
      %v4877 = vmax.f32 %v4849, %v4857
      %v4878 = vmax.f32 %v4850, %v4859
      %v4879 = vmax.f32 %v4851, %v4861
      %v4880 = vmax.f32 %v4852, %v4863
      %v4881 = vmax.f32 %v4853, %v4865
      %v4882 = vmax.f32 %v4854, %v4867
      %v4883 = vmax.f32 %v4855, %v4869
      %v4884 = vld [vmem:[#allocation9 + $0x1] sm:$0xff]
      %v4885 = vld [vmem:[#allocation9 + $0x9] sm:$0xff]
      %v4886 = vld [vmem:[#allocation9 + $0x11] sm:$0xff]
      %v4887 = vld [vmem:[#allocation9 + $0x19] sm:$0xff]
      %v4888 = vld [vmem:[#allocation9 + $0x21] sm:$0xff]
      %v4889 = vld [vmem:[#allocation9 + $0x29] sm:$0xff]
      %v4890 = vld [vmem:[#allocation9 + $0x31] sm:$0x1]
      %v4891 = vmax.f32 %v4877, %v4884
      %v4892 = vmax.f32 %v4878, %v4885
      %v4893 = vmax.f32 %v4879, %v4886
      %v4894 = vmax.f32 %v4880, %v4887
      %v4895 = vmax.f32 %v4881, %v4888
      %v4896 = vmax.f32 %v4882, %v4889
      %v4897 = vmax.f32 %v4883, %v4890
      %4905 = vrot.lane.b32.xlu0 %v4884, 127
      %v4906 = vpop.permute.xlu0 %4905
      %4907 = vrot.lane.b32.xlu0 %v4885, 127
      %v4908 = vpop.permute.xlu0 %4907
      %4909 = vrot.lane.b32.xlu0 %v4886, 127
      %v4910 = vpop.permute.xlu0 %4909
      %4911 = vrot.lane.b32.xlu0 %v4887, 127
      %v4912 = vpop.permute.xlu0 %4911
      %4913 = vrot.lane.b32.xlu0 %v4888, 127
      %v4914 = vpop.permute.xlu0 %4913
      %4915 = vrot.lane.b32.xlu0 %v4889, 127
      %v4916 = vpop.permute.xlu0 %4915
      %4917 = vrot.lane.b32.xlu0 %v4890, 127
      %v4918 = vpop.permute.xlu0 %4917
      %v4926 = vmax.f32 %v4891, %v4906
      %v4927 = vmax.f32 %v4892, %v4908
      %v4928 = vmax.f32 %v4893, %v4910
      %v4929 = vmax.f32 %v4894, %v4912
      %v4930 = vmax.f32 %v4895, %v4914
      %v4931 = vmax.f32 %v4896, %v4916
      %v4932 = vmax.f32 %v4897, %v4918
      %4933 = vrot.lane.b32.xlu0 %v4884, 126
      %v4934 = vpop.permute.xlu0 %4933
      %4935 = vrot.lane.b32.xlu0 %v4885, 126
      %v4936 = vpop.permute.xlu0 %4935
      %4937 = vrot.lane.b32.xlu0 %v4886, 126
      %v4938 = vpop.permute.xlu0 %4937
      %4939 = vrot.lane.b32.xlu0 %v4887, 126
      %v4940 = vpop.permute.xlu0 %4939
      %4941 = vrot.lane.b32.xlu0 %v4888, 126
      %v4942 = vpop.permute.xlu0 %4941
      %4943 = vrot.lane.b32.xlu0 %v4889, 126
      %v4944 = vpop.permute.xlu0 %4943
      %4945 = vrot.lane.b32.xlu0 %v4890, 126
      %v4946 = vpop.permute.xlu0 %4945
      %v4954 = vmax.f32 %v4926, %v4934
      %v4955 = vmax.f32 %v4927, %v4936
      %v4956 = vmax.f32 %v4928, %v4938
      %v4957 = vmax.f32 %v4929, %v4940
      %v4958 = vmax.f32 %v4930, %v4942
      %v4959 = vmax.f32 %v4931, %v4944
      %v4960 = vmax.f32 %v4932, %v4946
      %v4961 = vld [vmem:[#allocation9 + $0x2] sm:$0xff]
      %v4962 = vld [vmem:[#allocation9 + $0xa] sm:$0xff]
      %v4963 = vld [vmem:[#allocation9 + $0x12] sm:$0xff]
      %v4964 = vld [vmem:[#allocation9 + $0x1a] sm:$0xff]
      %v4965 = vld [vmem:[#allocation9 + $0x22] sm:$0xff]
      %v4966 = vld [vmem:[#allocation9 + $0x2a] sm:$0xff]
      %v4967 = vld [vmem:[#allocation9 + $0x32] sm:$0x1]
      %v4968 = vmax.f32 %v4954, %v4961
      %v4969 = vmax.f32 %v4955, %v4962
      %v4970 = vmax.f32 %v4956, %v4963
      %v4971 = vmax.f32 %v4957, %v4964
      %v4972 = vmax.f32 %v4958, %v4965
      %v4973 = vmax.f32 %v4959, %v4966
      %v4974 = vmax.f32 %v4960, %v4967
      %4982 = vrot.lane.b32.xlu0 %v4961, 127
      %v4983 = vpop.permute.xlu0 %4982
      %4984 = vrot.lane.b32.xlu0 %v4962, 127
      %v4985 = vpop.permute.xlu0 %4984
      %4986 = vrot.lane.b32.xlu0 %v4963, 127
      %v4987 = vpop.permute.xlu0 %4986
      %4988 = vrot.lane.b32.xlu0 %v4964, 127
      %v4989 = vpop.permute.xlu0 %4988
      %4990 = vrot.lane.b32.xlu0 %v4965, 127
      %v4991 = vpop.permute.xlu0 %4990
      %4992 = vrot.lane.b32.xlu0 %v4966, 127
      %v4993 = vpop.permute.xlu0 %4992
      %4994 = vrot.lane.b32.xlu0 %v4967, 127
      %v4995 = vpop.permute.xlu0 %4994
      %v5003 = vmax.f32 %v4968, %v4983
      %v5004 = vmax.f32 %v4969, %v4985
      %v5005 = vmax.f32 %v4970, %v4987
      %v5006 = vmax.f32 %v4971, %v4989
      %v5007 = vmax.f32 %v4972, %v4991
      %v5008 = vmax.f32 %v4973, %v4993
      %v5009 = vmax.f32 %v4974, %v4995
      %5010 = vrot.lane.b32.xlu0 %v4961, 126
      %v5011 = vpop.permute.xlu0 %5010
      %5012 = vrot.lane.b32.xlu0 %v4962, 126
      %v5013 = vpop.permute.xlu0 %5012
      %5014 = vrot.lane.b32.xlu0 %v4963, 126
      %v5015 = vpop.permute.xlu0 %5014
      %5016 = vrot.lane.b32.xlu0 %v4964, 126
      %v5017 = vpop.permute.xlu0 %5016
      %5018 = vrot.lane.b32.xlu0 %v4965, 126
      %v5019 = vpop.permute.xlu0 %5018
      %5020 = vrot.lane.b32.xlu0 %v4966, 126
      %v5021 = vpop.permute.xlu0 %5020
      %5022 = vrot.lane.b32.xlu0 %v4967, 126
      %v5023 = vpop.permute.xlu0 %5022
      %v5031 = vmax.f32 %v5003, %v5011
      %v5032 = vmax.f32 %v5004, %v5013
      %v5033 = vmax.f32 %v5005, %v5015
      %v5034 = vmax.f32 %v5006, %v5017
      %v5035 = vmax.f32 %v5007, %v5019
      %v5036 = vmax.f32 %v5008, %v5021
      %v5037 = vmax.f32 %v5009, %v5023
      %5038 = vst.msk [vmem:[#allocation10] sm:$0xff] %vm4282, %v5031
      %5039 = vst.msk [vmem:[#allocation10 + $0x8] sm:$0xff] %vm4282, %v5032
      %5040 = vst.msk [vmem:[#allocation10 + $0x10] sm:$0xff] %vm4282, %v5033
      %5041 = vst.msk [vmem:[#allocation10 + $0x18] sm:$0xff] %vm4282, %v5034
      %5042 = vst.msk [vmem:[#allocation10 + $0x20] sm:$0xff] %vm4282, %v5035
      %5043 = vst.msk [vmem:[#allocation10 + $0x28] sm:$0xff] %vm4282, %v5036
      %5044 = vst.msk [vmem:[#allocation10 + $0x30] sm:$0x1] %vm4289, %v5037
      %v5045 = vld [vmem:[%s4602] sm:$0xff]
      %v5046 = vld [vmem:[%s4602 + $0x8] sm:$0xff]
      %v5047 = vld [vmem:[%s4602 + $0x10] sm:$0xff]
      %v5048 = vld [vmem:[%s4602 + $0x18] sm:$0xff]
      %v5049 = vld [vmem:[%s4602 + $0x20] sm:$0xff]
      %v5050 = vld [vmem:[%s4602 + $0x28] sm:$0xff]
      %v5051 = vld [vmem:[%s4602 + $0x30] sm:$0x1]
      %v5052 = vmul.f32 %v5045, %v4745
      %v5053 = vmul.f32 %v5046, %v4745
      %v5054 = vmul.f32 %v5047, %v4745
      %v5055 = vmul.f32 %v5048, %v4745
      %v5056 = vmul.f32 %v5049, %v4745
      %v5057 = vmul.f32 %v5050, %v4745
      %v5058 = vmul.f32 %v5051, %v4745
      %v5059 = vadd.f32 %v5052, %v4753
      %v5060 = vadd.f32 %v5053, %v4753
      %v5061 = vadd.f32 %v5054, %v4753
      %v5062 = vadd.f32 %v5055, %v4753
      %v5063 = vadd.f32 %v5056, %v4753
      %v5064 = vadd.f32 %v5057, %v4753
      %v5065 = vadd.f32 %v5058, %v4753
      %v5066 = vmax.f32 %v5059, 0.0
      %v5067 = vmax.f32 %v5060, 0.0
      %v5068 = vmax.f32 %v5061, 0.0
      %v5069 = vmax.f32 %v5062, 0.0
      %v5070 = vmax.f32 %v5063, 0.0
      %v5071 = vmax.f32 %v5064, 0.0
      %v5072 = vmax.f32 %v5065, 0.0
      %5073 = vst.msk [vmem:[#allocation9] sm:$0xff] %vm215, %v4769
      %5074 = vst.msk [vmem:[#allocation9 + $0x8] sm:$0xff] %vm215, %v4769
      %5075 = vst.msk [vmem:[#allocation9 + $0x10] sm:$0xff] %vm215, %v4769
      %5076 = vst.msk [vmem:[#allocation9 + $0x18] sm:$0xff] %vm215, %v4769
      %5077 = vst.msk [vmem:[#allocation9 + $0x20] sm:$0xff] %vm215, %v4769
      %5078 = vst.msk [vmem:[#allocation9 + $0x28] sm:$0xff] %vm215, %v4769
      %5079 = vst.msk [vmem:[#allocation9 + $0x30] sm:$0x7] %vm222, %v4769
      %5087 = vrot.lane.b32.xlu0 %v5066, 1
      %v5088 = vpop.permute.xlu0 %5087
      %5089 = vrot.lane.b32.xlu0 %v5067, 1
      %v5090 = vpop.permute.xlu0 %5089
      %5091 = vrot.lane.b32.xlu0 %v5068, 1
      %v5092 = vpop.permute.xlu0 %5091
      %5093 = vrot.lane.b32.xlu0 %v5069, 1
      %v5094 = vpop.permute.xlu0 %5093
      %5095 = vrot.lane.b32.xlu0 %v5070, 1
      %v5096 = vpop.permute.xlu0 %5095
      %5097 = vrot.lane.b32.xlu0 %v5071, 1
      %v5098 = vpop.permute.xlu0 %5097
      %5099 = vrot.lane.b32.xlu0 %v5072, 1
      %v5100 = vpop.permute.xlu0 %5099
      %5108 = vst.msk [vmem:[#allocation9 + $0x1] sm:$0xff] %vm4805, %v5088
      %5109 = vst.msk [vmem:[#allocation9 + $0x9] sm:$0xff] %vm4805, %v5090
      %5110 = vst.msk [vmem:[#allocation9 + $0x11] sm:$0xff] %vm4805, %v5092
      %5111 = vst.msk [vmem:[#allocation9 + $0x19] sm:$0xff] %vm4805, %v5094
      %5112 = vst.msk [vmem:[#allocation9 + $0x21] sm:$0xff] %vm4805, %v5096
      %5113 = vst.msk [vmem:[#allocation9 + $0x29] sm:$0xff] %vm4805, %v5098
      %5114 = vst.msk [vmem:[#allocation9 + $0x31] sm:$0x1] %vm4812, %v5100
      %v5115 = vld [vmem:[#allocation9] sm:$0xff]
      %v5116 = vld [vmem:[#allocation9 + $0x8] sm:$0xff]
      %v5117 = vld [vmem:[#allocation9 + $0x10] sm:$0xff]
      %v5118 = vld [vmem:[#allocation9 + $0x18] sm:$0xff]
      %v5119 = vld [vmem:[#allocation9 + $0x20] sm:$0xff]
      %v5120 = vld [vmem:[#allocation9 + $0x28] sm:$0xff]
      %v5121 = vld [vmem:[#allocation9 + $0x30] sm:$0x1]
      %5129 = vrot.lane.b32.xlu0 %v5115, 127
      %v5130 = vpop.permute.xlu0 %5129
      %5131 = vrot.lane.b32.xlu0 %v5116, 127
      %v5132 = vpop.permute.xlu0 %5131
      %5133 = vrot.lane.b32.xlu0 %v5117, 127
      %v5134 = vpop.permute.xlu0 %5133
      %5135 = vrot.lane.b32.xlu0 %v5118, 127
      %v5136 = vpop.permute.xlu0 %5135
      %5137 = vrot.lane.b32.xlu0 %v5119, 127
      %v5138 = vpop.permute.xlu0 %5137
      %5139 = vrot.lane.b32.xlu0 %v5120, 127
      %v5140 = vpop.permute.xlu0 %5139
      %5141 = vrot.lane.b32.xlu0 %v5121, 127
      %v5142 = vpop.permute.xlu0 %5141
      %v5150 = vmax.f32 %v5115, %v5130
      %v5151 = vmax.f32 %v5116, %v5132
      %v5152 = vmax.f32 %v5117, %v5134
      %v5153 = vmax.f32 %v5118, %v5136
      %v5154 = vmax.f32 %v5119, %v5138
      %v5155 = vmax.f32 %v5120, %v5140
      %v5156 = vmax.f32 %v5121, %v5142
      %5157 = vrot.lane.b32.xlu0 %v5115, 126
      %v5158 = vpop.permute.xlu0 %5157
      %5159 = vrot.lane.b32.xlu0 %v5116, 126
      %v5160 = vpop.permute.xlu0 %5159
      %5161 = vrot.lane.b32.xlu0 %v5117, 126
      %v5162 = vpop.permute.xlu0 %5161
      %5163 = vrot.lane.b32.xlu0 %v5118, 126
      %v5164 = vpop.permute.xlu0 %5163
      %5165 = vrot.lane.b32.xlu0 %v5119, 126
      %v5166 = vpop.permute.xlu0 %5165
      %5167 = vrot.lane.b32.xlu0 %v5120, 126
      %v5168 = vpop.permute.xlu0 %5167
      %5169 = vrot.lane.b32.xlu0 %v5121, 126
      %v5170 = vpop.permute.xlu0 %5169
      %v5178 = vmax.f32 %v5150, %v5158
      %v5179 = vmax.f32 %v5151, %v5160
      %v5180 = vmax.f32 %v5152, %v5162
      %v5181 = vmax.f32 %v5153, %v5164
      %v5182 = vmax.f32 %v5154, %v5166
      %v5183 = vmax.f32 %v5155, %v5168
      %v5184 = vmax.f32 %v5156, %v5170
      %v5185 = vld [vmem:[#allocation9 + $0x1] sm:$0xff]
      %v5186 = vld [vmem:[#allocation9 + $0x9] sm:$0xff]
      %v5187 = vld [vmem:[#allocation9 + $0x11] sm:$0xff]
      %v5188 = vld [vmem:[#allocation9 + $0x19] sm:$0xff]
      %v5189 = vld [vmem:[#allocation9 + $0x21] sm:$0xff]
      %v5190 = vld [vmem:[#allocation9 + $0x29] sm:$0xff]
      %v5191 = vld [vmem:[#allocation9 + $0x31] sm:$0x1]
      %v5192 = vmax.f32 %v5178, %v5185
      %v5193 = vmax.f32 %v5179, %v5186
      %v5194 = vmax.f32 %v5180, %v5187
      %v5195 = vmax.f32 %v5181, %v5188
      %v5196 = vmax.f32 %v5182, %v5189
      %v5197 = vmax.f32 %v5183, %v5190
      %v5198 = vmax.f32 %v5184, %v5191
      %5206 = vrot.lane.b32.xlu0 %v5185, 127
      %v5207 = vpop.permute.xlu0 %5206
      %5208 = vrot.lane.b32.xlu0 %v5186, 127
      %v5209 = vpop.permute.xlu0 %5208
      %5210 = vrot.lane.b32.xlu0 %v5187, 127
      %v5211 = vpop.permute.xlu0 %5210
      %5212 = vrot.lane.b32.xlu0 %v5188, 127
      %v5213 = vpop.permute.xlu0 %5212
      %5214 = vrot.lane.b32.xlu0 %v5189, 127
      %v5215 = vpop.permute.xlu0 %5214
      %5216 = vrot.lane.b32.xlu0 %v5190, 127
      %v5217 = vpop.permute.xlu0 %5216
      %5218 = vrot.lane.b32.xlu0 %v5191, 127
      %v5219 = vpop.permute.xlu0 %5218
      %v5227 = vmax.f32 %v5192, %v5207
      %v5228 = vmax.f32 %v5193, %v5209
      %v5229 = vmax.f32 %v5194, %v5211
      %v5230 = vmax.f32 %v5195, %v5213
      %v5231 = vmax.f32 %v5196, %v5215
      %v5232 = vmax.f32 %v5197, %v5217
      %v5233 = vmax.f32 %v5198, %v5219
      %5234 = vrot.lane.b32.xlu0 %v5185, 126
      %v5235 = vpop.permute.xlu0 %5234
      %5236 = vrot.lane.b32.xlu0 %v5186, 126
      %v5237 = vpop.permute.xlu0 %5236
      %5238 = vrot.lane.b32.xlu0 %v5187, 126
      %v5239 = vpop.permute.xlu0 %5238
      %5240 = vrot.lane.b32.xlu0 %v5188, 126
      %v5241 = vpop.permute.xlu0 %5240
      %5242 = vrot.lane.b32.xlu0 %v5189, 126
      %v5243 = vpop.permute.xlu0 %5242
      %5244 = vrot.lane.b32.xlu0 %v5190, 126
      %v5245 = vpop.permute.xlu0 %5244
      %5246 = vrot.lane.b32.xlu0 %v5191, 126
      %v5247 = vpop.permute.xlu0 %5246
      %v5255 = vmax.f32 %v5227, %v5235
      %v5256 = vmax.f32 %v5228, %v5237
      %v5257 = vmax.f32 %v5229, %v5239
      %v5258 = vmax.f32 %v5230, %v5241
      %v5259 = vmax.f32 %v5231, %v5243
      %v5260 = vmax.f32 %v5232, %v5245
      %v5261 = vmax.f32 %v5233, %v5247
      %v5262 = vld [vmem:[#allocation9 + $0x2] sm:$0xff]
      %v5263 = vld [vmem:[#allocation9 + $0xa] sm:$0xff]
      %v5264 = vld [vmem:[#allocation9 + $0x12] sm:$0xff]
      %v5265 = vld [vmem:[#allocation9 + $0x1a] sm:$0xff]
      %v5266 = vld [vmem:[#allocation9 + $0x22] sm:$0xff]
      %v5267 = vld [vmem:[#allocation9 + $0x2a] sm:$0xff]
      %v5268 = vld [vmem:[#allocation9 + $0x32] sm:$0x1]
      %v5269 = vmax.f32 %v5255, %v5262
      %v5270 = vmax.f32 %v5256, %v5263
      %v5271 = vmax.f32 %v5257, %v5264
      %v5272 = vmax.f32 %v5258, %v5265
      %v5273 = vmax.f32 %v5259, %v5266
      %v5274 = vmax.f32 %v5260, %v5267
      %v5275 = vmax.f32 %v5261, %v5268
      %5283 = vrot.lane.b32.xlu0 %v5262, 127
      %v5284 = vpop.permute.xlu0 %5283
      %5285 = vrot.lane.b32.xlu0 %v5263, 127
      %v5286 = vpop.permute.xlu0 %5285
      %5287 = vrot.lane.b32.xlu0 %v5264, 127
      %v5288 = vpop.permute.xlu0 %5287
      %5289 = vrot.lane.b32.xlu0 %v5265, 127
      %v5290 = vpop.permute.xlu0 %5289
      %5291 = vrot.lane.b32.xlu0 %v5266, 127
      %v5292 = vpop.permute.xlu0 %5291
      %5293 = vrot.lane.b32.xlu0 %v5267, 127
      %v5294 = vpop.permute.xlu0 %5293
      %5295 = vrot.lane.b32.xlu0 %v5268, 127
      %v5296 = vpop.permute.xlu0 %5295
      %v5304 = vmax.f32 %v5269, %v5284
      %v5305 = vmax.f32 %v5270, %v5286
      %v5306 = vmax.f32 %v5271, %v5288
      %v5307 = vmax.f32 %v5272, %v5290
      %v5308 = vmax.f32 %v5273, %v5292
      %v5309 = vmax.f32 %v5274, %v5294
      %v5310 = vmax.f32 %v5275, %v5296
      %5311 = vrot.lane.b32.xlu0 %v5262, 126
      %v5312 = vpop.permute.xlu0 %5311
      %5313 = vrot.lane.b32.xlu0 %v5263, 126
      %v5314 = vpop.permute.xlu0 %5313
      %5315 = vrot.lane.b32.xlu0 %v5264, 126
      %v5316 = vpop.permute.xlu0 %5315
      %5317 = vrot.lane.b32.xlu0 %v5265, 126
      %v5318 = vpop.permute.xlu0 %5317
      %5319 = vrot.lane.b32.xlu0 %v5266, 126
      %v5320 = vpop.permute.xlu0 %5319
      %5321 = vrot.lane.b32.xlu0 %v5267, 126
      %v5322 = vpop.permute.xlu0 %5321
      %5323 = vrot.lane.b32.xlu0 %v5268, 126
      %v5324 = vpop.permute.xlu0 %5323
      %v5332 = vmax.f32 %v5304, %v5312
      %v5333 = vmax.f32 %v5305, %v5314
      %v5334 = vmax.f32 %v5306, %v5316
      %v5335 = vmax.f32 %v5307, %v5318
      %v5336 = vmax.f32 %v5308, %v5320
      %v5337 = vmax.f32 %v5309, %v5322
      %v5338 = vmax.f32 %v5310, %v5324
      %5339 = vst.msk [vmem:[#allocation10 + $0x31] sm:$0xff] %vm4282, %v5332
      %5340 = vst.msk [vmem:[#allocation10 + $0x39] sm:$0xff] %vm4282, %v5333
      %5341 = vst.msk [vmem:[#allocation10 + $0x41] sm:$0xff] %vm4282, %v5334
      %5342 = vst.msk [vmem:[#allocation10 + $0x49] sm:$0xff] %vm4282, %v5335
      %5343 = vst.msk [vmem:[#allocation10 + $0x51] sm:$0xff] %vm4282, %v5336
      %5344 = vst.msk [vmem:[#allocation10 + $0x59] sm:$0xff] %vm4282, %v5337
      %5345 = vst.msk [vmem:[#allocation10 + $0x61] sm:$0x1] %vm4289, %v5338
      %v5346 = vld [vmem:[#allocation10] sm:$0xff]
      %v5347 = vld [vmem:[#allocation10 + $0x8] sm:$0xff]
      %v5348 = vld [vmem:[#allocation10 + $0x10] sm:$0xff]
      %v5349 = vld [vmem:[#allocation10 + $0x18] sm:$0xff]
      %v5350 = vld [vmem:[#allocation10 + $0x20] sm:$0xff]
      %v5351 = vld [vmem:[#allocation10 + $0x28] sm:$0xff]
      %v5352 = vld [vmem:[#allocation10 + $0x30] sm:$0xff]
      %v5353 = vld [vmem:[#allocation10 + $0x38] sm:$0xff]
      %v5354 = vld [vmem:[#allocation10 + $0x40] sm:$0xff]
      %v5355 = vld [vmem:[#allocation10 + $0x48] sm:$0xff]
      %v5356 = vld [vmem:[#allocation10 + $0x50] sm:$0xff]
      %v5357 = vld [vmem:[#allocation10 + $0x58] sm:$0xff]
      %v5358 = vld [vmem:[#allocation10 + $0x60] sm:$0x3]
      %v5359 = vld [vmem:[%s17] sm:$0xff]
      %v5360 = vld [vmem:[%s17 + $0x8] sm:$0xff]
      %v5361 = vld [vmem:[%s17 + $0x10] sm:$0xff]
      %v5362 = vld [vmem:[%s17 + $0x18] sm:$0xff]
      %v5363 = vld [vmem:[%s17 + $0x20] sm:$0xff]
      %v5364 = vld [vmem:[%s17 + $0x28] sm:$0xff]
      %v5365 = vld [vmem:[%s17 + $0x30] sm:$0x1]
      %v5367 = vsel %vm4282, %v5346, 0
      %v5370 = vsel %vm4282, %v5347, 0
      %v5373 = vsel %vm4282, %v5348, 0
      %v5376 = vsel %vm4282, %v5349, 0
      %v5379 = vsel %vm4282, %v5350, 0
      %v5382 = vsel %vm4282, %v5351, 0
      %v5385 = vsel %vm4282, %v5352, 0
      %v5388 = vsel %vm4282, %v5353, 0
      %v5391 = vsel %vm4282, %v5354, 0
      %v5394 = vsel %vm4282, %v5355, 0
      %v5397 = vsel %vm4282, %v5356, 0
      %v5400 = vsel %vm4282, %v5357, 0
      %v5403 = vsel %vm4282, %v5358, 0
      %vm5405 = vcmask 1040384
      %v5407 = vsel %vm5405, %v5365, 0
      %5409 = vmatprep.subr.mxu0 0.0
      %5410 = vmatpush1.msra.mxu0 %v5359
      %5411 = vmatprep.subr.mxu0 0.0
      %5412 = vmatpush1.msra.mxu0 %v5360
      %5413 = vmatprep.subr.mxu0 0.0
      %5414 = vmatpush1.msra.mxu0 %v5361
      %5415 = vmatprep.subr.mxu0 0.0
      %5416 = vmatpush1.msra.mxu0 %v5362
      %5417 = vmatprep.subr.mxu0 0.0
      %5418 = vmatpush1.msra.mxu0 %v5363
      %5419 = vmatprep.subr.mxu0 0.0
      %5420 = vmatpush1.msra.mxu0 %v5364
      %5421 = vmatprep.subr.mxu0 0.0
      %5422 = vmatpush1.msra.mxu0 %v5407
      %5423 = vmatprep.subr.mxu0 0.0
      %5424 = vmatpush1.msra.mxu0 0.0
      %5425 = vmatprep.subr.mxu0 0.0
      %5426 = vmatpush1.msra.mxu0 0.0
      %5427 = vmatprep.subr.mxu0 0.0
      %5428 = vmatpush1.msra.mxu0 0.0
      %5429 = vmatprep.subr.mxu0 0.0
      %5430 = vmatpush1.msra.mxu0 0.0
      %5431 = vmatprep.subr.mxu0 0.0
      %5432 = vmatpush1.msra.mxu0 0.0
      %5433 = vmatprep.subr.mxu0 0.0
      %5434 = vmatpush1.msra.mxu0 0.0
      %5435 = vmatprep.subr.mxu0 0.0
      %5436 = vmatpush1.msra.mxu0 0.0
      %5437 = vmatprep.subr.mxu0 0.0
      %5438 = vmatpush1.msra.mxu0 0.0
      %5439 = vmatprep.subr.mxu0 0.0
      %5440 = vmatpush1.msra.mxu0 0.0
      %5441 = vmatprep.subr.mxu0 0.0
      %5442 = vmatpush1.msra.mxu0 0.0
      %5443 = vmatprep.subr.mxu0 0.0
      %5444 = vmatpush1.msra.mxu0 0.0
      %5445 = vmatprep.subr.mxu0 0.0
      %5446 = vmatpush1.msra.mxu0 0.0
      %5447 = vmatprep.subr.mxu0 0.0
      %5448 = vmatpush1.msra.mxu0 0.0
      %5449 = vmatprep.subr.mxu0 0.0
      %5450 = vmatpush1.msra.mxu0 0.0
      %5451 = vmatprep.subr.mxu0 0.0
      %5452 = vmatpush1.msra.mxu0 0.0
      %5453 = vmatprep.subr.mxu0 0.0
      %5454 = vmatpush1.msra.mxu0 0.0
      %5455 = vmatprep.subr.mxu0 0.0
      %5456 = vmatpush1.msra.mxu0 0.0
      %5457 = vmatprep.subr.mxu0 0.0
      %5458 = vmatpush1.msra.mxu0 0.0
      %5459 = vmatprep.subr.mxu0 0.0
      %5460 = vmatpush1.msra.mxu0 0.0
      %5461 = vmatprep.subr.mxu0 0.0
      %5462 = vmatpush1.msra.mxu0 0.0
      %5463 = vmatprep.subr.mxu0 0.0
      %5464 = vmatpush1.msra.mxu0 0.0
      %5465 = vmatprep.subr.mxu0 0.0
      %5466 = vmatpush1.msra.mxu0 0.0
      %5467 = vmatprep.subr.mxu0 0.0
      %5468 = vmatpush1.msra.mxu0 0.0
      %5469 = vmatprep.subr.mxu0 0.0
      %5470 = vmatpush1.msra.mxu0 0.0
      %5471 = vmatprep.subr.mxu0 0.0
      %5472 = vmatpush1.msra.mxu0 0.0
      %5473 = vmatprep.mubr.f32.mxu0 0.0
      %5474 = vmatmul.mubr.f32.gmra.mrb[0].mxu0 %v5367
      %v5475 = vpop.f32.mrb[0].mxu0
      %v5476 = vadd.f32 0.0, %v5475
      %v5477 = vpop.f32.mrb[0].mxu0
      %5478 = vmatprep.mubr.f32.mxu0 0.0
      %5479 = vmatmul.mubr.f32.gmra.mrb[0].mxu0 %v5370
      %v5480 = vpop.f32.mrb[0].mxu0
      %v5481 = vadd.f32 0.0, %v5480
      %v5482 = vpop.f32.mrb[0].mxu0
      %5483 = vmatprep.mubr.f32.mxu0 0.0
      %5484 = vmatmul.mubr.f32.gmra.mrb[0].mxu0 %v5373
      %v5485 = vpop.f32.mrb[0].mxu0
      %v5486 = vadd.f32 0.0, %v5485
      %v5487 = vpop.f32.mrb[0].mxu0
      %5488 = vmatprep.mubr.f32.mxu0 0.0
      %5489 = vmatmul.mubr.f32.gmra.mrb[0].mxu0 %v5376
      %v5490 = vpop.f32.mrb[0].mxu0
      %v5491 = vadd.f32 0.0, %v5490
      %v5492 = vpop.f32.mrb[0].mxu0
      %5493 = vmatprep.mubr.f32.mxu0 0.0
      %5494 = vmatmul.mubr.f32.gmra.mrb[0].mxu0 %v5379
      %v5495 = vpop.f32.mrb[0].mxu0
      %v5496 = vadd.f32 0.0, %v5495
      %v5497 = vpop.f32.mrb[0].mxu0
      %5498 = vmatprep.mubr.f32.mxu0 0.0
      %5499 = vmatmul.mubr.f32.gmra.mrb[0].mxu0 %v5382
      %v5500 = vpop.f32.mrb[0].mxu0
      %v5501 = vadd.f32 0.0, %v5500
      %v5502 = vpop.f32.mrb[0].mxu0
      %5503 = vmatprep.mubr.f32.mxu0 0.0
      %5504 = vmatmul.mubr.f32.gmra.mrb[0].mxu0 %v5385
      %v5505 = vpop.f32.mrb[0].mxu0
      %v5506 = vadd.f32 0.0, %v5505
      %v5507 = vpop.f32.mrb[0].mxu0
      %5508 = vmatprep.mubr.f32.mxu0 0.0
      %5509 = vmatmul.mubr.f32.gmra.mrb[0].mxu0 %v5388
      %v5510 = vpop.f32.mrb[0].mxu0
      %v5511 = vadd.f32 0.0, %v5510
      %v5512 = vpop.f32.mrb[0].mxu0
      %5513 = vmatprep.mubr.f32.mxu0 0.0
      %5514 = vmatmul.mubr.f32.gmra.mrb[0].mxu0 %v5391
      %v5515 = vpop.f32.mrb[0].mxu0
      %v5516 = vadd.f32 0.0, %v5515
      %v5517 = vpop.f32.mrb[0].mxu0
      %5518 = vmatprep.mubr.f32.mxu0 0.0
      %5519 = vmatmul.mubr.f32.gmra.mrb[0].mxu0 %v5394
      %v5520 = vpop.f32.mrb[0].mxu0
      %v5521 = vadd.f32 0.0, %v5520
      %v5522 = vpop.f32.mrb[0].mxu0
      %5523 = vmatprep.mubr.f32.mxu0 0.0
      %5524 = vmatmul.mubr.f32.gmra.mrb[0].mxu0 %v5397
      %v5525 = vpop.f32.mrb[0].mxu0
      %v5526 = vadd.f32 0.0, %v5525
      %v5527 = vpop.f32.mrb[0].mxu0
      %5528 = vmatprep.mubr.f32.mxu0 0.0
      %5529 = vmatmul.mubr.f32.gmra.mrb[0].mxu0 %v5400
      %v5530 = vpop.f32.mrb[0].mxu0
      %v5531 = vadd.f32 0.0, %v5530
      %v5532 = vpop.f32.mrb[0].mxu0
      %5533 = vmatprep.mubr.f32.mxu0 0.0
      %5534 = vmatmul.mubr.f32.gmra.mrb[0].mxu0 %v5403
      %v5535 = vpop.f32.mrb[0].mxu0
      %v5536 = vadd.f32 0.0, %v5535
      %v5537 = vpop.f32.mrb[0].mxu0
      %5538 = vdwg.mxu0
      %v5539 = vld [vmem:[%s18] sm:$0xff]
      %v5540 = vld [vmem:[%s18 + $0x8] sm:$0xff]
      %v5541 = vld [vmem:[%s18 + $0x10] sm:$0xff]
      %v5542 = vld [vmem:[%s18 + $0x18] sm:$0xff]
      %v5543 = vld [vmem:[%s18 + $0x20] sm:$0x3]
      %vm5544 = vcmask 801792
      %v5546 = vsel %vm5544, %v5539, 0
      %v5549 = vsel %vm5544, %v5540, 0
      %v5552 = vsel %vm5544, %v5541, 0
      %v5555 = vsel %vm5544, %v5542, 0
      %v5558 = vsel %vm5544, %v5543, 0
      %vm5560 = vcmask 1041408
      %v5562 = vsel %vm5560, %v5536, 0
      %5564 = vmatprep.subr.mxu0 0.0
      %5565 = vmatpush1.msra.mxu0 %v5476
      %5566 = vmatprep.subr.mxu0 0.0
      %5567 = vmatpush1.msra.mxu0 %v5481
      %5568 = vmatprep.subr.mxu0 0.0
      %5569 = vmatpush1.msra.mxu0 %v5486
      %5570 = vmatprep.subr.mxu0 0.0
      %5571 = vmatpush1.msra.mxu0 %v5491
      %5572 = vmatprep.subr.mxu0 0.0
      %5573 = vmatpush1.msra.mxu0 %v5496
      %5574 = vmatprep.subr.mxu0 0.0
      %5575 = vmatpush1.msra.mxu0 %v5501
      %5576 = vmatprep.subr.mxu0 0.0
      %5577 = vmatpush1.msra.mxu0 %v5506
      %5578 = vmatprep.subr.mxu0 0.0
      %5579 = vmatpush1.msra.mxu0 %v5511
      %5580 = vmatprep.subr.mxu0 0.0
      %5581 = vmatpush1.msra.mxu0 %v5516
      %5582 = vmatprep.subr.mxu0 0.0
      %5583 = vmatpush1.msra.mxu0 %v5521
      %5584 = vmatprep.subr.mxu0 0.0
      %5585 = vmatpush1.msra.mxu0 %v5526
      %5586 = vmatprep.subr.mxu0 0.0
      %5587 = vmatpush1.msra.mxu0 %v5531
      %5588 = vmatprep.subr.mxu0 0.0
      %5589 = vmatpush1.msra.mxu0 %v5562
      %5590 = vmatprep.subr.mxu0 0.0
      %5591 = vmatpush1.msra.mxu0 0.0
      %5592 = vmatprep.subr.mxu0 0.0
      %5593 = vmatpush1.msra.mxu0 0.0
      %5594 = vmatprep.subr.mxu0 0.0
      %5595 = vmatpush1.msra.mxu0 0.0
      %5596 = vmatprep.subr.mxu0 0.0
      %5597 = vmatpush1.msra.mxu0 0.0
      %5598 = vmatprep.subr.mxu0 0.0
      %5599 = vmatpush1.msra.mxu0 0.0
      %5600 = vmatprep.subr.mxu0 0.0
      %5601 = vmatpush1.msra.mxu0 0.0
      %5602 = vmatprep.subr.mxu0 0.0
      %5603 = vmatpush1.msra.mxu0 0.0
      %5604 = vmatprep.subr.mxu0 0.0
      %5605 = vmatpush1.msra.mxu0 0.0
      %5606 = vmatprep.subr.mxu0 0.0
      %5607 = vmatpush1.msra.mxu0 0.0
      %5608 = vmatprep.subr.mxu0 0.0
      %5609 = vmatpush1.msra.mxu0 0.0
      %5610 = vmatprep.subr.mxu0 0.0
      %5611 = vmatpush1.msra.mxu0 0.0
      %5612 = vmatprep.subr.mxu0 0.0
      %5613 = vmatpush1.msra.mxu0 0.0
      %5614 = vmatprep.subr.mxu0 0.0
      %5615 = vmatpush1.msra.mxu0 0.0
      %5616 = vmatprep.subr.mxu0 0.0
      %5617 = vmatpush1.msra.mxu0 0.0
      %5618 = vmatprep.subr.mxu0 0.0
      %5619 = vmatpush1.msra.mxu0 0.0
      %5620 = vmatprep.subr.mxu0 0.0
      %5621 = vmatpush1.msra.mxu0 0.0
      %5622 = vmatprep.subr.mxu0 0.0
      %5623 = vmatpush1.msra.mxu0 0.0
      %5624 = vmatprep.subr.mxu0 0.0
      %5625 = vmatpush1.msra.mxu0 0.0
      %5626 = vmatprep.subr.mxu0 0.0
      %5627 = vmatpush1.msra.mxu0 0.0
      %5628 = vmatprep.mubr.f32.mxu0 0.0
      %5629 = vmatmul.mubr.f32.gmra.mrb[0].mxu0 %v5546
      %v5630 = vpop.f32.mrb[0].mxu0
      %v5631 = vadd.f32 0.0, %v5630
      %v5632 = vpop.f32.mrb[0].mxu0
      %5633 = vmatprep.mubr.f32.mxu0 0.0
      %5634 = vmatmul.mubr.f32.gmra.mrb[0].mxu0 %v5549
      %v5635 = vpop.f32.mrb[0].mxu0
      %v5636 = vadd.f32 0.0, %v5635
      %v5637 = vpop.f32.mrb[0].mxu0
      %5638 = vmatprep.mubr.f32.mxu0 0.0
      %5639 = vmatmul.mubr.f32.gmra.mrb[0].mxu0 %v5552
      %v5640 = vpop.f32.mrb[0].mxu0
      %v5641 = vadd.f32 0.0, %v5640
      %v5642 = vpop.f32.mrb[0].mxu0
      %5643 = vmatprep.mubr.f32.mxu0 0.0
      %5644 = vmatmul.mubr.f32.gmra.mrb[0].mxu0 %v5555
      %v5645 = vpop.f32.mrb[0].mxu0
      %v5646 = vadd.f32 0.0, %v5645
      %v5647 = vpop.f32.mrb[0].mxu0
      %5648 = vmatprep.mubr.f32.mxu0 0.0
      %5649 = vmatmul.mubr.f32.gmra.mrb[0].mxu0 %v5558
      %v5650 = vpop.f32.mrb[0].mxu0
      %v5651 = vadd.f32 0.0, %v5650
      %v5652 = vpop.f32.mrb[0].mxu0
      %5653 = vdwg.mxu0
      %5656 = vrot.lane.b32.xlu0 %v5631, 127
      %v5657 = vpop.permute.xlu0 %5656
      %5658 = vrot.lane.b32.xlu0 %v5636, 127
      %v5659 = vpop.permute.xlu0 %5658
      %v5662 = vmax.f32 %v5631, %v5657
      %v5663 = vmax.f32 %v5636, %v5659
      %vm5665 = vcmask 1046528
      %v5666 = vrot.slane %v5631, 1
      %v5667 = vrot.slane %v5636, 1
      %v5668 = vsel %vm5665, %v5666, %v5667
      %v5669 = vrot.slane %v5641, 1
      %v5670 = vsel %vm5665, %v5667, %v5669
      %v5673 = vmax.f32 %v5662, %v5668
      %v5674 = vmax.f32 %v5663, %v5670
      %5675 = vrot.lane.b32.xlu0 %v5668, 127
      %v5676 = vpop.permute.xlu0 %5675
      %5677 = vrot.lane.b32.xlu0 %v5670, 127
      %v5678 = vpop.permute.xlu0 %5677
      %v5681 = vmax.f32 %v5673, %v5676
      %v5682 = vmax.f32 %v5674, %v5678
      %vm5683 = vcmask 130048
      %5684 = vst.msk [vmem:[#allocation11] sm:$0xff] %vm5683, %v5681
      %5685 = vst.msk [vmem:[#allocation11 + $0x8] sm:$0xff] %vm5683, %v5682
      %5688 = vrot.lane.b32.xlu0 %v5641, 127
      %v5689 = vpop.permute.xlu0 %5688
      %5690 = vrot.lane.b32.xlu0 %v5646, 127
      %v5691 = vpop.permute.xlu0 %5690
      %5692 = vrot.lane.b32.xlu0 %v5651, 127
      %v5693 = vpop.permute.xlu0 %5692
      %v5697 = vmax.f32 %v5641, %v5689
      %v5698 = vmax.f32 %v5646, %v5691
      %v5699 = vmax.f32 %v5651, %v5693
      %v5700 = vrot.slane %v5646, 1
      %v5701 = vsel %vm5665, %v5669, %v5700
      %v5702 = vrot.slane %v5651, 1
      %v5703 = vsel %vm5665, %v5700, %v5702
      %v5707 = vmax.f32 %v5697, %v5701
      %v5708 = vmax.f32 %v5698, %v5703
      %v5709 = vmax.f32 %v5699, %v5702
      %5710 = vrot.lane.b32.xlu0 %v5701, 127
      %v5711 = vpop.permute.xlu0 %5710
      %5712 = vrot.lane.b32.xlu0 %v5703, 127
      %v5713 = vpop.permute.xlu0 %5712
      %5714 = vrot.lane.b32.xlu0 %v5702, 127
      %v5715 = vpop.permute.xlu0 %5714
      %v5719 = vmax.f32 %v5707, %v5711
      %v5720 = vmax.f32 %v5708, %v5713
      %v5721 = vmax.f32 %v5709, %v5715
      %vm5722 = vcmask 130049
      %5723 = vst.msk [vmem:[#allocation11 + $0xf] sm:$0xfe] %vm5722, %v5719
      %5724 = vst.msk [vmem:[#allocation11 + $0x17] sm:$0xff] %vm5683, %v5720
      %vm5725 = vcmask 122880
      %5726 = vst.msk [vmem:[#allocation11 + $0x1f] sm:$0x1] %vm5725, %v5721
      %v5727 = vld [vmem:[#allocation11] sm:$0xff]
      %v5728 = vld [vmem:[#allocation11 + $0x8] sm:$0xff]
      %v5729 = vld [vmem:[#allocation11 + $0x10] sm:$0xff]
      %v5730 = vld [vmem:[#allocation11 + $0x18] sm:$0xff]
      %v5731 = vld [vmem:[%s19] sm:$0xff]
      %v5732 = vld [vmem:[%s19 + $0x8] sm:$0xff]
      %v5734 = vsel %vm5683, %v5727, 0
      %v5737 = vsel %vm5683, %v5728, 0
      %v5740 = vsel %vm5683, %v5729, 0
      %v5743 = vsel %vm5683, %v5730, 0
      %5745 = vmatprep.subr.mxu0 0.0
      %5746 = vmatpush1.msra.mxu0 %v5731
      %5747 = vmatprep.subr.mxu0 0.0
      %5748 = vmatpush1.msra.mxu0 %v5732
      %5749 = vmatprep.subr.mxu0 0.0
      %5750 = vmatpush1.msra.mxu0 0.0
      %5751 = vmatprep.subr.mxu0 0.0
      %5752 = vmatpush1.msra.mxu0 0.0
      %5753 = vmatprep.subr.mxu0 0.0
      %5754 = vmatpush1.msra.mxu0 0.0
      %5755 = vmatprep.subr.mxu0 0.0
      %5756 = vmatpush1.msra.mxu0 0.0
      %5757 = vmatprep.subr.mxu0 0.0
      %5758 = vmatpush1.msra.mxu0 0.0
      %5759 = vmatprep.subr.mxu0 0.0
      %5760 = vmatpush1.msra.mxu0 0.0
      %5761 = vmatprep.subr.mxu0 0.0
      %5762 = vmatpush1.msra.mxu0 0.0
      %5763 = vmatprep.subr.mxu0 0.0
      %5764 = vmatpush1.msra.mxu0 0.0
      %5765 = vmatprep.subr.mxu0 0.0
      %5766 = vmatpush1.msra.mxu0 0.0
      %5767 = vmatprep.subr.mxu0 0.0
      %5768 = vmatpush1.msra.mxu0 0.0
      %5769 = vmatprep.subr.mxu0 0.0
      %5770 = vmatpush1.msra.mxu0 0.0
      %5771 = vmatprep.subr.mxu0 0.0
      %5772 = vmatpush1.msra.mxu0 0.0
      %5773 = vmatprep.subr.mxu0 0.0
      %5774 = vmatpush1.msra.mxu0 0.0
      %5775 = vmatprep.subr.mxu0 0.0
      %5776 = vmatpush1.msra.mxu0 0.0
      %5777 = vmatprep.subr.mxu0 0.0
      %5778 = vmatpush1.msra.mxu0 0.0
      %5779 = vmatprep.subr.mxu0 0.0
      %5780 = vmatpush1.msra.mxu0 0.0
      %5781 = vmatprep.subr.mxu0 0.0
      %5782 = vmatpush1.msra.mxu0 0.0
      %5783 = vmatprep.subr.mxu0 0.0
      %5784 = vmatpush1.msra.mxu0 0.0
      %5785 = vmatprep.subr.mxu0 0.0
      %5786 = vmatpush1.msra.mxu0 0.0
      %5787 = vmatprep.subr.mxu0 0.0
      %5788 = vmatpush1.msra.mxu0 0.0
      %5789 = vmatprep.subr.mxu0 0.0
      %5790 = vmatpush1.msra.mxu0 0.0
      %5791 = vmatprep.subr.mxu0 0.0
      %5792 = vmatpush1.msra.mxu0 0.0
      %5793 = vmatprep.subr.mxu0 0.0
      %5794 = vmatpush1.msra.mxu0 0.0
      %5795 = vmatprep.subr.mxu0 0.0
      %5796 = vmatpush1.msra.mxu0 0.0
      %5797 = vmatprep.subr.mxu0 0.0
      %5798 = vmatpush1.msra.mxu0 0.0
      %5799 = vmatprep.subr.mxu0 0.0
      %5800 = vmatpush1.msra.mxu0 0.0
      %5801 = vmatprep.subr.mxu0 0.0
      %5802 = vmatpush1.msra.mxu0 0.0
      %5803 = vmatprep.subr.mxu0 0.0
      %5804 = vmatpush1.msra.mxu0 0.0
      %5805 = vmatprep.subr.mxu0 0.0
      %5806 = vmatpush1.msra.mxu0 0.0
      %5807 = vmatprep.subr.mxu0 0.0
      %5808 = vmatpush1.msra.mxu0 0.0
      %5809 = vmatprep.mubr.f32.mxu0 0.0
      %5810 = vmatmul.mubr.f32.gmra.mrb[0].mxu0 %v5734
      %v5811 = vpop.f32.mrb[0].mxu0
      %v5812 = vadd.f32 0.0, %v5811
      %v5813 = vpop.f32.mrb[0].mxu0
      %5814 = vmatprep.mubr.f32.mxu0 0.0
      %5815 = vmatmul.mubr.f32.gmra.mrb[0].mxu0 %v5737
      %v5816 = vpop.f32.mrb[0].mxu0
      %v5817 = vadd.f32 0.0, %v5816
      %v5818 = vpop.f32.mrb[0].mxu0
      %5819 = vmatprep.mubr.f32.mxu0 0.0
      %5820 = vmatmul.mubr.f32.gmra.mrb[0].mxu0 %v5740
      %v5821 = vpop.f32.mrb[0].mxu0
      %v5822 = vadd.f32 0.0, %v5821
      %v5823 = vpop.f32.mrb[0].mxu0
      %5824 = vmatprep.mubr.f32.mxu0 0.0
      %5825 = vmatmul.mubr.f32.gmra.mrb[0].mxu0 %v5743
      %v5826 = vpop.f32.mrb[0].mxu0
      %v5827 = vadd.f32 0.0, %v5826
      %v5828 = vpop.f32.mrb[0].mxu0
      %5829 = vdwg.mxu0
      %v5830 = vld [vmem:[%s20] sm:$0xff]
      %v5831 = vld [vmem:[%s20 + $0x8] sm:$0xff]
      %vm5832 = vcmask 261120
      %v5834 = vsel %vm5832, %v5830, 0
      %v5837 = vsel %vm5832, %v5831, 0
      %5839 = vmatprep.subr.mxu0 0.0
      %5840 = vmatpush1.msra.mxu0 %v5812
      %5841 = vmatprep.subr.mxu0 0.0
      %5842 = vmatpush1.msra.mxu0 %v5817
      %5843 = vmatprep.subr.mxu0 0.0
      %5844 = vmatpush1.msra.mxu0 %v5822
      %5845 = vmatprep.subr.mxu0 0.0
      %5846 = vmatpush1.msra.mxu0 %v5827
      %5847 = vmatprep.subr.mxu0 0.0
      %5848 = vmatpush1.msra.mxu0 0.0
      %5849 = vmatprep.subr.mxu0 0.0
      %5850 = vmatpush1.msra.mxu0 0.0
      %5851 = vmatprep.subr.mxu0 0.0
      %5852 = vmatpush1.msra.mxu0 0.0
      %5853 = vmatprep.subr.mxu0 0.0
      %5854 = vmatpush1.msra.mxu0 0.0
      %5855 = vmatprep.subr.mxu0 0.0
      %5856 = vmatpush1.msra.mxu0 0.0
      %5857 = vmatprep.subr.mxu0 0.0
      %5858 = vmatpush1.msra.mxu0 0.0
      %5859 = vmatprep.subr.mxu0 0.0
      %5860 = vmatpush1.msra.mxu0 0.0
      %5861 = vmatprep.subr.mxu0 0.0
      %5862 = vmatpush1.msra.mxu0 0.0
      %5863 = vmatprep.subr.mxu0 0.0
      %5864 = vmatpush1.msra.mxu0 0.0
      %5865 = vmatprep.subr.mxu0 0.0
      %5866 = vmatpush1.msra.mxu0 0.0
      %5867 = vmatprep.subr.mxu0 0.0
      %5868 = vmatpush1.msra.mxu0 0.0
      %5869 = vmatprep.subr.mxu0 0.0
      %5870 = vmatpush1.msra.mxu0 0.0
      %5871 = vmatprep.subr.mxu0 0.0
      %5872 = vmatpush1.msra.mxu0 0.0
      %5873 = vmatprep.subr.mxu0 0.0
      %5874 = vmatpush1.msra.mxu0 0.0
      %5875 = vmatprep.subr.mxu0 0.0
      %5876 = vmatpush1.msra.mxu0 0.0
      %5877 = vmatprep.subr.mxu0 0.0
      %5878 = vmatpush1.msra.mxu0 0.0
      %5879 = vmatprep.subr.mxu0 0.0
      %5880 = vmatpush1.msra.mxu0 0.0
      %5881 = vmatprep.subr.mxu0 0.0
      %5882 = vmatpush1.msra.mxu0 0.0
      %5883 = vmatprep.subr.mxu0 0.0
      %5884 = vmatpush1.msra.mxu0 0.0
      %5885 = vmatprep.subr.mxu0 0.0
      %5886 = vmatpush1.msra.mxu0 0.0
      %5887 = vmatprep.subr.mxu0 0.0
      %5888 = vmatpush1.msra.mxu0 0.0
      %5889 = vmatprep.subr.mxu0 0.0
      %5890 = vmatpush1.msra.mxu0 0.0
      %5891 = vmatprep.subr.mxu0 0.0
      %5892 = vmatpush1.msra.mxu0 0.0
      %5893 = vmatprep.subr.mxu0 0.0
      %5894 = vmatpush1.msra.mxu0 0.0
      %5895 = vmatprep.subr.mxu0 0.0
      %5896 = vmatpush1.msra.mxu0 0.0
      %5897 = vmatprep.subr.mxu0 0.0
      %5898 = vmatpush1.msra.mxu0 0.0
      %5899 = vmatprep.subr.mxu0 0.0
      %5900 = vmatpush1.msra.mxu0 0.0
      %5901 = vmatprep.subr.mxu0 0.0
      %5902 = vmatpush1.msra.mxu0 0.0
      %5903 = vmatprep.mubr.f32.mxu0 0.0
      %5904 = vmatmul.mubr.f32.gmra.mrb[0].mxu0 %v5834
      %v5905 = vpop.f32.mrb[0].mxu0
      %v5906 = vadd.f32 0.0, %v5905
      %v5907 = vpop.f32.mrb[0].mxu0
      %5908 = vmatprep.mubr.f32.mxu0 0.0
      %5909 = vmatmul.mubr.f32.gmra.mrb[0].mxu0 %v5837
      %v5910 = vpop.f32.mrb[0].mxu0
      %v5911 = vadd.f32 0.0, %v5910
      %v5912 = vpop.f32.mrb[0].mxu0
      %5913 = vdwg.mxu0
      %s5914 = smul.u32 %s3974, 32
      %s5915 = scalar_lea.vmem %s13, %s5914
      %v5916 = vld [vmem:[%s5915] sm:$0xff]
      %v5917 = vmul.f32 %v5906, %v5916
      %vm5918 = vcmask 64512
      %v5919 = vsel %vm5918, %v5917, 0.0
      %5920 = vadd.xlane.f32.xlu0 %v5919
      %v5921 = vpop.xlane.xlu0 %5920
      %v5922 = vrot.slane %v5921, 4
      %v5923 = vadd.f32 %v5921, %v5922
      %v5924 = vrot.slane %v5923, 2
      %v5925 = vadd.f32 %v5923, %v5924
      %v5926 = vrot.slane %v5925, 1
      %v5927 = vadd.f32 %v5925, %v5926
      %s5928 = vtos %v5927
      %v5929 = vstv %s5928
      %v5930 = vmul.f32 %v5929, %v3954
      %v5931 = vadd.f32 %v3979, %v5930
      %s5932 = sadd.s32 8, %s5914
      %s5933 = scalar_lea.vmem %s13, %s5932
      %v5934 = vld [vmem:[%s5933] sm:$0xff]
      %v5935 = vmul.f32 %v5906, %v5934
      %v5936 = vsel %vm5918, %v5935, 0.0
      %5937 = vadd.xlane.f32.xlu0 %v5936
      %v5938 = vpop.xlane.xlu0 %5937
      %v5939 = vrot.slane %v5938, 4
      %v5940 = vadd.f32 %v5938, %v5939
      %v5941 = vrot.slane %v5940, 2
      %v5942 = vadd.f32 %v5940, %v5941
      %v5943 = vrot.slane %v5942, 1
      %v5944 = vadd.f32 %v5942, %v5943
      %s5945 = vtos %v5944
      %v5946 = vstv %s5945
      %v5947 = vmul.f32 %v5946, %v3957
      %v5948 = vadd.f32 %v5931, %v5947
      %s5949 = sadd.s32 16, %s5914
      %s5950 = scalar_lea.vmem %s13, %s5949
      %v5951 = vld [vmem:[%s5950] sm:$0xff]
      %v5952 = vmul.f32 %v5906, %v5951
      %v5953 = vsel %vm5918, %v5952, 0.0
      %5954 = vadd.xlane.f32.xlu0 %v5953
      %v5955 = vpop.xlane.xlu0 %5954
      %v5956 = vrot.slane %v5955, 4
      %v5957 = vadd.f32 %v5955, %v5956
      %v5958 = vrot.slane %v5957, 2
      %v5959 = vadd.f32 %v5957, %v5958
      %v5960 = vrot.slane %v5959, 1
      %v5961 = vadd.f32 %v5959, %v5960
      %s5962 = vtos %v5961
      %v5963 = vstv %s5962
      %v5964 = vmul.f32 %v5963, %v3960
      %v5965 = vadd.f32 %v5948, %v5964
      %s5966 = sadd.s32 24, %s5914
      %s5967 = scalar_lea.vmem %s13, %s5966
      %v5968 = vld [vmem:[%s5967] sm:$0xff]
      %v5969 = vmul.f32 %v5906, %v5968
      %v5970 = vsel %vm5918, %v5969, 0.0
      %5971 = vadd.xlane.f32.xlu0 %v5970
      %v5972 = vpop.xlane.xlu0 %5971
      %v5973 = vrot.slane %v5972, 4
      %v5974 = vadd.f32 %v5972, %v5973
      %v5975 = vrot.slane %v5974, 2
      %v5976 = vadd.f32 %v5974, %v5975
      %v5977 = vrot.slane %v5976, 1
      %v5978 = vadd.f32 %v5976, %v5977
      %s5979 = vtos %v5978
      %v5980 = vstv %s5979
      %v5981 = vmul.f32 %v5980, %v3963
      %v5982 = vadd.f32 %v5965, %v5981
      %v5983 = vmul.f32 %v5911, %v5916
      %v5984 = vsel %vm5918, %v5983, 0.0
      %5985 = vadd.xlane.f32.xlu0 %v5984
      %v5986 = vpop.xlane.xlu0 %5985
      %v5987 = vrot.slane %v5986, 4
      %v5988 = vadd.f32 %v5986, %v5987
      %v5989 = vrot.slane %v5988, 2
      %v5990 = vadd.f32 %v5988, %v5989
      %v5991 = vrot.slane %v5990, 1
      %v5992 = vadd.f32 %v5990, %v5991
      %s5993 = vtos %v5992
      %v5994 = vstv %s5993
      %v5995 = vmul.f32 %v5994, %v3966
      %v5996 = vadd.f32 %v5982, %v5995
      %v5997 = vmul.f32 %v5911, %v5934
      %v5998 = vsel %vm5918, %v5997, 0.0
      %5999 = vadd.xlane.f32.xlu0 %v5998
      %v6000 = vpop.xlane.xlu0 %5999
      %v6001 = vrot.slane %v6000, 4
      %v6002 = vadd.f32 %v6000, %v6001
      %v6003 = vrot.slane %v6002, 2
      %v6004 = vadd.f32 %v6002, %v6003
      %v6005 = vrot.slane %v6004, 1
      %v6006 = vadd.f32 %v6004, %v6005
      %s6007 = vtos %v6006
      %v6008 = vstv %s6007
      %v6009 = vmul.f32 %v6008, %v3968
      %v6010 = vadd.f32 %v5996, %v6009
      %v6011 = vmul.f32 %v5911, %v5951
      %v6012 = vsel %vm5918, %v6011, 0.0
      %6013 = vadd.xlane.f32.xlu0 %v6012
      %v6014 = vpop.xlane.xlu0 %6013
      %v6015 = vrot.slane %v6014, 4
      %v6016 = vadd.f32 %v6014, %v6015
      %v6017 = vrot.slane %v6016, 2
      %v6018 = vadd.f32 %v6016, %v6017
      %v6019 = vrot.slane %v6018, 1
      %v6020 = vadd.f32 %v6018, %v6019
      %s6021 = vtos %v6020
      %v6022 = vstv %s6021
      %v6023 = vmul.f32 %v6022, %v3970
      %v6024 = vadd.f32 %v6010, %v6023
      %v6025 = vmul.f32 %v5911, %v5968
      %v6026 = vsel %vm5918, %v6025, 0.0
      %6027 = vadd.xlane.f32.xlu0 %v6026
      %v6028 = vpop.xlane.xlu0 %6027
      %v6029 = vrot.slane %v6028, 4
      %v6030 = vadd.f32 %v6028, %v6029
      %v6031 = vrot.slane %v6030, 2
      %v6032 = vadd.f32 %v6030, %v6031
      %v6033 = vrot.slane %v6032, 1
      %v6034 = vadd.f32 %v6032, %v6033
      %s6035 = vtos %v6034
      %v6036 = vstv %s6035
      %v6037 = vmul.f32 %v6036, %v3972
      %v6038 = vadd.f32 %v6024, %v6037
    $region159: #{_lambda_.1} parent=1 // loop_footer
      %s3978 = sadd.s32 1, %s3974
    $region160: #{_lambda_.1} parent=1 // loop_footer_branch
      %3973 = sbr.rel target = $region156
    $region161: #{_lambda_.1} parent=1 // loop_exit
      _
    %v6039 = vld [vmem:[%s14] sm:$0x1]
    %v6041 = vlaneseq
    %v6042 = vshrl.u32 %v6041, 7
    %v6043 = vsub.s32 0, %v6042
    %v6044 = vrot.slane %v6039, %v6043
    %v6046 = vadd.f32 %v3979, %v6044
    %vm6047 = vcmask 25600
    %6048 = vst.msk [vmem:[#allocation32] sm:$0x3] %vm6047, %v6046
    // Predicated region
    $region162: #{_lambda_.1} parent=1 // pred_check
      _
    $region163: #{_lambda_.1} parent=1 // pred_check_branch
      %6050 = sbr.rel (0) target = $region165
    $region164: #{_lambda_.1} parent=1 // pred_region
      %s6052 = ssub.s32 32, 32
      %6053 = vsyncadd [#allocation13], %s6052
      %s6055 = sshll.u32 [#allocation32], 4
      %s6056 = int_to_ptr.vmem [resolvable:$true] %s6055
      %6058 = dma.vmem_to_hbm [thread:$0]  %s6056, 32, %s21, [#allocation13]
    $region165: #{_lambda_.1} parent=1 // pred_fallthru
      _
    // Predicated region
    $region166: #{_lambda_.1} parent=1 // pred_check
      _
    $region167: #{_lambda_.1} parent=1 // pred_check_branch
      %6060 = sbr.rel (0) target = $region169
    $region168: #{_lambda_.1} parent=1 // pred_region
      %6061 = dma.done [#allocation13], 32
    $region169: #{_lambda_.1} parent=1 // pred_fallthru
      _
    %6062 = vsyncpa [#allocation13], 1
    %6063 = vsyncpa [#allocation14], 1
    %6064 = vsyncpa [#allocation16], 1
    %6065 = vsyncpa [#allocation19], 1
    %6066 = vsyncpa [#allocation22], 1
    %6067 = vsyncpa [#allocation25], 1
    %6068 = vsyncpa [#allocation28], 1
    %6069 = vsyncpa [#allocation31], 1

</llo_original>
